<compile_context>
chip_gen: v7x
topology: tpu7x:2x2x1
jax: 0.10.0
libtpu: 0.0.40
codegen_flags: <defaults>
</compile_context>

<pallas_src>
import math

import jax
import jax.numpy as jnp
from jax import lax
from jax.experimental import pallas as pl
from jax.experimental.pallas import tpu as pltpu

# ----------------------------------------------------------------------------- config
INPUT_H, INPUT_W = 24, 32          # module defaults (input_height=24, input_width=32)
BATCH = 2
NUM_HISTORY = 3                    # total frames per sample (last one is "current")
SP_LAST_CHANNEL = 32               # spatial encoder last_channel
SP_UPSAMPLE = 2
KP_LAST_CHANNEL = 21               # keypoints encoder last_channel (fixed by model)
KP_UPSAMPLE = 1
NUM_HEAD = 2
DIM_FEEDFORWARD = 64
NUM_LAYERS = 2
NUM_TEMPORAL_BLOCKS = 2

CONV1_CH = 16                      # hidden channels of first conv (per encoder)
CONV2_CH = 32                      # hidden channels of second conv (per encoder)

# Derived feature-map geometry (two stride-2 3x3 convs, then upsample)
OH1, OW1 = INPUT_H // 2, INPUT_W // 2                                        # 12, 16
OH2, OW2 = INPUT_H // 4, INPUT_W // 4                                        # 6, 8
SP_H, SP_W = OH2 * SP_UPSAMPLE, OW2 * SP_UPSAMPLE                            # 12, 16
KP_H, KP_W = OH2 * KP_UPSAMPLE, OW2 * KP_UPSAMPLE                            # 6, 8
D_MODEL = KP_H * KP_W                                                        # 48
SP_TOKENS = SP_H * SP_W                                                      # 192 (upsampled)
KV_TOKENS = OH2 * OW2                                                        # 48 (unique tokens)
HEAD_DIM = D_MODEL // NUM_HEAD                                               # 24


# ================================================================== in-kernel helpers
def _layernorm(x, g, b, eps=1e-5):
    mu = jnp.mean(x, axis=-1, keepdims=True)
    var = jnp.mean(jnp.square(x - mu), axis=-1, keepdims=True)
    return (x - mu) * lax.rsqrt(var + eps) * g + b


# ============================================ kernel 1: conv1 of both encoders, grid-less
def _conv1_kernel(cols_all_ref, cols_cur_ref, wkp_ref, bkp_ref, wsp_ref, bsp_ref,
                  okp_ref, osp_ref):
    # keypoints encoder conv1 on ALL frames — one long matmul, one MXU push sequence
    ykp = jnp.dot(cols_all_ref[...], wkp_ref[...],
                  preferred_element_type=jnp.float32) + bkp_ref[...]
    okp_ref[...] = jnp.clip(ykp, 0.0, 6.0).astype(okp_ref.dtype)           # ReLU6, bf16 out
    # spatial encoder conv1 only on the current frames (history spatial half is unused)
    ysp = jnp.dot(cols_cur_ref[...], wsp_ref[...],
                  preferred_element_type=jnp.float32) + bsp_ref[...]
    osp_ref[...] = jnp.clip(ysp, 0.0, 6.0).astype(osp_ref.dtype)


def conv1_fused(cols_all, cols_cur, wkp, bkp, wsp, bsp):
    """cols_all: (B*T*P1, 9) bf16; cols_cur: (B*P1, 9) bf16."""
    out_shape = (
        jax.ShapeDtypeStruct((cols_all.shape[0], wkp.shape[1]), jnp.bfloat16),
        jax.ShapeDtypeStruct((cols_cur.shape[0], wsp.shape[1]), jnp.bfloat16),
    )
    return pl.pallas_call(_conv1_kernel, out_shape=out_shape)(
        cols_all, cols_cur, wkp, bkp, wsp, bsp)


# ================= kernel 2: spatial conv2+conv3  &  keypoints conv2+conv3+graph, merged
def _conv23_kernel(cols_sp_ref, cols_kp_ref,
                   spw2_ref, spb2_ref, spw3_ref, spb3_ref,
                   kpw2_ref, kpb2_ref, kpw3_ref, kpb3_ref, adj_ref,
                   osp_ref, okp_ref):
    # spatial encoder tail: 3x3/s2 conv + 1x1 conv (both ReLU6)
    y = jnp.dot(cols_sp_ref[...], spw2_ref[...],
                preferred_element_type=jnp.float32) + spb2_ref[...]
    y = jnp.clip(y, 0.0, 6.0)
    y = jnp.dot(y.astype(jnp.bfloat16), spw3_ref[...],
                preferred_element_type=jnp.float32) + spb3_ref[...]
    osp_ref[...] = jnp.clip(y, 0.0, 6.0)
    # keypoints encoder tail + cross-keypoints graph fusion (A @ chan-major == y @ A^T)
    z = jnp.dot(cols_kp_ref[...], kpw2_ref[...],
                preferred_element_type=jnp.float32) + kpb2_ref[...]
    z = jnp.clip(z, 0.0, 6.0)
    z = jnp.dot(z.astype(jnp.bfloat16), kpw3_ref[...],
                preferred_element_type=jnp.float32) + kpb3_ref[...]
    z = jnp.clip(z, 0.0, 6.0)
    okp_ref[...] = jnp.dot(z.astype(jnp.bfloat16), adj_ref[...],
                           preferred_element_type=jnp.float32)


def conv23_fused(cols_sp, cols_kp, p):
    """cols_sp: (B*48, 144) bf16; cols_kp: (B*T*48, 144) bf16."""
    out_shape = (
        jax.ShapeDtypeStruct((cols_sp.shape[0], SP_LAST_CHANNEL), jnp.float32),
        jax.ShapeDtypeStruct((cols_kp.shape[0], KP_LAST_CHANNEL), jnp.float32),
    )
    return pl.pallas_call(_conv23_kernel, out_shape=out_shape)(
        cols_sp, cols_kp,
        p["sp_w2"], p["sp_b2"], p["sp_w3"], p["sp_b3"],
        p["kp_w2"], p["kp_b2"], p["kp_w3"], p["kp_b3"], p["adj_t"])


# ====== kernel 3: temporal-fusion blocks + transformer cross-attention + decoder (fused)
def _tapor_head_kernel(
    fused_ref, kv_ref,
    tw_ref, tb_ref,
    wq_ref, bq_ref, wk_ref, bk_ref, wv_ref, bv_ref, wo_ref, bo_ref,
    ln1g_ref, ln1b_ref, fw1_ref, fb1_ref, fw2_ref, fb2_ref, ln2g_ref, ln2b_ref,
    dw1_ref, db1_ref, dw2_ref, db2_ref,
    kp_ref, hp_ref, attn_ref,
):
    # ---- temporal keypoints fusion: residual MLP blocks on the softmax-weighted sum
    x = fused_ref[0]                                         # (21, D_MODEL) f32
    for i in range(NUM_TEMPORAL_BLOCKS):
        h = jnp.dot(x.astype(jnp.bfloat16), tw_ref[i],
                    preferred_element_type=jnp.float32) + tb_ref[i]
        x = jnp.maximum(h, 0.0) + x
    kp_ref[0] = x                                            # kp_feat output (pre-transformer)

    # ---- transformer cross-attention layers: 21 keypoint queries over the 48 unique
    #      pre-upsample spatial tokens (exact: upsampled keys/values are duplicates).
    kv = kv_ref[0]                                           # (KV_TOKENS, kv_dim) bf16
    scale = 1.0 / math.sqrt(HEAD_DIM)
    attn_avg = jnp.zeros((21, KV_TOKENS), jnp.float32)
    for l in range(NUM_LAYERS):
        xb = x.astype(jnp.bfloat16)
        # full-width projections: one MXU push each instead of two per-head pushes
        q = jnp.dot(xb, wq_ref[l], preferred_element_type=jnp.float32) + bq_ref[l]
        k = jnp.dot(kv, wk_ref[l], preferred_element_type=jnp.float32) + bk_ref[l]
        v = jnp.dot(kv, wv_ref[l], preferred_element_type=jnp.float32) + bv_ref[l]
        qb, kb, vb = (q.astype(jnp.bfloat16), k.astype(jnp.bfloat16),
                      v.astype(jnp.bfloat16))
        attn_out = jnp.zeros((21, D_MODEL), jnp.float32)
        attn_sum = jnp.zeros((21, KV_TOKENS), jnp.float32)
        for hh in range(NUM_HEAD):                           # per-head only for the scores
            sl = slice(hh * HEAD_DIM, (hh + 1) * HEAD_DIM)
            s = lax.dot_general(qb[:, sl], kb[:, sl],
                                (((1,), (1,)), ((), ())),
                                preferred_element_type=jnp.float32) * scale   # (21, 48)
            p = jnp.exp(s - jnp.max(s, axis=-1, keepdims=True))
            p = p * pl.reciprocal(jnp.sum(p, axis=-1, keepdims=True), approx=True)
            attn_sum = attn_sum + p
            o_h = jnp.dot(p.astype(jnp.bfloat16), vb[:, sl],
                          preferred_element_type=jnp.float32)                 # (21, 24)
            attn_out = attn_out + jnp.dot(o_h.astype(jnp.bfloat16), wo_ref[l, hh],
                                          preferred_element_type=jnp.float32)
        attn_out = attn_out + bo_ref[l]
        x = _layernorm(x + attn_out, ln1g_ref[l], ln1b_ref[l])
        xb = x.astype(jnp.bfloat16)
        ff = jnp.dot(xb, fw1_ref[l], preferred_element_type=jnp.float32) + fb1_ref[l]
        ff = jnp.maximum(ff, 0.0)
        ff = jnp.dot(ff.astype(jnp.bfloat16), fw2_ref[l],
                     preferred_element_type=jnp.float32) + fb2_ref[l]
        x = _layernorm(x + ff, ln2g_ref[l], ln2b_ref[l])
        if l == NUM_LAYERS - 1:
            attn_avg = attn_sum * (1.0 / NUM_HEAD)           # last layer, head-averaged
    attn_ref[0] = attn_avg
    # TODO(synk): dropout (p=0.1) inside the transformer layers is omitted (deterministic eval).

    # ---- regression decoder (Linear -> ReLU -> Linear), bf16 operands / f32 accumulation
    h1 = jnp.dot(x.astype(jnp.bfloat16), dw1_ref[...],
                 preferred_element_type=jnp.float32) + db1_ref[...]
    h1 = jnp.maximum(h1, 0.0)
    hp_ref[0] = jnp.dot(h1.astype(jnp.bfloat16), dw2_ref[...],
                        preferred_element_type=jnp.float32) + db2_ref[...]


def tapor_head(fused, kv, p):
    """fused: (B, 21, D_MODEL) f32; kv: (B, KV_TOKENS, kv_dim) bf16."""
    B = fused.shape[0]

    def const_spec(arr):
        nd = arr.ndim
        return pl.BlockSpec(arr.shape, lambda b, _n=nd: (0,) * _n)

    def batch_spec(arr):
        nd = arr.ndim
        return pl.BlockSpec((1,) + arr.shape[1:], lambda b, _n=nd: (b,) + (0,) * (_n - 1))

    weights = (p["tw"], p["tb"],
               p["wq"], p["bq"], p["wk"], p["bk"], p["wv"], p["bv"], p["wo"], p["bo"],
               p["ln1g"], p["ln1b"], p["fw1"], p["fb1"], p["fw2"], p["fb2"],
               p["ln2g"], p["ln2b"],
               p["dw1"], p["db1"], p["dw2"], p["db2"])

    in_specs = [batch_spec(fused), batch_spec(kv)] + [const_spec(w) for w in weights]

    out_shape = (
        jax.ShapeDtypeStruct((B, 21, D_MODEL), jnp.float32),     # kp_feat
        jax.ShapeDtypeStruct((B, 21, 3), jnp.float32),           # handpose
        jax.ShapeDtypeStruct((B, 21, KV_TOKENS), jnp.float32),   # attention over 48 tokens
    )
    out_specs = (
        pl.BlockSpec((1, 21, D_MODEL), lambda b: (b, 0, 0)),
        pl.BlockSpec((1, 21, 3), lambda b: (b, 0, 0)),
        pl.BlockSpec((1, 21, KV_TOKENS), lambda b: (b, 0, 0)),
    )
    return pl.pallas_call(
        _tapor_head_kernel,
        out_shape=out_shape,
        grid=(B,),
        in_specs=in_specs,
        out_specs=out_specs,
        compiler_params=pltpu.CompilerParams(dimension_semantics=("parallel",)),
    )(fused, kv, *weights)


# ======================================================================== JAX glue
def im2col(x, kh, kw, stride, pad):
    """x: (N, H, W, C) -> cols (N, OH*OW, kh*kw*C), OH, OW.  Pure layout glue (XLA)."""
    N, H, W, C = x.shape
    xp = jnp.pad(x, ((0, 0), (pad, pad), (pad, pad), (0, 0)))
    oh = (H + 2 * pad - kh) // stride + 1
    ow = (W + 2 * pad - kw) // stride + 1
    patches = [xp[:, i:i + stride * oh:stride, j:j + stride * ow:stride, :]
               for i in range(kh) for j in range(kw)]
    cols = jnp.stack(patches, axis=-2)                       # (N, oh, ow, kh*kw, C)
    return cols.reshape(N, oh * ow, kh * kw * C), oh, ow


# ==================================================================== full forward
def tapor_forward(x, params):
    """x: (B, T, H, W) thermal frames; returns the 5-tuple of the PyTorch forward."""
    B, T, H, W = x.shape
    frames = x.reshape(B * T, H, W, 1)                       # NHWC, C=1

    # --- conv1 of both encoders, one grid-less call
    cols1, oh1, ow1 = im2col(frames, 3, 3, 2, 1)             # (B*T, 192, 9)
    cols1 = cols1.astype(jnp.bfloat16)
    P1 = oh1 * ow1
    cols1_cur = cols1.reshape(B, T, P1, 9)[:, -1].reshape(B * P1, 9)   # current frames only
    y1_kp, y1_sp = conv1_fused(cols1.reshape(B * T * P1, 9), cols1_cur,
                               params["kp_w1"], params["kp_b1"],
                               params["sp_w1"], params["sp_b1"])
    y1_kp = y1_kp.reshape(B * T, oh1, ow1, CONV1_CH)          # bf16
    y1_sp = y1_sp.reshape(B, oh1, ow1, CONV1_CH)              # bf16

    # --- both encoder tails (+ cross-keypoints graph fusion), one grid-less call
    cols2s, oh2, ow2 = im2col(y1_sp, 3, 3, 2, 1)              # (B, 48, 144) bf16
    cols2k, _, _ = im2col(y1_kp, 3, 3, 2, 1)                  # (B*T, 48, 144) bf16
    P2 = oh2 * ow2
    sp_flat, kp_flat = conv23_fused(cols2s.reshape(B * P2, 9 * CONV1_CH),
                                    cols2k.reshape(B * T * P2, 9 * CONV1_CH), params)

    sp_nhwc = sp_flat.reshape(B, oh2, ow2, SP_LAST_CHANNEL)
    sp_up = jnp.repeat(jnp.repeat(sp_nhwc, SP_UPSAMPLE, axis=1), SP_UPSAMPLE, axis=2)
    sp_feat = jnp.transpose(sp_up, (0, 3, 1, 2))              # (B, 32, 12, 16) NCHW
    # attention keys/values: the 48 unique pre-upsample tokens (exact; see kernel 3)
    kv = sp_nhwc.reshape(B, P2, SP_LAST_CHANNEL).astype(jnp.bfloat16)

    all_kp = jnp.transpose(kp_flat.reshape(B, T, P2, 21), (0, 1, 3, 2))   # (B, T, 21, 48)
    current_kp_feat = all_kp[:, -1:, :, :]                    # (B, 1, 21, 48)

    # softmax-weighted temporal sum (3 fmadds on a tiny tensor — XLA-fused glue)
    wt = jax.nn.softmax(params["w_time"])                     # (T,)
    fused = jnp.einsum('t,btkd->bkd', wt, all_kp)             # (B, 21, 48) f32

    # --- temporal blocks + transformer + decoder, gridded over batch
    kp_feat, handpose, attn48 = tapor_head(fused, kv, params)

    # exact reconstruction of the 192-token (upsampled) cross-attention map:
    # duplicated keys share probability mass equally -> repeat 2x2 and divide by 4.
    cross_map = attn48.reshape(B, 21, oh2, ow2)
    cross_map = jnp.repeat(jnp.repeat(cross_map, SP_UPSAMPLE, axis=2), SP_UPSAMPLE, axis=3)
    cross_map = cross_map.reshape(B, 21, SP_TOKENS) * (1.0 / (SP_UPSAMPLE * SP_UPSAMPLE))

    return handpose, current_kp_feat, sp_feat, kp_feat, cross_map


# =============================================================== param construction
def _hand_adjacency():
    edges = [(0, 1), (1, 2), (2, 3), (3, 4), (0, 5), (5, 6), (6, 7), (7, 8),
             (0, 9), (9, 10), (10, 11), (11, 12), (0, 13), (13, 14), (14, 15), (15, 16),
             (0, 17), (17, 18), (18, 19), (19, 20)]
    a = jnp.eye(21, dtype=jnp.float32)
    for i, j in edges:
        a = a.at[i, j].set(1.0).at[j, i].set(1.0)
    return a / jnp.sum(a, axis=1, keepdims=True)


def init_params(key):
    # TODO(synk): MobileEncoder / HandposeEncoder / fusion sub-module internals are not in
    # the provided spec; this keeps the same interpretation as the previous accepted version
    # (3x3 s2 convs + 1x1 conv + ReLU6 + nearest upsample; std. multi-head cross-attention).
    ks = iter(jax.random.split(key, 64))

    def rnd(shape, scale=0.05):
        return (jax.random.normal(next(ks), shape) * scale).astype(jnp.float32)

    bf = lambda a: a.astype(jnp.bfloat16)   # all MXU operands pre-cast once (hoisted)

    p = dict(
        # encoder first convs (separate per encoder; spatial half only run on current frames)
        sp_w1=bf(rnd((9, CONV1_CH))), sp_b1=rnd((CONV1_CH,)).reshape(1, -1),
        kp_w1=bf(rnd((9, CONV1_CH))), kp_b1=rnd((CONV1_CH,)).reshape(1, -1),
        # encoder tails
        sp_w2=bf(rnd((9 * CONV1_CH, CONV2_CH))), sp_b2=rnd((CONV2_CH,)).reshape(1, -1),
        sp_w3=bf(rnd((CONV2_CH, SP_LAST_CHANNEL))), sp_b3=rnd((SP_LAST_CHANNEL,)).reshape(1, -1),
        kp_w2=bf(rnd((9 * CONV1_CH, CONV2_CH))), kp_b2=rnd((CONV2_CH,)).reshape(1, -1),
        kp_w3=bf(rnd((CONV2_CH, KP_LAST_CHANNEL))), kp_b3=rnd((KP_LAST_CHANNEL,)).reshape(1, -1),
        adj_t=bf(_hand_adjacency().T),
        # temporal fusion
        w_time=jnp.linspace(0.1, 1.0, NUM_HISTORY).astype(jnp.float32),
        tw=bf(jnp.stack([rnd((D_MODEL, D_MODEL)) for _ in range(NUM_TEMPORAL_BLOCKS)])),
        tb=jnp.stack([rnd((1, D_MODEL)) for _ in range(NUM_TEMPORAL_BLOCKS)]),
        # regression decoder
        dw1=bf(rnd((D_MODEL, D_MODEL // 2))), db1=rnd((D_MODEL // 2,)).reshape(1, -1),
        dw2=bf(rnd((D_MODEL // 2, 3))), db2=rnd((3,)).reshape(1, -1),
    )

    # transformer layers — Q/K/V projections stored full-width (one matmul each per layer);
    # output projection stored per-head so the per-head attention result needs no lane concat.
    wq, bq, wk, bk, wv, bv, wo, bo = [], [], [], [], [], [], [], []
    ln1g, ln1b, fw1, fb1, fw2, fb2, ln2g, ln2b = [], [], [], [], [], [], [], []
    for _ in range(NUM_LAYERS):
        wq.append(rnd((D_MODEL, D_MODEL)))
        wk.append(rnd((SP_LAST_CHANNEL, D_MODEL)))
        wv.append(rnd((SP_LAST_CHANNEL, D_MODEL)))
        wo.append(rnd((D_MODEL, D_MODEL)).reshape(NUM_HEAD, HEAD_DIM, D_MODEL))
        bq.append(rnd((D_MODEL,)).reshape(1, D_MODEL))
        bk.append(rnd((D_MODEL,)).reshape(1, D_MODEL))
        bv.append(rnd((D_MODEL,)).reshape(1, D_MODEL))
        bo.append(rnd((D_MODEL,)).reshape(1, D_MODEL))
        ln1g.append(jnp.ones((1, D_MODEL), jnp.float32))
        ln1b.append(jnp.zeros((1, D_MODEL), jnp.float32))
        fw1.append(rnd((D_MODEL, DIM_FEEDFORWARD)))
        fb1.append(rnd((1, DIM_FEEDFORWARD)))
        fw2.append(rnd((DIM_FEEDFORWARD, D_MODEL)))
        fb2.append(rnd((1, D_MODEL)))
        ln2g.append(jnp.ones((1, D_MODEL), jnp.float32))
        ln2b.append(jnp.zeros((1, D_MODEL), jnp.float32))

    p.update(
        wq=bf(jnp.stack(wq)), bq=jnp.stack(bq),
        wk=bf(jnp.stack(wk)), bk=jnp.stack(bk),
        wv=bf(jnp.stack(wv)), bv=jnp.stack(bv),
        wo=bf(jnp.stack(wo)), bo=jnp.stack(bo),
        ln1g=jnp.stack(ln1g), ln1b=jnp.stack(ln1b),
        fw1=bf(jnp.stack(fw1)), fb1=jnp.stack(fb1),
        fw2=bf(jnp.stack(fw2)), fb2=jnp.stack(fb2),
        ln2g=jnp.stack(ln2g), ln2b=jnp.stack(ln2b),
    )
    return p


# ============================================================================= main
if __name__ == "__main__":
    key = jax.random.PRNGKey(0)
    k_param, k_data = jax.random.split(key)
    params = init_params(k_param)
    x = jax.random.normal(k_data, (BATCH, NUM_HISTORY, INPUT_H, INPUT_W), dtype=jnp.float32)

    fwd = jax.jit(tapor_forward)
    outs = fwd(x, params)
    jax.block_until_ready(outs)
    handpose, current_kp_feat, sp_feat, kp_feat, cross_map = outs

    assert handpose.shape == (BATCH, 21, 3)
    assert current_kp_feat.shape == (BATCH, 1, 21, D_MODEL)
    assert sp_feat.shape == (BATCH, SP_LAST_CHANNEL, SP_H, SP_W)
    assert kp_feat.shape == (BATCH, 21, D_MODEL)
    assert cross_map.shape == (BATCH, 21, SP_TOKENS)
    assert bool(jnp.all(jnp.isfinite(handpose)))
    print("KERNEL_OK")
</pallas_src>

<mosaic_0001>
module attributes {stable_mosaic.version = 11 : i64} {
  func.func @_conv1_kernel(%arg0: memref<1152x9xbf16, #tpu.memory_space<vmem>>, %arg1: memref<384x9xbf16, #tpu.memory_space<vmem>>, %arg2: memref<9x16xbf16, #tpu.memory_space<vmem>>, %arg3: memref<1x16xf32, #tpu.memory_space<vmem>>, %arg4: memref<9x16xbf16, #tpu.memory_space<vmem>>, %arg5: memref<1x16xf32, #tpu.memory_space<vmem>>, %arg6: memref<1152x16xbf16, #tpu.memory_space<vmem>>, %arg7: memref<384x16xbf16, #tpu.memory_space<vmem>>) attributes {dimension_semantics = [], scalar_prefetch = 0 : i64, scratch_operands = 0 : i64, tpu.core_type = #tpu.core_type<tc>} {
    %c0 = arith.constant 0 : index
    %c0_0 = arith.constant 0 : index
    %0 = vector.load %arg0[%c0, %c0_0] : memref<1152x9xbf16, #tpu.memory_space<vmem>>, vector<1152x9xbf16>
    %c0_1 = arith.constant 0 : index
    %c0_2 = arith.constant 0 : index
    %1 = vector.load %arg2[%c0_1, %c0_2] : memref<9x16xbf16, #tpu.memory_space<vmem>>, vector<9x16xbf16>
    %cst = arith.constant dense<0.000000e+00> : vector<1152x16xf32>
    %2 = tpu.matmul %0, %1, %cst {dimension_numbers = #tpu.dot_dimension_numbers<[1], [0], [0], [1], [0, 0, 1, 1], [], []>} : vector<1152x9xbf16>, vector<9x16xbf16>, vector<1152x16xf32> -> vector<1152x16xf32>
    %c0_3 = arith.constant 0 : index
    %c0_4 = arith.constant 0 : index
    %3 = vector.load %arg3[%c0_3, %c0_4] : memref<1x16xf32, #tpu.memory_space<vmem>>, vector<1x16xf32>
    %4 = vector.broadcast %3 : vector<1x16xf32> to vector<1152x16xf32>
    %5 = arith.addf %2, %4 : vector<1152x16xf32>
    %cst_5 = arith.constant 0.000000e+00 : f32
    %cst_6 = arith.constant 6.000000e+00 : f32
    %6 = vector.broadcast %cst_5 : f32 to vector<1152x16xf32>
    %7 = arith.maximumf %6, %5 : vector<1152x16xf32>
    %8 = vector.broadcast %cst_6 : f32 to vector<1152x16xf32>
    %9 = arith.minimumf %8, %7 : vector<1152x16xf32>
    %10 = arith.truncf %9 : vector<1152x16xf32> to vector<1152x16xbf16>
    %c0_7 = arith.constant 0 : index
    %c0_8 = arith.constant 0 : index
    %11 = vector.load %arg6[%c0_7, %c0_8] : memref<1152x16xbf16, #tpu.memory_space<vmem>>, vector<1152x16xbf16>
    tpu.vector_store %arg6[%c0_7, %c0_8], %10 {strides = array<i32>} : memref<1152x16xbf16, #tpu.memory_space<vmem>>, vector<1152x16xbf16>,
    %c0_9 = arith.constant 0 : index
    %c0_10 = arith.constant 0 : index
    %12 = vector.load %arg1[%c0_9, %c0_10] : memref<384x9xbf16, #tpu.memory_space<vmem>>, vector<384x9xbf16>
    %c0_11 = arith.constant 0 : index
    %c0_12 = arith.constant 0 : index
    %13 = vector.load %arg4[%c0_11, %c0_12] : memref<9x16xbf16, #tpu.memory_space<vmem>>, vector<9x16xbf16>
    %cst_13 = arith.constant dense<0.000000e+00> : vector<384x16xf32>
    %14 = tpu.matmul %12, %13, %cst_13 {dimension_numbers = #tpu.dot_dimension_numbers<[1], [0], [0], [1], [0, 0, 1, 1], [], []>} : vector<384x9xbf16>, vector<9x16xbf16>, vector<384x16xf32> -> vector<384x16xf32>
    %c0_14 = arith.constant 0 : index
    %c0_15 = arith.constant 0 : index
    %15 = vector.load %arg5[%c0_14, %c0_15] : memref<1x16xf32, #tpu.memory_space<vmem>>, vector<1x16xf32>
    %16 = vector.broadcast %15 : vector<1x16xf32> to vector<384x16xf32>
    %17 = arith.addf %14, %16 : vector<384x16xf32>
    %cst_16 = arith.constant 0.000000e+00 : f32
    %cst_17 = arith.constant 6.000000e+00 : f32
    %18 = vector.broadcast %cst_16 : f32 to vector<384x16xf32>
    %19 = arith.maximumf %18, %17 : vector<384x16xf32>
    %20 = vector.broadcast %cst_17 : f32 to vector<384x16xf32>
    %21 = arith.minimumf %20, %19 : vector<384x16xf32>
    %22 = arith.truncf %21 : vector<384x16xf32> to vector<384x16xbf16>
    %c0_18 = arith.constant 0 : index
    %c0_19 = arith.constant 0 : index
    %23 = vector.load %arg7[%c0_18, %c0_19] : memref<384x16xbf16, #tpu.memory_space<vmem>>, vector<384x16xbf16>
    tpu.vector_store %arg7[%c0_18, %c0_19], %22 {strides = array<i32>} : memref<384x16xbf16, #tpu.memory_space<vmem>>, vector<384x16xbf16>,
    return
  }
}

module attributes {stable_mosaic.version = 11 : i64} {
  func.func @_conv23_kernel(%arg0: memref<96x144xbf16, #tpu.memory_space<vmem>>, %arg1: memref<288x144xbf16, #tpu.memory_space<vmem>>, %arg2: memref<144x32xbf16, #tpu.memory_space<vmem>>, %arg3: memref<1x32xf32, #tpu.memory_space<vmem>>, %arg4: memref<32x32xbf16, #tpu.memory_space<vmem>>, %arg5: memref<1x32xf32, #tpu.memory_space<vmem>>, %arg6: memref<144x32xbf16, #tpu.memory_space<vmem>>, %arg7: memref<1x32xf32, #tpu.memory_space<vmem>>, %arg8: memref<32x21xbf16, #tpu.memory_space<vmem>>, %arg9: memref<1x21xf32, #tpu.memory_space<vmem>>, %arg10: memref<21x21xbf16, #tpu.memory_space<vmem>>, %arg11: memref<96x32xf32, #tpu.memory_space<vmem>>, %arg12: memref<288x21xf32, #tpu.memory_space<vmem>>) attributes {dimension_semantics = [], scalar_prefetch = 0 : i64, scratch_operands = 0 : i64, tpu.core_type = #tpu.core_type<tc>} {
    %c0 = arith.constant 0 : index
    %c0_0 = arith.constant 0 : index
    %0 = vector.load %arg0[%c0, %c0_0] : memref<96x144xbf16, #tpu.memory_space<vmem>>, vector<96x144xbf16>
    %c0_1 = arith.constant 0 : index
    %c0_2 = arith.constant 0 : index
    %1 = vector.load %arg2[%c0_1, %c0_2] : memref<144x32xbf16, #tpu.memory_space<vmem>>, vector<144x32xbf16>
    %cst = arith.constant dense<0.000000e+00> : vector<96x32xf32>
    %2 = tpu.matmul %0, %1, %cst {dimension_numbers = #tpu.dot_dimension_numbers<[1], [0], [0], [1], [0, 0, 1, 1], [], []>} : vector<96x144xbf16>, vector<144x32xbf16>, vector<96x32xf32> -> vector<96x32xf32>
    %c0_3 = arith.constant 0 : index
    %c0_4 = arith.constant 0 : index
    %3 = vector.load %arg3[%c0_3, %c0_4] : memref<1x32xf32, #tpu.memory_space<vmem>>, vector<1x32xf32>
    %4 = vector.broadcast %3 : vector<1x32xf32> to vector<96x32xf32>
    %5 = arith.addf %2, %4 : vector<96x32xf32>
    %cst_5 = arith.constant 0.000000e+00 : f32
    %cst_6 = arith.constant 6.000000e+00 : f32
    %6 = vector.broadcast %cst_5 : f32 to vector<96x32xf32>
    %7 = arith.maximumf %6, %5 : vector<96x32xf32>
    %8 = vector.broadcast %cst_6 : f32 to vector<96x32xf32>
    %9 = arith.minimumf %8, %7 : vector<96x32xf32>
    %10 = arith.truncf %9 : vector<96x32xf32> to vector<96x32xbf16>
    %c0_7 = arith.constant 0 : index
    %c0_8 = arith.constant 0 : index
    %11 = vector.load %arg4[%c0_7, %c0_8] : memref<32x32xbf16, #tpu.memory_space<vmem>>, vector<32x32xbf16>
    %cst_9 = arith.constant dense<0.000000e+00> : vector<96x32xf32>
    %12 = tpu.matmul %10, %11, %cst_9 {dimension_numbers = #tpu.dot_dimension_numbers<[1], [0], [0], [1], [0, 0, 1, 1], [], []>} : vector<96x32xbf16>, vector<32x32xbf16>, vector<96x32xf32> -> vector<96x32xf32>
    %c0_10 = arith.constant 0 : index
    %c0_11 = arith.constant 0 : index
    %13 = vector.load %arg5[%c0_10, %c0_11] : memref<1x32xf32, #tpu.memory_space<vmem>>, vector<1x32xf32>
    %14 = vector.broadcast %13 : vector<1x32xf32> to vector<96x32xf32>
    %15 = arith.addf %12, %14 : vector<96x32xf32>
    %cst_12 = arith.constant 0.000000e+00 : f32
    %cst_13 = arith.constant 6.000000e+00 : f32
    %16 = vector.broadcast %cst_12 : f32 to vector<96x32xf32>
    %17 = arith.maximumf %16, %15 : vector<96x32xf32>
    %18 = vector.broadcast %cst_13 : f32 to vector<96x32xf32>
    %19 = arith.minimumf %18, %17 : vector<96x32xf32>
    %c0_14 = arith.constant 0 : index
    %c0_15 = arith.constant 0 : index
    %20 = vector.load %arg11[%c0_14, %c0_15] : memref<96x32xf32, #tpu.memory_space<vmem>>, vector<96x32xf32>
    tpu.vector_store %arg11[%c0_14, %c0_15], %19 {strides = array<i32>} : memref<96x32xf32, #tpu.memory_space<vmem>>, vector<96x32xf32>,
    %c0_16 = arith.constant 0 : index
    %c0_17 = arith.constant 0 : index
    %21 = vector.load %arg1[%c0_16, %c0_17] : memref<288x144xbf16, #tpu.memory_space<vmem>>, vector<288x144xbf16>
    %c0_18 = arith.constant 0 : index
    %c0_19 = arith.constant 0 : index
    %22 = vector.load %arg6[%c0_18, %c0_19] : memref<144x32xbf16, #tpu.memory_space<vmem>>, vector<144x32xbf16>
    %cst_20 = arith.constant dense<0.000000e+00> : vector<288x32xf32>
    %23 = tpu.matmul %21, %22, %cst_20 {dimension_numbers = #tpu.dot_dimension_numbers<[1], [0], [0], [1], [0, 0, 1, 1], [], []>} : vector<288x144xbf16>, vector<144x32xbf16>, vector<288x32xf32> -> vector<288x32xf32>
    %c0_21 = arith.constant 0 : index
    %c0_22 = arith.constant 0 : index
    %24 = vector.load %arg7[%c0_21, %c0_22] : memref<1x32xf32, #tpu.memory_space<vmem>>, vector<1x32xf32>
    %25 = vector.broadcast %24 : vector<1x32xf32> to vector<288x32xf32>
    %26 = arith.addf %23, %25 : vector<288x32xf32>
    %cst_23 = arith.constant 0.000000e+00 : f32
    %cst_24 = arith.constant 6.000000e+00 : f32
    %27 = vector.broadcast %cst_23 : f32 to vector<288x32xf32>
    %28 = arith.maximumf %27, %26 : vector<288x32xf32>
    %29 = vector.broadcast %cst_24 : f32 to vector<288x32xf32>
    %30 = arith.minimumf %29, %28 : vector<288x32xf32>
    %31 = arith.truncf %30 : vector<288x32xf32> to vector<288x32xbf16>
    %c0_25 = arith.constant 0 : index
    %c0_26 = arith.constant 0 : index
    %32 = vector.load %arg8[%c0_25, %c0_26] : memref<32x21xbf16, #tpu.memory_space<vmem>>, vector<32x21xbf16>
    %cst_27 = arith.constant dense<0.000000e+00> : vector<288x21xf32>
    %33 = tpu.matmul %31, %32, %cst_27 {dimension_numbers = #tpu.dot_dimension_numbers<[1], [0], [0], [1], [0, 0, 1, 1], [], []>} : vector<288x32xbf16>, vector<32x21xbf16>, vector<288x21xf32> -> vector<288x21xf32>
    %c0_28 = arith.constant 0 : index
    %c0_29 = arith.constant 0 : index
    %34 = vector.load %arg9[%c0_28, %c0_29] : memref<1x21xf32, #tpu.memory_space<vmem>>, vector<1x21xf32>
    %35 = vector.broadcast %34 : vector<1x21xf32> to vector<288x21xf32>
    %36 = arith.addf %33, %35 : vector<288x21xf32>
    %cst_30 = arith.constant 0.000000e+00 : f32
    %cst_31 = arith.constant 6.000000e+00 : f32
    %37 = vector.broadcast %cst_30 : f32 to vector<288x21xf32>
    %38 = arith.maximumf %37, %36 : vector<288x21xf32>
    %39 = vector.broadcast %cst_31 : f32 to vector<288x21xf32>
    %40 = arith.minimumf %39, %38 : vector<288x21xf32>
    %41 = arith.truncf %40 : vector<288x21xf32> to vector<288x21xbf16>
    %c0_32 = arith.constant 0 : index
    %c0_33 = arith.constant 0 : index
    %42 = vector.load %arg10[%c0_32, %c0_33] : memref<21x21xbf16, #tpu.memory_space<vmem>>, vector<21x21xbf16>
    %cst_34 = arith.constant dense<0.000000e+00> : vector<288x21xf32>
    %43 = tpu.matmul %41, %42, %cst_34 {dimension_numbers = #tpu.dot_dimension_numbers<[1], [0], [0], [1], [0, 0, 1, 1], [], []>} : vector<288x21xbf16>, vector<21x21xbf16>, vector<288x21xf32> -> vector<288x21xf32>
    %c0_35 = arith.constant 0 : index
    %c0_36 = arith.constant 0 : index
    %44 = vector.load %arg12[%c0_35, %c0_36] : memref<288x21xf32, #tpu.memory_space<vmem>>, vector<288x21xf32>
    tpu.vector_store %arg12[%c0_35, %c0_36], %43 {strides = array<i32>} : memref<288x21xf32, #tpu.memory_space<vmem>>, vector<288x21xf32>,
    return
  }
}

module attributes {stable_mosaic.version = 11 : i64} {
  func.func @_tapor_head_kernel(%arg0: i32, %arg1: memref<1x21x48xf32, #tpu.memory_space<vmem>>, %arg2: memref<1x48x32xbf16, #tpu.memory_space<vmem>>, %arg3: memref<2x48x48xbf16, #tpu.memory_space<vmem>>, %arg4: memref<2x1x48xf32, #tpu.memory_space<vmem>>, %arg5: memref<2x48x48xbf16, #tpu.memory_space<vmem>>, %arg6: memref<2x1x48xf32, #tpu.memory_space<vmem>>, %arg7: memref<2x32x48xbf16, #tpu.memory_space<vmem>>, %arg8: memref<2x1x48xf32, #tpu.memory_space<vmem>>, %arg9: memref<2x32x48xbf16, #tpu.memory_space<vmem>>, %arg10: memref<2x1x48xf32, #tpu.memory_space<vmem>>, %arg11: memref<2x2x24x48xbf16, #tpu.memory_space<vmem>>, %arg12: memref<2x1x48xf32, #tpu.memory_space<vmem>>, %arg13: memref<2x1x48xf32, #tpu.memory_space<vmem>>, %arg14: memref<2x1x48xf32, #tpu.memory_space<vmem>>, %arg15: memref<2x48x64xbf16, #tpu.memory_space<vmem>>, %arg16: memref<2x1x64xf32, #tpu.memory_space<vmem>>, %arg17: memref<2x64x48xbf16, #tpu.memory_space<vmem>>, %arg18: memref<2x1x48xf32, #tpu.memory_space<vmem>>, %arg19: memref<2x1x48xf32, #tpu.memory_space<vmem>>, %arg20: memref<2x1x48xf32, #tpu.memory_space<vmem>>, %arg21: memref<48x24xbf16, #tpu.memory_space<vmem>>, %arg22: memref<1x24xf32, #tpu.memory_space<vmem>>, %arg23: memref<24x3xbf16, #tpu.memory_space<vmem>>, %arg24: memref<1x3xf32, #tpu.memory_space<vmem>>, %arg25: memref<1x21x48xf32, #tpu.memory_space<vmem>>, %arg26: memref<1x21x3xf32, #tpu.memory_space<vmem>>, %arg27: memref<1x21x48xf32, #tpu.memory_space<vmem>>) attributes {dimension_semantics = [#tpu.dimension_semantics<parallel>], iteration_bounds = array<i64: 2>, scalar_prefetch = 0 : i64, scratch_operands = 0 : i64, tpu.core_type = #tpu.core_type<tc>, window_params = [{transform_indices = @transform_0, window_bounds = array<i64: 1, 21, 48>}, {transform_indices = @transform_1, window_bounds = array<i64: 1, 48, 32>}, {pipeline_mode = #tpu.pipeline_mode<synchronous>, transform_indices = @transform_2, window_bounds = array<i64: 2, 48, 48>}, {pipeline_mode = #tpu.pipeline_mode<synchronous>, transform_indices = @transform_3, window_bounds = array<i64: 2, 1, 48>}, {pipeline_mode = #tpu.pipeline_mode<synchronous>, transform_indices = @transform_4, window_bounds = array<i64: 2, 48, 48>}, {pipeline_mode = #tpu.pipeline_mode<synchronous>, transform_indices = @transform_5, window_bounds = array<i64: 2, 1, 48>}, {pipeline_mode = #tpu.pipeline_mode<synchronous>, transform_indices = @transform_6, window_bounds = array<i64: 2, 32, 48>}, {pipeline_mode = #tpu.pipeline_mode<synchronous>, transform_indices = @transform_7, window_bounds = array<i64: 2, 1, 48>}, {pipeline_mode = #tpu.pipeline_mode<synchronous>, transform_indices = @transform_8, window_bounds = array<i64: 2, 32, 48>}, {pipeline_mode = #tpu.pipeline_mode<synchronous>, transform_indices = @transform_9, window_bounds = array<i64: 2, 1, 48>}, {pipeline_mode = #tpu.pipeline_mode<synchronous>, transform_indices = @transform_10, window_bounds = array<i64: 2, 2, 24, 48>}, {pipeline_mode = #tpu.pipeline_mode<synchronous>, transform_indices = @transform_11, window_bounds = array<i64: 2, 1, 48>}, {pipeline_mode = #tpu.pipeline_mode<synchronous>, transform_indices = @transform_12, window_bounds = array<i64: 2, 1, 48>}, {pipeline_mode = #tpu.pipeline_mode<synchronous>, transform_indices = @transform_13, window_bounds = array<i64: 2, 1, 48>}, {pipeline_mode = #tpu.pipeline_mode<synchronous>, transform_indices = @transform_14, window_bounds = array<i64: 2, 48, 64>}, {pipeline_mode = #tpu.pipeline_mode<synchronous>, transform_indices = @transform_15, window_bounds = array<i64: 2, 1, 64>}, {pipeline_mode = #tpu.pipeline_mode<synchronous>, transform_indices = @transform_16, window_bounds = array<i64: 2, 64, 48>}, {pipeline_mode = #tpu.pipeline_mode<synchronous>, transform_indices = @transform_17, window_bounds = array<i64: 2, 1, 48>}, {pipeline_mode = #tpu.pipeline_mode<synchronous>, transform_indices = @transform_18, window_bounds = array<i64: 2, 1, 48>}, {pipeline_mode = #tpu.pipeline_mode<synchronous>, transform_indices = @transform_19, window_bounds = array<i64: 2, 1, 48>}, {pipeline_mode = #tpu.pipeline_mode<synchronous>, transform_indices = @transform_20, window_bounds = array<i64: 48, 24>}, {pipeline_mode = #tpu.pipeline_mode<synchronous>, transform_indices = @transform_21, window_bounds = array<i64: 1, 24>}, {pipeline_mode = #tpu.pipeline_mode<synchronous>, transform_indices = @transform_22, window_bounds = array<i64: 24, 3>}, {pipeline_mode = #tpu.pipeline_mode<synchronous>, transform_indices = @transform_23, window_bounds = array<i64: 1, 3>}, {transform_indices = @transform_24, window_bounds = array<i64: 1, 21, 48>}, {transform_indices = @transform_25, window_bounds = array<i64: 1, 21, 3>}, {transform_indices = @transform_26, window_bounds = array<i64: 1, 21, 48>}]} {
    %c0 = arith.constant 0 : index
    %c0_0 = arith.constant 0 : index
    %c0_1 = arith.constant 0 : index
    %0 = vector.load %arg1[%c0, %c0_0, %c0_1] : memref<1x21x48xf32, #tpu.memory_space<vmem>>, vector<1x21x48xf32>
    %1 = vector.shape_cast %0 : vector<1x21x48xf32> to vector<21x48xf32>
    %2 = arith.truncf %1 : vector<21x48xf32> to vector<21x48xbf16>
    %c0_2 = arith.constant 0 : index
    %c0_3 = arith.constant 0 : index
    %c0_4 = arith.constant 0 : index
    %3 = vector.load %arg3[%c0_2, %c0_3, %c0_4] : memref<2x48x48xbf16, #tpu.memory_space<vmem>>, vector<1x48x48xbf16>
    %4 = vector.shape_cast %3 : vector<1x48x48xbf16> to vector<48x48xbf16>
    %cst = arith.constant dense<0.000000e+00> : vector<21x48xf32>
    %5 = tpu.matmul %2, %4, %cst {dimension_numbers = #tpu.dot_dimension_numbers<[1], [0], [0], [1], [0, 0, 1, 1], [], []>} : vector<21x48xbf16>, vector<48x48xbf16>, vector<21x48xf32> -> vector<21x48xf32>
    %c0_5 = arith.constant 0 : index
    %c0_6 = arith.constant 0 : index
    %c0_7 = arith.constant 0 : index
    %6 = vector.load %arg4[%c0_5, %c0_6, %c0_7] : memref<2x1x48xf32, #tpu.memory_space<vmem>>, vector<1x1x48xf32>
    %7 = vector.shape_cast %6 : vector<1x1x48xf32> to vector<1x48xf32>
    %8 = vector.broadcast %7 : vector<1x48xf32> to vector<21x48xf32>
    %9 = arith.addf %5, %8 : vector<21x48xf32>
    %cst_8 = arith.constant 0.000000e+00 : f32
    %10 = vector.broadcast %cst_8 : f32 to vector<21x48xf32>
    %11 = arith.maximumf %9, %10 : vector<21x48xf32>
    %12 = arith.addf %11, %1 : vector<21x48xf32>
    %13 = arith.truncf %12 : vector<21x48xf32> to vector<21x48xbf16>
    %c1 = arith.constant 1 : index
    %c0_9 = arith.constant 0 : index
    %c0_10 = arith.constant 0 : index
    %14 = vector.load %arg3[%c1, %c0_9, %c0_10] : memref<2x48x48xbf16, #tpu.memory_space<vmem>>, vector<1x48x48xbf16>
    %15 = vector.shape_cast %14 : vector<1x48x48xbf16> to vector<48x48xbf16>
    %cst_11 = arith.constant dense<0.000000e+00> : vector<21x48xf32>
    %16 = tpu.matmul %13, %15, %cst_11 {dimension_numbers = #tpu.dot_dimension_numbers<[1], [0], [0], [1], [0, 0, 1, 1], [], []>} : vector<21x48xbf16>, vector<48x48xbf16>, vector<21x48xf32> -> vector<21x48xf32>
    %c1_12 = arith.constant 1 : index
    %c0_13 = arith.constant 0 : index
    %c0_14 = arith.constant 0 : index
    %17 = vector.load %arg4[%c1_12, %c0_13, %c0_14] : memref<2x1x48xf32, #tpu.memory_space<vmem>>, vector<1x1x48xf32>
    %18 = vector.shape_cast %17 : vector<1x1x48xf32> to vector<1x48xf32>
    %19 = vector.broadcast %18 : vector<1x48xf32> to vector<21x48xf32>
    %20 = arith.addf %16, %19 : vector<21x48xf32>
    %cst_15 = arith.constant 0.000000e+00 : f32
    %21 = vector.broadcast %cst_15 : f32 to vector<21x48xf32>
    %22 = arith.maximumf %20, %21 : vector<21x48xf32>
    %23 = arith.addf %22, %12 : vector<21x48xf32>
    %c0_16 = arith.constant 0 : index
    %c0_17 = arith.constant 0 : index
    %c0_18 = arith.constant 0 : index
    %24 = vector.load %arg25[%c0_16, %c0_17, %c0_18] : memref<1x21x48xf32, #tpu.memory_space<vmem>>, vector<1x21x48xf32>
    %25 = vector.shape_cast %24 : vector<1x21x48xf32> to vector<21x48xf32>
    %26 = vector.shape_cast %23 : vector<21x48xf32> to vector<1x21x48xf32>
    tpu.vector_store %arg25[%c0_16, %c0_17, %c0_18], %26 {strides = array<i32>} : memref<1x21x48xf32, #tpu.memory_space<vmem>>, vector<1x21x48xf32>,
    %c0_19 = arith.constant 0 : index
    %c0_20 = arith.constant 0 : index
    %c0_21 = arith.constant 0 : index
    %27 = vector.load %arg2[%c0_19, %c0_20, %c0_21] : memref<1x48x32xbf16, #tpu.memory_space<vmem>>, vector<1x48x32xbf16>
    %28 = vector.shape_cast %27 : vector<1x48x32xbf16> to vector<48x32xbf16>
    %29 = arith.truncf %23 : vector<21x48xf32> to vector<21x48xbf16>
    %c0_22 = arith.constant 0 : index
    %c0_23 = arith.constant 0 : index
    %c0_24 = arith.constant 0 : index
    %30 = vector.load %arg5[%c0_22, %c0_23, %c0_24] : memref<2x48x48xbf16, #tpu.memory_space<vmem>>, vector<1x48x48xbf16>
    %31 = vector.shape_cast %30 : vector<1x48x48xbf16> to vector<48x48xbf16>
    %cst_25 = arith.constant dense<0.000000e+00> : vector<21x48xf32>
    %32 = tpu.matmul %29, %31, %cst_25 {dimension_numbers = #tpu.dot_dimension_numbers<[1], [0], [0], [1], [0, 0, 1, 1], [], []>} : vector<21x48xbf16>, vector<48x48xbf16>, vector<21x48xf32> -> vector<21x48xf32>
    %c0_26 = arith.constant 0 : index
    %c0_27 = arith.constant 0 : index
    %c0_28 = arith.constant 0 : index
    %33 = vector.load %arg6[%c0_26, %c0_27, %c0_28] : memref<2x1x48xf32, #tpu.memory_space<vmem>>, vector<1x1x48xf32>
    %34 = vector.shape_cast %33 : vector<1x1x48xf32> to vector<1x48xf32>
    %35 = vector.broadcast %34 : vector<1x48xf32> to vector<21x48xf32>
    %36 = arith.addf %32, %35 : vector<21x48xf32>
    %c0_29 = arith.constant 0 : index
    %c0_30 = arith.constant 0 : index
    %c0_31 = arith.constant 0 : index
    %37 = vector.load %arg7[%c0_29, %c0_30, %c0_31] : memref<2x32x48xbf16, #tpu.memory_space<vmem>>, vector<1x32x48xbf16>
    %38 = vector.shape_cast %37 : vector<1x32x48xbf16> to vector<32x48xbf16>
    %cst_32 = arith.constant dense<0.000000e+00> : vector<48x48xf32>
    %39 = tpu.matmul %28, %38, %cst_32 {dimension_numbers = #tpu.dot_dimension_numbers<[1], [0], [0], [1], [0, 0, 1, 1], [], []>} : vector<48x32xbf16>, vector<32x48xbf16>, vector<48x48xf32> -> vector<48x48xf32>
    %c0_33 = arith.constant 0 : index
    %c0_34 = arith.constant 0 : index
    %c0_35 = arith.constant 0 : index
    %40 = vector.load %arg8[%c0_33, %c0_34, %c0_35] : memref<2x1x48xf32, #tpu.memory_space<vmem>>, vector<1x1x48xf32>
    %41 = vector.shape_cast %40 : vector<1x1x48xf32> to vector<1x48xf32>
    %42 = vector.broadcast %41 : vector<1x48xf32> to vector<48x48xf32>
    %43 = arith.addf %39, %42 : vector<48x48xf32>
    %c0_36 = arith.constant 0 : index
    %c0_37 = arith.constant 0 : index
    %c0_38 = arith.constant 0 : index
    %44 = vector.load %arg9[%c0_36, %c0_37, %c0_38] : memref<2x32x48xbf16, #tpu.memory_space<vmem>>, vector<1x32x48xbf16>
    %45 = vector.shape_cast %44 : vector<1x32x48xbf16> to vector<32x48xbf16>
    %cst_39 = arith.constant dense<0.000000e+00> : vector<48x48xf32>
    %46 = tpu.matmul %28, %45, %cst_39 {dimension_numbers = #tpu.dot_dimension_numbers<[1], [0], [0], [1], [0, 0, 1, 1], [], []>} : vector<48x32xbf16>, vector<32x48xbf16>, vector<48x48xf32> -> vector<48x48xf32>
    %c0_40 = arith.constant 0 : index
    %c0_41 = arith.constant 0 : index
    %c0_42 = arith.constant 0 : index
    %47 = vector.load %arg10[%c0_40, %c0_41, %c0_42] : memref<2x1x48xf32, #tpu.memory_space<vmem>>, vector<1x1x48xf32>
    %48 = vector.shape_cast %47 : vector<1x1x48xf32> to vector<1x48xf32>
    %49 = vector.broadcast %48 : vector<1x48xf32> to vector<48x48xf32>
    %50 = arith.addf %46, %49 : vector<48x48xf32>
    %51 = arith.truncf %36 : vector<21x48xf32> to vector<21x48xbf16>
    %52 = arith.truncf %43 : vector<48x48xf32> to vector<48x48xbf16>
    %53 = arith.truncf %50 : vector<48x48xf32> to vector<48x48xbf16>
    %cst_43 = arith.constant 0.000000e+00 : f32
    %54 = vector.broadcast %cst_43 : f32 to vector<21x48xf32>
    %55 = vector.extract_strided_slice %51 {offsets = [0, 0], sizes = [21, 24], strides = [1, 1]} : vector<21x48xbf16> to vector<21x24xbf16>
    %56 = vector.extract_strided_slice %52 {offsets = [0, 0], sizes = [48, 24], strides = [1, 1]} : vector<48x48xbf16> to vector<48x24xbf16>
    %cst_44 = arith.constant dense<0.000000e+00> : vector<21x48xf32>
    %57 = tpu.matmul %55, %56, %cst_44 {dimension_numbers = #tpu.dot_dimension_numbers<[1], [1], [0], [0], [0, 0, 1, 0], [], []>} : vector<21x24xbf16>, vector<48x24xbf16>, vector<21x48xf32> -> vector<21x48xf32>
    %cst_45 = arith.constant 0.204124153 : f32
    %58 = vector.broadcast %cst_45 : f32 to vector<21x48xf32>
    %59 = arith.mulf %57, %58 : vector<21x48xf32>
    %cst_46 = arith.constant dense<0xFF800000> : vector<21xf32>
    %60 = vector.multi_reduction <maximumf>, %59, %cst_46 [1] : vector<21x48xf32> to vector<21xf32>
    %61 = vector.shape_cast %60 : vector<21xf32> to vector<21x1xf32>
    %62 = vector.broadcast %61 : vector<21x1xf32> to vector<21x48xf32>
    %63 = arith.subf %59, %62 : vector<21x48xf32>
    %64 = math.exp %63 : vector<21x48xf32>
    %cst_47 = arith.constant dense<0.000000e+00> : vector<21xf32>
    %65 = vector.multi_reduction <add>, %64, %cst_47 [1] : vector<21x48xf32> to vector<21xf32>
    %66 = vector.shape_cast %65 : vector<21xf32> to vector<21x1xf32>
    %67 = tpu.reciprocal %66 {approx = true} : vector<21x1xf32> -> vector<21x1xf32>
    %68 = vector.broadcast %67 : vector<21x1xf32> to vector<21x48xf32>
    %69 = arith.mulf %64, %68 : vector<21x48xf32>
    %70 = arith.truncf %69 : vector<21x48xf32> to vector<21x48xbf16>
    %71 = vector.extract_strided_slice %53 {offsets = [0, 0], sizes = [48, 24], strides = [1, 1]} : vector<48x48xbf16> to vector<48x24xbf16>
    %cst_48 = arith.constant dense<0.000000e+00> : vector<21x24xf32>
    %72 = tpu.matmul %70, %71, %cst_48 {dimension_numbers = #tpu.dot_dimension_numbers<[1], [0], [0], [1], [0, 0, 1, 1], [], []>} : vector<21x48xbf16>, vector<48x24xbf16>, vector<21x24xf32> -> vector<21x24xf32>
    %73 = arith.truncf %72 : vector<21x24xf32> to vector<21x24xbf16>
    %c0_49 = arith.constant 0 : index
    %c0_50 = arith.constant 0 : index
    %c0_51 = arith.constant 0 : index
    %c0_52 = arith.constant 0 : index
    %74 = vector.load %arg11[%c0_49, %c0_50, %c0_51, %c0_52] : memref<2x2x24x48xbf16, #tpu.memory_space<vmem>>, vector<1x1x24x48xbf16>
    %75 = vector.shape_cast %74 : vector<1x1x24x48xbf16> to vector<24x48xbf16>
    %cst_53 = arith.constant dense<0.000000e+00> : vector<21x48xf32>
    %76 = tpu.matmul %73, %75, %cst_53 {dimension_numbers = #tpu.dot_dimension_numbers<[1], [0], [0], [1], [0, 0, 1, 1], [], []>} : vector<21x24xbf16>, vector<24x48xbf16>, vector<21x48xf32> -> vector<21x48xf32>
    %77 = arith.addf %54, %76 : vector<21x48xf32>
    %78 = vector.extract_strided_slice %51 {offsets = [0, 24], sizes = [21, 24], strides = [1, 1]} : vector<21x48xbf16> to vector<21x24xbf16>
    %79 = vector.extract_strided_slice %52 {offsets = [0, 24], sizes = [48, 24], strides = [1, 1]} : vector<48x48xbf16> to vector<48x24xbf16>
    %cst_54 = arith.constant dense<0.000000e+00> : vector<21x48xf32>
    %80 = tpu.matmul %78, %79, %cst_54 {dimension_numbers = #tpu.dot_dimension_numbers<[1], [1], [0], [0], [0, 0, 1, 0], [], []>} : vector<21x24xbf16>, vector<48x24xbf16>, vector<21x48xf32> -> vector<21x48xf32>
    %cst_55 = arith.constant 0.204124153 : f32
    %81 = vector.broadcast %cst_55 : f32 to vector<21x48xf32>
    %82 = arith.mulf %80, %81 : vector<21x48xf32>
    %cst_56 = arith.constant dense<0xFF800000> : vector<21xf32>
    %83 = vector.multi_reduction <maximumf>, %82, %cst_56 [1] : vector<21x48xf32> to vector<21xf32>
    %84 = vector.shape_cast %83 : vector<21xf32> to vector<21x1xf32>
    %85 = vector.broadcast %84 : vector<21x1xf32> to vector<21x48xf32>
    %86 = arith.subf %82, %85 : vector<21x48xf32>
    %87 = math.exp %86 : vector<21x48xf32>
    %cst_57 = arith.constant dense<0.000000e+00> : vector<21xf32>
    %88 = vector.multi_reduction <add>, %87, %cst_57 [1] : vector<21x48xf32> to vector<21xf32>
    %89 = vector.shape_cast %88 : vector<21xf32> to vector<21x1xf32>
    %90 = tpu.reciprocal %89 {approx = true} : vector<21x1xf32> -> vector<21x1xf32>
    %91 = vector.broadcast %90 : vector<21x1xf32> to vector<21x48xf32>
    %92 = arith.mulf %87, %91 : vector<21x48xf32>
    %93 = arith.truncf %92 : vector<21x48xf32> to vector<21x48xbf16>
    %94 = vector.extract_strided_slice %53 {offsets = [0, 24], sizes = [48, 24], strides = [1, 1]} : vector<48x48xbf16> to vector<48x24xbf16>
    %cst_58 = arith.constant dense<0.000000e+00> : vector<21x24xf32>
    %95 = tpu.matmul %93, %94, %cst_58 {dimension_numbers = #tpu.dot_dimension_numbers<[1], [0], [0], [1], [0, 0, 1, 1], [], []>} : vector<21x48xbf16>, vector<48x24xbf16>, vector<21x24xf32> -> vector<21x24xf32>
    %96 = arith.truncf %95 : vector<21x24xf32> to vector<21x24xbf16>
    %c0_59 = arith.constant 0 : index
    %c1_60 = arith.constant 1 : index
    %c0_61 = arith.constant 0 : index
    %c0_62 = arith.constant 0 : index
    %97 = vector.load %arg11[%c0_59, %c1_60, %c0_61, %c0_62] : memref<2x2x24x48xbf16, #tpu.memory_space<vmem>>, vector<1x1x24x48xbf16>
    %98 = vector.shape_cast %97 : vector<1x1x24x48xbf16> to vector<24x48xbf16>
    %cst_63 = arith.constant dense<0.000000e+00> : vector<21x48xf32>
    %99 = tpu.matmul %96, %98, %cst_63 {dimension_numbers = #tpu.dot_dimension_numbers<[1], [0], [0], [1], [0, 0, 1, 1], [], []>} : vector<21x24xbf16>, vector<24x48xbf16>, vector<21x48xf32> -> vector<21x48xf32>
    %100 = arith.addf %77, %99 : vector<21x48xf32>
    %c0_64 = arith.constant 0 : index
    %c0_65 = arith.constant 0 : index
    %c0_66 = arith.constant 0 : index
    %101 = vector.load %arg12[%c0_64, %c0_65, %c0_66] : memref<2x1x48xf32, #tpu.memory_space<vmem>>, vector<1x1x48xf32>
    %102 = vector.shape_cast %101 : vector<1x1x48xf32> to vector<1x48xf32>
    %103 = vector.broadcast %102 : vector<1x48xf32> to vector<21x48xf32>
    %104 = arith.addf %100, %103 : vector<21x48xf32>
    %105 = arith.addf %23, %104 : vector<21x48xf32>
    %c0_67 = arith.constant 0 : index
    %c0_68 = arith.constant 0 : index
    %c0_69 = arith.constant 0 : index
    %106 = vector.load %arg13[%c0_67, %c0_68, %c0_69] : memref<2x1x48xf32, #tpu.memory_space<vmem>>, vector<1x1x48xf32>
    %107 = vector.shape_cast %106 : vector<1x1x48xf32> to vector<1x48xf32>
    %c0_70 = arith.constant 0 : index
    %c0_71 = arith.constant 0 : index
    %c0_72 = arith.constant 0 : index
    %108 = vector.load %arg14[%c0_70, %c0_71, %c0_72] : memref<2x1x48xf32, #tpu.memory_space<vmem>>, vector<1x1x48xf32>
    %109 = vector.shape_cast %108 : vector<1x1x48xf32> to vector<1x48xf32>
    %cst_73 = arith.constant dense<0.000000e+00> : vector<21xf32>
    %110 = vector.multi_reduction <add>, %105, %cst_73 [1] : vector<21x48xf32> to vector<21xf32>
    %111 = vector.shape_cast %110 : vector<21xf32> to vector<21x1xf32>
    %cst_74 = arith.constant 4.800000e+01 : f32
    %112 = vector.broadcast %cst_74 : f32 to vector<21x1xf32>
    %113 = arith.divf %111, %112 : vector<21x1xf32>
    %114 = vector.broadcast %113 : vector<21x1xf32> to vector<21x48xf32>
    %115 = arith.subf %105, %114 : vector<21x48xf32>
    %116 = arith.mulf %115, %115 : vector<21x48xf32>
    %cst_75 = arith.constant dense<0.000000e+00> : vector<21xf32>
    %117 = vector.multi_reduction <add>, %116, %cst_75 [1] : vector<21x48xf32> to vector<21xf32>
    %118 = vector.shape_cast %117 : vector<21xf32> to vector<21x1xf32>
    %cst_76 = arith.constant 4.800000e+01 : f32
    %119 = vector.broadcast %cst_76 : f32 to vector<21x1xf32>
    %120 = arith.divf %118, %119 : vector<21x1xf32>
    %121 = vector.broadcast %113 : vector<21x1xf32> to vector<21x48xf32>
    %122 = arith.subf %105, %121 : vector<21x48xf32>
    %cst_77 = arith.constant 9.99999974E-6 : f32
    %123 = vector.broadcast %cst_77 : f32 to vector<21x1xf32>
    %124 = arith.addf %120, %123 : vector<21x1xf32>
    %125 = math.rsqrt %124 : vector<21x1xf32>
    %126 = vector.broadcast %125 : vector<21x1xf32> to vector<21x48xf32>
    %127 = arith.mulf %122, %126 : vector<21x48xf32>
    %128 = vector.broadcast %107 : vector<1x48xf32> to vector<21x48xf32>
    %129 = arith.mulf %127, %128 : vector<21x48xf32>
    %130 = vector.broadcast %109 : vector<1x48xf32> to vector<21x48xf32>
    %131 = arith.addf %129, %130 : vector<21x48xf32>
    %132 = arith.truncf %131 : vector<21x48xf32> to vector<21x48xbf16>
    %c0_78 = arith.constant 0 : index
    %c0_79 = arith.constant 0 : index
    %c0_80 = arith.constant 0 : index
    %133 = vector.load %arg15[%c0_78, %c0_79, %c0_80] : memref<2x48x64xbf16, #tpu.memory_space<vmem>>, vector<1x48x64xbf16>
    %134 = vector.shape_cast %133 : vector<1x48x64xbf16> to vector<48x64xbf16>
    %cst_81 = arith.constant dense<0.000000e+00> : vector<21x64xf32>
    %135 = tpu.matmul %132, %134, %cst_81 {dimension_numbers = #tpu.dot_dimension_numbers<[1], [0], [0], [1], [0, 0, 1, 1], [], []>} : vector<21x48xbf16>, vector<48x64xbf16>, vector<21x64xf32> -> vector<21x64xf32>
    %c0_82 = arith.constant 0 : index
    %c0_83 = arith.constant 0 : index
    %c0_84 = arith.constant 0 : index
    %136 = vector.load %arg16[%c0_82, %c0_83, %c0_84] : memref<2x1x64xf32, #tpu.memory_space<vmem>>, vector<1x1x64xf32>
    %137 = vector.shape_cast %136 : vector<1x1x64xf32> to vector<1x64xf32>
    %138 = vector.broadcast %137 : vector<1x64xf32> to vector<21x64xf32>
    %139 = arith.addf %135, %138 : vector<21x64xf32>
    %cst_85 = arith.constant 0.000000e+00 : f32
    %140 = vector.broadcast %cst_85 : f32 to vector<21x64xf32>
    %141 = arith.maximumf %139, %140 : vector<21x64xf32>
    %142 = arith.truncf %141 : vector<21x64xf32> to vector<21x64xbf16>
    %c0_86 = arith.constant 0 : index
    %c0_87 = arith.constant 0 : index
    %c0_88 = arith.constant 0 : index
    %143 = vector.load %arg17[%c0_86, %c0_87, %c0_88] : memref<2x64x48xbf16, #tpu.memory_space<vmem>>, vector<1x64x48xbf16>
    %144 = vector.shape_cast %143 : vector<1x64x48xbf16> to vector<64x48xbf16>
    %cst_89 = arith.constant dense<0.000000e+00> : vector<21x48xf32>
    %145 = tpu.matmul %142, %144, %cst_89 {dimension_numbers = #tpu.dot_dimension_numbers<[1], [0], [0], [1], [0, 0, 1, 1], [], []>} : vector<21x64xbf16>, vector<64x48xbf16>, vector<21x48xf32> -> vector<21x48xf32>
    %c0_90 = arith.constant 0 : index
    %c0_91 = arith.constant 0 : index
    %c0_92 = arith.constant 0 : index
    %146 = vector.load %arg18[%c0_90, %c0_91, %c0_92] : memref<2x1x48xf32, #tpu.memory_space<vmem>>, vector<1x1x48xf32>
    %147 = vector.shape_cast %146 : vector<1x1x48xf32> to vector<1x48xf32>
    %148 = vector.broadcast %147 : vector<1x48xf32> to vector<21x48xf32>
    %149 = arith.addf %145, %148 : vector<21x48xf32>
    %150 = arith.addf %131, %149 : vector<21x48xf32>
    %c0_93 = arith.constant 0 : index
    %c0_94 = arith.constant 0 : index
    %c0_95 = arith.constant 0 : index
    %151 = vector.load %arg19[%c0_93, %c0_94, %c0_95] : memref<2x1x48xf32, #tpu.memory_space<vmem>>, vector<1x1x48xf32>
    %152 = vector.shape_cast %151 : vector<1x1x48xf32> to vector<1x48xf32>
    %c0_96 = arith.constant 0 : index
    %c0_97 = arith.constant 0 : index
    %c0_98 = arith.constant 0 : index
    %153 = vector.load %arg20[%c0_96, %c0_97, %c0_98] : memref<2x1x48xf32, #tpu.memory_space<vmem>>, vector<1x1x48xf32>
    %154 = vector.shape_cast %153 : vector<1x1x48xf32> to vector<1x48xf32>
    %cst_99 = arith.constant dense<0.000000e+00> : vector<21xf32>
    %155 = vector.multi_reduction <add>, %150, %cst_99 [1] : vector<21x48xf32> to vector<21xf32>
    %156 = vector.shape_cast %155 : vector<21xf32> to vector<21x1xf32>
    %cst_100 = arith.constant 4.800000e+01 : f32
    %157 = vector.broadcast %cst_100 : f32 to vector<21x1xf32>
    %158 = arith.divf %156, %157 : vector<21x1xf32>
    %159 = vector.broadcast %158 : vector<21x1xf32> to vector<21x48xf32>
    %160 = arith.subf %150, %159 : vector<21x48xf32>
    %161 = arith.mulf %160, %160 : vector<21x48xf32>
    %cst_101 = arith.constant dense<0.000000e+00> : vector<21xf32>
    %162 = vector.multi_reduction <add>, %161, %cst_101 [1] : vector<21x48xf32> to vector<21xf32>
    %163 = vector.shape_cast %162 : vector<21xf32> to vector<21x1xf32>
    %cst_102 = arith.constant 4.800000e+01 : f32
    %164 = vector.broadcast %cst_102 : f32 to vector<21x1xf32>
    %165 = arith.divf %163, %164 : vector<21x1xf32>
    %166 = vector.broadcast %158 : vector<21x1xf32> to vector<21x48xf32>
    %167 = arith.subf %150, %166 : vector<21x48xf32>
    %cst_103 = arith.constant 9.99999974E-6 : f32
    %168 = vector.broadcast %cst_103 : f32 to vector<21x1xf32>
    %169 = arith.addf %165, %168 : vector<21x1xf32>
    %170 = math.rsqrt %169 : vector<21x1xf32>
    %171 = vector.broadcast %170 : vector<21x1xf32> to vector<21x48xf32>
    %172 = arith.mulf %167, %171 : vector<21x48xf32>
    %173 = vector.broadcast %152 : vector<1x48xf32> to vector<21x48xf32>
    %174 = arith.mulf %172, %173 : vector<21x48xf32>
    %175 = vector.broadcast %154 : vector<1x48xf32> to vector<21x48xf32>
    %176 = arith.addf %174, %175 : vector<21x48xf32>
    %177 = arith.truncf %176 : vector<21x48xf32> to vector<21x48xbf16>
    %c1_104 = arith.constant 1 : index
    %c0_105 = arith.constant 0 : index
    %c0_106 = arith.constant 0 : index
    %178 = vector.load %arg5[%c1_104, %c0_105, %c0_106] : memref<2x48x48xbf16, #tpu.memory_space<vmem>>, vector<1x48x48xbf16>
    %179 = vector.shape_cast %178 : vector<1x48x48xbf16> to vector<48x48xbf16>
    %cst_107 = arith.constant dense<0.000000e+00> : vector<21x48xf32>
    %180 = tpu.matmul %177, %179, %cst_107 {dimension_numbers = #tpu.dot_dimension_numbers<[1], [0], [0], [1], [0, 0, 1, 1], [], []>} : vector<21x48xbf16>, vector<48x48xbf16>, vector<21x48xf32> -> vector<21x48xf32>
    %c1_108 = arith.constant 1 : index
    %c0_109 = arith.constant 0 : index
    %c0_110 = arith.constant 0 : index
    %181 = vector.load %arg6[%c1_108, %c0_109, %c0_110] : memref<2x1x48xf32, #tpu.memory_space<vmem>>, vector<1x1x48xf32>
    %182 = vector.shape_cast %181 : vector<1x1x48xf32> to vector<1x48xf32>
    %183 = vector.broadcast %182 : vector<1x48xf32> to vector<21x48xf32>
    %184 = arith.addf %180, %183 : vector<21x48xf32>
    %c1_111 = arith.constant 1 : index
    %c0_112 = arith.constant 0 : index
    %c0_113 = arith.constant 0 : index
    %185 = vector.load %arg7[%c1_111, %c0_112, %c0_113] : memref<2x32x48xbf16, #tpu.memory_space<vmem>>, vector<1x32x48xbf16>
    %186 = vector.shape_cast %185 : vector<1x32x48xbf16> to vector<32x48xbf16>
    %cst_114 = arith.constant dense<0.000000e+00> : vector<48x48xf32>
    %187 = tpu.matmul %28, %186, %cst_114 {dimension_numbers = #tpu.dot_dimension_numbers<[1], [0], [0], [1], [0, 0, 1, 1], [], []>} : vector<48x32xbf16>, vector<32x48xbf16>, vector<48x48xf32> -> vector<48x48xf32>
    %c1_115 = arith.constant 1 : index
    %c0_116 = arith.constant 0 : index
    %c0_117 = arith.constant 0 : index
    %188 = vector.load %arg8[%c1_115, %c0_116, %c0_117] : memref<2x1x48xf32, #tpu.memory_space<vmem>>, vector<1x1x48xf32>
    %189 = vector.shape_cast %188 : vector<1x1x48xf32> to vector<1x48xf32>
    %190 = vector.broadcast %189 : vector<1x48xf32> to vector<48x48xf32>
    %191 = arith.addf %187, %190 : vector<48x48xf32>
    %c1_118 = arith.constant 1 : index
    %c0_119 = arith.constant 0 : index
    %c0_120 = arith.constant 0 : index
    %192 = vector.load %arg9[%c1_118, %c0_119, %c0_120] : memref<2x32x48xbf16, #tpu.memory_space<vmem>>, vector<1x32x48xbf16>
    %193 = vector.shape_cast %192 : vector<1x32x48xbf16> to vector<32x48xbf16>
    %cst_121 = arith.constant dense<0.000000e+00> : vector<48x48xf32>
    %194 = tpu.matmul %28, %193, %cst_121 {dimension_numbers = #tpu.dot_dimension_numbers<[1], [0], [0], [1], [0, 0, 1, 1], [], []>} : vector<48x32xbf16>, vector<32x48xbf16>, vector<48x48xf32> -> vector<48x48xf32>
    %c1_122 = arith.constant 1 : index
    %c0_123 = arith.constant 0 : index
    %c0_124 = arith.constant 0 : index
    %195 = vector.load %arg10[%c1_122, %c0_123, %c0_124] : memref<2x1x48xf32, #tpu.memory_space<vmem>>, vector<1x1x48xf32>
    %196 = vector.shape_cast %195 : vector<1x1x48xf32> to vector<1x48xf32>
    %197 = vector.broadcast %196 : vector<1x48xf32> to vector<48x48xf32>
    %198 = arith.addf %194, %197 : vector<48x48xf32>
    %199 = arith.truncf %184 : vector<21x48xf32> to vector<21x48xbf16>
    %200 = arith.truncf %191 : vector<48x48xf32> to vector<48x48xbf16>
    %201 = arith.truncf %198 : vector<48x48xf32> to vector<48x48xbf16>
    %cst_125 = arith.constant 0.000000e+00 : f32
    %202 = vector.broadcast %cst_125 : f32 to vector<21x48xf32>
    %cst_126 = arith.constant 0.000000e+00 : f32
    %203 = vector.broadcast %cst_126 : f32 to vector<21x48xf32>
    %204 = vector.extract_strided_slice %199 {offsets = [0, 0], sizes = [21, 24], strides = [1, 1]} : vector<21x48xbf16> to vector<21x24xbf16>
    %205 = vector.extract_strided_slice %200 {offsets = [0, 0], sizes = [48, 24], strides = [1, 1]} : vector<48x48xbf16> to vector<48x24xbf16>
    %cst_127 = arith.constant dense<0.000000e+00> : vector<21x48xf32>
    %206 = tpu.matmul %204, %205, %cst_127 {dimension_numbers = #tpu.dot_dimension_numbers<[1], [1], [0], [0], [0, 0, 1, 0], [], []>} : vector<21x24xbf16>, vector<48x24xbf16>, vector<21x48xf32> -> vector<21x48xf32>
    %cst_128 = arith.constant 0.204124153 : f32
    %207 = vector.broadcast %cst_128 : f32 to vector<21x48xf32>
    %208 = arith.mulf %206, %207 : vector<21x48xf32>
    %cst_129 = arith.constant dense<0xFF800000> : vector<21xf32>
    %209 = vector.multi_reduction <maximumf>, %208, %cst_129 [1] : vector<21x48xf32> to vector<21xf32>
    %210 = vector.shape_cast %209 : vector<21xf32> to vector<21x1xf32>
    %211 = vector.broadcast %210 : vector<21x1xf32> to vector<21x48xf32>
    %212 = arith.subf %208, %211 : vector<21x48xf32>
    %213 = math.exp %212 : vector<21x48xf32>
    %cst_130 = arith.constant dense<0.000000e+00> : vector<21xf32>
    %214 = vector.multi_reduction <add>, %213, %cst_130 [1] : vector<21x48xf32> to vector<21xf32>
    %215 = vector.shape_cast %214 : vector<21xf32> to vector<21x1xf32>
    %216 = tpu.reciprocal %215 {approx = true} : vector<21x1xf32> -> vector<21x1xf32>
    %217 = vector.broadcast %216 : vector<21x1xf32> to vector<21x48xf32>
    %218 = arith.mulf %213, %217 : vector<21x48xf32>
    %219 = arith.addf %203, %218 : vector<21x48xf32>
    %220 = arith.truncf %218 : vector<21x48xf32> to vector<21x48xbf16>
    %221 = vector.extract_strided_slice %201 {offsets = [0, 0], sizes = [48, 24], strides = [1, 1]} : vector<48x48xbf16> to vector<48x24xbf16>
    %cst_131 = arith.constant dense<0.000000e+00> : vector<21x24xf32>
    %222 = tpu.matmul %220, %221, %cst_131 {dimension_numbers = #tpu.dot_dimension_numbers<[1], [0], [0], [1], [0, 0, 1, 1], [], []>} : vector<21x48xbf16>, vector<48x24xbf16>, vector<21x24xf32> -> vector<21x24xf32>
    %223 = arith.truncf %222 : vector<21x24xf32> to vector<21x24xbf16>
    %c1_132 = arith.constant 1 : index
    %c0_133 = arith.constant 0 : index
    %c0_134 = arith.constant 0 : index
    %c0_135 = arith.constant 0 : index
    %224 = vector.load %arg11[%c1_132, %c0_133, %c0_134, %c0_135] : memref<2x2x24x48xbf16, #tpu.memory_space<vmem>>, vector<1x1x24x48xbf16>
    %225 = vector.shape_cast %224 : vector<1x1x24x48xbf16> to vector<24x48xbf16>
    %cst_136 = arith.constant dense<0.000000e+00> : vector<21x48xf32>
    %226 = tpu.matmul %223, %225, %cst_136 {dimension_numbers = #tpu.dot_dimension_numbers<[1], [0], [0], [1], [0, 0, 1, 1], [], []>} : vector<21x24xbf16>, vector<24x48xbf16>, vector<21x48xf32> -> vector<21x48xf32>
    %227 = arith.addf %202, %226 : vector<21x48xf32>
    %228 = vector.extract_strided_slice %199 {offsets = [0, 24], sizes = [21, 24], strides = [1, 1]} : vector<21x48xbf16> to vector<21x24xbf16>
    %229 = vector.extract_strided_slice %200 {offsets = [0, 24], sizes = [48, 24], strides = [1, 1]} : vector<48x48xbf16> to vector<48x24xbf16>
    %cst_137 = arith.constant dense<0.000000e+00> : vector<21x48xf32>
    %230 = tpu.matmul %228, %229, %cst_137 {dimension_numbers = #tpu.dot_dimension_numbers<[1], [1], [0], [0], [0, 0, 1, 0], [], []>} : vector<21x24xbf16>, vector<48x24xbf16>, vector<21x48xf32> -> vector<21x48xf32>
    %cst_138 = arith.constant 0.204124153 : f32
    %231 = vector.broadcast %cst_138 : f32 to vector<21x48xf32>
    %232 = arith.mulf %230, %231 : vector<21x48xf32>
    %cst_139 = arith.constant dense<0xFF800000> : vector<21xf32>
    %233 = vector.multi_reduction <maximumf>, %232, %cst_139 [1] : vector<21x48xf32> to vector<21xf32>
    %234 = vector.shape_cast %233 : vector<21xf32> to vector<21x1xf32>
    %235 = vector.broadcast %234 : vector<21x1xf32> to vector<21x48xf32>
    %236 = arith.subf %232, %235 : vector<21x48xf32>
    %237 = math.exp %236 : vector<21x48xf32>
    %cst_140 = arith.constant dense<0.000000e+00> : vector<21xf32>
    %238 = vector.multi_reduction <add>, %237, %cst_140 [1] : vector<21x48xf32> to vector<21xf32>
    %239 = vector.shape_cast %238 : vector<21xf32> to vector<21x1xf32>
    %240 = tpu.reciprocal %239 {approx = true} : vector<21x1xf32> -> vector<21x1xf32>
    %241 = vector.broadcast %240 : vector<21x1xf32> to vector<21x48xf32>
    %242 = arith.mulf %237, %241 : vector<21x48xf32>
    %243 = arith.addf %219, %242 : vector<21x48xf32>
    %244 = arith.truncf %242 : vector<21x48xf32> to vector<21x48xbf16>
    %245 = vector.extract_strided_slice %201 {offsets = [0, 24], sizes = [48, 24], strides = [1, 1]} : vector<48x48xbf16> to vector<48x24xbf16>
    %cst_141 = arith.constant dense<0.000000e+00> : vector<21x24xf32>
    %246 = tpu.matmul %244, %245, %cst_141 {dimension_numbers = #tpu.dot_dimension_numbers<[1], [0], [0], [1], [0, 0, 1, 1], [], []>} : vector<21x48xbf16>, vector<48x24xbf16>, vector<21x24xf32> -> vector<21x24xf32>
    %247 = arith.truncf %246 : vector<21x24xf32> to vector<21x24xbf16>
    %c1_142 = arith.constant 1 : index
    %c1_143 = arith.constant 1 : index
    %c0_144 = arith.constant 0 : index
    %c0_145 = arith.constant 0 : index
    %248 = vector.load %arg11[%c1_142, %c1_143, %c0_144, %c0_145] : memref<2x2x24x48xbf16, #tpu.memory_space<vmem>>, vector<1x1x24x48xbf16>
    %249 = vector.shape_cast %248 : vector<1x1x24x48xbf16> to vector<24x48xbf16>
    %cst_146 = arith.constant dense<0.000000e+00> : vector<21x48xf32>
    %250 = tpu.matmul %247, %249, %cst_146 {dimension_numbers = #tpu.dot_dimension_numbers<[1], [0], [0], [1], [0, 0, 1, 1], [], []>} : vector<21x24xbf16>, vector<24x48xbf16>, vector<21x48xf32> -> vector<21x48xf32>
    %251 = arith.addf %227, %250 : vector<21x48xf32>
    %c1_147 = arith.constant 1 : index
    %c0_148 = arith.constant 0 : index
    %c0_149 = arith.constant 0 : index
    %252 = vector.load %arg12[%c1_147, %c0_148, %c0_149] : memref<2x1x48xf32, #tpu.memory_space<vmem>>, vector<1x1x48xf32>
    %253 = vector.shape_cast %252 : vector<1x1x48xf32> to vector<1x48xf32>
    %254 = vector.broadcast %253 : vector<1x48xf32> to vector<21x48xf32>
    %255 = arith.addf %251, %254 : vector<21x48xf32>
    %256 = arith.addf %176, %255 : vector<21x48xf32>
    %c1_150 = arith.constant 1 : index
    %c0_151 = arith.constant 0 : index
    %c0_152 = arith.constant 0 : index
    %257 = vector.load %arg13[%c1_150, %c0_151, %c0_152] : memref<2x1x48xf32, #tpu.memory_space<vmem>>, vector<1x1x48xf32>
    %258 = vector.shape_cast %257 : vector<1x1x48xf32> to vector<1x48xf32>
    %c1_153 = arith.constant 1 : index
    %c0_154 = arith.constant 0 : index
    %c0_155 = arith.constant 0 : index
    %259 = vector.load %arg14[%c1_153, %c0_154, %c0_155] : memref<2x1x48xf32, #tpu.memory_space<vmem>>, vector<1x1x48xf32>
    %260 = vector.shape_cast %259 : vector<1x1x48xf32> to vector<1x48xf32>
    %cst_156 = arith.constant dense<0.000000e+00> : vector<21xf32>
    %261 = vector.multi_reduction <add>, %256, %cst_156 [1] : vector<21x48xf32> to vector<21xf32>
    %262 = vector.shape_cast %261 : vector<21xf32> to vector<21x1xf32>
    %cst_157 = arith.constant 4.800000e+01 : f32
    %263 = vector.broadcast %cst_157 : f32 to vector<21x1xf32>
    %264 = arith.divf %262, %263 : vector<21x1xf32>
    %265 = vector.broadcast %264 : vector<21x1xf32> to vector<21x48xf32>
    %266 = arith.subf %256, %265 : vector<21x48xf32>
    %267 = arith.mulf %266, %266 : vector<21x48xf32>
    %cst_158 = arith.constant dense<0.000000e+00> : vector<21xf32>
    %268 = vector.multi_reduction <add>, %267, %cst_158 [1] : vector<21x48xf32> to vector<21xf32>
    %269 = vector.shape_cast %268 : vector<21xf32> to vector<21x1xf32>
    %cst_159 = arith.constant 4.800000e+01 : f32
    %270 = vector.broadcast %cst_159 : f32 to vector<21x1xf32>
    %271 = arith.divf %269, %270 : vector<21x1xf32>
    %272 = vector.broadcast %264 : vector<21x1xf32> to vector<21x48xf32>
    %273 = arith.subf %256, %272 : vector<21x48xf32>
    %cst_160 = arith.constant 9.99999974E-6 : f32
    %274 = vector.broadcast %cst_160 : f32 to vector<21x1xf32>
    %275 = arith.addf %271, %274 : vector<21x1xf32>
    %276 = math.rsqrt %275 : vector<21x1xf32>
    %277 = vector.broadcast %276 : vector<21x1xf32> to vector<21x48xf32>
    %278 = arith.mulf %273, %277 : vector<21x48xf32>
    %279 = vector.broadcast %258 : vector<1x48xf32> to vector<21x48xf32>
    %280 = arith.mulf %278, %279 : vector<21x48xf32>
    %281 = vector.broadcast %260 : vector<1x48xf32> to vector<21x48xf32>
    %282 = arith.addf %280, %281 : vector<21x48xf32>
    %283 = arith.truncf %282 : vector<21x48xf32> to vector<21x48xbf16>
    %c1_161 = arith.constant 1 : index
    %c0_162 = arith.constant 0 : index
    %c0_163 = arith.constant 0 : index
    %284 = vector.load %arg15[%c1_161, %c0_162, %c0_163] : memref<2x48x64xbf16, #tpu.memory_space<vmem>>, vector<1x48x64xbf16>
    %285 = vector.shape_cast %284 : vector<1x48x64xbf16> to vector<48x64xbf16>
    %cst_164 = arith.constant dense<0.000000e+00> : vector<21x64xf32>
    %286 = tpu.matmul %283, %285, %cst_164 {dimension_numbers = #tpu.dot_dimension_numbers<[1], [0], [0], [1], [0, 0, 1, 1], [], []>} : vector<21x48xbf16>, vector<48x64xbf16>, vector<21x64xf32> -> vector<21x64xf32>
    %c1_165 = arith.constant 1 : index
    %c0_166 = arith.constant 0 : index
    %c0_167 = arith.constant 0 : index
    %287 = vector.load %arg16[%c1_165, %c0_166, %c0_167] : memref<2x1x64xf32, #tpu.memory_space<vmem>>, vector<1x1x64xf32>
    %288 = vector.shape_cast %287 : vector<1x1x64xf32> to vector<1x64xf32>
    %289 = vector.broadcast %288 : vector<1x64xf32> to vector<21x64xf32>
    %290 = arith.addf %286, %289 : vector<21x64xf32>
    %cst_168 = arith.constant 0.000000e+00 : f32
    %291 = vector.broadcast %cst_168 : f32 to vector<21x64xf32>
    %292 = arith.maximumf %290, %291 : vector<21x64xf32>
    %293 = arith.truncf %292 : vector<21x64xf32> to vector<21x64xbf16>
    %c1_169 = arith.constant 1 : index
    %c0_170 = arith.constant 0 : index
    %c0_171 = arith.constant 0 : index
    %294 = vector.load %arg17[%c1_169, %c0_170, %c0_171] : memref<2x64x48xbf16, #tpu.memory_space<vmem>>, vector<1x64x48xbf16>
    %295 = vector.shape_cast %294 : vector<1x64x48xbf16> to vector<64x48xbf16>
    %cst_172 = arith.constant dense<0.000000e+00> : vector<21x48xf32>
    %296 = tpu.matmul %293, %295, %cst_172 {dimension_numbers = #tpu.dot_dimension_numbers<[1], [0], [0], [1], [0, 0, 1, 1], [], []>} : vector<21x64xbf16>, vector<64x48xbf16>, vector<21x48xf32> -> vector<21x48xf32>
    %c1_173 = arith.constant 1 : index
    %c0_174 = arith.constant 0 : index
    %c0_175 = arith.constant 0 : index
    %297 = vector.load %arg18[%c1_173, %c0_174, %c0_175] : memref<2x1x48xf32, #tpu.memory_space<vmem>>, vector<1x1x48xf32>
    %298 = vector.shape_cast %297 : vector<1x1x48xf32> to vector<1x48xf32>
    %299 = vector.broadcast %298 : vector<1x48xf32> to vector<21x48xf32>
    %300 = arith.addf %296, %299 : vector<21x48xf32>
    %301 = arith.addf %282, %300 : vector<21x48xf32>
    %c1_176 = arith.constant 1 : index
    %c0_177 = arith.constant 0 : index
    %c0_178 = arith.constant 0 : index
    %302 = vector.load %arg19[%c1_176, %c0_177, %c0_178] : memref<2x1x48xf32, #tpu.memory_space<vmem>>, vector<1x1x48xf32>
    %303 = vector.shape_cast %302 : vector<1x1x48xf32> to vector<1x48xf32>
    %c1_179 = arith.constant 1 : index
    %c0_180 = arith.constant 0 : index
    %c0_181 = arith.constant 0 : index
    %304 = vector.load %arg20[%c1_179, %c0_180, %c0_181] : memref<2x1x48xf32, #tpu.memory_space<vmem>>, vector<1x1x48xf32>
    %305 = vector.shape_cast %304 : vector<1x1x48xf32> to vector<1x48xf32>
    %cst_182 = arith.constant dense<0.000000e+00> : vector<21xf32>
    %306 = vector.multi_reduction <add>, %301, %cst_182 [1] : vector<21x48xf32> to vector<21xf32>
    %307 = vector.shape_cast %306 : vector<21xf32> to vector<21x1xf32>
    %cst_183 = arith.constant 4.800000e+01 : f32
    %308 = vector.broadcast %cst_183 : f32 to vector<21x1xf32>
    %309 = arith.divf %307, %308 : vector<21x1xf32>
    %310 = vector.broadcast %309 : vector<21x1xf32> to vector<21x48xf32>
    %311 = arith.subf %301, %310 : vector<21x48xf32>
    %312 = arith.mulf %311, %311 : vector<21x48xf32>
    %cst_184 = arith.constant dense<0.000000e+00> : vector<21xf32>
    %313 = vector.multi_reduction <add>, %312, %cst_184 [1] : vector<21x48xf32> to vector<21xf32>
    %314 = vector.shape_cast %313 : vector<21xf32> to vector<21x1xf32>
    %cst_185 = arith.constant 4.800000e+01 : f32
    %315 = vector.broadcast %cst_185 : f32 to vector<21x1xf32>
    %316 = arith.divf %314, %315 : vector<21x1xf32>
    %317 = vector.broadcast %309 : vector<21x1xf32> to vector<21x48xf32>
    %318 = arith.subf %301, %317 : vector<21x48xf32>
    %cst_186 = arith.constant 9.99999974E-6 : f32
    %319 = vector.broadcast %cst_186 : f32 to vector<21x1xf32>
    %320 = arith.addf %316, %319 : vector<21x1xf32>
    %321 = math.rsqrt %320 : vector<21x1xf32>
    %322 = vector.broadcast %321 : vector<21x1xf32> to vector<21x48xf32>
    %323 = arith.mulf %318, %322 : vector<21x48xf32>
    %324 = vector.broadcast %303 : vector<1x48xf32> to vector<21x48xf32>
    %325 = arith.mulf %323, %324 : vector<21x48xf32>
    %326 = vector.broadcast %305 : vector<1x48xf32> to vector<21x48xf32>
    %327 = arith.addf %325, %326 : vector<21x48xf32>
    %cst_187 = arith.constant 5.000000e-01 : f32
    %328 = vector.broadcast %cst_187 : f32 to vector<21x48xf32>
    %329 = arith.mulf %243, %328 : vector<21x48xf32>
    %c0_188 = arith.constant 0 : index
    %c0_189 = arith.constant 0 : index
    %c0_190 = arith.constant 0 : index
    %330 = vector.load %arg27[%c0_188, %c0_189, %c0_190] : memref<1x21x48xf32, #tpu.memory_space<vmem>>, vector<1x21x48xf32>
    %331 = vector.shape_cast %330 : vector<1x21x48xf32> to vector<21x48xf32>
    %332 = vector.shape_cast %329 : vector<21x48xf32> to vector<1x21x48xf32>
    tpu.vector_store %arg27[%c0_188, %c0_189, %c0_190], %332 {strides = array<i32>} : memref<1x21x48xf32, #tpu.memory_space<vmem>>, vector<1x21x48xf32>,
    %333 = arith.truncf %327 : vector<21x48xf32> to vector<21x48xbf16>
    %c0_191 = arith.constant 0 : index
    %c0_192 = arith.constant 0 : index
    %334 = vector.load %arg21[%c0_191, %c0_192] : memref<48x24xbf16, #tpu.memory_space<vmem>>, vector<48x24xbf16>
    %cst_193 = arith.constant dense<0.000000e+00> : vector<21x24xf32>
    %335 = tpu.matmul %333, %334, %cst_193 {dimension_numbers = #tpu.dot_dimension_numbers<[1], [0], [0], [1], [0, 0, 1, 1], [], []>} : vector<21x48xbf16>, vector<48x24xbf16>, vector<21x24xf32> -> vector<21x24xf32>
    %c0_194 = arith.constant 0 : index
    %c0_195 = arith.constant 0 : index
    %336 = vector.load %arg22[%c0_194, %c0_195] : memref<1x24xf32, #tpu.memory_space<vmem>>, vector<1x24xf32>
    %337 = vector.broadcast %336 : vector<1x24xf32> to vector<21x24xf32>
    %338 = arith.addf %335, %337 : vector<21x24xf32>
    %cst_196 = arith.constant 0.000000e+00 : f32
    %339 = vector.broadcast %cst_196 : f32 to vector<21x24xf32>
    %340 = arith.maximumf %338, %339 : vector<21x24xf32>
    %341 = arith.truncf %340 : vector<21x24xf32> to vector<21x24xbf16>
    %c0_197 = arith.constant 0 : index
    %c0_198 = arith.constant 0 : index
    %342 = vector.load %arg23[%c0_197, %c0_198] : memref<24x3xbf16, #tpu.memory_space<vmem>>, vector<24x3xbf16>
    %cst_199 = arith.constant dense<0.000000e+00> : vector<21x3xf32>
    %343 = tpu.matmul %341, %342, %cst_199 {dimension_numbers = #tpu.dot_dimension_numbers<[1], [0], [0], [1], [0, 0, 1, 1], [], []>} : vector<21x24xbf16>, vector<24x3xbf16>, vector<21x3xf32> -> vector<21x3xf32>
    %c0_200 = arith.constant 0 : index
    %c0_201 = arith.constant 0 : index
    %344 = vector.load %arg24[%c0_200, %c0_201] : memref<1x3xf32, #tpu.memory_space<vmem>>, vector<1x3xf32>
    %345 = vector.broadcast %344 : vector<1x3xf32> to vector<21x3xf32>
    %346 = arith.addf %343, %345 : vector<21x3xf32>
    %c0_202 = arith.constant 0 : index
    %c0_203 = arith.constant 0 : index
    %c0_204 = arith.constant 0 : index
    %347 = vector.load %arg26[%c0_202, %c0_203, %c0_204] : memref<1x21x3xf32, #tpu.memory_space<vmem>>, vector<1x21x3xf32>
    %348 = vector.shape_cast %347 : vector<1x21x3xf32> to vector<21x3xf32>
    %349 = vector.shape_cast %346 : vector<21x3xf32> to vector<1x21x3xf32>
    tpu.vector_store %arg26[%c0_202, %c0_203, %c0_204], %349 {strides = array<i32>} : memref<1x21x3xf32, #tpu.memory_space<vmem>>, vector<1x21x3xf32>,
    return
  }
  func.func @transform_0(%arg0: i32) -> (i32, i32, i32) {
    %c0_i32 = arith.constant 0 : i32
    %c0_i32_0 = arith.constant 0 : i32
    %c0_i32_1 = arith.constant 0 : i32
    return %arg0, %c0_i32, %c0_i32_0 : i32, i32, i32
  }
  func.func @transform_1(%arg0: i32) -> (i32, i32, i32) {
    %c0_i32 = arith.constant 0 : i32
    %c0_i32_0 = arith.constant 0 : i32
    %c0_i32_1 = arith.constant 0 : i32
    return %arg0, %c0_i32, %c0_i32_0 : i32, i32, i32
  }
  func.func @transform_2(%arg0: i32) -> (i32, i32, i32) {
    %c0_i32 = arith.constant 0 : i32
    %c0_i32_0 = arith.constant 0 : i32
    %c0_i32_1 = arith.constant 0 : i32
    %c0_i32_2 = arith.constant 0 : i32
    return %c0_i32, %c0_i32_0, %c0_i32_1 : i32, i32, i32
  }
  func.func @transform_3(%arg0: i32) -> (i32, i32, i32) {
    %c0_i32 = arith.constant 0 : i32
    %c0_i32_0 = arith.constant 0 : i32
    %c0_i32_1 = arith.constant 0 : i32
    %c0_i32_2 = arith.constant 0 : i32
    return %c0_i32, %c0_i32_0, %c0_i32_1 : i32, i32, i32
  }
  func.func @transform_4(%arg0: i32) -> (i32, i32, i32) {
    %c0_i32 = arith.constant 0 : i32
    %c0_i32_0 = arith.constant 0 : i32
    %c0_i32_1 = arith.constant 0 : i32
    %c0_i32_2 = arith.constant 0 : i32
    return %c0_i32, %c0_i32_0, %c0_i32_1 : i32, i32, i32
  }
  func.func @transform_5(%arg0: i32) -> (i32, i32, i32) {
    %c0_i32 = arith.constant 0 : i32
    %c0_i32_0 = arith.constant 0 : i32
    %c0_i32_1 = arith.constant 0 : i32
    %c0_i32_2 = arith.constant 0 : i32
    return %c0_i32, %c0_i32_0, %c0_i32_1 : i32, i32, i32
  }
  func.func @transform_6(%arg0: i32) -> (i32, i32, i32) {
    %c0_i32 = arith.constant 0 : i32
    %c0_i32_0 = arith.constant 0 : i32
    %c0_i32_1 = arith.constant 0 : i32
    %c0_i32_2 = arith.constant 0 : i32
    return %c0_i32, %c0_i32_0, %c0_i32_1 : i32, i32, i32
  }
  func.func @transform_7(%arg0: i32) -> (i32, i32, i32) {
    %c0_i32 = arith.constant 0 : i32
    %c0_i32_0 = arith.constant 0 : i32
    %c0_i32_1 = arith.constant 0 : i32
    %c0_i32_2 = arith.constant 0 : i32
    return %c0_i32, %c0_i32_0, %c0_i32_1 : i32, i32, i32
  }
  func.func @transform_8(%arg0: i32) -> (i32, i32, i32) {
    %c0_i32 = arith.constant 0 : i32
    %c0_i32_0 = arith.constant 0 : i32
    %c0_i32_1 = arith.constant 0 : i32
    %c0_i32_2 = arith.constant 0 : i32
    return %c0_i32, %c0_i32_0, %c0_i32_1 : i32, i32, i32
  }
  func.func @transform_9(%arg0: i32) -> (i32, i32, i32) {
    %c0_i32 = arith.constant 0 : i32
    %c0_i32_0 = arith.constant 0 : i32
    %c0_i32_1 = arith.constant 0 : i32
    %c0_i32_2 = arith.constant 0 : i32
    return %c0_i32, %c0_i32_0, %c0_i32_1 : i32, i32, i32
  }
  func.func @transform_10(%arg0: i32) -> (i32, i32, i32, i32) {
    %c0_i32 = arith.constant 0 : i32
    %c0_i32_0 = arith.constant 0 : i32
    %c0_i32_1 = arith.constant 0 : i32
    %c0_i32_2 = arith.constant 0 : i32
    %c0_i32_3 = arith.constant 0 : i32
    return %c0_i32, %c0_i32_0, %c0_i32_1, %c0_i32_2 : i32, i32, i32, i32
  }
  func.func @transform_11(%arg0: i32) -> (i32, i32, i32) {
    %c0_i32 = arith.constant 0 : i32
    %c0_i32_0 = arith.constant 0 : i32
    %c0_i32_1 = arith.constant 0 : i32
    %c0_i32_2 = arith.constant 0 : i32
    return %c0_i32, %c0_i32_0, %c0_i32_1 : i32, i32, i32
  }
  func.func @transform_12(%arg0: i32) -> (i32, i32, i32) {
    %c0_i32 = arith.constant 0 : i32
    %c0_i32_0 = arith.constant 0 : i32
    %c0_i32_1 = arith.constant 0 : i32
    %c0_i32_2 = arith.constant 0 : i32
    return %c0_i32, %c0_i32_0, %c0_i32_1 : i32, i32, i32
  }
  func.func @transform_13(%arg0: i32) -> (i32, i32, i32) {
    %c0_i32 = arith.constant 0 : i32
    %c0_i32_0 = arith.constant 0 : i32
    %c0_i32_1 = arith.constant 0 : i32
    %c0_i32_2 = arith.constant 0 : i32
    return %c0_i32, %c0_i32_0, %c0_i32_1 : i32, i32, i32
  }
  func.func @transform_14(%arg0: i32) -> (i32, i32, i32) {
    %c0_i32 = arith.constant 0 : i32
    %c0_i32_0 = arith.constant 0 : i32
    %c0_i32_1 = arith.constant 0 : i32
    %c0_i32_2 = arith.constant 0 : i32
    return %c0_i32, %c0_i32_0, %c0_i32_1 : i32, i32, i32
  }
  func.func @transform_15(%arg0: i32) -> (i32, i32, i32) {
    %c0_i32 = arith.constant 0 : i32
    %c0_i32_0 = arith.constant 0 : i32
    %c0_i32_1 = arith.constant 0 : i32
    %c0_i32_2 = arith.constant 0 : i32
    return %c0_i32, %c0_i32_0, %c0_i32_1 : i32, i32, i32
  }
  func.func @transform_16(%arg0: i32) -> (i32, i32, i32) {
    %c0_i32 = arith.constant 0 : i32
    %c0_i32_0 = arith.constant 0 : i32
    %c0_i32_1 = arith.constant 0 : i32
    %c0_i32_2 = arith.constant 0 : i32
    return %c0_i32, %c0_i32_0, %c0_i32_1 : i32, i32, i32
  }
  func.func @transform_17(%arg0: i32) -> (i32, i32, i32) {
    %c0_i32 = arith.constant 0 : i32
    %c0_i32_0 = arith.constant 0 : i32
    %c0_i32_1 = arith.constant 0 : i32
    %c0_i32_2 = arith.constant 0 : i32
    return %c0_i32, %c0_i32_0, %c0_i32_1 : i32, i32, i32
  }
  func.func @transform_18(%arg0: i32) -> (i32, i32, i32) {
    %c0_i32 = arith.constant 0 : i32
    %c0_i32_0 = arith.constant 0 : i32
    %c0_i32_1 = arith.constant 0 : i32
    %c0_i32_2 = arith.constant 0 : i32
    return %c0_i32, %c0_i32_0, %c0_i32_1 : i32, i32, i32
  }
  func.func @transform_19(%arg0: i32) -> (i32, i32, i32) {
    %c0_i32 = arith.constant 0 : i32
    %c0_i32_0 = arith.constant 0 : i32
    %c0_i32_1 = arith.constant 0 : i32
    %c0_i32_2 = arith.constant 0 : i32
    return %c0_i32, %c0_i32_0, %c0_i32_1 : i32, i32, i32
  }
  func.func @transform_20(%arg0: i32) -> (i32, i32) {
    %c0_i32 = arith.constant 0 : i32
    %c0_i32_0 = arith.constant 0 : i32
    %c0_i32_1 = arith.constant 0 : i32
    return %c0_i32, %c0_i32_0 : i32, i32
  }
  func.func @transform_21(%arg0: i32) -> (i32, i32) {
    %c0_i32 = arith.constant 0 : i32
    %c0_i32_0 = arith.constant 0 : i32
    %c0_i32_1 = arith.constant 0 : i32
    return %c0_i32, %c0_i32_0 : i32, i32
  }
  func.func @transform_22(%arg0: i32) -> (i32, i32) {
    %c0_i32 = arith.constant 0 : i32
    %c0_i32_0 = arith.constant 0 : i32
    %c0_i32_1 = arith.constant 0 : i32
    return %c0_i32, %c0_i32_0 : i32, i32
  }
  func.func @transform_23(%arg0: i32) -> (i32, i32) {
    %c0_i32 = arith.constant 0 : i32
    %c0_i32_0 = arith.constant 0 : i32
    %c0_i32_1 = arith.constant 0 : i32
    return %c0_i32, %c0_i32_0 : i32, i32
  }
  func.func @transform_24(%arg0: i32) -> (i32, i32, i32) {
    %c0_i32 = arith.constant 0 : i32
    %c0_i32_0 = arith.constant 0 : i32
    %c0_i32_1 = arith.constant 0 : i32
    return %arg0, %c0_i32, %c0_i32_0 : i32, i32, i32
  }
  func.func @transform_25(%arg0: i32) -> (i32, i32, i32) {
    %c0_i32 = arith.constant 0 : i32
    %c0_i32_0 = arith.constant 0 : i32
    %c0_i32_1 = arith.constant 0 : i32
    return %arg0, %c0_i32, %c0_i32_0 : i32, i32, i32
  }
  func.func @transform_26(%arg0: i32) -> (i32, i32, i32) {
    %c0_i32 = arith.constant 0 : i32
    %c0_i32_0 = arith.constant 0 : i32
    %c0_i32_1 = arith.constant 0 : i32
    return %arg0, %c0_i32, %c0_i32_0 : i32, i32, i32
  }
}

</mosaic_0001>

<llo_original>
// kernel: tapor_forward.3
$region0: #{tapor_forward.3}
  #allocation0 [shape = 'u32[]', space=smem, size = 0x4, offset = 0x4, fixed_abs, tag = 'smem constant byte address 0x4 - core index']
  #allocation1 [shape = 'u32[144,128]{1,0:T(1,128)}', space=vmem, size = 0x12000, scoped, tag = 'internal scratch']
  %s0 = inlined_call_operand.vmem [shape: bf16[1152,9], index: 0, kind: input, shape index: {}]
  %s1 = inlined_call_operand.vmem [shape: bf16[384,9], index: 1, kind: input, shape index: {}]
  %s2 = inlined_call_operand.vmem [shape: bf16[9,16], index: 2, kind: input, shape index: {}]
  %s3 = inlined_call_operand.vmem [shape: f32[1,16], index: 3, kind: input, shape index: {}]
  %s4 = inlined_call_operand.vmem [shape: bf16[9,16], index: 4, kind: input, shape index: {}]
  %s5 = inlined_call_operand.vmem [shape: f32[1,16], index: 5, kind: input, shape index: {}]
  %s6 = inlined_call_operand.vmem [shape: bf16[1152,16], index: 6, kind: output, shape index: {0}]
  %s7 = inlined_call_operand.vmem [shape: bf16[384,16], index: 7, kind: output, shape index: {1}]
  %8 = xla_tuple %s6, %s7
  %s9 = sld [smem:[#allocation0]]
  $region42: #{tapor_forward.3} parent=0
    _
  %s11 = ssub.s32 1, %s9
  %s12 = scalar_select 0, %s11, %s9
  // Predicated region
  $region2: #{tapor_forward.3} parent=0 // pred_check
    _
  $region3: #{tapor_forward.3} parent=0 // pred_check_branch
    %14 = sbr.rel (0) target = $region5
  $region4: #{tapor_forward.3} parent=0 // pred_region
    _
  $region5: #{tapor_forward.3} parent=0 // pred_fallthru
    _
  // Predicated region
  $region6: #{tapor_forward.3} parent=0 // pred_check
    _
  $region7: #{tapor_forward.3} parent=0 // pred_check_branch
    %16 = sbr.rel (0) target = $region9
  $region8: #{tapor_forward.3} parent=0 // pred_region
    _
  $region9: #{tapor_forward.3} parent=0 // pred_fallthru
    _
  // Predicated region
  $region10: #{tapor_forward.3} parent=0 // pred_check
    _
  $region11: #{tapor_forward.3} parent=0 // pred_check_branch
    %18 = sbr.rel (0) target = $region13
  $region12: #{tapor_forward.3} parent=0 // pred_region
    _
  $region13: #{tapor_forward.3} parent=0 // pred_fallthru
    _
  // Predicated region
  $region14: #{tapor_forward.3} parent=0 // pred_check
    _
  $region15: #{tapor_forward.3} parent=0 // pred_check_branch
    %20 = sbr.rel (0) target = $region17
  $region16: #{tapor_forward.3} parent=0 // pred_region
    _
  $region17: #{tapor_forward.3} parent=0 // pred_fallthru
    _
  // Predicated region
  $region18: #{tapor_forward.3} parent=0 // pred_check
    _
  $region19: #{tapor_forward.3} parent=0 // pred_check_branch
    %22 = sbr.rel (0) target = $region21
  $region20: #{tapor_forward.3} parent=0 // pred_region
    _
  $region21: #{tapor_forward.3} parent=0 // pred_fallthru
    _
  // Predicated region
  $region22: #{tapor_forward.3} parent=0 // pred_check
    _
  $region23: #{tapor_forward.3} parent=0 // pred_check_branch
    %24 = sbr.rel (0) target = $region25
  $region24: #{tapor_forward.3} parent=0 // pred_region
    _
  $region25: #{tapor_forward.3} parent=0 // pred_fallthru
    _
  %v26 = vld [vmem:[%s0] sm:$0xf]
  %v27 = vld [vmem:[%s0 + $0x4] sm:$0xf]
  %v28 = vld [vmem:[%s0 + $0x8] sm:$0xf]
  %v29 = vld [vmem:[%s0 + $0xc] sm:$0xf]
  %v30 = vld [vmem:[%s0 + $0x10] sm:$0xf]
  %v31 = vld [vmem:[%s0 + $0x14] sm:$0xf]
  %v32 = vld [vmem:[%s0 + $0x18] sm:$0xf]
  %v33 = vld [vmem:[%s0 + $0x1c] sm:$0xf]
  %v34 = vld [vmem:[%s0 + $0x20] sm:$0xf]
  %v35 = vld [vmem:[%s0 + $0x24] sm:$0xf]
  %v36 = vld [vmem:[%s0 + $0x28] sm:$0xf]
  %v37 = vld [vmem:[%s0 + $0x2c] sm:$0xf]
  %v38 = vld [vmem:[%s0 + $0x30] sm:$0xf]
  %v39 = vld [vmem:[%s0 + $0x34] sm:$0xf]
  %v40 = vld [vmem:[%s0 + $0x38] sm:$0xf]
  %v41 = vld [vmem:[%s0 + $0x3c] sm:$0xf]
  %v42 = vld [vmem:[%s0 + $0x40] sm:$0xf]
  %v43 = vld [vmem:[%s0 + $0x44] sm:$0xf]
  %v44 = vld [vmem:[%s0 + $0x48] sm:$0xf]
  %v45 = vld [vmem:[%s0 + $0x4c] sm:$0xf]
  %v46 = vld [vmem:[%s0 + $0x50] sm:$0xf]
  %v47 = vld [vmem:[%s0 + $0x54] sm:$0xf]
  %v48 = vld [vmem:[%s0 + $0x58] sm:$0xf]
  %v49 = vld [vmem:[%s0 + $0x5c] sm:$0xf]
  %v50 = vld [vmem:[%s0 + $0x60] sm:$0xf]
  %v51 = vld [vmem:[%s0 + $0x64] sm:$0xf]
  %v52 = vld [vmem:[%s0 + $0x68] sm:$0xf]
  %v53 = vld [vmem:[%s0 + $0x6c] sm:$0xf]
  %v54 = vld [vmem:[%s0 + $0x70] sm:$0xf]
  %v55 = vld [vmem:[%s0 + $0x74] sm:$0xf]
  %v56 = vld [vmem:[%s0 + $0x78] sm:$0xf]
  %v57 = vld [vmem:[%s0 + $0x7c] sm:$0xf]
  %v58 = vld [vmem:[%s0 + $0x80] sm:$0xf]
  %v59 = vld [vmem:[%s0 + $0x84] sm:$0xf]
  %v60 = vld [vmem:[%s0 + $0x88] sm:$0xf]
  %v61 = vld [vmem:[%s0 + $0x8c] sm:$0xf]
  %v62 = vld [vmem:[%s0 + $0x90] sm:$0xf]
  %v63 = vld [vmem:[%s0 + $0x94] sm:$0xf]
  %v64 = vld [vmem:[%s0 + $0x98] sm:$0xf]
  %v65 = vld [vmem:[%s0 + $0x9c] sm:$0xf]
  %v66 = vld [vmem:[%s0 + $0xa0] sm:$0xf]
  %v67 = vld [vmem:[%s0 + $0xa4] sm:$0xf]
  %v68 = vld [vmem:[%s0 + $0xa8] sm:$0xf]
  %v69 = vld [vmem:[%s0 + $0xac] sm:$0xf]
  %v70 = vld [vmem:[%s0 + $0xb0] sm:$0xf]
  %v71 = vld [vmem:[%s0 + $0xb4] sm:$0xf]
  %v72 = vld [vmem:[%s0 + $0xb8] sm:$0xf]
  %v73 = vld [vmem:[%s0 + $0xbc] sm:$0xf]
  %v74 = vld [vmem:[%s0 + $0xc0] sm:$0xf]
  %v75 = vld [vmem:[%s0 + $0xc4] sm:$0xf]
  %v76 = vld [vmem:[%s0 + $0xc8] sm:$0xf]
  %v77 = vld [vmem:[%s0 + $0xcc] sm:$0xf]
  %v78 = vld [vmem:[%s0 + $0xd0] sm:$0xf]
  %v79 = vld [vmem:[%s0 + $0xd4] sm:$0xf]
  %v80 = vld [vmem:[%s0 + $0xd8] sm:$0xf]
  %v81 = vld [vmem:[%s0 + $0xdc] sm:$0xf]
  %v82 = vld [vmem:[%s0 + $0xe0] sm:$0xf]
  %v83 = vld [vmem:[%s0 + $0xe4] sm:$0xf]
  %v84 = vld [vmem:[%s0 + $0xe8] sm:$0xf]
  %v85 = vld [vmem:[%s0 + $0xec] sm:$0xf]
  %v86 = vld [vmem:[%s0 + $0xf0] sm:$0xf]
  %v87 = vld [vmem:[%s0 + $0xf4] sm:$0xf]
  %v88 = vld [vmem:[%s0 + $0xf8] sm:$0xf]
  %v89 = vld [vmem:[%s0 + $0xfc] sm:$0xf]
  %v90 = vld [vmem:[%s0 + $0x100] sm:$0xf]
  %v91 = vld [vmem:[%s0 + $0x104] sm:$0xf]
  %v92 = vld [vmem:[%s0 + $0x108] sm:$0xf]
  %v93 = vld [vmem:[%s0 + $0x10c] sm:$0xf]
  %v94 = vld [vmem:[%s0 + $0x110] sm:$0xf]
  %v95 = vld [vmem:[%s0 + $0x114] sm:$0xf]
  %v96 = vld [vmem:[%s0 + $0x118] sm:$0xf]
  %v97 = vld [vmem:[%s0 + $0x11c] sm:$0xf]
  %v98 = vld [vmem:[%s0 + $0x120] sm:$0xf]
  %v99 = vld [vmem:[%s0 + $0x124] sm:$0xf]
  %v100 = vld [vmem:[%s0 + $0x128] sm:$0xf]
  %v101 = vld [vmem:[%s0 + $0x12c] sm:$0xf]
  %v102 = vld [vmem:[%s0 + $0x130] sm:$0xf]
  %v103 = vld [vmem:[%s0 + $0x134] sm:$0xf]
  %v104 = vld [vmem:[%s0 + $0x138] sm:$0xf]
  %v105 = vld [vmem:[%s0 + $0x13c] sm:$0xf]
  %v106 = vld [vmem:[%s0 + $0x140] sm:$0xf]
  %v107 = vld [vmem:[%s0 + $0x144] sm:$0xf]
  %v108 = vld [vmem:[%s0 + $0x148] sm:$0xf]
  %v109 = vld [vmem:[%s0 + $0x14c] sm:$0xf]
  %v110 = vld [vmem:[%s0 + $0x150] sm:$0xf]
  %v111 = vld [vmem:[%s0 + $0x154] sm:$0xf]
  %v112 = vld [vmem:[%s0 + $0x158] sm:$0xf]
  %v113 = vld [vmem:[%s0 + $0x15c] sm:$0xf]
  %v114 = vld [vmem:[%s0 + $0x160] sm:$0xf]
  %v115 = vld [vmem:[%s0 + $0x164] sm:$0xf]
  %v116 = vld [vmem:[%s0 + $0x168] sm:$0xf]
  %v117 = vld [vmem:[%s0 + $0x16c] sm:$0xf]
  %v118 = vld [vmem:[%s0 + $0x170] sm:$0xf]
  %v119 = vld [vmem:[%s0 + $0x174] sm:$0xf]
  %v120 = vld [vmem:[%s0 + $0x178] sm:$0xf]
  %v121 = vld [vmem:[%s0 + $0x17c] sm:$0xf]
  %v122 = vld [vmem:[%s0 + $0x180] sm:$0xf]
  %v123 = vld [vmem:[%s0 + $0x184] sm:$0xf]
  %v124 = vld [vmem:[%s0 + $0x188] sm:$0xf]
  %v125 = vld [vmem:[%s0 + $0x18c] sm:$0xf]
  %v126 = vld [vmem:[%s0 + $0x190] sm:$0xf]
  %v127 = vld [vmem:[%s0 + $0x194] sm:$0xf]
  %v128 = vld [vmem:[%s0 + $0x198] sm:$0xf]
  %v129 = vld [vmem:[%s0 + $0x19c] sm:$0xf]
  %v130 = vld [vmem:[%s0 + $0x1a0] sm:$0xf]
  %v131 = vld [vmem:[%s0 + $0x1a4] sm:$0xf]
  %v132 = vld [vmem:[%s0 + $0x1a8] sm:$0xf]
  %v133 = vld [vmem:[%s0 + $0x1ac] sm:$0xf]
  %v134 = vld [vmem:[%s0 + $0x1b0] sm:$0xf]
  %v135 = vld [vmem:[%s0 + $0x1b4] sm:$0xf]
  %v136 = vld [vmem:[%s0 + $0x1b8] sm:$0xf]
  %v137 = vld [vmem:[%s0 + $0x1bc] sm:$0xf]
  %v138 = vld [vmem:[%s0 + $0x1c0] sm:$0xf]
  %v139 = vld [vmem:[%s0 + $0x1c4] sm:$0xf]
  %v140 = vld [vmem:[%s0 + $0x1c8] sm:$0xf]
  %v141 = vld [vmem:[%s0 + $0x1cc] sm:$0xf]
  %v142 = vld [vmem:[%s0 + $0x1d0] sm:$0xf]
  %v143 = vld [vmem:[%s0 + $0x1d4] sm:$0xf]
  %v144 = vld [vmem:[%s0 + $0x1d8] sm:$0xf]
  %v145 = vld [vmem:[%s0 + $0x1dc] sm:$0xf]
  %v146 = vld [vmem:[%s0 + $0x1e0] sm:$0xf]
  %v147 = vld [vmem:[%s0 + $0x1e4] sm:$0xf]
  %v148 = vld [vmem:[%s0 + $0x1e8] sm:$0xf]
  %v149 = vld [vmem:[%s0 + $0x1ec] sm:$0xf]
  %v150 = vld [vmem:[%s0 + $0x1f0] sm:$0xf]
  %v151 = vld [vmem:[%s0 + $0x1f4] sm:$0xf]
  %v152 = vld [vmem:[%s0 + $0x1f8] sm:$0xf]
  %v153 = vld [vmem:[%s0 + $0x1fc] sm:$0xf]
  %v154 = vld [vmem:[%s0 + $0x200] sm:$0xf]
  %v155 = vld [vmem:[%s0 + $0x204] sm:$0xf]
  %v156 = vld [vmem:[%s0 + $0x208] sm:$0xf]
  %v157 = vld [vmem:[%s0 + $0x20c] sm:$0xf]
  %v158 = vld [vmem:[%s0 + $0x210] sm:$0xf]
  %v159 = vld [vmem:[%s0 + $0x214] sm:$0xf]
  %v160 = vld [vmem:[%s0 + $0x218] sm:$0xf]
  %v161 = vld [vmem:[%s0 + $0x21c] sm:$0xf]
  %v162 = vld [vmem:[%s0 + $0x220] sm:$0xf]
  %v163 = vld [vmem:[%s0 + $0x224] sm:$0xf]
  %v164 = vld [vmem:[%s0 + $0x228] sm:$0xf]
  %v165 = vld [vmem:[%s0 + $0x22c] sm:$0xf]
  %v166 = vld [vmem:[%s0 + $0x230] sm:$0xf]
  %v167 = vld [vmem:[%s0 + $0x234] sm:$0xf]
  %v168 = vld [vmem:[%s0 + $0x238] sm:$0xf]
  %v169 = vld [vmem:[%s0 + $0x23c] sm:$0xf]
  %v170 = vld [vmem:[%s2] sm:$0xf]
  %v171 = vld [vmem:[%s2 + $0x4] sm:$0x1]
  %v172 = vld [vmem:[%s3] sm:$0x1]
  %v174 = vlaneseq
  %v175 = vshrl.u32 %v174, 7
  %v176 = vsub.s32 0, %v175
  %v177 = vrot.slane %v172, %v176
  %v323 = vunpack.c.l.b16 %v26
  %v324 = vunpack.c.l.b16 %v27
  %v325 = vunpack.c.l.b16 %v28
  %v326 = vunpack.c.l.b16 %v29
  %v327 = vunpack.c.l.b16 %v30
  %v328 = vunpack.c.l.b16 %v31
  %v329 = vunpack.c.l.b16 %v32
  %v330 = vunpack.c.l.b16 %v33
  %v331 = vunpack.c.l.b16 %v34
  %v332 = vunpack.c.l.b16 %v35
  %v333 = vunpack.c.l.b16 %v36
  %v334 = vunpack.c.l.b16 %v37
  %v335 = vunpack.c.l.b16 %v38
  %v336 = vunpack.c.l.b16 %v39
  %v337 = vunpack.c.l.b16 %v40
  %v338 = vunpack.c.l.b16 %v41
  %v339 = vunpack.c.l.b16 %v42
  %v340 = vunpack.c.l.b16 %v43
  %v341 = vunpack.c.l.b16 %v44
  %v342 = vunpack.c.l.b16 %v45
  %v343 = vunpack.c.l.b16 %v46
  %v344 = vunpack.c.l.b16 %v47
  %v345 = vunpack.c.l.b16 %v48
  %v346 = vunpack.c.l.b16 %v49
  %v347 = vunpack.c.l.b16 %v50
  %v348 = vunpack.c.l.b16 %v51
  %v349 = vunpack.c.l.b16 %v52
  %v350 = vunpack.c.l.b16 %v53
  %v351 = vunpack.c.l.b16 %v54
  %v352 = vunpack.c.l.b16 %v55
  %v353 = vunpack.c.l.b16 %v56
  %v354 = vunpack.c.l.b16 %v57
  %v355 = vunpack.c.l.b16 %v58
  %v356 = vunpack.c.l.b16 %v59
  %v357 = vunpack.c.l.b16 %v60
  %v358 = vunpack.c.l.b16 %v61
  %v359 = vunpack.c.l.b16 %v62
  %v360 = vunpack.c.l.b16 %v63
  %v361 = vunpack.c.l.b16 %v64
  %v362 = vunpack.c.l.b16 %v65
  %v363 = vunpack.c.l.b16 %v66
  %v364 = vunpack.c.l.b16 %v67
  %v365 = vunpack.c.l.b16 %v68
  %v366 = vunpack.c.l.b16 %v69
  %v367 = vunpack.c.l.b16 %v70
  %v368 = vunpack.c.l.b16 %v71
  %v369 = vunpack.c.l.b16 %v72
  %v370 = vunpack.c.l.b16 %v73
  %v371 = vunpack.c.l.b16 %v74
  %v372 = vunpack.c.l.b16 %v75
  %v373 = vunpack.c.l.b16 %v76
  %v374 = vunpack.c.l.b16 %v77
  %v375 = vunpack.c.l.b16 %v78
  %v376 = vunpack.c.l.b16 %v79
  %v377 = vunpack.c.l.b16 %v80
  %v378 = vunpack.c.l.b16 %v81
  %v379 = vunpack.c.l.b16 %v82
  %v380 = vunpack.c.l.b16 %v83
  %v381 = vunpack.c.l.b16 %v84
  %v382 = vunpack.c.l.b16 %v85
  %v383 = vunpack.c.l.b16 %v86
  %v384 = vunpack.c.l.b16 %v87
  %v385 = vunpack.c.l.b16 %v88
  %v386 = vunpack.c.l.b16 %v89
  %v387 = vunpack.c.l.b16 %v90
  %v388 = vunpack.c.l.b16 %v91
  %v389 = vunpack.c.l.b16 %v92
  %v390 = vunpack.c.l.b16 %v93
  %v391 = vunpack.c.l.b16 %v94
  %v392 = vunpack.c.l.b16 %v95
  %v393 = vunpack.c.l.b16 %v96
  %v394 = vunpack.c.l.b16 %v97
  %v395 = vunpack.c.l.b16 %v98
  %v396 = vunpack.c.l.b16 %v99
  %v397 = vunpack.c.l.b16 %v100
  %v398 = vunpack.c.l.b16 %v101
  %v399 = vunpack.c.l.b16 %v102
  %v400 = vunpack.c.l.b16 %v103
  %v401 = vunpack.c.l.b16 %v104
  %v402 = vunpack.c.l.b16 %v105
  %v403 = vunpack.c.l.b16 %v106
  %v404 = vunpack.c.l.b16 %v107
  %v405 = vunpack.c.l.b16 %v108
  %v406 = vunpack.c.l.b16 %v109
  %v407 = vunpack.c.l.b16 %v110
  %v408 = vunpack.c.l.b16 %v111
  %v409 = vunpack.c.l.b16 %v112
  %v410 = vunpack.c.l.b16 %v113
  %v411 = vunpack.c.l.b16 %v114
  %v412 = vunpack.c.l.b16 %v115
  %v413 = vunpack.c.l.b16 %v116
  %v414 = vunpack.c.l.b16 %v117
  %v415 = vunpack.c.l.b16 %v118
  %v416 = vunpack.c.l.b16 %v119
  %v417 = vunpack.c.l.b16 %v120
  %v418 = vunpack.c.l.b16 %v121
  %v419 = vunpack.c.l.b16 %v122
  %v420 = vunpack.c.l.b16 %v123
  %v421 = vunpack.c.l.b16 %v124
  %v422 = vunpack.c.l.b16 %v125
  %v423 = vunpack.c.l.b16 %v126
  %v424 = vunpack.c.l.b16 %v127
  %v425 = vunpack.c.l.b16 %v128
  %v426 = vunpack.c.l.b16 %v129
  %v427 = vunpack.c.l.b16 %v130
  %v428 = vunpack.c.l.b16 %v131
  %v429 = vunpack.c.l.b16 %v132
  %v430 = vunpack.c.l.b16 %v133
  %v431 = vunpack.c.l.b16 %v134
  %v432 = vunpack.c.l.b16 %v135
  %v433 = vunpack.c.l.b16 %v136
  %v434 = vunpack.c.l.b16 %v137
  %v435 = vunpack.c.l.b16 %v138
  %v436 = vunpack.c.l.b16 %v139
  %v437 = vunpack.c.l.b16 %v140
  %v438 = vunpack.c.l.b16 %v141
  %v439 = vunpack.c.l.b16 %v142
  %v440 = vunpack.c.l.b16 %v143
  %v441 = vunpack.c.l.b16 %v144
  %v442 = vunpack.c.l.b16 %v145
  %v443 = vunpack.c.l.b16 %v146
  %v444 = vunpack.c.l.b16 %v147
  %v445 = vunpack.c.l.b16 %v148
  %v446 = vunpack.c.l.b16 %v149
  %v447 = vunpack.c.l.b16 %v150
  %v448 = vunpack.c.l.b16 %v151
  %v449 = vunpack.c.l.b16 %v152
  %v450 = vunpack.c.l.b16 %v153
  %v451 = vunpack.c.l.b16 %v154
  %v452 = vunpack.c.l.b16 %v155
  %v453 = vunpack.c.l.b16 %v156
  %v454 = vunpack.c.l.b16 %v157
  %v455 = vunpack.c.l.b16 %v158
  %v456 = vunpack.c.l.b16 %v159
  %v457 = vunpack.c.l.b16 %v160
  %v458 = vunpack.c.l.b16 %v161
  %v459 = vunpack.c.l.b16 %v162
  %v460 = vunpack.c.l.b16 %v163
  %v461 = vunpack.c.l.b16 %v164
  %v462 = vunpack.c.l.b16 %v165
  %v463 = vunpack.c.l.b16 %v166
  %v464 = vunpack.c.l.b16 %v167
  %v465 = vunpack.c.l.b16 %v168
  %v466 = vunpack.c.l.b16 %v169
  %v467 = vpack.c.b16 %v324, %v323
  %v468 = vpack.c.b16 %v326, %v325
  %v469 = vpack.c.b16 %v328, %v327
  %v470 = vpack.c.b16 %v330, %v329
  %v471 = vpack.c.b16 %v332, %v331
  %v472 = vpack.c.b16 %v334, %v333
  %v473 = vpack.c.b16 %v336, %v335
  %v474 = vpack.c.b16 %v338, %v337
  %v475 = vpack.c.b16 %v340, %v339
  %v476 = vpack.c.b16 %v342, %v341
  %v477 = vpack.c.b16 %v344, %v343
  %v478 = vpack.c.b16 %v346, %v345
  %v479 = vpack.c.b16 %v348, %v347
  %v480 = vpack.c.b16 %v350, %v349
  %v481 = vpack.c.b16 %v352, %v351
  %v482 = vpack.c.b16 %v354, %v353
  %v483 = vpack.c.b16 %v356, %v355
  %v484 = vpack.c.b16 %v358, %v357
  %v485 = vpack.c.b16 %v360, %v359
  %v486 = vpack.c.b16 %v362, %v361
  %v487 = vpack.c.b16 %v364, %v363
  %v488 = vpack.c.b16 %v366, %v365
  %v489 = vpack.c.b16 %v368, %v367
  %v490 = vpack.c.b16 %v370, %v369
  %v491 = vpack.c.b16 %v372, %v371
  %v492 = vpack.c.b16 %v374, %v373
  %v493 = vpack.c.b16 %v376, %v375
  %v494 = vpack.c.b16 %v378, %v377
  %v495 = vpack.c.b16 %v380, %v379
  %v496 = vpack.c.b16 %v382, %v381
  %v497 = vpack.c.b16 %v384, %v383
  %v498 = vpack.c.b16 %v386, %v385
  %v499 = vpack.c.b16 %v388, %v387
  %v500 = vpack.c.b16 %v390, %v389
  %v501 = vpack.c.b16 %v392, %v391
  %v502 = vpack.c.b16 %v394, %v393
  %v503 = vpack.c.b16 %v396, %v395
  %v504 = vpack.c.b16 %v398, %v397
  %v505 = vpack.c.b16 %v400, %v399
  %v506 = vpack.c.b16 %v402, %v401
  %v507 = vpack.c.b16 %v404, %v403
  %v508 = vpack.c.b16 %v406, %v405
  %v509 = vpack.c.b16 %v408, %v407
  %v510 = vpack.c.b16 %v410, %v409
  %v511 = vpack.c.b16 %v412, %v411
  %v512 = vpack.c.b16 %v414, %v413
  %v513 = vpack.c.b16 %v416, %v415
  %v514 = vpack.c.b16 %v418, %v417
  %v515 = vpack.c.b16 %v420, %v419
  %v516 = vpack.c.b16 %v422, %v421
  %v517 = vpack.c.b16 %v424, %v423
  %v518 = vpack.c.b16 %v426, %v425
  %v519 = vpack.c.b16 %v428, %v427
  %v520 = vpack.c.b16 %v430, %v429
  %v521 = vpack.c.b16 %v432, %v431
  %v522 = vpack.c.b16 %v434, %v433
  %v523 = vpack.c.b16 %v436, %v435
  %v524 = vpack.c.b16 %v438, %v437
  %v525 = vpack.c.b16 %v440, %v439
  %v526 = vpack.c.b16 %v442, %v441
  %v527 = vpack.c.b16 %v444, %v443
  %v528 = vpack.c.b16 %v446, %v445
  %v529 = vpack.c.b16 %v448, %v447
  %v530 = vpack.c.b16 %v450, %v449
  %v531 = vpack.c.b16 %v452, %v451
  %v532 = vpack.c.b16 %v454, %v453
  %v533 = vpack.c.b16 %v456, %v455
  %v534 = vpack.c.b16 %v458, %v457
  %v535 = vpack.c.b16 %v460, %v459
  %v536 = vpack.c.b16 %v462, %v461
  %v537 = vpack.c.b16 %v464, %v463
  %v538 = vpack.c.b16 %v466, %v465
  %v541 = vunpack.c.l.b16 %v170
  %v542 = vunpack.c.l.b16 %v171
  %v543 = vpack.c.b16 %v542, %v541
  %vm544 = vcmask 72704
  %v546 = vsel %vm544, %v467, 0
  %v549 = vsel %vm544, %v468, 0
  %v552 = vsel %vm544, %v469, 0
  %v555 = vsel %vm544, %v470, 0
  %v558 = vsel %vm544, %v471, 0
  %v561 = vsel %vm544, %v472, 0
  %v564 = vsel %vm544, %v473, 0
  %v567 = vsel %vm544, %v474, 0
  %v570 = vsel %vm544, %v475, 0
  %v573 = vsel %vm544, %v476, 0
  %v576 = vsel %vm544, %v477, 0
  %v579 = vsel %vm544, %v478, 0
  %v582 = vsel %vm544, %v479, 0
  %v585 = vsel %vm544, %v480, 0
  %v588 = vsel %vm544, %v481, 0
  %v591 = vsel %vm544, %v482, 0
  %v594 = vsel %vm544, %v483, 0
  %v597 = vsel %vm544, %v484, 0
  %v600 = vsel %vm544, %v485, 0
  %v603 = vsel %vm544, %v486, 0
  %v606 = vsel %vm544, %v487, 0
  %v609 = vsel %vm544, %v488, 0
  %v612 = vsel %vm544, %v489, 0
  %v615 = vsel %vm544, %v490, 0
  %v618 = vsel %vm544, %v491, 0
  %v621 = vsel %vm544, %v492, 0
  %v624 = vsel %vm544, %v493, 0
  %v627 = vsel %vm544, %v494, 0
  %v630 = vsel %vm544, %v495, 0
  %v633 = vsel %vm544, %v496, 0
  %v636 = vsel %vm544, %v497, 0
  %v639 = vsel %vm544, %v498, 0
  %v642 = vsel %vm544, %v499, 0
  %v645 = vsel %vm544, %v500, 0
  %v648 = vsel %vm544, %v501, 0
  %v651 = vsel %vm544, %v502, 0
  %v654 = vsel %vm544, %v503, 0
  %v657 = vsel %vm544, %v504, 0
  %v660 = vsel %vm544, %v505, 0
  %v663 = vsel %vm544, %v506, 0
  %v666 = vsel %vm544, %v507, 0
  %v669 = vsel %vm544, %v508, 0
  %v672 = vsel %vm544, %v509, 0
  %v675 = vsel %vm544, %v510, 0
  %v678 = vsel %vm544, %v511, 0
  %v681 = vsel %vm544, %v512, 0
  %v684 = vsel %vm544, %v513, 0
  %v687 = vsel %vm544, %v514, 0
  %v690 = vsel %vm544, %v515, 0
  %v693 = vsel %vm544, %v516, 0
  %v696 = vsel %vm544, %v517, 0
  %v699 = vsel %vm544, %v518, 0
  %v702 = vsel %vm544, %v519, 0
  %v705 = vsel %vm544, %v520, 0
  %v708 = vsel %vm544, %v521, 0
  %v711 = vsel %vm544, %v522, 0
  %v714 = vsel %vm544, %v523, 0
  %v717 = vsel %vm544, %v524, 0
  %v720 = vsel %vm544, %v525, 0
  %v723 = vsel %vm544, %v526, 0
  %v726 = vsel %vm544, %v527, 0
  %v729 = vsel %vm544, %v528, 0
  %v732 = vsel %vm544, %v529, 0
  %v735 = vsel %vm544, %v530, 0
  %v738 = vsel %vm544, %v531, 0
  %v741 = vsel %vm544, %v532, 0
  %v744 = vsel %vm544, %v533, 0
  %v747 = vsel %vm544, %v534, 0
  %v750 = vsel %vm544, %v535, 0
  %v753 = vsel %vm544, %v536, 0
  %v756 = vsel %vm544, %v537, 0
  %v759 = vsel %vm544, %v538, 0
  %vm761 = vcmask 1043456
  %vm762 = vcmask 1044480
  %v763 = vsel %vm761, 4294967295, 65535
  %v764 = vsel %vm762, %v763, 0
  %v766 = vand.u32 %v543, %v764
  %768 = vmatprep.subr.bf16.mxu0 0
  %769 = vmatpush1.bf16.msra.mxu0 %v766
  %770 = vmatprep.subr.bf16.mxu0 0
  %771 = vmatpush1.bf16.msra.mxu0 0
  %772 = vmatprep.subr.bf16.mxu0 0
  %773 = vmatpush1.bf16.msra.mxu0 0
  %774 = vmatprep.subr.bf16.mxu0 0
  %775 = vmatpush1.bf16.msra.mxu0 0
  %776 = vmatprep.subr.bf16.mxu0 0
  %777 = vmatpush1.bf16.msra.mxu0 0
  %778 = vmatprep.subr.bf16.mxu0 0
  %779 = vmatpush1.bf16.msra.mxu0 0
  %780 = vmatprep.subr.bf16.mxu0 0
  %781 = vmatpush1.bf16.msra.mxu0 0
  %782 = vmatprep.subr.bf16.mxu0 0
  %783 = vmatpush1.bf16.msra.mxu0 0
  %784 = vmatprep.subr.bf16.mxu0 0
  %785 = vmatpush1.bf16.msra.mxu0 0
  %786 = vmatprep.subr.bf16.mxu0 0
  %787 = vmatpush1.bf16.msra.mxu0 0
  %788 = vmatprep.subr.bf16.mxu0 0
  %789 = vmatpush1.bf16.msra.mxu0 0
  %790 = vmatprep.subr.bf16.mxu0 0
  %791 = vmatpush1.bf16.msra.mxu0 0
  %792 = vmatprep.subr.bf16.mxu0 0
  %793 = vmatpush1.bf16.msra.mxu0 0
  %794 = vmatprep.subr.bf16.mxu0 0
  %795 = vmatpush1.bf16.msra.mxu0 0
  %796 = vmatprep.subr.bf16.mxu0 0
  %797 = vmatpush1.bf16.msra.mxu0 0
  %798 = vmatprep.subr.bf16.mxu0 0
  %799 = vmatpush1.bf16.msra.mxu0 0
  %800 = vmatprep.mubr.bf16.mxu0 0
  %801 = vmatmul.mubr.bf16.gmra.mrb[0].mxu0 %v546
  %v802 = vpop.f32.mrb[0].mxu0
  %v803 = vadd.f32 %v177, %v802
  %v804 = vpop.f32.mrb[0].mxu0
  %v805 = vpop.f32.mrb[0].mxu0
  %v806 = vadd.f32 %v177, %v805
  %v807 = vpop.f32.mrb[0].mxu0
  %808 = vmatprep.mubr.bf16.mxu0 0
  %809 = vmatmul.mubr.bf16.gmra.mrb[0].mxu0 %v549
  %v810 = vpop.f32.mrb[0].mxu0
  %v811 = vadd.f32 %v177, %v810
  %v812 = vpop.f32.mrb[0].mxu0
  %v813 = vpop.f32.mrb[0].mxu0
  %v814 = vadd.f32 %v177, %v813
  %v815 = vpop.f32.mrb[0].mxu0
  %816 = vmatprep.mubr.bf16.mxu0 0
  %817 = vmatmul.mubr.bf16.gmra.mrb[0].mxu0 %v552
  %v818 = vpop.f32.mrb[0].mxu0
  %v819 = vadd.f32 %v177, %v818
  %v820 = vpop.f32.mrb[0].mxu0
  %v821 = vpop.f32.mrb[0].mxu0
  %v822 = vadd.f32 %v177, %v821
  %v823 = vpop.f32.mrb[0].mxu0
  %824 = vmatprep.mubr.bf16.mxu0 0
  %825 = vmatmul.mubr.bf16.gmra.mrb[0].mxu0 %v555
  %v826 = vpop.f32.mrb[0].mxu0
  %v827 = vadd.f32 %v177, %v826
  %v828 = vpop.f32.mrb[0].mxu0
  %v829 = vpop.f32.mrb[0].mxu0
  %v830 = vadd.f32 %v177, %v829
  %v831 = vpop.f32.mrb[0].mxu0
  %832 = vmatprep.mubr.bf16.mxu0 0
  %833 = vmatmul.mubr.bf16.gmra.mrb[0].mxu0 %v558
  %v834 = vpop.f32.mrb[0].mxu0
  %v835 = vadd.f32 %v177, %v834
  %v836 = vpop.f32.mrb[0].mxu0
  %v837 = vpop.f32.mrb[0].mxu0
  %v838 = vadd.f32 %v177, %v837
  %v839 = vpop.f32.mrb[0].mxu0
  %840 = vmatprep.mubr.bf16.mxu0 0
  %841 = vmatmul.mubr.bf16.gmra.mrb[0].mxu0 %v561
  %v842 = vpop.f32.mrb[0].mxu0
  %v843 = vadd.f32 %v177, %v842
  %v844 = vpop.f32.mrb[0].mxu0
  %v845 = vpop.f32.mrb[0].mxu0
  %v846 = vadd.f32 %v177, %v845
  %v847 = vpop.f32.mrb[0].mxu0
  %848 = vmatprep.mubr.bf16.mxu0 0
  %849 = vmatmul.mubr.bf16.gmra.mrb[0].mxu0 %v564
  %v850 = vpop.f32.mrb[0].mxu0
  %v851 = vadd.f32 %v177, %v850
  %v852 = vpop.f32.mrb[0].mxu0
  %v853 = vpop.f32.mrb[0].mxu0
  %v854 = vadd.f32 %v177, %v853
  %v855 = vpop.f32.mrb[0].mxu0
  %856 = vmatprep.mubr.bf16.mxu0 0
  %857 = vmatmul.mubr.bf16.gmra.mrb[0].mxu0 %v567
  %v858 = vpop.f32.mrb[0].mxu0
  %v859 = vadd.f32 %v177, %v858
  %v860 = vpop.f32.mrb[0].mxu0
  %v861 = vpop.f32.mrb[0].mxu0
  %v862 = vadd.f32 %v177, %v861
  %v863 = vpop.f32.mrb[0].mxu0
  %864 = vmatprep.mubr.bf16.mxu0 0
  %865 = vmatmul.mubr.bf16.gmra.mrb[0].mxu0 %v570
  %v866 = vpop.f32.mrb[0].mxu0
  %v867 = vadd.f32 %v177, %v866
  %v868 = vpop.f32.mrb[0].mxu0
  %v869 = vpop.f32.mrb[0].mxu0
  %v870 = vadd.f32 %v177, %v869
  %v871 = vpop.f32.mrb[0].mxu0
  %872 = vmatprep.mubr.bf16.mxu0 0
  %873 = vmatmul.mubr.bf16.gmra.mrb[0].mxu0 %v573
  %v874 = vpop.f32.mrb[0].mxu0
  %v875 = vadd.f32 %v177, %v874
  %v876 = vpop.f32.mrb[0].mxu0
  %v877 = vpop.f32.mrb[0].mxu0
  %v878 = vadd.f32 %v177, %v877
  %v879 = vpop.f32.mrb[0].mxu0
  %880 = vmatprep.mubr.bf16.mxu0 0
  %881 = vmatmul.mubr.bf16.gmra.mrb[0].mxu0 %v576
  %v882 = vpop.f32.mrb[0].mxu0
  %v883 = vadd.f32 %v177, %v882
  %v884 = vpop.f32.mrb[0].mxu0
  %v885 = vpop.f32.mrb[0].mxu0
  %v886 = vadd.f32 %v177, %v885
  %v887 = vpop.f32.mrb[0].mxu0
  %888 = vmatprep.mubr.bf16.mxu0 0
  %889 = vmatmul.mubr.bf16.gmra.mrb[0].mxu0 %v579
  %v890 = vpop.f32.mrb[0].mxu0
  %v891 = vadd.f32 %v177, %v890
  %v892 = vpop.f32.mrb[0].mxu0
  %v893 = vpop.f32.mrb[0].mxu0
  %v894 = vadd.f32 %v177, %v893
  %v895 = vpop.f32.mrb[0].mxu0
  %896 = vmatprep.mubr.bf16.mxu0 0
  %897 = vmatmul.mubr.bf16.gmra.mrb[0].mxu0 %v582
  %v898 = vpop.f32.mrb[0].mxu0
  %v899 = vadd.f32 %v177, %v898
  %v900 = vpop.f32.mrb[0].mxu0
  %v901 = vpop.f32.mrb[0].mxu0
  %v902 = vadd.f32 %v177, %v901
  %v903 = vpop.f32.mrb[0].mxu0
  %904 = vmatprep.mubr.bf16.mxu0 0
  %905 = vmatmul.mubr.bf16.gmra.mrb[0].mxu0 %v585
  %v906 = vpop.f32.mrb[0].mxu0
  %v907 = vadd.f32 %v177, %v906
  %v908 = vpop.f32.mrb[0].mxu0
  %v909 = vpop.f32.mrb[0].mxu0
  %v910 = vadd.f32 %v177, %v909
  %v911 = vpop.f32.mrb[0].mxu0
  %912 = vmatprep.mubr.bf16.mxu0 0
  %913 = vmatmul.mubr.bf16.gmra.mrb[0].mxu0 %v588
  %v914 = vpop.f32.mrb[0].mxu0
  %v915 = vadd.f32 %v177, %v914
  %v916 = vpop.f32.mrb[0].mxu0
  %v917 = vpop.f32.mrb[0].mxu0
  %v918 = vadd.f32 %v177, %v917
  %v919 = vpop.f32.mrb[0].mxu0
  %920 = vmatprep.mubr.bf16.mxu0 0
  %921 = vmatmul.mubr.bf16.gmra.mrb[0].mxu0 %v591
  %v922 = vpop.f32.mrb[0].mxu0
  %v923 = vadd.f32 %v177, %v922
  %v924 = vpop.f32.mrb[0].mxu0
  %v925 = vpop.f32.mrb[0].mxu0
  %v926 = vadd.f32 %v177, %v925
  %v927 = vpop.f32.mrb[0].mxu0
  %928 = vmatprep.mubr.bf16.mxu0 0
  %929 = vmatmul.mubr.bf16.gmra.mrb[0].mxu0 %v594
  %v930 = vpop.f32.mrb[0].mxu0
  %v931 = vadd.f32 %v177, %v930
  %v932 = vpop.f32.mrb[0].mxu0
  %v933 = vpop.f32.mrb[0].mxu0
  %v934 = vadd.f32 %v177, %v933
  %v935 = vpop.f32.mrb[0].mxu0
  %936 = vmatprep.mubr.bf16.mxu0 0
  %937 = vmatmul.mubr.bf16.gmra.mrb[0].mxu0 %v597
  %v938 = vpop.f32.mrb[0].mxu0
  %v939 = vadd.f32 %v177, %v938
  %v940 = vpop.f32.mrb[0].mxu0
  %v941 = vpop.f32.mrb[0].mxu0
  %v942 = vadd.f32 %v177, %v941
  %v943 = vpop.f32.mrb[0].mxu0
  %944 = vmatprep.mubr.bf16.mxu0 0
  %945 = vmatmul.mubr.bf16.gmra.mrb[0].mxu0 %v600
  %v946 = vpop.f32.mrb[0].mxu0
  %v947 = vadd.f32 %v177, %v946
  %v948 = vpop.f32.mrb[0].mxu0
  %v949 = vpop.f32.mrb[0].mxu0
  %v950 = vadd.f32 %v177, %v949
  %v951 = vpop.f32.mrb[0].mxu0
  %952 = vmatprep.mubr.bf16.mxu0 0
  %953 = vmatmul.mubr.bf16.gmra.mrb[0].mxu0 %v603
  %v954 = vpop.f32.mrb[0].mxu0
  %v955 = vadd.f32 %v177, %v954
  %v956 = vpop.f32.mrb[0].mxu0
  %v957 = vpop.f32.mrb[0].mxu0
  %v958 = vadd.f32 %v177, %v957
  %v959 = vpop.f32.mrb[0].mxu0
  %960 = vmatprep.mubr.bf16.mxu0 0
  %961 = vmatmul.mubr.bf16.gmra.mrb[0].mxu0 %v606
  %v962 = vpop.f32.mrb[0].mxu0
  %v963 = vadd.f32 %v177, %v962
  %v964 = vpop.f32.mrb[0].mxu0
  %v965 = vpop.f32.mrb[0].mxu0
  %v966 = vadd.f32 %v177, %v965
  %v967 = vpop.f32.mrb[0].mxu0
  %968 = vmatprep.mubr.bf16.mxu0 0
  %969 = vmatmul.mubr.bf16.gmra.mrb[0].mxu0 %v609
  %v970 = vpop.f32.mrb[0].mxu0
  %v971 = vadd.f32 %v177, %v970
  %v972 = vpop.f32.mrb[0].mxu0
  %v973 = vpop.f32.mrb[0].mxu0
  %v974 = vadd.f32 %v177, %v973
  %v975 = vpop.f32.mrb[0].mxu0
  %976 = vmatprep.mubr.bf16.mxu0 0
  %977 = vmatmul.mubr.bf16.gmra.mrb[0].mxu0 %v612
  %v978 = vpop.f32.mrb[0].mxu0
  %v979 = vadd.f32 %v177, %v978
  %v980 = vpop.f32.mrb[0].mxu0
  %v981 = vpop.f32.mrb[0].mxu0
  %v982 = vadd.f32 %v177, %v981
  %v983 = vpop.f32.mrb[0].mxu0
  %984 = vmatprep.mubr.bf16.mxu0 0
  %985 = vmatmul.mubr.bf16.gmra.mrb[0].mxu0 %v615
  %v986 = vpop.f32.mrb[0].mxu0
  %v987 = vadd.f32 %v177, %v986
  %v988 = vpop.f32.mrb[0].mxu0
  %v989 = vpop.f32.mrb[0].mxu0
  %v990 = vadd.f32 %v177, %v989
  %v991 = vpop.f32.mrb[0].mxu0
  %992 = vmatprep.mubr.bf16.mxu0 0
  %993 = vmatmul.mubr.bf16.gmra.mrb[0].mxu0 %v618
  %v994 = vpop.f32.mrb[0].mxu0
  %v995 = vadd.f32 %v177, %v994
  %v996 = vpop.f32.mrb[0].mxu0
  %v997 = vpop.f32.mrb[0].mxu0
  %v998 = vadd.f32 %v177, %v997
  %v999 = vpop.f32.mrb[0].mxu0
  %1000 = vmatprep.mubr.bf16.mxu0 0
  %1001 = vmatmul.mubr.bf16.gmra.mrb[0].mxu0 %v621
  %v1002 = vpop.f32.mrb[0].mxu0
  %v1003 = vadd.f32 %v177, %v1002
  %v1004 = vpop.f32.mrb[0].mxu0
  %v1005 = vpop.f32.mrb[0].mxu0
  %v1006 = vadd.f32 %v177, %v1005
  %v1007 = vpop.f32.mrb[0].mxu0
  %1008 = vmatprep.mubr.bf16.mxu0 0
  %1009 = vmatmul.mubr.bf16.gmra.mrb[0].mxu0 %v624
  %v1010 = vpop.f32.mrb[0].mxu0
  %v1011 = vadd.f32 %v177, %v1010
  %v1012 = vpop.f32.mrb[0].mxu0
  %v1013 = vpop.f32.mrb[0].mxu0
  %v1014 = vadd.f32 %v177, %v1013
  %v1015 = vpop.f32.mrb[0].mxu0
  %1016 = vmatprep.mubr.bf16.mxu0 0
  %1017 = vmatmul.mubr.bf16.gmra.mrb[0].mxu0 %v627
  %v1018 = vpop.f32.mrb[0].mxu0
  %v1019 = vadd.f32 %v177, %v1018
  %v1020 = vpop.f32.mrb[0].mxu0
  %v1021 = vpop.f32.mrb[0].mxu0
  %v1022 = vadd.f32 %v177, %v1021
  %v1023 = vpop.f32.mrb[0].mxu0
  %1024 = vmatprep.mubr.bf16.mxu0 0
  %1025 = vmatmul.mubr.bf16.gmra.mrb[0].mxu0 %v630
  %v1026 = vpop.f32.mrb[0].mxu0
  %v1027 = vadd.f32 %v177, %v1026
  %v1028 = vpop.f32.mrb[0].mxu0
  %v1029 = vpop.f32.mrb[0].mxu0
  %v1030 = vadd.f32 %v177, %v1029
  %v1031 = vpop.f32.mrb[0].mxu0
  %1032 = vmatprep.mubr.bf16.mxu0 0
  %1033 = vmatmul.mubr.bf16.gmra.mrb[0].mxu0 %v633
  %v1034 = vpop.f32.mrb[0].mxu0
  %v1035 = vadd.f32 %v177, %v1034
  %v1036 = vpop.f32.mrb[0].mxu0
  %v1037 = vpop.f32.mrb[0].mxu0
  %v1038 = vadd.f32 %v177, %v1037
  %v1039 = vpop.f32.mrb[0].mxu0
  %1040 = vmatprep.mubr.bf16.mxu0 0
  %1041 = vmatmul.mubr.bf16.gmra.mrb[0].mxu0 %v636
  %v1042 = vpop.f32.mrb[0].mxu0
  %v1043 = vadd.f32 %v177, %v1042
  %v1044 = vpop.f32.mrb[0].mxu0
  %v1045 = vpop.f32.mrb[0].mxu0
  %v1046 = vadd.f32 %v177, %v1045
  %v1047 = vpop.f32.mrb[0].mxu0
  %1048 = vmatprep.mubr.bf16.mxu0 0
  %1049 = vmatmul.mubr.bf16.gmra.mrb[0].mxu0 %v639
  %v1050 = vpop.f32.mrb[0].mxu0
  %v1051 = vadd.f32 %v177, %v1050
  %v1052 = vpop.f32.mrb[0].mxu0
  %v1053 = vpop.f32.mrb[0].mxu0
  %v1054 = vadd.f32 %v177, %v1053
  %v1055 = vpop.f32.mrb[0].mxu0
  %1056 = vmatprep.mubr.bf16.mxu0 0
  %1057 = vmatmul.mubr.bf16.gmra.mrb[0].mxu0 %v642
  %v1058 = vpop.f32.mrb[0].mxu0
  %v1059 = vadd.f32 %v177, %v1058
  %v1060 = vpop.f32.mrb[0].mxu0
  %v1061 = vpop.f32.mrb[0].mxu0
  %v1062 = vadd.f32 %v177, %v1061
  %v1063 = vpop.f32.mrb[0].mxu0
  %1064 = vmatprep.mubr.bf16.mxu0 0
  %1065 = vmatmul.mubr.bf16.gmra.mrb[0].mxu0 %v645
  %v1066 = vpop.f32.mrb[0].mxu0
  %v1067 = vadd.f32 %v177, %v1066
  %v1068 = vpop.f32.mrb[0].mxu0
  %v1069 = vpop.f32.mrb[0].mxu0
  %v1070 = vadd.f32 %v177, %v1069
  %v1071 = vpop.f32.mrb[0].mxu0
  %1072 = vmatprep.mubr.bf16.mxu0 0
  %1073 = vmatmul.mubr.bf16.gmra.mrb[0].mxu0 %v648
  %v1074 = vpop.f32.mrb[0].mxu0
  %v1075 = vadd.f32 %v177, %v1074
  %v1076 = vpop.f32.mrb[0].mxu0
  %v1077 = vpop.f32.mrb[0].mxu0
  %v1078 = vadd.f32 %v177, %v1077
  %v1079 = vpop.f32.mrb[0].mxu0
  %1080 = vmatprep.mubr.bf16.mxu0 0
  %1081 = vmatmul.mubr.bf16.gmra.mrb[0].mxu0 %v651
  %v1082 = vpop.f32.mrb[0].mxu0
  %v1083 = vadd.f32 %v177, %v1082
  %v1084 = vpop.f32.mrb[0].mxu0
  %v1085 = vpop.f32.mrb[0].mxu0
  %v1086 = vadd.f32 %v177, %v1085
  %v1087 = vpop.f32.mrb[0].mxu0
  %1088 = vmatprep.mubr.bf16.mxu0 0
  %1089 = vmatmul.mubr.bf16.gmra.mrb[0].mxu0 %v654
  %v1090 = vpop.f32.mrb[0].mxu0
  %v1091 = vadd.f32 %v177, %v1090
  %v1092 = vpop.f32.mrb[0].mxu0
  %v1093 = vpop.f32.mrb[0].mxu0
  %v1094 = vadd.f32 %v177, %v1093
  %v1095 = vpop.f32.mrb[0].mxu0
  %1096 = vmatprep.mubr.bf16.mxu0 0
  %1097 = vmatmul.mubr.bf16.gmra.mrb[0].mxu0 %v657
  %v1098 = vpop.f32.mrb[0].mxu0
  %v1099 = vadd.f32 %v177, %v1098
  %v1100 = vpop.f32.mrb[0].mxu0
  %v1101 = vpop.f32.mrb[0].mxu0
  %v1102 = vadd.f32 %v177, %v1101
  %v1103 = vpop.f32.mrb[0].mxu0
  %1104 = vmatprep.mubr.bf16.mxu0 0
  %1105 = vmatmul.mubr.bf16.gmra.mrb[0].mxu0 %v660
  %v1106 = vpop.f32.mrb[0].mxu0
  %v1107 = vadd.f32 %v177, %v1106
  %v1108 = vpop.f32.mrb[0].mxu0
  %v1109 = vpop.f32.mrb[0].mxu0
  %v1110 = vadd.f32 %v177, %v1109
  %v1111 = vpop.f32.mrb[0].mxu0
  %1112 = vmatprep.mubr.bf16.mxu0 0
  %1113 = vmatmul.mubr.bf16.gmra.mrb[0].mxu0 %v663
  %v1114 = vpop.f32.mrb[0].mxu0
  %v1115 = vadd.f32 %v177, %v1114
  %v1116 = vpop.f32.mrb[0].mxu0
  %v1117 = vpop.f32.mrb[0].mxu0
  %v1118 = vadd.f32 %v177, %v1117
  %v1119 = vpop.f32.mrb[0].mxu0
  %1120 = vmatprep.mubr.bf16.mxu0 0
  %1121 = vmatmul.mubr.bf16.gmra.mrb[0].mxu0 %v666
  %v1122 = vpop.f32.mrb[0].mxu0
  %v1123 = vadd.f32 %v177, %v1122
  %v1124 = vpop.f32.mrb[0].mxu0
  %v1125 = vpop.f32.mrb[0].mxu0
  %v1126 = vadd.f32 %v177, %v1125
  %v1127 = vpop.f32.mrb[0].mxu0
  %1128 = vmatprep.mubr.bf16.mxu0 0
  %1129 = vmatmul.mubr.bf16.gmra.mrb[0].mxu0 %v669
  %v1130 = vpop.f32.mrb[0].mxu0
  %v1131 = vadd.f32 %v177, %v1130
  %v1132 = vpop.f32.mrb[0].mxu0
  %v1133 = vpop.f32.mrb[0].mxu0
  %v1134 = vadd.f32 %v177, %v1133
  %v1135 = vpop.f32.mrb[0].mxu0
  %1136 = vmatprep.mubr.bf16.mxu0 0
  %1137 = vmatmul.mubr.bf16.gmra.mrb[0].mxu0 %v672
  %v1138 = vpop.f32.mrb[0].mxu0
  %v1139 = vadd.f32 %v177, %v1138
  %v1140 = vpop.f32.mrb[0].mxu0
  %v1141 = vpop.f32.mrb[0].mxu0
  %v1142 = vadd.f32 %v177, %v1141
  %v1143 = vpop.f32.mrb[0].mxu0
  %1144 = vmatprep.mubr.bf16.mxu0 0
  %1145 = vmatmul.mubr.bf16.gmra.mrb[0].mxu0 %v675
  %v1146 = vpop.f32.mrb[0].mxu0
  %v1147 = vadd.f32 %v177, %v1146
  %v1148 = vpop.f32.mrb[0].mxu0
  %v1149 = vpop.f32.mrb[0].mxu0
  %v1150 = vadd.f32 %v177, %v1149
  %v1151 = vpop.f32.mrb[0].mxu0
  %1152 = vmatprep.mubr.bf16.mxu0 0
  %1153 = vmatmul.mubr.bf16.gmra.mrb[0].mxu0 %v678
  %v1154 = vpop.f32.mrb[0].mxu0
  %v1155 = vadd.f32 %v177, %v1154
  %v1156 = vpop.f32.mrb[0].mxu0
  %v1157 = vpop.f32.mrb[0].mxu0
  %v1158 = vadd.f32 %v177, %v1157
  %v1159 = vpop.f32.mrb[0].mxu0
  %1160 = vmatprep.mubr.bf16.mxu0 0
  %1161 = vmatmul.mubr.bf16.gmra.mrb[0].mxu0 %v681
  %v1162 = vpop.f32.mrb[0].mxu0
  %v1163 = vadd.f32 %v177, %v1162
  %v1164 = vpop.f32.mrb[0].mxu0
  %v1165 = vpop.f32.mrb[0].mxu0
  %v1166 = vadd.f32 %v177, %v1165
  %v1167 = vpop.f32.mrb[0].mxu0
  %1168 = vmatprep.mubr.bf16.mxu0 0
  %1169 = vmatmul.mubr.bf16.gmra.mrb[0].mxu0 %v684
  %v1170 = vpop.f32.mrb[0].mxu0
  %v1171 = vadd.f32 %v177, %v1170
  %v1172 = vpop.f32.mrb[0].mxu0
  %v1173 = vpop.f32.mrb[0].mxu0
  %v1174 = vadd.f32 %v177, %v1173
  %v1175 = vpop.f32.mrb[0].mxu0
  %1176 = vmatprep.mubr.bf16.mxu0 0
  %1177 = vmatmul.mubr.bf16.gmra.mrb[0].mxu0 %v687
  %v1178 = vpop.f32.mrb[0].mxu0
  %v1179 = vadd.f32 %v177, %v1178
  %v1180 = vpop.f32.mrb[0].mxu0
  %v1181 = vpop.f32.mrb[0].mxu0
  %v1182 = vadd.f32 %v177, %v1181
  %v1183 = vpop.f32.mrb[0].mxu0
  %1184 = vmatprep.mubr.bf16.mxu0 0
  %1185 = vmatmul.mubr.bf16.gmra.mrb[0].mxu0 %v690
  %v1186 = vpop.f32.mrb[0].mxu0
  %v1187 = vadd.f32 %v177, %v1186
  %v1188 = vpop.f32.mrb[0].mxu0
  %v1189 = vpop.f32.mrb[0].mxu0
  %v1190 = vadd.f32 %v177, %v1189
  %v1191 = vpop.f32.mrb[0].mxu0
  %1192 = vmatprep.mubr.bf16.mxu0 0
  %1193 = vmatmul.mubr.bf16.gmra.mrb[0].mxu0 %v693
  %v1194 = vpop.f32.mrb[0].mxu0
  %v1195 = vadd.f32 %v177, %v1194
  %v1196 = vpop.f32.mrb[0].mxu0
  %v1197 = vpop.f32.mrb[0].mxu0
  %v1198 = vadd.f32 %v177, %v1197
  %v1199 = vpop.f32.mrb[0].mxu0
  %1200 = vmatprep.mubr.bf16.mxu0 0
  %1201 = vmatmul.mubr.bf16.gmra.mrb[0].mxu0 %v696
  %v1202 = vpop.f32.mrb[0].mxu0
  %v1203 = vadd.f32 %v177, %v1202
  %v1204 = vpop.f32.mrb[0].mxu0
  %v1205 = vpop.f32.mrb[0].mxu0
  %v1206 = vadd.f32 %v177, %v1205
  %v1207 = vpop.f32.mrb[0].mxu0
  %1208 = vmatprep.mubr.bf16.mxu0 0
  %1209 = vmatmul.mubr.bf16.gmra.mrb[0].mxu0 %v699
  %v1210 = vpop.f32.mrb[0].mxu0
  %v1211 = vadd.f32 %v177, %v1210
  %v1212 = vpop.f32.mrb[0].mxu0
  %v1213 = vpop.f32.mrb[0].mxu0
  %v1214 = vadd.f32 %v177, %v1213
  %v1215 = vpop.f32.mrb[0].mxu0
  %1216 = vmatprep.mubr.bf16.mxu0 0
  %1217 = vmatmul.mubr.bf16.gmra.mrb[0].mxu0 %v702
  %v1218 = vpop.f32.mrb[0].mxu0
  %v1219 = vadd.f32 %v177, %v1218
  %v1220 = vpop.f32.mrb[0].mxu0
  %v1221 = vpop.f32.mrb[0].mxu0
  %v1222 = vadd.f32 %v177, %v1221
  %v1223 = vpop.f32.mrb[0].mxu0
  %1224 = vmatprep.mubr.bf16.mxu0 0
  %1225 = vmatmul.mubr.bf16.gmra.mrb[0].mxu0 %v705
  %v1226 = vpop.f32.mrb[0].mxu0
  %v1227 = vadd.f32 %v177, %v1226
  %v1228 = vpop.f32.mrb[0].mxu0
  %v1229 = vpop.f32.mrb[0].mxu0
  %v1230 = vadd.f32 %v177, %v1229
  %v1231 = vpop.f32.mrb[0].mxu0
  %1232 = vmatprep.mubr.bf16.mxu0 0
  %1233 = vmatmul.mubr.bf16.gmra.mrb[0].mxu0 %v708
  %v1234 = vpop.f32.mrb[0].mxu0
  %v1235 = vadd.f32 %v177, %v1234
  %v1236 = vpop.f32.mrb[0].mxu0
  %v1237 = vpop.f32.mrb[0].mxu0
  %v1238 = vadd.f32 %v177, %v1237
  %v1239 = vpop.f32.mrb[0].mxu0
  %1240 = vmatprep.mubr.bf16.mxu0 0
  %1241 = vmatmul.mubr.bf16.gmra.mrb[0].mxu0 %v711
  %v1242 = vpop.f32.mrb[0].mxu0
  %v1243 = vadd.f32 %v177, %v1242
  %v1244 = vpop.f32.mrb[0].mxu0
  %v1245 = vpop.f32.mrb[0].mxu0
  %v1246 = vadd.f32 %v177, %v1245
  %v1247 = vpop.f32.mrb[0].mxu0
  %1248 = vmatprep.mubr.bf16.mxu0 0
  %1249 = vmatmul.mubr.bf16.gmra.mrb[0].mxu0 %v714
  %v1250 = vpop.f32.mrb[0].mxu0
  %v1251 = vadd.f32 %v177, %v1250
  %v1252 = vpop.f32.mrb[0].mxu0
  %v1253 = vpop.f32.mrb[0].mxu0
  %v1254 = vadd.f32 %v177, %v1253
  %v1255 = vpop.f32.mrb[0].mxu0
  %1256 = vmatprep.mubr.bf16.mxu0 0
  %1257 = vmatmul.mubr.bf16.gmra.mrb[0].mxu0 %v717
  %v1258 = vpop.f32.mrb[0].mxu0
  %v1259 = vadd.f32 %v177, %v1258
  %v1260 = vpop.f32.mrb[0].mxu0
  %v1261 = vpop.f32.mrb[0].mxu0
  %v1262 = vadd.f32 %v177, %v1261
  %v1263 = vpop.f32.mrb[0].mxu0
  %1264 = vmatprep.mubr.bf16.mxu0 0
  %1265 = vmatmul.mubr.bf16.gmra.mrb[0].mxu0 %v720
  %v1266 = vpop.f32.mrb[0].mxu0
  %v1267 = vadd.f32 %v177, %v1266
  %v1268 = vpop.f32.mrb[0].mxu0
  %v1269 = vpop.f32.mrb[0].mxu0
  %v1270 = vadd.f32 %v177, %v1269
  %v1271 = vpop.f32.mrb[0].mxu0
  %1272 = vmatprep.mubr.bf16.mxu0 0
  %1273 = vmatmul.mubr.bf16.gmra.mrb[0].mxu0 %v723
  %v1274 = vpop.f32.mrb[0].mxu0
  %v1275 = vadd.f32 %v177, %v1274
  %v1276 = vpop.f32.mrb[0].mxu0
  %v1277 = vpop.f32.mrb[0].mxu0
  %v1278 = vadd.f32 %v177, %v1277
  %v1279 = vpop.f32.mrb[0].mxu0
  %1280 = vmatprep.mubr.bf16.mxu0 0
  %1281 = vmatmul.mubr.bf16.gmra.mrb[0].mxu0 %v726
  %v1282 = vpop.f32.mrb[0].mxu0
  %v1283 = vadd.f32 %v177, %v1282
  %v1284 = vpop.f32.mrb[0].mxu0
  %v1285 = vpop.f32.mrb[0].mxu0
  %v1286 = vadd.f32 %v177, %v1285
  %v1287 = vpop.f32.mrb[0].mxu0
  %1288 = vmatprep.mubr.bf16.mxu0 0
  %1289 = vmatmul.mubr.bf16.gmra.mrb[0].mxu0 %v729
  %v1290 = vpop.f32.mrb[0].mxu0
  %v1291 = vadd.f32 %v177, %v1290
  %v1292 = vpop.f32.mrb[0].mxu0
  %v1293 = vpop.f32.mrb[0].mxu0
  %v1294 = vadd.f32 %v177, %v1293
  %v1295 = vpop.f32.mrb[0].mxu0
  %1296 = vmatprep.mubr.bf16.mxu0 0
  %1297 = vmatmul.mubr.bf16.gmra.mrb[0].mxu0 %v732
  %v1298 = vpop.f32.mrb[0].mxu0
  %v1299 = vadd.f32 %v177, %v1298
  %v1300 = vpop.f32.mrb[0].mxu0
  %v1301 = vpop.f32.mrb[0].mxu0
  %v1302 = vadd.f32 %v177, %v1301
  %v1303 = vpop.f32.mrb[0].mxu0
  %1304 = vmatprep.mubr.bf16.mxu0 0
  %1305 = vmatmul.mubr.bf16.gmra.mrb[0].mxu0 %v735
  %v1306 = vpop.f32.mrb[0].mxu0
  %v1307 = vadd.f32 %v177, %v1306
  %v1308 = vpop.f32.mrb[0].mxu0
  %v1309 = vpop.f32.mrb[0].mxu0
  %v1310 = vadd.f32 %v177, %v1309
  %v1311 = vpop.f32.mrb[0].mxu0
  %1312 = vmatprep.mubr.bf16.mxu0 0
  %1313 = vmatmul.mubr.bf16.gmra.mrb[0].mxu0 %v738
  %v1314 = vpop.f32.mrb[0].mxu0
  %v1315 = vadd.f32 %v177, %v1314
  %v1316 = vpop.f32.mrb[0].mxu0
  %v1317 = vpop.f32.mrb[0].mxu0
  %v1318 = vadd.f32 %v177, %v1317
  %v1319 = vpop.f32.mrb[0].mxu0
  %1320 = vmatprep.mubr.bf16.mxu0 0
  %1321 = vmatmul.mubr.bf16.gmra.mrb[0].mxu0 %v741
  %v1322 = vpop.f32.mrb[0].mxu0
  %v1323 = vadd.f32 %v177, %v1322
  %v1324 = vpop.f32.mrb[0].mxu0
  %v1325 = vpop.f32.mrb[0].mxu0
  %v1326 = vadd.f32 %v177, %v1325
  %v1327 = vpop.f32.mrb[0].mxu0
  %1328 = vmatprep.mubr.bf16.mxu0 0
  %1329 = vmatmul.mubr.bf16.gmra.mrb[0].mxu0 %v744
  %v1330 = vpop.f32.mrb[0].mxu0
  %v1331 = vadd.f32 %v177, %v1330
  %v1332 = vpop.f32.mrb[0].mxu0
  %v1333 = vpop.f32.mrb[0].mxu0
  %v1334 = vadd.f32 %v177, %v1333
  %v1335 = vpop.f32.mrb[0].mxu0
  %1336 = vmatprep.mubr.bf16.mxu0 0
  %1337 = vmatmul.mubr.bf16.gmra.mrb[0].mxu0 %v747
  %v1338 = vpop.f32.mrb[0].mxu0
  %v1339 = vadd.f32 %v177, %v1338
  %v1340 = vpop.f32.mrb[0].mxu0
  %v1341 = vpop.f32.mrb[0].mxu0
  %v1342 = vadd.f32 %v177, %v1341
  %v1343 = vpop.f32.mrb[0].mxu0
  %1344 = vmatprep.mubr.bf16.mxu0 0
  %1345 = vmatmul.mubr.bf16.gmra.mrb[0].mxu0 %v750
  %v1346 = vpop.f32.mrb[0].mxu0
  %v1347 = vadd.f32 %v177, %v1346
  %v1348 = vpop.f32.mrb[0].mxu0
  %v1349 = vpop.f32.mrb[0].mxu0
  %v1350 = vadd.f32 %v177, %v1349
  %v1351 = vpop.f32.mrb[0].mxu0
  %1352 = vmatprep.mubr.bf16.mxu0 0
  %1353 = vmatmul.mubr.bf16.gmra.mrb[0].mxu0 %v753
  %v1354 = vpop.f32.mrb[0].mxu0
  %v1355 = vadd.f32 %v177, %v1354
  %v1356 = vpop.f32.mrb[0].mxu0
  %v1357 = vpop.f32.mrb[0].mxu0
  %v1358 = vadd.f32 %v177, %v1357
  %v1359 = vpop.f32.mrb[0].mxu0
  %1360 = vmatprep.mubr.bf16.mxu0 0
  %1361 = vmatmul.mubr.bf16.gmra.mrb[0].mxu0 %v756
  %v1362 = vpop.f32.mrb[0].mxu0
  %v1363 = vadd.f32 %v177, %v1362
  %v1364 = vpop.f32.mrb[0].mxu0
  %v1365 = vpop.f32.mrb[0].mxu0
  %v1366 = vadd.f32 %v177, %v1365
  %v1367 = vpop.f32.mrb[0].mxu0
  %1368 = vmatprep.mubr.bf16.mxu0 0
  %1369 = vmatmul.mubr.bf16.gmra.mrb[0].mxu0 %v759
  %v1370 = vpop.f32.mrb[0].mxu0
  %v1371 = vadd.f32 %v177, %v1370
  %v1372 = vpop.f32.mrb[0].mxu0
  %v1373 = vpop.f32.mrb[0].mxu0
  %v1374 = vadd.f32 %v177, %v1373
  %v1375 = vpop.f32.mrb[0].mxu0
  %1376 = vdwg.mxu0
  %v1377 = vmax.f32 %v803, 0.0
  %v1378 = vmax.f32 %v806, 0.0
  %v1379 = vmax.f32 %v811, 0.0
  %v1380 = vmax.f32 %v814, 0.0
  %v1381 = vmax.f32 %v819, 0.0
  %v1382 = vmax.f32 %v822, 0.0
  %v1383 = vmax.f32 %v827, 0.0
  %v1384 = vmax.f32 %v830, 0.0
  %v1385 = vmax.f32 %v835, 0.0
  %v1386 = vmax.f32 %v838, 0.0
  %v1387 = vmax.f32 %v843, 0.0
  %v1388 = vmax.f32 %v846, 0.0
  %v1389 = vmax.f32 %v851, 0.0
  %v1390 = vmax.f32 %v854, 0.0
  %v1391 = vmax.f32 %v859, 0.0
  %v1392 = vmax.f32 %v862, 0.0
  %v1393 = vmax.f32 %v867, 0.0
  %v1394 = vmax.f32 %v870, 0.0
  %v1395 = vmax.f32 %v875, 0.0
  %v1396 = vmax.f32 %v878, 0.0
  %v1397 = vmax.f32 %v883, 0.0
  %v1398 = vmax.f32 %v886, 0.0
  %v1399 = vmax.f32 %v891, 0.0
  %v1400 = vmax.f32 %v894, 0.0
  %v1401 = vmax.f32 %v899, 0.0
  %v1402 = vmax.f32 %v902, 0.0
  %v1403 = vmax.f32 %v907, 0.0
  %v1404 = vmax.f32 %v910, 0.0
  %v1405 = vmax.f32 %v915, 0.0
  %v1406 = vmax.f32 %v918, 0.0
  %v1407 = vmax.f32 %v923, 0.0
  %v1408 = vmax.f32 %v926, 0.0
  %v1409 = vmax.f32 %v931, 0.0
  %v1410 = vmax.f32 %v934, 0.0
  %v1411 = vmax.f32 %v939, 0.0
  %v1412 = vmax.f32 %v942, 0.0
  %v1413 = vmax.f32 %v947, 0.0
  %v1414 = vmax.f32 %v950, 0.0
  %v1415 = vmax.f32 %v955, 0.0
  %v1416 = vmax.f32 %v958, 0.0
  %v1417 = vmax.f32 %v963, 0.0
  %v1418 = vmax.f32 %v966, 0.0
  %v1419 = vmax.f32 %v971, 0.0
  %v1420 = vmax.f32 %v974, 0.0
  %v1421 = vmax.f32 %v979, 0.0
  %v1422 = vmax.f32 %v982, 0.0
  %v1423 = vmax.f32 %v987, 0.0
  %v1424 = vmax.f32 %v990, 0.0
  %v1425 = vmax.f32 %v995, 0.0
  %v1426 = vmax.f32 %v998, 0.0
  %v1427 = vmax.f32 %v1003, 0.0
  %v1428 = vmax.f32 %v1006, 0.0
  %v1429 = vmax.f32 %v1011, 0.0
  %v1430 = vmax.f32 %v1014, 0.0
  %v1431 = vmax.f32 %v1019, 0.0
  %v1432 = vmax.f32 %v1022, 0.0
  %v1433 = vmax.f32 %v1027, 0.0
  %v1434 = vmax.f32 %v1030, 0.0
  %v1435 = vmax.f32 %v1035, 0.0
  %v1436 = vmax.f32 %v1038, 0.0
  %v1437 = vmax.f32 %v1043, 0.0
  %v1438 = vmax.f32 %v1046, 0.0
  %v1439 = vmax.f32 %v1051, 0.0
  %v1440 = vmax.f32 %v1054, 0.0
  %v1441 = vmax.f32 %v1059, 0.0
  %v1442 = vmax.f32 %v1062, 0.0
  %v1443 = vmax.f32 %v1067, 0.0
  %v1444 = vmax.f32 %v1070, 0.0
  %v1445 = vmax.f32 %v1075, 0.0
  %v1446 = vmax.f32 %v1078, 0.0
  %v1447 = vmax.f32 %v1083, 0.0
  %v1448 = vmax.f32 %v1086, 0.0
  %v1449 = vmax.f32 %v1091, 0.0
  %v1450 = vmax.f32 %v1094, 0.0
  %v1451 = vmax.f32 %v1099, 0.0
  %v1452 = vmax.f32 %v1102, 0.0
  %v1453 = vmax.f32 %v1107, 0.0
  %v1454 = vmax.f32 %v1110, 0.0
  %v1455 = vmax.f32 %v1115, 0.0
  %v1456 = vmax.f32 %v1118, 0.0
  %v1457 = vmax.f32 %v1123, 0.0
  %v1458 = vmax.f32 %v1126, 0.0
  %v1459 = vmax.f32 %v1131, 0.0
  %v1460 = vmax.f32 %v1134, 0.0
  %v1461 = vmax.f32 %v1139, 0.0
  %v1462 = vmax.f32 %v1142, 0.0
  %v1463 = vmax.f32 %v1147, 0.0
  %v1464 = vmax.f32 %v1150, 0.0
  %v1465 = vmax.f32 %v1155, 0.0
  %v1466 = vmax.f32 %v1158, 0.0
  %v1467 = vmax.f32 %v1163, 0.0
  %v1468 = vmax.f32 %v1166, 0.0
  %v1469 = vmax.f32 %v1171, 0.0
  %v1470 = vmax.f32 %v1174, 0.0
  %v1471 = vmax.f32 %v1179, 0.0
  %v1472 = vmax.f32 %v1182, 0.0
  %v1473 = vmax.f32 %v1187, 0.0
  %v1474 = vmax.f32 %v1190, 0.0
  %v1475 = vmax.f32 %v1195, 0.0
  %v1476 = vmax.f32 %v1198, 0.0
  %v1477 = vmax.f32 %v1203, 0.0
  %v1478 = vmax.f32 %v1206, 0.0
  %v1479 = vmax.f32 %v1211, 0.0
  %v1480 = vmax.f32 %v1214, 0.0
  %v1481 = vmax.f32 %v1219, 0.0
  %v1482 = vmax.f32 %v1222, 0.0
  %v1483 = vmax.f32 %v1227, 0.0
  %v1484 = vmax.f32 %v1230, 0.0
  %v1485 = vmax.f32 %v1235, 0.0
  %v1486 = vmax.f32 %v1238, 0.0
  %v1487 = vmax.f32 %v1243, 0.0
  %v1488 = vmax.f32 %v1246, 0.0
  %v1489 = vmax.f32 %v1251, 0.0
  %v1490 = vmax.f32 %v1254, 0.0
  %v1491 = vmax.f32 %v1259, 0.0
  %v1492 = vmax.f32 %v1262, 0.0
  %v1493 = vmax.f32 %v1267, 0.0
  %v1494 = vmax.f32 %v1270, 0.0
  %v1495 = vmax.f32 %v1275, 0.0
  %v1496 = vmax.f32 %v1278, 0.0
  %v1497 = vmax.f32 %v1283, 0.0
  %v1498 = vmax.f32 %v1286, 0.0
  %v1499 = vmax.f32 %v1291, 0.0
  %v1500 = vmax.f32 %v1294, 0.0
  %v1501 = vmax.f32 %v1299, 0.0
  %v1502 = vmax.f32 %v1302, 0.0
  %v1503 = vmax.f32 %v1307, 0.0
  %v1504 = vmax.f32 %v1310, 0.0
  %v1505 = vmax.f32 %v1315, 0.0
  %v1506 = vmax.f32 %v1318, 0.0
  %v1507 = vmax.f32 %v1323, 0.0
  %v1508 = vmax.f32 %v1326, 0.0
  %v1509 = vmax.f32 %v1331, 0.0
  %v1510 = vmax.f32 %v1334, 0.0
  %v1511 = vmax.f32 %v1339, 0.0
  %v1512 = vmax.f32 %v1342, 0.0
  %v1513 = vmax.f32 %v1347, 0.0
  %v1514 = vmax.f32 %v1350, 0.0
  %v1515 = vmax.f32 %v1355, 0.0
  %v1516 = vmax.f32 %v1358, 0.0
  %v1517 = vmax.f32 %v1363, 0.0
  %v1518 = vmax.f32 %v1366, 0.0
  %v1519 = vmax.f32 %v1371, 0.0
  %v1520 = vmax.f32 %v1374, 0.0
  %v1521 = vmin.f32 %v1377, 6.0
  %v1522 = vmin.f32 %v1378, 6.0
  %v1523 = vmin.f32 %v1379, 6.0
  %v1524 = vmin.f32 %v1380, 6.0
  %v1525 = vmin.f32 %v1381, 6.0
  %v1526 = vmin.f32 %v1382, 6.0
  %v1527 = vmin.f32 %v1383, 6.0
  %v1528 = vmin.f32 %v1384, 6.0
  %v1529 = vmin.f32 %v1385, 6.0
  %v1530 = vmin.f32 %v1386, 6.0
  %v1531 = vmin.f32 %v1387, 6.0
  %v1532 = vmin.f32 %v1388, 6.0
  %v1533 = vmin.f32 %v1389, 6.0
  %v1534 = vmin.f32 %v1390, 6.0
  %v1535 = vmin.f32 %v1391, 6.0
  %v1536 = vmin.f32 %v1392, 6.0
  %v1537 = vmin.f32 %v1393, 6.0
  %v1538 = vmin.f32 %v1394, 6.0
  %v1539 = vmin.f32 %v1395, 6.0
  %v1540 = vmin.f32 %v1396, 6.0
  %v1541 = vmin.f32 %v1397, 6.0
  %v1542 = vmin.f32 %v1398, 6.0
  %v1543 = vmin.f32 %v1399, 6.0
  %v1544 = vmin.f32 %v1400, 6.0
  %v1545 = vmin.f32 %v1401, 6.0
  %v1546 = vmin.f32 %v1402, 6.0
  %v1547 = vmin.f32 %v1403, 6.0
  %v1548 = vmin.f32 %v1404, 6.0
  %v1549 = vmin.f32 %v1405, 6.0
  %v1550 = vmin.f32 %v1406, 6.0
  %v1551 = vmin.f32 %v1407, 6.0
  %v1552 = vmin.f32 %v1408, 6.0
  %v1553 = vmin.f32 %v1409, 6.0
  %v1554 = vmin.f32 %v1410, 6.0
  %v1555 = vmin.f32 %v1411, 6.0
  %v1556 = vmin.f32 %v1412, 6.0
  %v1557 = vmin.f32 %v1413, 6.0
  %v1558 = vmin.f32 %v1414, 6.0
  %v1559 = vmin.f32 %v1415, 6.0
  %v1560 = vmin.f32 %v1416, 6.0
  %v1561 = vmin.f32 %v1417, 6.0
  %v1562 = vmin.f32 %v1418, 6.0
  %v1563 = vmin.f32 %v1419, 6.0
  %v1564 = vmin.f32 %v1420, 6.0
  %v1565 = vmin.f32 %v1421, 6.0
  %v1566 = vmin.f32 %v1422, 6.0
  %v1567 = vmin.f32 %v1423, 6.0
  %v1568 = vmin.f32 %v1424, 6.0
  %v1569 = vmin.f32 %v1425, 6.0
  %v1570 = vmin.f32 %v1426, 6.0
  %v1571 = vmin.f32 %v1427, 6.0
  %v1572 = vmin.f32 %v1428, 6.0
  %v1573 = vmin.f32 %v1429, 6.0
  %v1574 = vmin.f32 %v1430, 6.0
  %v1575 = vmin.f32 %v1431, 6.0
  %v1576 = vmin.f32 %v1432, 6.0
  %v1577 = vmin.f32 %v1433, 6.0
  %v1578 = vmin.f32 %v1434, 6.0
  %v1579 = vmin.f32 %v1435, 6.0
  %v1580 = vmin.f32 %v1436, 6.0
  %v1581 = vmin.f32 %v1437, 6.0
  %v1582 = vmin.f32 %v1438, 6.0
  %v1583 = vmin.f32 %v1439, 6.0
  %v1584 = vmin.f32 %v1440, 6.0
  %v1585 = vmin.f32 %v1441, 6.0
  %v1586 = vmin.f32 %v1442, 6.0
  %v1587 = vmin.f32 %v1443, 6.0
  %v1588 = vmin.f32 %v1444, 6.0
  %v1589 = vmin.f32 %v1445, 6.0
  %v1590 = vmin.f32 %v1446, 6.0
  %v1591 = vmin.f32 %v1447, 6.0
  %v1592 = vmin.f32 %v1448, 6.0
  %v1593 = vmin.f32 %v1449, 6.0
  %v1594 = vmin.f32 %v1450, 6.0
  %v1595 = vmin.f32 %v1451, 6.0
  %v1596 = vmin.f32 %v1452, 6.0
  %v1597 = vmin.f32 %v1453, 6.0
  %v1598 = vmin.f32 %v1454, 6.0
  %v1599 = vmin.f32 %v1455, 6.0
  %v1600 = vmin.f32 %v1456, 6.0
  %v1601 = vmin.f32 %v1457, 6.0
  %v1602 = vmin.f32 %v1458, 6.0
  %v1603 = vmin.f32 %v1459, 6.0
  %v1604 = vmin.f32 %v1460, 6.0
  %v1605 = vmin.f32 %v1461, 6.0
  %v1606 = vmin.f32 %v1462, 6.0
  %v1607 = vmin.f32 %v1463, 6.0
  %v1608 = vmin.f32 %v1464, 6.0
  %v1609 = vmin.f32 %v1465, 6.0
  %v1610 = vmin.f32 %v1466, 6.0
  %v1611 = vmin.f32 %v1467, 6.0
  %v1612 = vmin.f32 %v1468, 6.0
  %v1613 = vmin.f32 %v1469, 6.0
  %v1614 = vmin.f32 %v1470, 6.0
  %v1615 = vmin.f32 %v1471, 6.0
  %v1616 = vmin.f32 %v1472, 6.0
  %v1617 = vmin.f32 %v1473, 6.0
  %v1618 = vmin.f32 %v1474, 6.0
  %v1619 = vmin.f32 %v1475, 6.0
  %v1620 = vmin.f32 %v1476, 6.0
  %v1621 = vmin.f32 %v1477, 6.0
  %v1622 = vmin.f32 %v1478, 6.0
  %v1623 = vmin.f32 %v1479, 6.0
  %v1624 = vmin.f32 %v1480, 6.0
  %v1625 = vmin.f32 %v1481, 6.0
  %v1626 = vmin.f32 %v1482, 6.0
  %v1627 = vmin.f32 %v1483, 6.0
  %v1628 = vmin.f32 %v1484, 6.0
  %v1629 = vmin.f32 %v1485, 6.0
  %v1630 = vmin.f32 %v1486, 6.0
  %v1631 = vmin.f32 %v1487, 6.0
  %v1632 = vmin.f32 %v1488, 6.0
  %v1633 = vmin.f32 %v1489, 6.0
  %v1634 = vmin.f32 %v1490, 6.0
  %v1635 = vmin.f32 %v1491, 6.0
  %v1636 = vmin.f32 %v1492, 6.0
  %v1637 = vmin.f32 %v1493, 6.0
  %v1638 = vmin.f32 %v1494, 6.0
  %v1639 = vmin.f32 %v1495, 6.0
  %v1640 = vmin.f32 %v1496, 6.0
  %v1641 = vmin.f32 %v1497, 6.0
  %v1642 = vmin.f32 %v1498, 6.0
  %v1643 = vmin.f32 %v1499, 6.0
  %v1644 = vmin.f32 %v1500, 6.0
  %v1645 = vmin.f32 %v1501, 6.0
  %v1646 = vmin.f32 %v1502, 6.0
  %v1647 = vmin.f32 %v1503, 6.0
  %v1648 = vmin.f32 %v1504, 6.0
  %v1649 = vmin.f32 %v1505, 6.0
  %v1650 = vmin.f32 %v1506, 6.0
  %v1651 = vmin.f32 %v1507, 6.0
  %v1652 = vmin.f32 %v1508, 6.0
  %v1653 = vmin.f32 %v1509, 6.0
  %v1654 = vmin.f32 %v1510, 6.0
  %v1655 = vmin.f32 %v1511, 6.0
  %v1656 = vmin.f32 %v1512, 6.0
  %v1657 = vmin.f32 %v1513, 6.0
  %v1658 = vmin.f32 %v1514, 6.0
  %v1659 = vmin.f32 %v1515, 6.0
  %v1660 = vmin.f32 %v1516, 6.0
  %v1661 = vmin.f32 %v1517, 6.0
  %v1662 = vmin.f32 %v1518, 6.0
  %v1663 = vmin.f32 %v1519, 6.0
  %v1664 = vmin.f32 %v1520, 6.0
  %v1665 = vpack.c.bf16 %v1522, %v1521
  %v1666 = vpack.c.bf16 %v1524, %v1523
  %v1667 = vpack.c.bf16 %v1526, %v1525
  %v1668 = vpack.c.bf16 %v1528, %v1527
  %v1669 = vpack.c.bf16 %v1530, %v1529
  %v1670 = vpack.c.bf16 %v1532, %v1531
  %v1671 = vpack.c.bf16 %v1534, %v1533
  %v1672 = vpack.c.bf16 %v1536, %v1535
  %v1673 = vpack.c.bf16 %v1538, %v1537
  %v1674 = vpack.c.bf16 %v1540, %v1539
  %v1675 = vpack.c.bf16 %v1542, %v1541
  %v1676 = vpack.c.bf16 %v1544, %v1543
  %v1677 = vpack.c.bf16 %v1546, %v1545
  %v1678 = vpack.c.bf16 %v1548, %v1547
  %v1679 = vpack.c.bf16 %v1550, %v1549
  %v1680 = vpack.c.bf16 %v1552, %v1551
  %v1681 = vpack.c.bf16 %v1554, %v1553
  %v1682 = vpack.c.bf16 %v1556, %v1555
  %v1683 = vpack.c.bf16 %v1558, %v1557
  %v1684 = vpack.c.bf16 %v1560, %v1559
  %v1685 = vpack.c.bf16 %v1562, %v1561
  %v1686 = vpack.c.bf16 %v1564, %v1563
  %v1687 = vpack.c.bf16 %v1566, %v1565
  %v1688 = vpack.c.bf16 %v1568, %v1567
  %v1689 = vpack.c.bf16 %v1570, %v1569
  %v1690 = vpack.c.bf16 %v1572, %v1571
  %v1691 = vpack.c.bf16 %v1574, %v1573
  %v1692 = vpack.c.bf16 %v1576, %v1575
  %v1693 = vpack.c.bf16 %v1578, %v1577
  %v1694 = vpack.c.bf16 %v1580, %v1579
  %v1695 = vpack.c.bf16 %v1582, %v1581
  %v1696 = vpack.c.bf16 %v1584, %v1583
  %v1697 = vpack.c.bf16 %v1586, %v1585
  %v1698 = vpack.c.bf16 %v1588, %v1587
  %v1699 = vpack.c.bf16 %v1590, %v1589
  %v1700 = vpack.c.bf16 %v1592, %v1591
  %v1701 = vpack.c.bf16 %v1594, %v1593
  %v1702 = vpack.c.bf16 %v1596, %v1595
  %v1703 = vpack.c.bf16 %v1598, %v1597
  %v1704 = vpack.c.bf16 %v1600, %v1599
  %v1705 = vpack.c.bf16 %v1602, %v1601
  %v1706 = vpack.c.bf16 %v1604, %v1603
  %v1707 = vpack.c.bf16 %v1606, %v1605
  %v1708 = vpack.c.bf16 %v1608, %v1607
  %v1709 = vpack.c.bf16 %v1610, %v1609
  %v1710 = vpack.c.bf16 %v1612, %v1611
  %v1711 = vpack.c.bf16 %v1614, %v1613
  %v1712 = vpack.c.bf16 %v1616, %v1615
  %v1713 = vpack.c.bf16 %v1618, %v1617
  %v1714 = vpack.c.bf16 %v1620, %v1619
  %v1715 = vpack.c.bf16 %v1622, %v1621
  %v1716 = vpack.c.bf16 %v1624, %v1623
  %v1717 = vpack.c.bf16 %v1626, %v1625
  %v1718 = vpack.c.bf16 %v1628, %v1627
  %v1719 = vpack.c.bf16 %v1630, %v1629
  %v1720 = vpack.c.bf16 %v1632, %v1631
  %v1721 = vpack.c.bf16 %v1634, %v1633
  %v1722 = vpack.c.bf16 %v1636, %v1635
  %v1723 = vpack.c.bf16 %v1638, %v1637
  %v1724 = vpack.c.bf16 %v1640, %v1639
  %v1725 = vpack.c.bf16 %v1642, %v1641
  %v1726 = vpack.c.bf16 %v1644, %v1643
  %v1727 = vpack.c.bf16 %v1646, %v1645
  %v1728 = vpack.c.bf16 %v1648, %v1647
  %v1729 = vpack.c.bf16 %v1650, %v1649
  %v1730 = vpack.c.bf16 %v1652, %v1651
  %v1731 = vpack.c.bf16 %v1654, %v1653
  %v1732 = vpack.c.bf16 %v1656, %v1655
  %v1733 = vpack.c.bf16 %v1658, %v1657
  %v1734 = vpack.c.bf16 %v1660, %v1659
  %v1735 = vpack.c.bf16 %v1662, %v1661
  %v1736 = vpack.c.bf16 %v1664, %v1663
  %v1809 = vunpack.c.l.b16 %v1665
  %v1810 = vunpack.c.h.b16 %v1665
  %v1811 = vunpack.c.l.b16 %v1666
  %v1812 = vunpack.c.h.b16 %v1666
  %v1813 = vunpack.c.l.b16 %v1667
  %v1814 = vunpack.c.h.b16 %v1667
  %v1815 = vunpack.c.l.b16 %v1668
  %v1816 = vunpack.c.h.b16 %v1668
  %v1817 = vunpack.c.l.b16 %v1669
  %v1818 = vunpack.c.h.b16 %v1669
  %v1819 = vunpack.c.l.b16 %v1670
  %v1820 = vunpack.c.h.b16 %v1670
  %v1821 = vunpack.c.l.b16 %v1671
  %v1822 = vunpack.c.h.b16 %v1671
  %v1823 = vunpack.c.l.b16 %v1672
  %v1824 = vunpack.c.h.b16 %v1672
  %v1825 = vunpack.c.l.b16 %v1673
  %v1826 = vunpack.c.h.b16 %v1673
  %v1827 = vunpack.c.l.b16 %v1674
  %v1828 = vunpack.c.h.b16 %v1674
  %v1829 = vunpack.c.l.b16 %v1675
  %v1830 = vunpack.c.h.b16 %v1675
  %v1831 = vunpack.c.l.b16 %v1676
  %v1832 = vunpack.c.h.b16 %v1676
  %v1833 = vunpack.c.l.b16 %v1677
  %v1834 = vunpack.c.h.b16 %v1677
  %v1835 = vunpack.c.l.b16 %v1678
  %v1836 = vunpack.c.h.b16 %v1678
  %v1837 = vunpack.c.l.b16 %v1679
  %v1838 = vunpack.c.h.b16 %v1679
  %v1839 = vunpack.c.l.b16 %v1680
  %v1840 = vunpack.c.h.b16 %v1680
  %v1841 = vunpack.c.l.b16 %v1681
  %v1842 = vunpack.c.h.b16 %v1681
  %v1843 = vunpack.c.l.b16 %v1682
  %v1844 = vunpack.c.h.b16 %v1682
  %v1845 = vunpack.c.l.b16 %v1683
  %v1846 = vunpack.c.h.b16 %v1683
  %v1847 = vunpack.c.l.b16 %v1684
  %v1848 = vunpack.c.h.b16 %v1684
  %v1849 = vunpack.c.l.b16 %v1685
  %v1850 = vunpack.c.h.b16 %v1685
  %v1851 = vunpack.c.l.b16 %v1686
  %v1852 = vunpack.c.h.b16 %v1686
  %v1853 = vunpack.c.l.b16 %v1687
  %v1854 = vunpack.c.h.b16 %v1687
  %v1855 = vunpack.c.l.b16 %v1688
  %v1856 = vunpack.c.h.b16 %v1688
  %v1857 = vunpack.c.l.b16 %v1689
  %v1858 = vunpack.c.h.b16 %v1689
  %v1859 = vunpack.c.l.b16 %v1690
  %v1860 = vunpack.c.h.b16 %v1690
  %v1861 = vunpack.c.l.b16 %v1691
  %v1862 = vunpack.c.h.b16 %v1691
  %v1863 = vunpack.c.l.b16 %v1692
  %v1864 = vunpack.c.h.b16 %v1692
  %v1865 = vunpack.c.l.b16 %v1693
  %v1866 = vunpack.c.h.b16 %v1693
  %v1867 = vunpack.c.l.b16 %v1694
  %v1868 = vunpack.c.h.b16 %v1694
  %v1869 = vunpack.c.l.b16 %v1695
  %v1870 = vunpack.c.h.b16 %v1695
  %v1871 = vunpack.c.l.b16 %v1696
  %v1872 = vunpack.c.h.b16 %v1696
  %v1873 = vunpack.c.l.b16 %v1697
  %v1874 = vunpack.c.h.b16 %v1697
  %v1875 = vunpack.c.l.b16 %v1698
  %v1876 = vunpack.c.h.b16 %v1698
  %v1877 = vunpack.c.l.b16 %v1699
  %v1878 = vunpack.c.h.b16 %v1699
  %v1879 = vunpack.c.l.b16 %v1700
  %v1880 = vunpack.c.h.b16 %v1700
  %v1881 = vunpack.c.l.b16 %v1701
  %v1882 = vunpack.c.h.b16 %v1701
  %v1883 = vunpack.c.l.b16 %v1702
  %v1884 = vunpack.c.h.b16 %v1702
  %v1885 = vunpack.c.l.b16 %v1703
  %v1886 = vunpack.c.h.b16 %v1703
  %v1887 = vunpack.c.l.b16 %v1704
  %v1888 = vunpack.c.h.b16 %v1704
  %v1889 = vunpack.c.l.b16 %v1705
  %v1890 = vunpack.c.h.b16 %v1705
  %v1891 = vunpack.c.l.b16 %v1706
  %v1892 = vunpack.c.h.b16 %v1706
  %v1893 = vunpack.c.l.b16 %v1707
  %v1894 = vunpack.c.h.b16 %v1707
  %v1895 = vunpack.c.l.b16 %v1708
  %v1896 = vunpack.c.h.b16 %v1708
  %v1897 = vunpack.c.l.b16 %v1709
  %v1898 = vunpack.c.h.b16 %v1709
  %v1899 = vunpack.c.l.b16 %v1710
  %v1900 = vunpack.c.h.b16 %v1710
  %v1901 = vunpack.c.l.b16 %v1711
  %v1902 = vunpack.c.h.b16 %v1711
  %v1903 = vunpack.c.l.b16 %v1712
  %v1904 = vunpack.c.h.b16 %v1712
  %v1905 = vunpack.c.l.b16 %v1713
  %v1906 = vunpack.c.h.b16 %v1713
  %v1907 = vunpack.c.l.b16 %v1714
  %v1908 = vunpack.c.h.b16 %v1714
  %v1909 = vunpack.c.l.b16 %v1715
  %v1910 = vunpack.c.h.b16 %v1715
  %v1911 = vunpack.c.l.b16 %v1716
  %v1912 = vunpack.c.h.b16 %v1716
  %v1913 = vunpack.c.l.b16 %v1717
  %v1914 = vunpack.c.h.b16 %v1717
  %v1915 = vunpack.c.l.b16 %v1718
  %v1916 = vunpack.c.h.b16 %v1718
  %v1917 = vunpack.c.l.b16 %v1719
  %v1918 = vunpack.c.h.b16 %v1719
  %v1919 = vunpack.c.l.b16 %v1720
  %v1920 = vunpack.c.h.b16 %v1720
  %v1921 = vunpack.c.l.b16 %v1721
  %v1922 = vunpack.c.h.b16 %v1721
  %v1923 = vunpack.c.l.b16 %v1722
  %v1924 = vunpack.c.h.b16 %v1722
  %v1925 = vunpack.c.l.b16 %v1723
  %v1926 = vunpack.c.h.b16 %v1723
  %v1927 = vunpack.c.l.b16 %v1724
  %v1928 = vunpack.c.h.b16 %v1724
  %v1929 = vunpack.c.l.b16 %v1725
  %v1930 = vunpack.c.h.b16 %v1725
  %v1931 = vunpack.c.l.b16 %v1726
  %v1932 = vunpack.c.h.b16 %v1726
  %v1933 = vunpack.c.l.b16 %v1727
  %v1934 = vunpack.c.h.b16 %v1727
  %v1935 = vunpack.c.l.b16 %v1728
  %v1936 = vunpack.c.h.b16 %v1728
  %v1937 = vunpack.c.l.b16 %v1729
  %v1938 = vunpack.c.h.b16 %v1729
  %v1939 = vunpack.c.l.b16 %v1730
  %v1940 = vunpack.c.h.b16 %v1730
  %v1941 = vunpack.c.l.b16 %v1731
  %v1942 = vunpack.c.h.b16 %v1731
  %v1943 = vunpack.c.l.b16 %v1732
  %v1944 = vunpack.c.h.b16 %v1732
  %v1945 = vunpack.c.l.b16 %v1733
  %v1946 = vunpack.c.h.b16 %v1733
  %v1947 = vunpack.c.l.b16 %v1734
  %v1948 = vunpack.c.h.b16 %v1734
  %v1949 = vunpack.c.l.b16 %v1735
  %v1950 = vunpack.c.h.b16 %v1735
  %v1951 = vunpack.c.l.b16 %v1736
  %v1952 = vunpack.c.h.b16 %v1736
  %v1953 = vpack.c.b16 %v1809, %v1809
  %v1954 = vpack.c.b16 %v1810, %v1810
  %v1955 = vpack.c.b16 %v1811, %v1811
  %v1956 = vpack.c.b16 %v1812, %v1812
  %v1957 = vpack.c.b16 %v1813, %v1813
  %v1958 = vpack.c.b16 %v1814, %v1814
  %v1959 = vpack.c.b16 %v1815, %v1815
  %v1960 = vpack.c.b16 %v1816, %v1816
  %v1961 = vpack.c.b16 %v1817, %v1817
  %v1962 = vpack.c.b16 %v1818, %v1818
  %v1963 = vpack.c.b16 %v1819, %v1819
  %v1964 = vpack.c.b16 %v1820, %v1820
  %v1965 = vpack.c.b16 %v1821, %v1821
  %v1966 = vpack.c.b16 %v1822, %v1822
  %v1967 = vpack.c.b16 %v1823, %v1823
  %v1968 = vpack.c.b16 %v1824, %v1824
  %v1969 = vpack.c.b16 %v1825, %v1825
  %v1970 = vpack.c.b16 %v1826, %v1826
  %v1971 = vpack.c.b16 %v1827, %v1827
  %v1972 = vpack.c.b16 %v1828, %v1828
  %v1973 = vpack.c.b16 %v1829, %v1829
  %v1974 = vpack.c.b16 %v1830, %v1830
  %v1975 = vpack.c.b16 %v1831, %v1831
  %v1976 = vpack.c.b16 %v1832, %v1832
  %v1977 = vpack.c.b16 %v1833, %v1833
  %v1978 = vpack.c.b16 %v1834, %v1834
  %v1979 = vpack.c.b16 %v1835, %v1835
  %v1980 = vpack.c.b16 %v1836, %v1836
  %v1981 = vpack.c.b16 %v1837, %v1837
  %v1982 = vpack.c.b16 %v1838, %v1838
  %v1983 = vpack.c.b16 %v1839, %v1839
  %v1984 = vpack.c.b16 %v1840, %v1840
  %v1985 = vpack.c.b16 %v1841, %v1841
  %v1986 = vpack.c.b16 %v1842, %v1842
  %v1987 = vpack.c.b16 %v1843, %v1843
  %v1988 = vpack.c.b16 %v1844, %v1844
  %v1989 = vpack.c.b16 %v1845, %v1845
  %v1990 = vpack.c.b16 %v1846, %v1846
  %v1991 = vpack.c.b16 %v1847, %v1847
  %v1992 = vpack.c.b16 %v1848, %v1848
  %v1993 = vpack.c.b16 %v1849, %v1849
  %v1994 = vpack.c.b16 %v1850, %v1850
  %v1995 = vpack.c.b16 %v1851, %v1851
  %v1996 = vpack.c.b16 %v1852, %v1852
  %v1997 = vpack.c.b16 %v1853, %v1853
  %v1998 = vpack.c.b16 %v1854, %v1854
  %v1999 = vpack.c.b16 %v1855, %v1855
  %v2000 = vpack.c.b16 %v1856, %v1856
  %v2001 = vpack.c.b16 %v1857, %v1857
  %v2002 = vpack.c.b16 %v1858, %v1858
  %v2003 = vpack.c.b16 %v1859, %v1859
  %v2004 = vpack.c.b16 %v1860, %v1860
  %v2005 = vpack.c.b16 %v1861, %v1861
  %v2006 = vpack.c.b16 %v1862, %v1862
  %v2007 = vpack.c.b16 %v1863, %v1863
  %v2008 = vpack.c.b16 %v1864, %v1864
  %v2009 = vpack.c.b16 %v1865, %v1865
  %v2010 = vpack.c.b16 %v1866, %v1866
  %v2011 = vpack.c.b16 %v1867, %v1867
  %v2012 = vpack.c.b16 %v1868, %v1868
  %v2013 = vpack.c.b16 %v1869, %v1869
  %v2014 = vpack.c.b16 %v1870, %v1870
  %v2015 = vpack.c.b16 %v1871, %v1871
  %v2016 = vpack.c.b16 %v1872, %v1872
  %v2017 = vpack.c.b16 %v1873, %v1873
  %v2018 = vpack.c.b16 %v1874, %v1874
  %v2019 = vpack.c.b16 %v1875, %v1875
  %v2020 = vpack.c.b16 %v1876, %v1876
  %v2021 = vpack.c.b16 %v1877, %v1877
  %v2022 = vpack.c.b16 %v1878, %v1878
  %v2023 = vpack.c.b16 %v1879, %v1879
  %v2024 = vpack.c.b16 %v1880, %v1880
  %v2025 = vpack.c.b16 %v1881, %v1881
  %v2026 = vpack.c.b16 %v1882, %v1882
  %v2027 = vpack.c.b16 %v1883, %v1883
  %v2028 = vpack.c.b16 %v1884, %v1884
  %v2029 = vpack.c.b16 %v1885, %v1885
  %v2030 = vpack.c.b16 %v1886, %v1886
  %v2031 = vpack.c.b16 %v1887, %v1887
  %v2032 = vpack.c.b16 %v1888, %v1888
  %v2033 = vpack.c.b16 %v1889, %v1889
  %v2034 = vpack.c.b16 %v1890, %v1890
  %v2035 = vpack.c.b16 %v1891, %v1891
  %v2036 = vpack.c.b16 %v1892, %v1892
  %v2037 = vpack.c.b16 %v1893, %v1893
  %v2038 = vpack.c.b16 %v1894, %v1894
  %v2039 = vpack.c.b16 %v1895, %v1895
  %v2040 = vpack.c.b16 %v1896, %v1896
  %v2041 = vpack.c.b16 %v1897, %v1897
  %v2042 = vpack.c.b16 %v1898, %v1898
  %v2043 = vpack.c.b16 %v1899, %v1899
  %v2044 = vpack.c.b16 %v1900, %v1900
  %v2045 = vpack.c.b16 %v1901, %v1901
  %v2046 = vpack.c.b16 %v1902, %v1902
  %v2047 = vpack.c.b16 %v1903, %v1903
  %v2048 = vpack.c.b16 %v1904, %v1904
  %v2049 = vpack.c.b16 %v1905, %v1905
  %v2050 = vpack.c.b16 %v1906, %v1906
  %v2051 = vpack.c.b16 %v1907, %v1907
  %v2052 = vpack.c.b16 %v1908, %v1908
  %v2053 = vpack.c.b16 %v1909, %v1909
  %v2054 = vpack.c.b16 %v1910, %v1910
  %v2055 = vpack.c.b16 %v1911, %v1911
  %v2056 = vpack.c.b16 %v1912, %v1912
  %v2057 = vpack.c.b16 %v1913, %v1913
  %v2058 = vpack.c.b16 %v1914, %v1914
  %v2059 = vpack.c.b16 %v1915, %v1915
  %v2060 = vpack.c.b16 %v1916, %v1916
  %v2061 = vpack.c.b16 %v1917, %v1917
  %v2062 = vpack.c.b16 %v1918, %v1918
  %v2063 = vpack.c.b16 %v1919, %v1919
  %v2064 = vpack.c.b16 %v1920, %v1920
  %v2065 = vpack.c.b16 %v1921, %v1921
  %v2066 = vpack.c.b16 %v1922, %v1922
  %v2067 = vpack.c.b16 %v1923, %v1923
  %v2068 = vpack.c.b16 %v1924, %v1924
  %v2069 = vpack.c.b16 %v1925, %v1925
  %v2070 = vpack.c.b16 %v1926, %v1926
  %v2071 = vpack.c.b16 %v1927, %v1927
  %v2072 = vpack.c.b16 %v1928, %v1928
  %v2073 = vpack.c.b16 %v1929, %v1929
  %v2074 = vpack.c.b16 %v1930, %v1930
  %v2075 = vpack.c.b16 %v1931, %v1931
  %v2076 = vpack.c.b16 %v1932, %v1932
  %v2077 = vpack.c.b16 %v1933, %v1933
  %v2078 = vpack.c.b16 %v1934, %v1934
  %v2079 = vpack.c.b16 %v1935, %v1935
  %v2080 = vpack.c.b16 %v1936, %v1936
  %v2081 = vpack.c.b16 %v1937, %v1937
  %v2082 = vpack.c.b16 %v1938, %v1938
  %v2083 = vpack.c.b16 %v1939, %v1939
  %v2084 = vpack.c.b16 %v1940, %v1940
  %v2085 = vpack.c.b16 %v1941, %v1941
  %v2086 = vpack.c.b16 %v1942, %v1942
  %v2087 = vpack.c.b16 %v1943, %v1943
  %v2088 = vpack.c.b16 %v1944, %v1944
  %v2089 = vpack.c.b16 %v1945, %v1945
  %v2090 = vpack.c.b16 %v1946, %v1946
  %v2091 = vpack.c.b16 %v1947, %v1947
  %v2092 = vpack.c.b16 %v1948, %v1948
  %v2093 = vpack.c.b16 %v1949, %v1949
  %v2094 = vpack.c.b16 %v1950, %v1950
  %v2095 = vpack.c.b16 %v1951, %v1951
  %v2096 = vpack.c.b16 %v1952, %v1952
  %vm2241 = vcmask 125952
  %2242 = vst.msk [vmem:[%s6] sm:$0xf] %vm2241, %v1953
  %2243 = vst.msk [vmem:[%s6 + $0x4] sm:$0xf] %vm2241, %v1954
  %2244 = vst.msk [vmem:[%s6 + $0x8] sm:$0xf] %vm2241, %v1955
  %2245 = vst.msk [vmem:[%s6 + $0xc] sm:$0xf] %vm2241, %v1956
  %2246 = vst.msk [vmem:[%s6 + $0x10] sm:$0xf] %vm2241, %v1957
  %2247 = vst.msk [vmem:[%s6 + $0x14] sm:$0xf] %vm2241, %v1958
  %2248 = vst.msk [vmem:[%s6 + $0x18] sm:$0xf] %vm2241, %v1959
  %2249 = vst.msk [vmem:[%s6 + $0x1c] sm:$0xf] %vm2241, %v1960
  %2250 = vst.msk [vmem:[%s6 + $0x20] sm:$0xf] %vm2241, %v1961
  %2251 = vst.msk [vmem:[%s6 + $0x24] sm:$0xf] %vm2241, %v1962
  %2252 = vst.msk [vmem:[%s6 + $0x28] sm:$0xf] %vm2241, %v1963
  %2253 = vst.msk [vmem:[%s6 + $0x2c] sm:$0xf] %vm2241, %v1964
  %2254 = vst.msk [vmem:[%s6 + $0x30] sm:$0xf] %vm2241, %v1965
  %2255 = vst.msk [vmem:[%s6 + $0x34] sm:$0xf] %vm2241, %v1966
  %2256 = vst.msk [vmem:[%s6 + $0x38] sm:$0xf] %vm2241, %v1967
  %2257 = vst.msk [vmem:[%s6 + $0x3c] sm:$0xf] %vm2241, %v1968
  %2258 = vst.msk [vmem:[%s6 + $0x40] sm:$0xf] %vm2241, %v1969
  %2259 = vst.msk [vmem:[%s6 + $0x44] sm:$0xf] %vm2241, %v1970
  %2260 = vst.msk [vmem:[%s6 + $0x48] sm:$0xf] %vm2241, %v1971
  %2261 = vst.msk [vmem:[%s6 + $0x4c] sm:$0xf] %vm2241, %v1972
  %2262 = vst.msk [vmem:[%s6 + $0x50] sm:$0xf] %vm2241, %v1973
  %2263 = vst.msk [vmem:[%s6 + $0x54] sm:$0xf] %vm2241, %v1974
  %2264 = vst.msk [vmem:[%s6 + $0x58] sm:$0xf] %vm2241, %v1975
  %2265 = vst.msk [vmem:[%s6 + $0x5c] sm:$0xf] %vm2241, %v1976
  %2266 = vst.msk [vmem:[%s6 + $0x60] sm:$0xf] %vm2241, %v1977
  %2267 = vst.msk [vmem:[%s6 + $0x64] sm:$0xf] %vm2241, %v1978
  %2268 = vst.msk [vmem:[%s6 + $0x68] sm:$0xf] %vm2241, %v1979
  %2269 = vst.msk [vmem:[%s6 + $0x6c] sm:$0xf] %vm2241, %v1980
  %2270 = vst.msk [vmem:[%s6 + $0x70] sm:$0xf] %vm2241, %v1981
  %2271 = vst.msk [vmem:[%s6 + $0x74] sm:$0xf] %vm2241, %v1982
  %2272 = vst.msk [vmem:[%s6 + $0x78] sm:$0xf] %vm2241, %v1983
  %2273 = vst.msk [vmem:[%s6 + $0x7c] sm:$0xf] %vm2241, %v1984
  %2274 = vst.msk [vmem:[%s6 + $0x80] sm:$0xf] %vm2241, %v1985
  %2275 = vst.msk [vmem:[%s6 + $0x84] sm:$0xf] %vm2241, %v1986
  %2276 = vst.msk [vmem:[%s6 + $0x88] sm:$0xf] %vm2241, %v1987
  %2277 = vst.msk [vmem:[%s6 + $0x8c] sm:$0xf] %vm2241, %v1988
  %2278 = vst.msk [vmem:[%s6 + $0x90] sm:$0xf] %vm2241, %v1989
  %2279 = vst.msk [vmem:[%s6 + $0x94] sm:$0xf] %vm2241, %v1990
  %2280 = vst.msk [vmem:[%s6 + $0x98] sm:$0xf] %vm2241, %v1991
  %2281 = vst.msk [vmem:[%s6 + $0x9c] sm:$0xf] %vm2241, %v1992
  %2282 = vst.msk [vmem:[%s6 + $0xa0] sm:$0xf] %vm2241, %v1993
  %2283 = vst.msk [vmem:[%s6 + $0xa4] sm:$0xf] %vm2241, %v1994
  %2284 = vst.msk [vmem:[%s6 + $0xa8] sm:$0xf] %vm2241, %v1995
  %2285 = vst.msk [vmem:[%s6 + $0xac] sm:$0xf] %vm2241, %v1996
  %2286 = vst.msk [vmem:[%s6 + $0xb0] sm:$0xf] %vm2241, %v1997
  %2287 = vst.msk [vmem:[%s6 + $0xb4] sm:$0xf] %vm2241, %v1998
  %2288 = vst.msk [vmem:[%s6 + $0xb8] sm:$0xf] %vm2241, %v1999
  %2289 = vst.msk [vmem:[%s6 + $0xbc] sm:$0xf] %vm2241, %v2000
  %2290 = vst.msk [vmem:[%s6 + $0xc0] sm:$0xf] %vm2241, %v2001
  %2291 = vst.msk [vmem:[%s6 + $0xc4] sm:$0xf] %vm2241, %v2002
  %2292 = vst.msk [vmem:[%s6 + $0xc8] sm:$0xf] %vm2241, %v2003
  %2293 = vst.msk [vmem:[%s6 + $0xcc] sm:$0xf] %vm2241, %v2004
  %2294 = vst.msk [vmem:[%s6 + $0xd0] sm:$0xf] %vm2241, %v2005
  %2295 = vst.msk [vmem:[%s6 + $0xd4] sm:$0xf] %vm2241, %v2006
  %2296 = vst.msk [vmem:[%s6 + $0xd8] sm:$0xf] %vm2241, %v2007
  %2297 = vst.msk [vmem:[%s6 + $0xdc] sm:$0xf] %vm2241, %v2008
  %2298 = vst.msk [vmem:[%s6 + $0xe0] sm:$0xf] %vm2241, %v2009
  %2299 = vst.msk [vmem:[%s6 + $0xe4] sm:$0xf] %vm2241, %v2010
  %2300 = vst.msk [vmem:[%s6 + $0xe8] sm:$0xf] %vm2241, %v2011
  %2301 = vst.msk [vmem:[%s6 + $0xec] sm:$0xf] %vm2241, %v2012
  %2302 = vst.msk [vmem:[%s6 + $0xf0] sm:$0xf] %vm2241, %v2013
  %2303 = vst.msk [vmem:[%s6 + $0xf4] sm:$0xf] %vm2241, %v2014
  %2304 = vst.msk [vmem:[%s6 + $0xf8] sm:$0xf] %vm2241, %v2015
  %2305 = vst.msk [vmem:[%s6 + $0xfc] sm:$0xf] %vm2241, %v2016
  %2306 = vst.msk [vmem:[%s6 + $0x100] sm:$0xf] %vm2241, %v2017
  %2307 = vst.msk [vmem:[%s6 + $0x104] sm:$0xf] %vm2241, %v2018
  %2308 = vst.msk [vmem:[%s6 + $0x108] sm:$0xf] %vm2241, %v2019
  %2309 = vst.msk [vmem:[%s6 + $0x10c] sm:$0xf] %vm2241, %v2020
  %2310 = vst.msk [vmem:[%s6 + $0x110] sm:$0xf] %vm2241, %v2021
  %2311 = vst.msk [vmem:[%s6 + $0x114] sm:$0xf] %vm2241, %v2022
  %2312 = vst.msk [vmem:[%s6 + $0x118] sm:$0xf] %vm2241, %v2023
  %2313 = vst.msk [vmem:[%s6 + $0x11c] sm:$0xf] %vm2241, %v2024
  %2314 = vst.msk [vmem:[%s6 + $0x120] sm:$0xf] %vm2241, %v2025
  %2315 = vst.msk [vmem:[%s6 + $0x124] sm:$0xf] %vm2241, %v2026
  %2316 = vst.msk [vmem:[%s6 + $0x128] sm:$0xf] %vm2241, %v2027
  %2317 = vst.msk [vmem:[%s6 + $0x12c] sm:$0xf] %vm2241, %v2028
  %2318 = vst.msk [vmem:[%s6 + $0x130] sm:$0xf] %vm2241, %v2029
  %2319 = vst.msk [vmem:[%s6 + $0x134] sm:$0xf] %vm2241, %v2030
  %2320 = vst.msk [vmem:[%s6 + $0x138] sm:$0xf] %vm2241, %v2031
  %2321 = vst.msk [vmem:[%s6 + $0x13c] sm:$0xf] %vm2241, %v2032
  %2322 = vst.msk [vmem:[%s6 + $0x140] sm:$0xf] %vm2241, %v2033
  %2323 = vst.msk [vmem:[%s6 + $0x144] sm:$0xf] %vm2241, %v2034
  %2324 = vst.msk [vmem:[%s6 + $0x148] sm:$0xf] %vm2241, %v2035
  %2325 = vst.msk [vmem:[%s6 + $0x14c] sm:$0xf] %vm2241, %v2036
  %2326 = vst.msk [vmem:[%s6 + $0x150] sm:$0xf] %vm2241, %v2037
  %2327 = vst.msk [vmem:[%s6 + $0x154] sm:$0xf] %vm2241, %v2038
  %2328 = vst.msk [vmem:[%s6 + $0x158] sm:$0xf] %vm2241, %v2039
  %2329 = vst.msk [vmem:[%s6 + $0x15c] sm:$0xf] %vm2241, %v2040
  %2330 = vst.msk [vmem:[%s6 + $0x160] sm:$0xf] %vm2241, %v2041
  %2331 = vst.msk [vmem:[%s6 + $0x164] sm:$0xf] %vm2241, %v2042
  %2332 = vst.msk [vmem:[%s6 + $0x168] sm:$0xf] %vm2241, %v2043
  %2333 = vst.msk [vmem:[%s6 + $0x16c] sm:$0xf] %vm2241, %v2044
  %2334 = vst.msk [vmem:[%s6 + $0x170] sm:$0xf] %vm2241, %v2045
  %2335 = vst.msk [vmem:[%s6 + $0x174] sm:$0xf] %vm2241, %v2046
  %2336 = vst.msk [vmem:[%s6 + $0x178] sm:$0xf] %vm2241, %v2047
  %2337 = vst.msk [vmem:[%s6 + $0x17c] sm:$0xf] %vm2241, %v2048
  %2338 = vst.msk [vmem:[%s6 + $0x180] sm:$0xf] %vm2241, %v2049
  %2339 = vst.msk [vmem:[%s6 + $0x184] sm:$0xf] %vm2241, %v2050
  %2340 = vst.msk [vmem:[%s6 + $0x188] sm:$0xf] %vm2241, %v2051
  %2341 = vst.msk [vmem:[%s6 + $0x18c] sm:$0xf] %vm2241, %v2052
  %2342 = vst.msk [vmem:[%s6 + $0x190] sm:$0xf] %vm2241, %v2053
  %2343 = vst.msk [vmem:[%s6 + $0x194] sm:$0xf] %vm2241, %v2054
  %2344 = vst.msk [vmem:[%s6 + $0x198] sm:$0xf] %vm2241, %v2055
  %2345 = vst.msk [vmem:[%s6 + $0x19c] sm:$0xf] %vm2241, %v2056
  %2346 = vst.msk [vmem:[%s6 + $0x1a0] sm:$0xf] %vm2241, %v2057
  %2347 = vst.msk [vmem:[%s6 + $0x1a4] sm:$0xf] %vm2241, %v2058
  %2348 = vst.msk [vmem:[%s6 + $0x1a8] sm:$0xf] %vm2241, %v2059
  %2349 = vst.msk [vmem:[%s6 + $0x1ac] sm:$0xf] %vm2241, %v2060
  %2350 = vst.msk [vmem:[%s6 + $0x1b0] sm:$0xf] %vm2241, %v2061
  %2351 = vst.msk [vmem:[%s6 + $0x1b4] sm:$0xf] %vm2241, %v2062
  %2352 = vst.msk [vmem:[%s6 + $0x1b8] sm:$0xf] %vm2241, %v2063
  %2353 = vst.msk [vmem:[%s6 + $0x1bc] sm:$0xf] %vm2241, %v2064
  %2354 = vst.msk [vmem:[%s6 + $0x1c0] sm:$0xf] %vm2241, %v2065
  %2355 = vst.msk [vmem:[%s6 + $0x1c4] sm:$0xf] %vm2241, %v2066
  %2356 = vst.msk [vmem:[%s6 + $0x1c8] sm:$0xf] %vm2241, %v2067
  %2357 = vst.msk [vmem:[%s6 + $0x1cc] sm:$0xf] %vm2241, %v2068
  %2358 = vst.msk [vmem:[%s6 + $0x1d0] sm:$0xf] %vm2241, %v2069
  %2359 = vst.msk [vmem:[%s6 + $0x1d4] sm:$0xf] %vm2241, %v2070
  %2360 = vst.msk [vmem:[%s6 + $0x1d8] sm:$0xf] %vm2241, %v2071
  %2361 = vst.msk [vmem:[%s6 + $0x1dc] sm:$0xf] %vm2241, %v2072
  %2362 = vst.msk [vmem:[%s6 + $0x1e0] sm:$0xf] %vm2241, %v2073
  %2363 = vst.msk [vmem:[%s6 + $0x1e4] sm:$0xf] %vm2241, %v2074
  %2364 = vst.msk [vmem:[%s6 + $0x1e8] sm:$0xf] %vm2241, %v2075
  %2365 = vst.msk [vmem:[%s6 + $0x1ec] sm:$0xf] %vm2241, %v2076
  %2366 = vst.msk [vmem:[%s6 + $0x1f0] sm:$0xf] %vm2241, %v2077
  %2367 = vst.msk [vmem:[%s6 + $0x1f4] sm:$0xf] %vm2241, %v2078
  %2368 = vst.msk [vmem:[%s6 + $0x1f8] sm:$0xf] %vm2241, %v2079
  %2369 = vst.msk [vmem:[%s6 + $0x1fc] sm:$0xf] %vm2241, %v2080
  %2370 = vst.msk [vmem:[%s6 + $0x200] sm:$0xf] %vm2241, %v2081
  %2371 = vst.msk [vmem:[%s6 + $0x204] sm:$0xf] %vm2241, %v2082
  %2372 = vst.msk [vmem:[%s6 + $0x208] sm:$0xf] %vm2241, %v2083
  %2373 = vst.msk [vmem:[%s6 + $0x20c] sm:$0xf] %vm2241, %v2084
  %2374 = vst.msk [vmem:[%s6 + $0x210] sm:$0xf] %vm2241, %v2085
  %2375 = vst.msk [vmem:[%s6 + $0x214] sm:$0xf] %vm2241, %v2086
  %2376 = vst.msk [vmem:[%s6 + $0x218] sm:$0xf] %vm2241, %v2087
  %2377 = vst.msk [vmem:[%s6 + $0x21c] sm:$0xf] %vm2241, %v2088
  %2378 = vst.msk [vmem:[%s6 + $0x220] sm:$0xf] %vm2241, %v2089
  %2379 = vst.msk [vmem:[%s6 + $0x224] sm:$0xf] %vm2241, %v2090
  %2380 = vst.msk [vmem:[%s6 + $0x228] sm:$0xf] %vm2241, %v2091
  %2381 = vst.msk [vmem:[%s6 + $0x22c] sm:$0xf] %vm2241, %v2092
  %2382 = vst.msk [vmem:[%s6 + $0x230] sm:$0xf] %vm2241, %v2093
  %2383 = vst.msk [vmem:[%s6 + $0x234] sm:$0xf] %vm2241, %v2094
  %2384 = vst.msk [vmem:[%s6 + $0x238] sm:$0xf] %vm2241, %v2095
  %2385 = vst.msk [vmem:[%s6 + $0x23c] sm:$0xf] %vm2241, %v2096
  %v2386 = vld [vmem:[%s1] sm:$0xf]
  %v2387 = vld [vmem:[%s1 + $0x4] sm:$0xf]
  %v2388 = vld [vmem:[%s1 + $0x8] sm:$0xf]
  %v2389 = vld [vmem:[%s1 + $0xc] sm:$0xf]
  %v2390 = vld [vmem:[%s1 + $0x10] sm:$0xf]
  %v2391 = vld [vmem:[%s1 + $0x14] sm:$0xf]
  %v2392 = vld [vmem:[%s1 + $0x18] sm:$0xf]
  %v2393 = vld [vmem:[%s1 + $0x1c] sm:$0xf]
  %v2394 = vld [vmem:[%s1 + $0x20] sm:$0xf]
  %v2395 = vld [vmem:[%s1 + $0x24] sm:$0xf]
  %v2396 = vld [vmem:[%s1 + $0x28] sm:$0xf]
  %v2397 = vld [vmem:[%s1 + $0x2c] sm:$0xf]
  %v2398 = vld [vmem:[%s1 + $0x30] sm:$0xf]
  %v2399 = vld [vmem:[%s1 + $0x34] sm:$0xf]
  %v2400 = vld [vmem:[%s1 + $0x38] sm:$0xf]
  %v2401 = vld [vmem:[%s1 + $0x3c] sm:$0xf]
  %v2402 = vld [vmem:[%s1 + $0x40] sm:$0xf]
  %v2403 = vld [vmem:[%s1 + $0x44] sm:$0xf]
  %v2404 = vld [vmem:[%s1 + $0x48] sm:$0xf]
  %v2405 = vld [vmem:[%s1 + $0x4c] sm:$0xf]
  %v2406 = vld [vmem:[%s1 + $0x50] sm:$0xf]
  %v2407 = vld [vmem:[%s1 + $0x54] sm:$0xf]
  %v2408 = vld [vmem:[%s1 + $0x58] sm:$0xf]
  %v2409 = vld [vmem:[%s1 + $0x5c] sm:$0xf]
  %v2410 = vld [vmem:[%s1 + $0x60] sm:$0xf]
  %v2411 = vld [vmem:[%s1 + $0x64] sm:$0xf]
  %v2412 = vld [vmem:[%s1 + $0x68] sm:$0xf]
  %v2413 = vld [vmem:[%s1 + $0x6c] sm:$0xf]
  %v2414 = vld [vmem:[%s1 + $0x70] sm:$0xf]
  %v2415 = vld [vmem:[%s1 + $0x74] sm:$0xf]
  %v2416 = vld [vmem:[%s1 + $0x78] sm:$0xf]
  %v2417 = vld [vmem:[%s1 + $0x7c] sm:$0xf]
  %v2418 = vld [vmem:[%s1 + $0x80] sm:$0xf]
  %v2419 = vld [vmem:[%s1 + $0x84] sm:$0xf]
  %v2420 = vld [vmem:[%s1 + $0x88] sm:$0xf]
  %v2421 = vld [vmem:[%s1 + $0x8c] sm:$0xf]
  %v2422 = vld [vmem:[%s1 + $0x90] sm:$0xf]
  %v2423 = vld [vmem:[%s1 + $0x94] sm:$0xf]
  %v2424 = vld [vmem:[%s1 + $0x98] sm:$0xf]
  %v2425 = vld [vmem:[%s1 + $0x9c] sm:$0xf]
  %v2426 = vld [vmem:[%s1 + $0xa0] sm:$0xf]
  %v2427 = vld [vmem:[%s1 + $0xa4] sm:$0xf]
  %v2428 = vld [vmem:[%s1 + $0xa8] sm:$0xf]
  %v2429 = vld [vmem:[%s1 + $0xac] sm:$0xf]
  %v2430 = vld [vmem:[%s1 + $0xb0] sm:$0xf]
  %v2431 = vld [vmem:[%s1 + $0xb4] sm:$0xf]
  %v2432 = vld [vmem:[%s1 + $0xb8] sm:$0xf]
  %v2433 = vld [vmem:[%s1 + $0xbc] sm:$0xf]
  %v2434 = vld [vmem:[%s4] sm:$0xf]
  %v2435 = vld [vmem:[%s4 + $0x4] sm:$0x1]
  %v2436 = vld [vmem:[%s5] sm:$0x1]
  %v2438 = vlaneseq
  %v2439 = vshrl.u32 %v2438, 7
  %v2440 = vsub.s32 0, %v2439
  %v2441 = vrot.slane %v2436, %v2440
  %v2491 = vunpack.c.l.b16 %v2386
  %v2492 = vunpack.c.l.b16 %v2387
  %v2493 = vunpack.c.l.b16 %v2388
  %v2494 = vunpack.c.l.b16 %v2389
  %v2495 = vunpack.c.l.b16 %v2390
  %v2496 = vunpack.c.l.b16 %v2391
  %v2497 = vunpack.c.l.b16 %v2392
  %v2498 = vunpack.c.l.b16 %v2393
  %v2499 = vunpack.c.l.b16 %v2394
  %v2500 = vunpack.c.l.b16 %v2395
  %v2501 = vunpack.c.l.b16 %v2396
  %v2502 = vunpack.c.l.b16 %v2397
  %v2503 = vunpack.c.l.b16 %v2398
  %v2504 = vunpack.c.l.b16 %v2399
  %v2505 = vunpack.c.l.b16 %v2400
  %v2506 = vunpack.c.l.b16 %v2401
  %v2507 = vunpack.c.l.b16 %v2402
  %v2508 = vunpack.c.l.b16 %v2403
  %v2509 = vunpack.c.l.b16 %v2404
  %v2510 = vunpack.c.l.b16 %v2405
  %v2511 = vunpack.c.l.b16 %v2406
  %v2512 = vunpack.c.l.b16 %v2407
  %v2513 = vunpack.c.l.b16 %v2408
  %v2514 = vunpack.c.l.b16 %v2409
  %v2515 = vunpack.c.l.b16 %v2410
  %v2516 = vunpack.c.l.b16 %v2411
  %v2517 = vunpack.c.l.b16 %v2412
  %v2518 = vunpack.c.l.b16 %v2413
  %v2519 = vunpack.c.l.b16 %v2414
  %v2520 = vunpack.c.l.b16 %v2415
  %v2521 = vunpack.c.l.b16 %v2416
  %v2522 = vunpack.c.l.b16 %v2417
  %v2523 = vunpack.c.l.b16 %v2418
  %v2524 = vunpack.c.l.b16 %v2419
  %v2525 = vunpack.c.l.b16 %v2420
  %v2526 = vunpack.c.l.b16 %v2421
  %v2527 = vunpack.c.l.b16 %v2422
  %v2528 = vunpack.c.l.b16 %v2423
  %v2529 = vunpack.c.l.b16 %v2424
  %v2530 = vunpack.c.l.b16 %v2425
  %v2531 = vunpack.c.l.b16 %v2426
  %v2532 = vunpack.c.l.b16 %v2427
  %v2533 = vunpack.c.l.b16 %v2428
  %v2534 = vunpack.c.l.b16 %v2429
  %v2535 = vunpack.c.l.b16 %v2430
  %v2536 = vunpack.c.l.b16 %v2431
  %v2537 = vunpack.c.l.b16 %v2432
  %v2538 = vunpack.c.l.b16 %v2433
  %v2539 = vpack.c.b16 %v2492, %v2491
  %v2540 = vpack.c.b16 %v2494, %v2493
  %v2541 = vpack.c.b16 %v2496, %v2495
  %v2542 = vpack.c.b16 %v2498, %v2497
  %v2543 = vpack.c.b16 %v2500, %v2499
  %v2544 = vpack.c.b16 %v2502, %v2501
  %v2545 = vpack.c.b16 %v2504, %v2503
  %v2546 = vpack.c.b16 %v2506, %v2505
  %v2547 = vpack.c.b16 %v2508, %v2507
  %v2548 = vpack.c.b16 %v2510, %v2509
  %v2549 = vpack.c.b16 %v2512, %v2511
  %v2550 = vpack.c.b16 %v2514, %v2513
  %v2551 = vpack.c.b16 %v2516, %v2515
  %v2552 = vpack.c.b16 %v2518, %v2517
  %v2553 = vpack.c.b16 %v2520, %v2519
  %v2554 = vpack.c.b16 %v2522, %v2521
  %v2555 = vpack.c.b16 %v2524, %v2523
  %v2556 = vpack.c.b16 %v2526, %v2525
  %v2557 = vpack.c.b16 %v2528, %v2527
  %v2558 = vpack.c.b16 %v2530, %v2529
  %v2559 = vpack.c.b16 %v2532, %v2531
  %v2560 = vpack.c.b16 %v2534, %v2533
  %v2561 = vpack.c.b16 %v2536, %v2535
  %v2562 = vpack.c.b16 %v2538, %v2537
  %v2565 = vunpack.c.l.b16 %v2434
  %v2566 = vunpack.c.l.b16 %v2435
  %v2567 = vpack.c.b16 %v2566, %v2565
  %v2569 = vsel %vm544, %v2539, 0
  %v2572 = vsel %vm544, %v2540, 0
  %v2575 = vsel %vm544, %v2541, 0
  %v2578 = vsel %vm544, %v2542, 0
  %v2581 = vsel %vm544, %v2543, 0
  %v2584 = vsel %vm544, %v2544, 0
  %v2587 = vsel %vm544, %v2545, 0
  %v2590 = vsel %vm544, %v2546, 0
  %v2593 = vsel %vm544, %v2547, 0
  %v2596 = vsel %vm544, %v2548, 0
  %v2599 = vsel %vm544, %v2549, 0
  %v2602 = vsel %vm544, %v2550, 0
  %v2605 = vsel %vm544, %v2551, 0
  %v2608 = vsel %vm544, %v2552, 0
  %v2611 = vsel %vm544, %v2553, 0
  %v2614 = vsel %vm544, %v2554, 0
  %v2617 = vsel %vm544, %v2555, 0
  %v2620 = vsel %vm544, %v2556, 0
  %v2623 = vsel %vm544, %v2557, 0
  %v2626 = vsel %vm544, %v2558, 0
  %v2629 = vsel %vm544, %v2559, 0
  %v2632 = vsel %vm544, %v2560, 0
  %v2635 = vsel %vm544, %v2561, 0
  %v2638 = vsel %vm544, %v2562, 0
  %v2641 = vand.u32 %v2567, %v764
  %2643 = vmatprep.subr.bf16.mxu0 0
  %2644 = vmatpush1.bf16.msra.mxu0 %v2641
  %2645 = vmatprep.subr.bf16.mxu0 0
  %2646 = vmatpush1.bf16.msra.mxu0 0
  %2647 = vmatprep.subr.bf16.mxu0 0
  %2648 = vmatpush1.bf16.msra.mxu0 0
  %2649 = vmatprep.subr.bf16.mxu0 0
  %2650 = vmatpush1.bf16.msra.mxu0 0
  %2651 = vmatprep.subr.bf16.mxu0 0
  %2652 = vmatpush1.bf16.msra.mxu0 0
  %2653 = vmatprep.subr.bf16.mxu0 0
  %2654 = vmatpush1.bf16.msra.mxu0 0
  %2655 = vmatprep.subr.bf16.mxu0 0
  %2656 = vmatpush1.bf16.msra.mxu0 0
  %2657 = vmatprep.subr.bf16.mxu0 0
  %2658 = vmatpush1.bf16.msra.mxu0 0
  %2659 = vmatprep.subr.bf16.mxu0 0
  %2660 = vmatpush1.bf16.msra.mxu0 0
  %2661 = vmatprep.subr.bf16.mxu0 0
  %2662 = vmatpush1.bf16.msra.mxu0 0
  %2663 = vmatprep.subr.bf16.mxu0 0
  %2664 = vmatpush1.bf16.msra.mxu0 0
  %2665 = vmatprep.subr.bf16.mxu0 0
  %2666 = vmatpush1.bf16.msra.mxu0 0
  %2667 = vmatprep.subr.bf16.mxu0 0
  %2668 = vmatpush1.bf16.msra.mxu0 0
  %2669 = vmatprep.subr.bf16.mxu0 0
  %2670 = vmatpush1.bf16.msra.mxu0 0
  %2671 = vmatprep.subr.bf16.mxu0 0
  %2672 = vmatpush1.bf16.msra.mxu0 0
  %2673 = vmatprep.subr.bf16.mxu0 0
  %2674 = vmatpush1.bf16.msra.mxu0 0
  %2675 = vmatprep.mubr.bf16.mxu0 0
  %2676 = vmatmul.mubr.bf16.gmra.mrb[0].mxu0 %v2569
  %v2677 = vpop.f32.mrb[0].mxu0
  %v2678 = vadd.f32 %v2441, %v2677
  %v2679 = vpop.f32.mrb[0].mxu0
  %v2680 = vpop.f32.mrb[0].mxu0
  %v2681 = vadd.f32 %v2441, %v2680
  %v2682 = vpop.f32.mrb[0].mxu0
  %2683 = vmatprep.mubr.bf16.mxu0 0
  %2684 = vmatmul.mubr.bf16.gmra.mrb[0].mxu0 %v2572
  %v2685 = vpop.f32.mrb[0].mxu0
  %v2686 = vadd.f32 %v2441, %v2685
  %v2687 = vpop.f32.mrb[0].mxu0
  %v2688 = vpop.f32.mrb[0].mxu0
  %v2689 = vadd.f32 %v2441, %v2688
  %v2690 = vpop.f32.mrb[0].mxu0
  %2691 = vmatprep.mubr.bf16.mxu0 0
  %2692 = vmatmul.mubr.bf16.gmra.mrb[0].mxu0 %v2575
  %v2693 = vpop.f32.mrb[0].mxu0
  %v2694 = vadd.f32 %v2441, %v2693
  %v2695 = vpop.f32.mrb[0].mxu0
  %v2696 = vpop.f32.mrb[0].mxu0
  %v2697 = vadd.f32 %v2441, %v2696
  %v2698 = vpop.f32.mrb[0].mxu0
  %2699 = vmatprep.mubr.bf16.mxu0 0
  %2700 = vmatmul.mubr.bf16.gmra.mrb[0].mxu0 %v2578
  %v2701 = vpop.f32.mrb[0].mxu0
  %v2702 = vadd.f32 %v2441, %v2701
  %v2703 = vpop.f32.mrb[0].mxu0
  %v2704 = vpop.f32.mrb[0].mxu0
  %v2705 = vadd.f32 %v2441, %v2704
  %v2706 = vpop.f32.mrb[0].mxu0
  %2707 = vmatprep.mubr.bf16.mxu0 0
  %2708 = vmatmul.mubr.bf16.gmra.mrb[0].mxu0 %v2581
  %v2709 = vpop.f32.mrb[0].mxu0
  %v2710 = vadd.f32 %v2441, %v2709
  %v2711 = vpop.f32.mrb[0].mxu0
  %v2712 = vpop.f32.mrb[0].mxu0
  %v2713 = vadd.f32 %v2441, %v2712
  %v2714 = vpop.f32.mrb[0].mxu0
  %2715 = vmatprep.mubr.bf16.mxu0 0
  %2716 = vmatmul.mubr.bf16.gmra.mrb[0].mxu0 %v2584
  %v2717 = vpop.f32.mrb[0].mxu0
  %v2718 = vadd.f32 %v2441, %v2717
  %v2719 = vpop.f32.mrb[0].mxu0
  %v2720 = vpop.f32.mrb[0].mxu0
  %v2721 = vadd.f32 %v2441, %v2720
  %v2722 = vpop.f32.mrb[0].mxu0
  %2723 = vmatprep.mubr.bf16.mxu0 0
  %2724 = vmatmul.mubr.bf16.gmra.mrb[0].mxu0 %v2587
  %v2725 = vpop.f32.mrb[0].mxu0
  %v2726 = vadd.f32 %v2441, %v2725
  %v2727 = vpop.f32.mrb[0].mxu0
  %v2728 = vpop.f32.mrb[0].mxu0
  %v2729 = vadd.f32 %v2441, %v2728
  %v2730 = vpop.f32.mrb[0].mxu0
  %2731 = vmatprep.mubr.bf16.mxu0 0
  %2732 = vmatmul.mubr.bf16.gmra.mrb[0].mxu0 %v2590
  %v2733 = vpop.f32.mrb[0].mxu0
  %v2734 = vadd.f32 %v2441, %v2733
  %v2735 = vpop.f32.mrb[0].mxu0
  %v2736 = vpop.f32.mrb[0].mxu0
  %v2737 = vadd.f32 %v2441, %v2736
  %v2738 = vpop.f32.mrb[0].mxu0
  %2739 = vmatprep.mubr.bf16.mxu0 0
  %2740 = vmatmul.mubr.bf16.gmra.mrb[0].mxu0 %v2593
  %v2741 = vpop.f32.mrb[0].mxu0
  %v2742 = vadd.f32 %v2441, %v2741
  %v2743 = vpop.f32.mrb[0].mxu0
  %v2744 = vpop.f32.mrb[0].mxu0
  %v2745 = vadd.f32 %v2441, %v2744
  %v2746 = vpop.f32.mrb[0].mxu0
  %2747 = vmatprep.mubr.bf16.mxu0 0
  %2748 = vmatmul.mubr.bf16.gmra.mrb[0].mxu0 %v2596
  %v2749 = vpop.f32.mrb[0].mxu0
  %v2750 = vadd.f32 %v2441, %v2749
  %v2751 = vpop.f32.mrb[0].mxu0
  %v2752 = vpop.f32.mrb[0].mxu0
  %v2753 = vadd.f32 %v2441, %v2752
  %v2754 = vpop.f32.mrb[0].mxu0
  %2755 = vmatprep.mubr.bf16.mxu0 0
  %2756 = vmatmul.mubr.bf16.gmra.mrb[0].mxu0 %v2599
  %v2757 = vpop.f32.mrb[0].mxu0
  %v2758 = vadd.f32 %v2441, %v2757
  %v2759 = vpop.f32.mrb[0].mxu0
  %v2760 = vpop.f32.mrb[0].mxu0
  %v2761 = vadd.f32 %v2441, %v2760
  %v2762 = vpop.f32.mrb[0].mxu0
  %2763 = vmatprep.mubr.bf16.mxu0 0
  %2764 = vmatmul.mubr.bf16.gmra.mrb[0].mxu0 %v2602
  %v2765 = vpop.f32.mrb[0].mxu0
  %v2766 = vadd.f32 %v2441, %v2765
  %v2767 = vpop.f32.mrb[0].mxu0
  %v2768 = vpop.f32.mrb[0].mxu0
  %v2769 = vadd.f32 %v2441, %v2768
  %v2770 = vpop.f32.mrb[0].mxu0
  %2771 = vmatprep.mubr.bf16.mxu0 0
  %2772 = vmatmul.mubr.bf16.gmra.mrb[0].mxu0 %v2605
  %v2773 = vpop.f32.mrb[0].mxu0
  %v2774 = vadd.f32 %v2441, %v2773
  %v2775 = vpop.f32.mrb[0].mxu0
  %v2776 = vpop.f32.mrb[0].mxu0
  %v2777 = vadd.f32 %v2441, %v2776
  %v2778 = vpop.f32.mrb[0].mxu0
  %2779 = vmatprep.mubr.bf16.mxu0 0
  %2780 = vmatmul.mubr.bf16.gmra.mrb[0].mxu0 %v2608
  %v2781 = vpop.f32.mrb[0].mxu0
  %v2782 = vadd.f32 %v2441, %v2781
  %v2783 = vpop.f32.mrb[0].mxu0
  %v2784 = vpop.f32.mrb[0].mxu0
  %v2785 = vadd.f32 %v2441, %v2784
  %v2786 = vpop.f32.mrb[0].mxu0
  %2787 = vmatprep.mubr.bf16.mxu0 0
  %2788 = vmatmul.mubr.bf16.gmra.mrb[0].mxu0 %v2611
  %v2789 = vpop.f32.mrb[0].mxu0
  %v2790 = vadd.f32 %v2441, %v2789
  %v2791 = vpop.f32.mrb[0].mxu0
  %v2792 = vpop.f32.mrb[0].mxu0
  %v2793 = vadd.f32 %v2441, %v2792
  %v2794 = vpop.f32.mrb[0].mxu0
  %2795 = vmatprep.mubr.bf16.mxu0 0
  %2796 = vmatmul.mubr.bf16.gmra.mrb[0].mxu0 %v2614
  %v2797 = vpop.f32.mrb[0].mxu0
  %v2798 = vadd.f32 %v2441, %v2797
  %v2799 = vpop.f32.mrb[0].mxu0
  %v2800 = vpop.f32.mrb[0].mxu0
  %v2801 = vadd.f32 %v2441, %v2800
  %v2802 = vpop.f32.mrb[0].mxu0
  %2803 = vmatprep.mubr.bf16.mxu0 0
  %2804 = vmatmul.mubr.bf16.gmra.mrb[0].mxu0 %v2617
  %v2805 = vpop.f32.mrb[0].mxu0
  %v2806 = vadd.f32 %v2441, %v2805
  %v2807 = vpop.f32.mrb[0].mxu0
  %v2808 = vpop.f32.mrb[0].mxu0
  %v2809 = vadd.f32 %v2441, %v2808
  %v2810 = vpop.f32.mrb[0].mxu0
  %2811 = vmatprep.mubr.bf16.mxu0 0
  %2812 = vmatmul.mubr.bf16.gmra.mrb[0].mxu0 %v2620
  %v2813 = vpop.f32.mrb[0].mxu0
  %v2814 = vadd.f32 %v2441, %v2813
  %v2815 = vpop.f32.mrb[0].mxu0
  %v2816 = vpop.f32.mrb[0].mxu0
  %v2817 = vadd.f32 %v2441, %v2816
  %v2818 = vpop.f32.mrb[0].mxu0
  %2819 = vmatprep.mubr.bf16.mxu0 0
  %2820 = vmatmul.mubr.bf16.gmra.mrb[0].mxu0 %v2623
  %v2821 = vpop.f32.mrb[0].mxu0
  %v2822 = vadd.f32 %v2441, %v2821
  %v2823 = vpop.f32.mrb[0].mxu0
  %v2824 = vpop.f32.mrb[0].mxu0
  %v2825 = vadd.f32 %v2441, %v2824
  %v2826 = vpop.f32.mrb[0].mxu0
  %2827 = vmatprep.mubr.bf16.mxu0 0
  %2828 = vmatmul.mubr.bf16.gmra.mrb[0].mxu0 %v2626
  %v2829 = vpop.f32.mrb[0].mxu0
  %v2830 = vadd.f32 %v2441, %v2829
  %v2831 = vpop.f32.mrb[0].mxu0
  %v2832 = vpop.f32.mrb[0].mxu0
  %v2833 = vadd.f32 %v2441, %v2832
  %v2834 = vpop.f32.mrb[0].mxu0
  %2835 = vmatprep.mubr.bf16.mxu0 0
  %2836 = vmatmul.mubr.bf16.gmra.mrb[0].mxu0 %v2629
  %v2837 = vpop.f32.mrb[0].mxu0
  %v2838 = vadd.f32 %v2441, %v2837
  %v2839 = vpop.f32.mrb[0].mxu0
  %v2840 = vpop.f32.mrb[0].mxu0
  %v2841 = vadd.f32 %v2441, %v2840
  %v2842 = vpop.f32.mrb[0].mxu0
  %2843 = vmatprep.mubr.bf16.mxu0 0
  %2844 = vmatmul.mubr.bf16.gmra.mrb[0].mxu0 %v2632
  %v2845 = vpop.f32.mrb[0].mxu0
  %v2846 = vadd.f32 %v2441, %v2845
  %v2847 = vpop.f32.mrb[0].mxu0
  %v2848 = vpop.f32.mrb[0].mxu0
  %v2849 = vadd.f32 %v2441, %v2848
  %v2850 = vpop.f32.mrb[0].mxu0
  %2851 = vmatprep.mubr.bf16.mxu0 0
  %2852 = vmatmul.mubr.bf16.gmra.mrb[0].mxu0 %v2635
  %v2853 = vpop.f32.mrb[0].mxu0
  %v2854 = vadd.f32 %v2441, %v2853
  %v2855 = vpop.f32.mrb[0].mxu0
  %v2856 = vpop.f32.mrb[0].mxu0
  %v2857 = vadd.f32 %v2441, %v2856
  %v2858 = vpop.f32.mrb[0].mxu0
  %2859 = vmatprep.mubr.bf16.mxu0 0
  %2860 = vmatmul.mubr.bf16.gmra.mrb[0].mxu0 %v2638
  %v2861 = vpop.f32.mrb[0].mxu0
  %v2862 = vadd.f32 %v2441, %v2861
  %v2863 = vpop.f32.mrb[0].mxu0
  %v2864 = vpop.f32.mrb[0].mxu0
  %v2865 = vadd.f32 %v2441, %v2864
  %v2866 = vpop.f32.mrb[0].mxu0
  %2867 = vdwg.mxu0
  %v2868 = vmax.f32 %v2678, 0.0
  %v2869 = vmax.f32 %v2681, 0.0
  %v2870 = vmax.f32 %v2686, 0.0
  %v2871 = vmax.f32 %v2689, 0.0
  %v2872 = vmax.f32 %v2694, 0.0
  %v2873 = vmax.f32 %v2697, 0.0
  %v2874 = vmax.f32 %v2702, 0.0
  %v2875 = vmax.f32 %v2705, 0.0
  %v2876 = vmax.f32 %v2710, 0.0
  %v2877 = vmax.f32 %v2713, 0.0
  %v2878 = vmax.f32 %v2718, 0.0
  %v2879 = vmax.f32 %v2721, 0.0
  %v2880 = vmax.f32 %v2726, 0.0
  %v2881 = vmax.f32 %v2729, 0.0
  %v2882 = vmax.f32 %v2734, 0.0
  %v2883 = vmax.f32 %v2737, 0.0
  %v2884 = vmax.f32 %v2742, 0.0
  %v2885 = vmax.f32 %v2745, 0.0
  %v2886 = vmax.f32 %v2750, 0.0
  %v2887 = vmax.f32 %v2753, 0.0
  %v2888 = vmax.f32 %v2758, 0.0
  %v2889 = vmax.f32 %v2761, 0.0
  %v2890 = vmax.f32 %v2766, 0.0
  %v2891 = vmax.f32 %v2769, 0.0
  %v2892 = vmax.f32 %v2774, 0.0
  %v2893 = vmax.f32 %v2777, 0.0
  %v2894 = vmax.f32 %v2782, 0.0
  %v2895 = vmax.f32 %v2785, 0.0
  %v2896 = vmax.f32 %v2790, 0.0
  %v2897 = vmax.f32 %v2793, 0.0
  %v2898 = vmax.f32 %v2798, 0.0
  %v2899 = vmax.f32 %v2801, 0.0
  %v2900 = vmax.f32 %v2806, 0.0
  %v2901 = vmax.f32 %v2809, 0.0
  %v2902 = vmax.f32 %v2814, 0.0
  %v2903 = vmax.f32 %v2817, 0.0
  %v2904 = vmax.f32 %v2822, 0.0
  %v2905 = vmax.f32 %v2825, 0.0
  %v2906 = vmax.f32 %v2830, 0.0
  %v2907 = vmax.f32 %v2833, 0.0
  %v2908 = vmax.f32 %v2838, 0.0
  %v2909 = vmax.f32 %v2841, 0.0
  %v2910 = vmax.f32 %v2846, 0.0
  %v2911 = vmax.f32 %v2849, 0.0
  %v2912 = vmax.f32 %v2854, 0.0
  %v2913 = vmax.f32 %v2857, 0.0
  %v2914 = vmax.f32 %v2862, 0.0
  %v2915 = vmax.f32 %v2865, 0.0
  %v2916 = vmin.f32 %v2868, 6.0
  %v2917 = vmin.f32 %v2869, 6.0
  %v2918 = vmin.f32 %v2870, 6.0
  %v2919 = vmin.f32 %v2871, 6.0
  %v2920 = vmin.f32 %v2872, 6.0
  %v2921 = vmin.f32 %v2873, 6.0
  %v2922 = vmin.f32 %v2874, 6.0
  %v2923 = vmin.f32 %v2875, 6.0
  %v2924 = vmin.f32 %v2876, 6.0
  %v2925 = vmin.f32 %v2877, 6.0
  %v2926 = vmin.f32 %v2878, 6.0
  %v2927 = vmin.f32 %v2879, 6.0
  %v2928 = vmin.f32 %v2880, 6.0
  %v2929 = vmin.f32 %v2881, 6.0
  %v2930 = vmin.f32 %v2882, 6.0
  %v2931 = vmin.f32 %v2883, 6.0
  %v2932 = vmin.f32 %v2884, 6.0
  %v2933 = vmin.f32 %v2885, 6.0
  %v2934 = vmin.f32 %v2886, 6.0
  %v2935 = vmin.f32 %v2887, 6.0
  %v2936 = vmin.f32 %v2888, 6.0
  %v2937 = vmin.f32 %v2889, 6.0
  %v2938 = vmin.f32 %v2890, 6.0
  %v2939 = vmin.f32 %v2891, 6.0
  %v2940 = vmin.f32 %v2892, 6.0
  %v2941 = vmin.f32 %v2893, 6.0
  %v2942 = vmin.f32 %v2894, 6.0
  %v2943 = vmin.f32 %v2895, 6.0
  %v2944 = vmin.f32 %v2896, 6.0
  %v2945 = vmin.f32 %v2897, 6.0
  %v2946 = vmin.f32 %v2898, 6.0
  %v2947 = vmin.f32 %v2899, 6.0
  %v2948 = vmin.f32 %v2900, 6.0
  %v2949 = vmin.f32 %v2901, 6.0
  %v2950 = vmin.f32 %v2902, 6.0
  %v2951 = vmin.f32 %v2903, 6.0
  %v2952 = vmin.f32 %v2904, 6.0
  %v2953 = vmin.f32 %v2905, 6.0
  %v2954 = vmin.f32 %v2906, 6.0
  %v2955 = vmin.f32 %v2907, 6.0
  %v2956 = vmin.f32 %v2908, 6.0
  %v2957 = vmin.f32 %v2909, 6.0
  %v2958 = vmin.f32 %v2910, 6.0
  %v2959 = vmin.f32 %v2911, 6.0
  %v2960 = vmin.f32 %v2912, 6.0
  %v2961 = vmin.f32 %v2913, 6.0
  %v2962 = vmin.f32 %v2914, 6.0
  %v2963 = vmin.f32 %v2915, 6.0
  %v2964 = vpack.c.bf16 %v2917, %v2916
  %v2965 = vpack.c.bf16 %v2919, %v2918
  %v2966 = vpack.c.bf16 %v2921, %v2920
  %v2967 = vpack.c.bf16 %v2923, %v2922
  %v2968 = vpack.c.bf16 %v2925, %v2924
  %v2969 = vpack.c.bf16 %v2927, %v2926
  %v2970 = vpack.c.bf16 %v2929, %v2928
  %v2971 = vpack.c.bf16 %v2931, %v2930
  %v2972 = vpack.c.bf16 %v2933, %v2932
  %v2973 = vpack.c.bf16 %v2935, %v2934
  %v2974 = vpack.c.bf16 %v2937, %v2936
  %v2975 = vpack.c.bf16 %v2939, %v2938
  %v2976 = vpack.c.bf16 %v2941, %v2940
  %v2977 = vpack.c.bf16 %v2943, %v2942
  %v2978 = vpack.c.bf16 %v2945, %v2944
  %v2979 = vpack.c.bf16 %v2947, %v2946
  %v2980 = vpack.c.bf16 %v2949, %v2948
  %v2981 = vpack.c.bf16 %v2951, %v2950
  %v2982 = vpack.c.bf16 %v2953, %v2952
  %v2983 = vpack.c.bf16 %v2955, %v2954
  %v2984 = vpack.c.bf16 %v2957, %v2956
  %v2985 = vpack.c.bf16 %v2959, %v2958
  %v2986 = vpack.c.bf16 %v2961, %v2960
  %v2987 = vpack.c.bf16 %v2963, %v2962
  %v3012 = vunpack.c.l.b16 %v2964
  %v3013 = vunpack.c.h.b16 %v2964
  %v3014 = vunpack.c.l.b16 %v2965
  %v3015 = vunpack.c.h.b16 %v2965
  %v3016 = vunpack.c.l.b16 %v2966
  %v3017 = vunpack.c.h.b16 %v2966
  %v3018 = vunpack.c.l.b16 %v2967
  %v3019 = vunpack.c.h.b16 %v2967
  %v3020 = vunpack.c.l.b16 %v2968
  %v3021 = vunpack.c.h.b16 %v2968
  %v3022 = vunpack.c.l.b16 %v2969
  %v3023 = vunpack.c.h.b16 %v2969
  %v3024 = vunpack.c.l.b16 %v2970
  %v3025 = vunpack.c.h.b16 %v2970
  %v3026 = vunpack.c.l.b16 %v2971
  %v3027 = vunpack.c.h.b16 %v2971
  %v3028 = vunpack.c.l.b16 %v2972
  %v3029 = vunpack.c.h.b16 %v2972
  %v3030 = vunpack.c.l.b16 %v2973
  %v3031 = vunpack.c.h.b16 %v2973
  %v3032 = vunpack.c.l.b16 %v2974
  %v3033 = vunpack.c.h.b16 %v2974
  %v3034 = vunpack.c.l.b16 %v2975
  %v3035 = vunpack.c.h.b16 %v2975
  %v3036 = vunpack.c.l.b16 %v2976
  %v3037 = vunpack.c.h.b16 %v2976
  %v3038 = vunpack.c.l.b16 %v2977
  %v3039 = vunpack.c.h.b16 %v2977
  %v3040 = vunpack.c.l.b16 %v2978
  %v3041 = vunpack.c.h.b16 %v2978
  %v3042 = vunpack.c.l.b16 %v2979
  %v3043 = vunpack.c.h.b16 %v2979
  %v3044 = vunpack.c.l.b16 %v2980
  %v3045 = vunpack.c.h.b16 %v2980
  %v3046 = vunpack.c.l.b16 %v2981
  %v3047 = vunpack.c.h.b16 %v2981
  %v3048 = vunpack.c.l.b16 %v2982
  %v3049 = vunpack.c.h.b16 %v2982
  %v3050 = vunpack.c.l.b16 %v2983
  %v3051 = vunpack.c.h.b16 %v2983
  %v3052 = vunpack.c.l.b16 %v2984
  %v3053 = vunpack.c.h.b16 %v2984
  %v3054 = vunpack.c.l.b16 %v2985
  %v3055 = vunpack.c.h.b16 %v2985
  %v3056 = vunpack.c.l.b16 %v2986
  %v3057 = vunpack.c.h.b16 %v2986
  %v3058 = vunpack.c.l.b16 %v2987
  %v3059 = vunpack.c.h.b16 %v2987
  %v3060 = vpack.c.b16 %v3012, %v3012
  %v3061 = vpack.c.b16 %v3013, %v3013
  %v3062 = vpack.c.b16 %v3014, %v3014
  %v3063 = vpack.c.b16 %v3015, %v3015
  %v3064 = vpack.c.b16 %v3016, %v3016
  %v3065 = vpack.c.b16 %v3017, %v3017
  %v3066 = vpack.c.b16 %v3018, %v3018
  %v3067 = vpack.c.b16 %v3019, %v3019
  %v3068 = vpack.c.b16 %v3020, %v3020
  %v3069 = vpack.c.b16 %v3021, %v3021
  %v3070 = vpack.c.b16 %v3022, %v3022
  %v3071 = vpack.c.b16 %v3023, %v3023
  %v3072 = vpack.c.b16 %v3024, %v3024
  %v3073 = vpack.c.b16 %v3025, %v3025
  %v3074 = vpack.c.b16 %v3026, %v3026
  %v3075 = vpack.c.b16 %v3027, %v3027
  %v3076 = vpack.c.b16 %v3028, %v3028
  %v3077 = vpack.c.b16 %v3029, %v3029
  %v3078 = vpack.c.b16 %v3030, %v3030
  %v3079 = vpack.c.b16 %v3031, %v3031
  %v3080 = vpack.c.b16 %v3032, %v3032
  %v3081 = vpack.c.b16 %v3033, %v3033
  %v3082 = vpack.c.b16 %v3034, %v3034
  %v3083 = vpack.c.b16 %v3035, %v3035
  %v3084 = vpack.c.b16 %v3036, %v3036
  %v3085 = vpack.c.b16 %v3037, %v3037
  %v3086 = vpack.c.b16 %v3038, %v3038
  %v3087 = vpack.c.b16 %v3039, %v3039
  %v3088 = vpack.c.b16 %v3040, %v3040
  %v3089 = vpack.c.b16 %v3041, %v3041
  %v3090 = vpack.c.b16 %v3042, %v3042
  %v3091 = vpack.c.b16 %v3043, %v3043
  %v3092 = vpack.c.b16 %v3044, %v3044
  %v3093 = vpack.c.b16 %v3045, %v3045
  %v3094 = vpack.c.b16 %v3046, %v3046
  %v3095 = vpack.c.b16 %v3047, %v3047
  %v3096 = vpack.c.b16 %v3048, %v3048
  %v3097 = vpack.c.b16 %v3049, %v3049
  %v3098 = vpack.c.b16 %v3050, %v3050
  %v3099 = vpack.c.b16 %v3051, %v3051
  %v3100 = vpack.c.b16 %v3052, %v3052
  %v3101 = vpack.c.b16 %v3053, %v3053
  %v3102 = vpack.c.b16 %v3054, %v3054
  %v3103 = vpack.c.b16 %v3055, %v3055
  %v3104 = vpack.c.b16 %v3056, %v3056
  %v3105 = vpack.c.b16 %v3057, %v3057
  %v3106 = vpack.c.b16 %v3058, %v3058
  %v3107 = vpack.c.b16 %v3059, %v3059
  %3156 = vst.msk [vmem:[%s7] sm:$0xf] %vm2241, %v3060
  %3157 = vst.msk [vmem:[%s7 + $0x4] sm:$0xf] %vm2241, %v3061
  %3158 = vst.msk [vmem:[%s7 + $0x8] sm:$0xf] %vm2241, %v3062
  %3159 = vst.msk [vmem:[%s7 + $0xc] sm:$0xf] %vm2241, %v3063
  %3160 = vst.msk [vmem:[%s7 + $0x10] sm:$0xf] %vm2241, %v3064
  %3161 = vst.msk [vmem:[%s7 + $0x14] sm:$0xf] %vm2241, %v3065
  %3162 = vst.msk [vmem:[%s7 + $0x18] sm:$0xf] %vm2241, %v3066
  %3163 = vst.msk [vmem:[%s7 + $0x1c] sm:$0xf] %vm2241, %v3067
  %3164 = vst.msk [vmem:[%s7 + $0x20] sm:$0xf] %vm2241, %v3068
  %3165 = vst.msk [vmem:[%s7 + $0x24] sm:$0xf] %vm2241, %v3069
  %3166 = vst.msk [vmem:[%s7 + $0x28] sm:$0xf] %vm2241, %v3070
  %3167 = vst.msk [vmem:[%s7 + $0x2c] sm:$0xf] %vm2241, %v3071
  %3168 = vst.msk [vmem:[%s7 + $0x30] sm:$0xf] %vm2241, %v3072
  %3169 = vst.msk [vmem:[%s7 + $0x34] sm:$0xf] %vm2241, %v3073
  %3170 = vst.msk [vmem:[%s7 + $0x38] sm:$0xf] %vm2241, %v3074
  %3171 = vst.msk [vmem:[%s7 + $0x3c] sm:$0xf] %vm2241, %v3075
  %3172 = vst.msk [vmem:[%s7 + $0x40] sm:$0xf] %vm2241, %v3076
  %3173 = vst.msk [vmem:[%s7 + $0x44] sm:$0xf] %vm2241, %v3077
  %3174 = vst.msk [vmem:[%s7 + $0x48] sm:$0xf] %vm2241, %v3078
  %3175 = vst.msk [vmem:[%s7 + $0x4c] sm:$0xf] %vm2241, %v3079
  %3176 = vst.msk [vmem:[%s7 + $0x50] sm:$0xf] %vm2241, %v3080
  %3177 = vst.msk [vmem:[%s7 + $0x54] sm:$0xf] %vm2241, %v3081
  %3178 = vst.msk [vmem:[%s7 + $0x58] sm:$0xf] %vm2241, %v3082
  %3179 = vst.msk [vmem:[%s7 + $0x5c] sm:$0xf] %vm2241, %v3083
  %3180 = vst.msk [vmem:[%s7 + $0x60] sm:$0xf] %vm2241, %v3084
  %3181 = vst.msk [vmem:[%s7 + $0x64] sm:$0xf] %vm2241, %v3085
  %3182 = vst.msk [vmem:[%s7 + $0x68] sm:$0xf] %vm2241, %v3086
  %3183 = vst.msk [vmem:[%s7 + $0x6c] sm:$0xf] %vm2241, %v3087
  %3184 = vst.msk [vmem:[%s7 + $0x70] sm:$0xf] %vm2241, %v3088
  %3185 = vst.msk [vmem:[%s7 + $0x74] sm:$0xf] %vm2241, %v3089
  %3186 = vst.msk [vmem:[%s7 + $0x78] sm:$0xf] %vm2241, %v3090
  %3187 = vst.msk [vmem:[%s7 + $0x7c] sm:$0xf] %vm2241, %v3091
  %3188 = vst.msk [vmem:[%s7 + $0x80] sm:$0xf] %vm2241, %v3092
  %3189 = vst.msk [vmem:[%s7 + $0x84] sm:$0xf] %vm2241, %v3093
  %3190 = vst.msk [vmem:[%s7 + $0x88] sm:$0xf] %vm2241, %v3094
  %3191 = vst.msk [vmem:[%s7 + $0x8c] sm:$0xf] %vm2241, %v3095
  %3192 = vst.msk [vmem:[%s7 + $0x90] sm:$0xf] %vm2241, %v3096
  %3193 = vst.msk [vmem:[%s7 + $0x94] sm:$0xf] %vm2241, %v3097
  %3194 = vst.msk [vmem:[%s7 + $0x98] sm:$0xf] %vm2241, %v3098
  %3195 = vst.msk [vmem:[%s7 + $0x9c] sm:$0xf] %vm2241, %v3099
  %3196 = vst.msk [vmem:[%s7 + $0xa0] sm:$0xf] %vm2241, %v3100
  %3197 = vst.msk [vmem:[%s7 + $0xa4] sm:$0xf] %vm2241, %v3101
  %3198 = vst.msk [vmem:[%s7 + $0xa8] sm:$0xf] %vm2241, %v3102
  %3199 = vst.msk [vmem:[%s7 + $0xac] sm:$0xf] %vm2241, %v3103
  %3200 = vst.msk [vmem:[%s7 + $0xb0] sm:$0xf] %vm2241, %v3104
  %3201 = vst.msk [vmem:[%s7 + $0xb4] sm:$0xf] %vm2241, %v3105
  %3202 = vst.msk [vmem:[%s7 + $0xb8] sm:$0xf] %vm2241, %v3106
  %3203 = vst.msk [vmem:[%s7 + $0xbc] sm:$0xf] %vm2241, %v3107
  // Predicated region
  $region26: #{tapor_forward.3} parent=0 // pred_check
    _
  $region27: #{tapor_forward.3} parent=0 // pred_check_branch
    %3205 = sbr.rel (0) target = $region29
  $region28: #{tapor_forward.3} parent=0 // pred_region
    _
  $region29: #{tapor_forward.3} parent=0 // pred_fallthru
    _
  // Predicated region
  $region30: #{tapor_forward.3} parent=0 // pred_check
    _
  $region31: #{tapor_forward.3} parent=0 // pred_check_branch
    %3207 = sbr.rel (0) target = $region33
  $region32: #{tapor_forward.3} parent=0 // pred_region
    _
  $region33: #{tapor_forward.3} parent=0 // pred_fallthru
    _
  // Predicated region
  $region34: #{tapor_forward.3} parent=0 // pred_check
    _
  $region35: #{tapor_forward.3} parent=0 // pred_check_branch
    %3209 = sbr.rel (0) target = $region37
  $region36: #{tapor_forward.3} parent=0 // pred_region
    _
  $region37: #{tapor_forward.3} parent=0 // pred_fallthru
    _
  // Predicated region
  $region38: #{tapor_forward.3} parent=0 // pred_check
    _
  $region39: #{tapor_forward.3} parent=0 // pred_check_branch
    %3211 = sbr.rel (0) target = $region41
  $region40: #{tapor_forward.3} parent=0 // pred_region
    _
  $region41: #{tapor_forward.3} parent=0 // pred_fallthru
    _

// kernel: tapor_forward.4
$region0: #{tapor_forward.4}
  #allocation0 [shape = 'u32[]', space=smem, size = 0x4, offset = 0x4, fixed_abs, tag = 'smem constant byte address 0x4 - core index']
  #allocation1 [shape = 'u32[144,128]{1,0:T(1,128)}', space=vmem, size = 0x12000, scoped, tag = 'internal scratch']
  %s0 = inlined_call_operand.vmem [shape: bf16[96,144], index: 0, kind: input, shape index: {}]
  %s1 = inlined_call_operand.vmem [shape: bf16[288,144], index: 1, kind: input, shape index: {}]
  %s2 = inlined_call_operand.vmem [shape: bf16[144,32], index: 2, kind: input, shape index: {}]
  %s3 = inlined_call_operand.vmem [shape: f32[1,32], index: 3, kind: input, shape index: {}]
  %s4 = inlined_call_operand.vmem [shape: bf16[32,32], index: 4, kind: input, shape index: {}]
  %s5 = inlined_call_operand.vmem [shape: f32[1,32], index: 5, kind: input, shape index: {}]
  %s6 = inlined_call_operand.vmem [shape: bf16[144,32], index: 6, kind: input, shape index: {}]
  %s7 = inlined_call_operand.vmem [shape: f32[1,32], index: 7, kind: input, shape index: {}]
  %s8 = inlined_call_operand.vmem [shape: bf16[32,21], index: 8, kind: input, shape index: {}]
  %s9 = inlined_call_operand.vmem [shape: f32[1,21], index: 9, kind: input, shape index: {}]
  %s10 = inlined_call_operand.vmem [shape: bf16[21,21], index: 10, kind: input, shape index: {}]
  %s11 = inlined_call_operand.vmem [shape: f32[96,32], index: 11, kind: output, shape index: {0}]
  %s12 = inlined_call_operand.vmem [shape: f32[288,21], index: 12, kind: output, shape index: {1}]
  %13 = xla_tuple %s11, %s12
  %s14 = sld [smem:[#allocation0]]
  $region62: #{tapor_forward.4} parent=0
    _
  %s16 = ssub.s32 1, %s14
  %s17 = scalar_select 0, %s16, %s14
  // Predicated region
  $region2: #{tapor_forward.4} parent=0 // pred_check
    _
  $region3: #{tapor_forward.4} parent=0 // pred_check_branch
    %19 = sbr.rel (0) target = $region5
  $region4: #{tapor_forward.4} parent=0 // pred_region
    _
  $region5: #{tapor_forward.4} parent=0 // pred_fallthru
    _
  // Predicated region
  $region6: #{tapor_forward.4} parent=0 // pred_check
    _
  $region7: #{tapor_forward.4} parent=0 // pred_check_branch
    %21 = sbr.rel (0) target = $region9
  $region8: #{tapor_forward.4} parent=0 // pred_region
    _
  $region9: #{tapor_forward.4} parent=0 // pred_fallthru
    _
  // Predicated region
  $region10: #{tapor_forward.4} parent=0 // pred_check
    _
  $region11: #{tapor_forward.4} parent=0 // pred_check_branch
    %23 = sbr.rel (0) target = $region13
  $region12: #{tapor_forward.4} parent=0 // pred_region
    _
  $region13: #{tapor_forward.4} parent=0 // pred_fallthru
    _
  // Predicated region
  $region14: #{tapor_forward.4} parent=0 // pred_check
    _
  $region15: #{tapor_forward.4} parent=0 // pred_check_branch
    %25 = sbr.rel (0) target = $region17
  $region16: #{tapor_forward.4} parent=0 // pred_region
    _
  $region17: #{tapor_forward.4} parent=0 // pred_fallthru
    _
  // Predicated region
  $region18: #{tapor_forward.4} parent=0 // pred_check
    _
  $region19: #{tapor_forward.4} parent=0 // pred_check_branch
    %27 = sbr.rel (0) target = $region21
  $region20: #{tapor_forward.4} parent=0 // pred_region
    _
  $region21: #{tapor_forward.4} parent=0 // pred_fallthru
    _
  // Predicated region
  $region22: #{tapor_forward.4} parent=0 // pred_check
    _
  $region23: #{tapor_forward.4} parent=0 // pred_check_branch
    %29 = sbr.rel (0) target = $region25
  $region24: #{tapor_forward.4} parent=0 // pred_region
    _
  $region25: #{tapor_forward.4} parent=0 // pred_fallthru
    _
  // Predicated region
  $region26: #{tapor_forward.4} parent=0 // pred_check
    _
  $region27: #{tapor_forward.4} parent=0 // pred_check_branch
    %31 = sbr.rel (0) target = $region29
  $region28: #{tapor_forward.4} parent=0 // pred_region
    _
  $region29: #{tapor_forward.4} parent=0 // pred_fallthru
    _
  // Predicated region
  $region30: #{tapor_forward.4} parent=0 // pred_check
    _
  $region31: #{tapor_forward.4} parent=0 // pred_check_branch
    %33 = sbr.rel (0) target = $region33
  $region32: #{tapor_forward.4} parent=0 // pred_region
    _
  $region33: #{tapor_forward.4} parent=0 // pred_fallthru
    _
  // Predicated region
  $region34: #{tapor_forward.4} parent=0 // pred_check
    _
  $region35: #{tapor_forward.4} parent=0 // pred_check_branch
    %35 = sbr.rel (0) target = $region37
  $region36: #{tapor_forward.4} parent=0 // pred_region
    _
  $region37: #{tapor_forward.4} parent=0 // pred_fallthru
    _
  // Predicated region
  $region38: #{tapor_forward.4} parent=0 // pred_check
    _
  $region39: #{tapor_forward.4} parent=0 // pred_check_branch
    %37 = sbr.rel (0) target = $region41
  $region40: #{tapor_forward.4} parent=0 // pred_region
    _
  $region41: #{tapor_forward.4} parent=0 // pred_fallthru
    _
  // Predicated region
  $region42: #{tapor_forward.4} parent=0 // pred_check
    _
  $region43: #{tapor_forward.4} parent=0 // pred_check_branch
    %39 = sbr.rel (0) target = $region45
  $region44: #{tapor_forward.4} parent=0 // pred_region
    _
  $region45: #{tapor_forward.4} parent=0 // pred_fallthru
    _
  %v41 = vld [vmem:[%s0] sm:$0xff]
  %v42 = vld [vmem:[%s0 + $0x8] sm:$0xff]
  %v43 = vld [vmem:[%s0 + $0x10] sm:$0xff]
  %v44 = vld [vmem:[%s0 + $0x18] sm:$0xff]
  %v45 = vld [vmem:[%s0 + $0x20] sm:$0xff]
  %v46 = vld [vmem:[%s0 + $0x28] sm:$0xff]
  %v47 = vld [vmem:[%s0 + $0x30] sm:$0xff]
  %v48 = vld [vmem:[%s0 + $0x38] sm:$0xff]
  %v49 = vld [vmem:[%s0 + $0x40] sm:$0xff]
  %v50 = vld [vmem:[%s0 + $0x48] sm:$0xff]
  %v51 = vld [vmem:[%s0 + $0x50] sm:$0xff]
  %v52 = vld [vmem:[%s0 + $0x58] sm:$0xff]
  %v53 = vld [vmem:[%s2] sm:$0xf]
  %v54 = vld [vmem:[%s2 + $0x4] sm:$0xf]
  %v55 = vld [vmem:[%s2 + $0x8] sm:$0xf]
  %v56 = vld [vmem:[%s2 + $0xc] sm:$0xf]
  %v57 = vld [vmem:[%s2 + $0x10] sm:$0xf]
  %v58 = vld [vmem:[%s2 + $0x14] sm:$0xf]
  %v59 = vld [vmem:[%s2 + $0x18] sm:$0xf]
  %v60 = vld [vmem:[%s2 + $0x1c] sm:$0xf]
  %v61 = vld [vmem:[%s2 + $0x20] sm:$0xf]
  %v62 = vld [vmem:[%s2 + $0x24] sm:$0xf]
  %v63 = vld [vmem:[%s2 + $0x28] sm:$0xf]
  %v64 = vld [vmem:[%s2 + $0x2c] sm:$0xf]
  %v65 = vld [vmem:[%s2 + $0x30] sm:$0xf]
  %v66 = vld [vmem:[%s2 + $0x34] sm:$0xf]
  %v67 = vld [vmem:[%s2 + $0x38] sm:$0xf]
  %v68 = vld [vmem:[%s2 + $0x3c] sm:$0xf]
  %v69 = vld [vmem:[%s2 + $0x40] sm:$0xf]
  %v70 = vld [vmem:[%s2 + $0x44] sm:$0xf]
  %v71 = vld [vmem:[%s3] sm:$0x1]
  %v73 = vlaneseq
  %v74 = vshrl.u32 %v73, 7
  %v75 = vsub.s32 0, %v74
  %v76 = vrot.slane %v71, %v75
  %v90 = vunpack.c.l.b16 %v41
  %v91 = vunpack.c.h.b16 %v41
  %v92 = vunpack.c.l.b16 %v42
  %v93 = vunpack.c.h.b16 %v42
  %v94 = vunpack.c.l.b16 %v43
  %v95 = vunpack.c.h.b16 %v43
  %v96 = vunpack.c.l.b16 %v44
  %v97 = vunpack.c.h.b16 %v44
  %v98 = vunpack.c.l.b16 %v45
  %v99 = vunpack.c.h.b16 %v45
  %v100 = vunpack.c.l.b16 %v46
  %v101 = vunpack.c.h.b16 %v46
  %v102 = vunpack.c.l.b16 %v47
  %v103 = vunpack.c.h.b16 %v47
  %v104 = vunpack.c.l.b16 %v48
  %v105 = vunpack.c.h.b16 %v48
  %v106 = vunpack.c.l.b16 %v49
  %v107 = vunpack.c.h.b16 %v49
  %v108 = vunpack.c.l.b16 %v50
  %v109 = vunpack.c.h.b16 %v50
  %v110 = vunpack.c.l.b16 %v51
  %v111 = vunpack.c.h.b16 %v51
  %v112 = vunpack.c.l.b16 %v52
  %v113 = vunpack.c.h.b16 %v52
  %v114 = vpack.c.b16 %v92, %v90
  %v115 = vpack.c.b16 %v93, %v91
  %v116 = vpack.c.b16 %v96, %v94
  %v117 = vpack.c.b16 %v97, %v95
  %v118 = vpack.c.b16 %v100, %v98
  %v119 = vpack.c.b16 %v101, %v99
  %v120 = vpack.c.b16 %v104, %v102
  %v121 = vpack.c.b16 %v105, %v103
  %v122 = vpack.c.b16 %v108, %v106
  %v123 = vpack.c.b16 %v109, %v107
  %v124 = vpack.c.b16 %v112, %v110
  %v125 = vpack.c.b16 %v113, %v111
  %v150 = vunpack.c.l.b16 %v53
  %v151 = vunpack.c.l.b16 %v54
  %v152 = vunpack.c.l.b16 %v55
  %v153 = vunpack.c.l.b16 %v56
  %v154 = vunpack.c.l.b16 %v57
  %v155 = vunpack.c.l.b16 %v58
  %v156 = vunpack.c.l.b16 %v59
  %v157 = vunpack.c.l.b16 %v60
  %v158 = vunpack.c.l.b16 %v61
  %v159 = vunpack.c.l.b16 %v62
  %v160 = vunpack.c.l.b16 %v63
  %v161 = vunpack.c.l.b16 %v64
  %v162 = vunpack.c.l.b16 %v65
  %v163 = vunpack.c.l.b16 %v66
  %v164 = vunpack.c.l.b16 %v67
  %v165 = vunpack.c.l.b16 %v68
  %v166 = vunpack.c.l.b16 %v69
  %v167 = vunpack.c.l.b16 %v70
  %v168 = vpack.c.b16 %v151, %v150
  %v169 = vpack.c.b16 %v153, %v152
  %v170 = vpack.c.b16 %v155, %v154
  %v171 = vpack.c.b16 %v157, %v156
  %v172 = vpack.c.b16 %v159, %v158
  %v173 = vpack.c.b16 %v161, %v160
  %v174 = vpack.c.b16 %v163, %v162
  %v175 = vpack.c.b16 %v165, %v164
  %v176 = vpack.c.b16 %v167, %v166
  %vm186 = vcmask 130048
  %v188 = vsel %vm186, %v115, 0
  %v191 = vsel %vm186, %v117, 0
  %v194 = vsel %vm186, %v119, 0
  %v197 = vsel %vm186, %v121, 0
  %v200 = vsel %vm186, %v123, 0
  %v203 = vsel %vm186, %v125, 0
  %205 = vmatprep.subr.bf16.mxu0 0
  %206 = vmatpush1.bf16.msra.mxu0 %v168
  %207 = vmatprep.subr.bf16.mxu0 0
  %208 = vmatpush1.bf16.msra.mxu0 %v169
  %209 = vmatprep.subr.bf16.mxu0 0
  %210 = vmatpush1.bf16.msra.mxu0 %v170
  %211 = vmatprep.subr.bf16.mxu0 0
  %212 = vmatpush1.bf16.msra.mxu0 %v171
  %213 = vmatprep.subr.bf16.mxu0 0
  %214 = vmatpush1.bf16.msra.mxu0 %v172
  %215 = vmatprep.subr.bf16.mxu0 0
  %216 = vmatpush1.bf16.msra.mxu0 %v173
  %217 = vmatprep.subr.bf16.mxu0 0
  %218 = vmatpush1.bf16.msra.mxu0 %v174
  %219 = vmatprep.subr.bf16.mxu0 0
  %220 = vmatpush1.bf16.msra.mxu0 %v175
  %221 = vmatprep.subr.bf16.mxu0 0
  %222 = vmatpush1.bf16.msra.mxu0 %v176
  %223 = vmatprep.subr.bf16.mxu0 0
  %224 = vmatpush1.bf16.msra.mxu0 0
  %225 = vmatprep.subr.bf16.mxu0 0
  %226 = vmatpush1.bf16.msra.mxu0 0
  %227 = vmatprep.subr.bf16.mxu0 0
  %228 = vmatpush1.bf16.msra.mxu0 0
  %229 = vmatprep.subr.bf16.mxu0 0
  %230 = vmatpush1.bf16.msra.mxu0 0
  %231 = vmatprep.subr.bf16.mxu0 0
  %232 = vmatpush1.bf16.msra.mxu0 0
  %233 = vmatprep.subr.bf16.mxu0 0
  %234 = vmatpush1.bf16.msra.mxu0 0
  %235 = vmatprep.subr.bf16.mxu0 0
  %236 = vmatpush1.bf16.msra.mxu0 0
  %237 = vmatprep.mubr.bf16.mxu0 %v188
  %238 = vmatmul.mubr.bf16.gmra.mrb[0].mxu0 %v114
  %v239 = vpop.f32.mrb[0].mxu0
  %v240 = vadd.f32 %v76, %v239
  %v241 = vpop.f32.mrb[0].mxu0
  %v242 = vpop.f32.mrb[0].mxu0
  %v243 = vadd.f32 %v76, %v242
  %v244 = vpop.f32.mrb[0].mxu0
  %245 = vmatprep.mubr.bf16.mxu0 %v191
  %246 = vmatmul.mubr.bf16.gmra.mrb[0].mxu0 %v116
  %v247 = vpop.f32.mrb[0].mxu0
  %v248 = vadd.f32 %v76, %v247
  %v249 = vpop.f32.mrb[0].mxu0
  %v250 = vpop.f32.mrb[0].mxu0
  %v251 = vadd.f32 %v76, %v250
  %v252 = vpop.f32.mrb[0].mxu0
  %253 = vmatprep.mubr.bf16.mxu0 %v194
  %254 = vmatmul.mubr.bf16.gmra.mrb[0].mxu0 %v118
  %v255 = vpop.f32.mrb[0].mxu0
  %v256 = vadd.f32 %v76, %v255
  %v257 = vpop.f32.mrb[0].mxu0
  %v258 = vpop.f32.mrb[0].mxu0
  %v259 = vadd.f32 %v76, %v258
  %v260 = vpop.f32.mrb[0].mxu0
  %261 = vmatprep.mubr.bf16.mxu0 %v197
  %262 = vmatmul.mubr.bf16.gmra.mrb[0].mxu0 %v120
  %v263 = vpop.f32.mrb[0].mxu0
  %v264 = vadd.f32 %v76, %v263
  %v265 = vpop.f32.mrb[0].mxu0
  %v266 = vpop.f32.mrb[0].mxu0
  %v267 = vadd.f32 %v76, %v266
  %v268 = vpop.f32.mrb[0].mxu0
  %269 = vmatprep.mubr.bf16.mxu0 %v200
  %270 = vmatmul.mubr.bf16.gmra.mrb[0].mxu0 %v122
  %v271 = vpop.f32.mrb[0].mxu0
  %v272 = vadd.f32 %v76, %v271
  %v273 = vpop.f32.mrb[0].mxu0
  %v274 = vpop.f32.mrb[0].mxu0
  %v275 = vadd.f32 %v76, %v274
  %v276 = vpop.f32.mrb[0].mxu0
  %277 = vmatprep.mubr.bf16.mxu0 %v203
  %278 = vmatmul.mubr.bf16.gmra.mrb[0].mxu0 %v124
  %v279 = vpop.f32.mrb[0].mxu0
  %v280 = vadd.f32 %v76, %v279
  %v281 = vpop.f32.mrb[0].mxu0
  %v282 = vpop.f32.mrb[0].mxu0
  %v283 = vadd.f32 %v76, %v282
  %v284 = vpop.f32.mrb[0].mxu0
  %285 = vdwg.mxu0
  %v286 = vmax.f32 %v240, 0.0
  %v287 = vmax.f32 %v243, 0.0
  %v288 = vmax.f32 %v248, 0.0
  %v289 = vmax.f32 %v251, 0.0
  %v290 = vmax.f32 %v256, 0.0
  %v291 = vmax.f32 %v259, 0.0
  %v292 = vmax.f32 %v264, 0.0
  %v293 = vmax.f32 %v267, 0.0
  %v294 = vmax.f32 %v272, 0.0
  %v295 = vmax.f32 %v275, 0.0
  %v296 = vmax.f32 %v280, 0.0
  %v297 = vmax.f32 %v283, 0.0
  %v298 = vmin.f32 %v286, 6.0
  %v299 = vmin.f32 %v287, 6.0
  %v300 = vmin.f32 %v288, 6.0
  %v301 = vmin.f32 %v289, 6.0
  %v302 = vmin.f32 %v290, 6.0
  %v303 = vmin.f32 %v291, 6.0
  %v304 = vmin.f32 %v292, 6.0
  %v305 = vmin.f32 %v293, 6.0
  %v306 = vmin.f32 %v294, 6.0
  %v307 = vmin.f32 %v295, 6.0
  %v308 = vmin.f32 %v296, 6.0
  %v309 = vmin.f32 %v297, 6.0
  %v310 = vpack.c.bf16 %v299, %v298
  %v311 = vpack.c.bf16 %v301, %v300
  %v312 = vpack.c.bf16 %v303, %v302
  %v313 = vpack.c.bf16 %v305, %v304
  %v314 = vpack.c.bf16 %v307, %v306
  %v315 = vpack.c.bf16 %v309, %v308
  %v316 = vld [vmem:[%s4] sm:$0xf]
  %v317 = vld [vmem:[%s4 + $0x4] sm:$0xf]
  %v318 = vld [vmem:[%s4 + $0x8] sm:$0xf]
  %v319 = vld [vmem:[%s4 + $0xc] sm:$0xf]
  %v320 = vld [vmem:[%s5] sm:$0x1]
  %v322 = vlaneseq
  %v323 = vshrl.u32 %v322, 7
  %v324 = vsub.s32 0, %v323
  %v325 = vrot.slane %v320, %v324
  %v331 = vunpack.c.l.b16 %v316
  %v332 = vunpack.c.l.b16 %v317
  %v333 = vunpack.c.l.b16 %v318
  %v334 = vunpack.c.l.b16 %v319
  %v335 = vpack.c.b16 %v332, %v331
  %v336 = vpack.c.b16 %v334, %v333
  %vm339 = vcmask 261120
  %v341 = vsel %vm339, %v310, 0
  %v344 = vsel %vm339, %v311, 0
  %v347 = vsel %vm339, %v312, 0
  %v350 = vsel %vm339, %v313, 0
  %v353 = vsel %vm339, %v314, 0
  %v356 = vsel %vm339, %v315, 0
  %358 = vmatprep.subr.bf16.mxu0 0
  %359 = vmatpush1.bf16.msra.mxu0 %v335
  %360 = vmatprep.subr.bf16.mxu0 0
  %361 = vmatpush1.bf16.msra.mxu0 %v336
  %362 = vmatprep.subr.bf16.mxu0 0
  %363 = vmatpush1.bf16.msra.mxu0 0
  %364 = vmatprep.subr.bf16.mxu0 0
  %365 = vmatpush1.bf16.msra.mxu0 0
  %366 = vmatprep.subr.bf16.mxu0 0
  %367 = vmatpush1.bf16.msra.mxu0 0
  %368 = vmatprep.subr.bf16.mxu0 0
  %369 = vmatpush1.bf16.msra.mxu0 0
  %370 = vmatprep.subr.bf16.mxu0 0
  %371 = vmatpush1.bf16.msra.mxu0 0
  %372 = vmatprep.subr.bf16.mxu0 0
  %373 = vmatpush1.bf16.msra.mxu0 0
  %374 = vmatprep.subr.bf16.mxu0 0
  %375 = vmatpush1.bf16.msra.mxu0 0
  %376 = vmatprep.subr.bf16.mxu0 0
  %377 = vmatpush1.bf16.msra.mxu0 0
  %378 = vmatprep.subr.bf16.mxu0 0
  %379 = vmatpush1.bf16.msra.mxu0 0
  %380 = vmatprep.subr.bf16.mxu0 0
  %381 = vmatpush1.bf16.msra.mxu0 0
  %382 = vmatprep.subr.bf16.mxu0 0
  %383 = vmatpush1.bf16.msra.mxu0 0
  %384 = vmatprep.subr.bf16.mxu0 0
  %385 = vmatpush1.bf16.msra.mxu0 0
  %386 = vmatprep.subr.bf16.mxu0 0
  %387 = vmatpush1.bf16.msra.mxu0 0
  %388 = vmatprep.subr.bf16.mxu0 0
  %389 = vmatpush1.bf16.msra.mxu0 0
  %390 = vmatprep.mubr.bf16.mxu0 0
  %391 = vmatmul.mubr.bf16.gmra.mrb[0].mxu0 %v341
  %v392 = vpop.f32.mrb[0].mxu0
  %v393 = vadd.f32 %v325, %v392
  %v394 = vpop.f32.mrb[0].mxu0
  %v395 = vpop.f32.mrb[0].mxu0
  %v396 = vadd.f32 %v325, %v395
  %v397 = vpop.f32.mrb[0].mxu0
  %398 = vmatprep.mubr.bf16.mxu0 0
  %399 = vmatmul.mubr.bf16.gmra.mrb[0].mxu0 %v344
  %v400 = vpop.f32.mrb[0].mxu0
  %v401 = vadd.f32 %v325, %v400
  %v402 = vpop.f32.mrb[0].mxu0
  %v403 = vpop.f32.mrb[0].mxu0
  %v404 = vadd.f32 %v325, %v403
  %v405 = vpop.f32.mrb[0].mxu0
  %406 = vmatprep.mubr.bf16.mxu0 0
  %407 = vmatmul.mubr.bf16.gmra.mrb[0].mxu0 %v347
  %v408 = vpop.f32.mrb[0].mxu0
  %v409 = vadd.f32 %v325, %v408
  %v410 = vpop.f32.mrb[0].mxu0
  %v411 = vpop.f32.mrb[0].mxu0
  %v412 = vadd.f32 %v325, %v411
  %v413 = vpop.f32.mrb[0].mxu0
  %414 = vmatprep.mubr.bf16.mxu0 0
  %415 = vmatmul.mubr.bf16.gmra.mrb[0].mxu0 %v350
  %v416 = vpop.f32.mrb[0].mxu0
  %v417 = vadd.f32 %v325, %v416
  %v418 = vpop.f32.mrb[0].mxu0
  %v419 = vpop.f32.mrb[0].mxu0
  %v420 = vadd.f32 %v325, %v419
  %v421 = vpop.f32.mrb[0].mxu0
  %422 = vmatprep.mubr.bf16.mxu0 0
  %423 = vmatmul.mubr.bf16.gmra.mrb[0].mxu0 %v353
  %v424 = vpop.f32.mrb[0].mxu0
  %v425 = vadd.f32 %v325, %v424
  %v426 = vpop.f32.mrb[0].mxu0
  %v427 = vpop.f32.mrb[0].mxu0
  %v428 = vadd.f32 %v325, %v427
  %v429 = vpop.f32.mrb[0].mxu0
  %430 = vmatprep.mubr.bf16.mxu0 0
  %431 = vmatmul.mubr.bf16.gmra.mrb[0].mxu0 %v356
  %v432 = vpop.f32.mrb[0].mxu0
  %v433 = vadd.f32 %v325, %v432
  %v434 = vpop.f32.mrb[0].mxu0
  %v435 = vpop.f32.mrb[0].mxu0
  %v436 = vadd.f32 %v325, %v435
  %v437 = vpop.f32.mrb[0].mxu0
  %438 = vdwg.mxu0
  %v439 = vmax.f32 %v393, 0.0
  %v440 = vmax.f32 %v396, 0.0
  %v441 = vmax.f32 %v401, 0.0
  %v442 = vmax.f32 %v404, 0.0
  %v443 = vmax.f32 %v409, 0.0
  %v444 = vmax.f32 %v412, 0.0
  %v445 = vmax.f32 %v417, 0.0
  %v446 = vmax.f32 %v420, 0.0
  %v447 = vmax.f32 %v425, 0.0
  %v448 = vmax.f32 %v428, 0.0
  %v449 = vmax.f32 %v433, 0.0
  %v450 = vmax.f32 %v436, 0.0
  %v451 = vmin.f32 %v439, 6.0
  %v452 = vmin.f32 %v440, 6.0
  %v453 = vmin.f32 %v441, 6.0
  %v454 = vmin.f32 %v442, 6.0
  %v455 = vmin.f32 %v443, 6.0
  %v456 = vmin.f32 %v444, 6.0
  %v457 = vmin.f32 %v445, 6.0
  %v458 = vmin.f32 %v446, 6.0
  %v459 = vmin.f32 %v447, 6.0
  %v460 = vmin.f32 %v448, 6.0
  %v461 = vmin.f32 %v449, 6.0
  %v462 = vmin.f32 %v450, 6.0
  %463 = vst.msk [vmem:[%s11] sm:$0xff] %vm339, %v451
  %464 = vst.msk [vmem:[%s11 + $0x8] sm:$0xff] %vm339, %v452
  %465 = vst.msk [vmem:[%s11 + $0x10] sm:$0xff] %vm339, %v453
  %466 = vst.msk [vmem:[%s11 + $0x18] sm:$0xff] %vm339, %v454
  %467 = vst.msk [vmem:[%s11 + $0x20] sm:$0xff] %vm339, %v455
  %468 = vst.msk [vmem:[%s11 + $0x28] sm:$0xff] %vm339, %v456
  %469 = vst.msk [vmem:[%s11 + $0x30] sm:$0xff] %vm339, %v457
  %470 = vst.msk [vmem:[%s11 + $0x38] sm:$0xff] %vm339, %v458
  %471 = vst.msk [vmem:[%s11 + $0x40] sm:$0xff] %vm339, %v459
  %472 = vst.msk [vmem:[%s11 + $0x48] sm:$0xff] %vm339, %v460
  %473 = vst.msk [vmem:[%s11 + $0x50] sm:$0xff] %vm339, %v461
  %474 = vst.msk [vmem:[%s11 + $0x58] sm:$0xff] %vm339, %v462
  %v475 = vld [vmem:[%s1] sm:$0xff]
  %v476 = vld [vmem:[%s1 + $0x8] sm:$0xff]
  %v477 = vld [vmem:[%s1 + $0x10] sm:$0xff]
  %v478 = vld [vmem:[%s1 + $0x18] sm:$0xff]
  %v479 = vld [vmem:[%s1 + $0x20] sm:$0xff]
  %v480 = vld [vmem:[%s1 + $0x28] sm:$0xff]
  %v481 = vld [vmem:[%s1 + $0x30] sm:$0xff]
  %v482 = vld [vmem:[%s1 + $0x38] sm:$0xff]
  %v483 = vld [vmem:[%s1 + $0x40] sm:$0xff]
  %v484 = vld [vmem:[%s1 + $0x48] sm:$0xff]
  %v485 = vld [vmem:[%s1 + $0x50] sm:$0xff]
  %v486 = vld [vmem:[%s1 + $0x58] sm:$0xff]
  %v487 = vld [vmem:[%s1 + $0x60] sm:$0xff]
  %v488 = vld [vmem:[%s1 + $0x68] sm:$0xff]
  %v489 = vld [vmem:[%s1 + $0x70] sm:$0xff]
  %v490 = vld [vmem:[%s1 + $0x78] sm:$0xff]
  %v491 = vld [vmem:[%s1 + $0x80] sm:$0xff]
  %v492 = vld [vmem:[%s1 + $0x88] sm:$0xff]
  %v493 = vld [vmem:[%s1 + $0x90] sm:$0xff]
  %v494 = vld [vmem:[%s1 + $0x98] sm:$0xff]
  %v495 = vld [vmem:[%s1 + $0xa0] sm:$0xff]
  %v496 = vld [vmem:[%s1 + $0xa8] sm:$0xff]
  %v497 = vld [vmem:[%s1 + $0xb0] sm:$0xff]
  %v498 = vld [vmem:[%s1 + $0xb8] sm:$0xff]
  %v499 = vld [vmem:[%s1 + $0xc0] sm:$0xff]
  %v500 = vld [vmem:[%s1 + $0xc8] sm:$0xff]
  %v501 = vld [vmem:[%s1 + $0xd0] sm:$0xff]
  %v502 = vld [vmem:[%s1 + $0xd8] sm:$0xff]
  %v503 = vld [vmem:[%s1 + $0xe0] sm:$0xff]
  %v504 = vld [vmem:[%s1 + $0xe8] sm:$0xff]
  %v505 = vld [vmem:[%s1 + $0xf0] sm:$0xff]
  %v506 = vld [vmem:[%s1 + $0xf8] sm:$0xff]
  %v507 = vld [vmem:[%s1 + $0x100] sm:$0xff]
  %v508 = vld [vmem:[%s1 + $0x108] sm:$0xff]
  %v509 = vld [vmem:[%s1 + $0x110] sm:$0xff]
  %v510 = vld [vmem:[%s1 + $0x118] sm:$0xff]
  %v511 = vld [vmem:[%s6] sm:$0xf]
  %v512 = vld [vmem:[%s6 + $0x4] sm:$0xf]
  %v513 = vld [vmem:[%s6 + $0x8] sm:$0xf]
  %v514 = vld [vmem:[%s6 + $0xc] sm:$0xf]
  %v515 = vld [vmem:[%s6 + $0x10] sm:$0xf]
  %v516 = vld [vmem:[%s6 + $0x14] sm:$0xf]
  %v517 = vld [vmem:[%s6 + $0x18] sm:$0xf]
  %v518 = vld [vmem:[%s6 + $0x1c] sm:$0xf]
  %v519 = vld [vmem:[%s6 + $0x20] sm:$0xf]
  %v520 = vld [vmem:[%s6 + $0x24] sm:$0xf]
  %v521 = vld [vmem:[%s6 + $0x28] sm:$0xf]
  %v522 = vld [vmem:[%s6 + $0x2c] sm:$0xf]
  %v523 = vld [vmem:[%s6 + $0x30] sm:$0xf]
  %v524 = vld [vmem:[%s6 + $0x34] sm:$0xf]
  %v525 = vld [vmem:[%s6 + $0x38] sm:$0xf]
  %v526 = vld [vmem:[%s6 + $0x3c] sm:$0xf]
  %v527 = vld [vmem:[%s6 + $0x40] sm:$0xf]
  %v528 = vld [vmem:[%s6 + $0x44] sm:$0xf]
  %v529 = vld [vmem:[%s7] sm:$0x1]
  %v531 = vlaneseq
  %v532 = vshrl.u32 %v531, 7
  %v533 = vsub.s32 0, %v532
  %v534 = vrot.slane %v529, %v533
  %v572 = vunpack.c.l.b16 %v475
  %v573 = vunpack.c.h.b16 %v475
  %v574 = vunpack.c.l.b16 %v476
  %v575 = vunpack.c.h.b16 %v476
  %v576 = vunpack.c.l.b16 %v477
  %v577 = vunpack.c.h.b16 %v477
  %v578 = vunpack.c.l.b16 %v478
  %v579 = vunpack.c.h.b16 %v478
  %v580 = vunpack.c.l.b16 %v479
  %v581 = vunpack.c.h.b16 %v479
  %v582 = vunpack.c.l.b16 %v480
  %v583 = vunpack.c.h.b16 %v480
  %v584 = vunpack.c.l.b16 %v481
  %v585 = vunpack.c.h.b16 %v481
  %v586 = vunpack.c.l.b16 %v482
  %v587 = vunpack.c.h.b16 %v482
  %v588 = vunpack.c.l.b16 %v483
  %v589 = vunpack.c.h.b16 %v483
  %v590 = vunpack.c.l.b16 %v484
  %v591 = vunpack.c.h.b16 %v484
  %v592 = vunpack.c.l.b16 %v485
  %v593 = vunpack.c.h.b16 %v485
  %v594 = vunpack.c.l.b16 %v486
  %v595 = vunpack.c.h.b16 %v486
  %v596 = vunpack.c.l.b16 %v487
  %v597 = vunpack.c.h.b16 %v487
  %v598 = vunpack.c.l.b16 %v488
  %v599 = vunpack.c.h.b16 %v488
  %v600 = vunpack.c.l.b16 %v489
  %v601 = vunpack.c.h.b16 %v489
  %v602 = vunpack.c.l.b16 %v490
  %v603 = vunpack.c.h.b16 %v490
  %v604 = vunpack.c.l.b16 %v491
  %v605 = vunpack.c.h.b16 %v491
  %v606 = vunpack.c.l.b16 %v492
  %v607 = vunpack.c.h.b16 %v492
  %v608 = vunpack.c.l.b16 %v493
  %v609 = vunpack.c.h.b16 %v493
  %v610 = vunpack.c.l.b16 %v494
  %v611 = vunpack.c.h.b16 %v494
  %v612 = vunpack.c.l.b16 %v495
  %v613 = vunpack.c.h.b16 %v495
  %v614 = vunpack.c.l.b16 %v496
  %v615 = vunpack.c.h.b16 %v496
  %v616 = vunpack.c.l.b16 %v497
  %v617 = vunpack.c.h.b16 %v497
  %v618 = vunpack.c.l.b16 %v498
  %v619 = vunpack.c.h.b16 %v498
  %v620 = vunpack.c.l.b16 %v499
  %v621 = vunpack.c.h.b16 %v499
  %v622 = vunpack.c.l.b16 %v500
  %v623 = vunpack.c.h.b16 %v500
  %v624 = vunpack.c.l.b16 %v501
  %v625 = vunpack.c.h.b16 %v501
  %v626 = vunpack.c.l.b16 %v502
  %v627 = vunpack.c.h.b16 %v502
  %v628 = vunpack.c.l.b16 %v503
  %v629 = vunpack.c.h.b16 %v503
  %v630 = vunpack.c.l.b16 %v504
  %v631 = vunpack.c.h.b16 %v504
  %v632 = vunpack.c.l.b16 %v505
  %v633 = vunpack.c.h.b16 %v505
  %v634 = vunpack.c.l.b16 %v506
  %v635 = vunpack.c.h.b16 %v506
  %v636 = vunpack.c.l.b16 %v507
  %v637 = vunpack.c.h.b16 %v507
  %v638 = vunpack.c.l.b16 %v508
  %v639 = vunpack.c.h.b16 %v508
  %v640 = vunpack.c.l.b16 %v509
  %v641 = vunpack.c.h.b16 %v509
  %v642 = vunpack.c.l.b16 %v510
  %v643 = vunpack.c.h.b16 %v510
  %v644 = vpack.c.b16 %v574, %v572
  %v645 = vpack.c.b16 %v575, %v573
  %v646 = vpack.c.b16 %v578, %v576
  %v647 = vpack.c.b16 %v579, %v577
  %v648 = vpack.c.b16 %v582, %v580
  %v649 = vpack.c.b16 %v583, %v581
  %v650 = vpack.c.b16 %v586, %v584
  %v651 = vpack.c.b16 %v587, %v585
  %v652 = vpack.c.b16 %v590, %v588
  %v653 = vpack.c.b16 %v591, %v589
  %v654 = vpack.c.b16 %v594, %v592
  %v655 = vpack.c.b16 %v595, %v593
  %v656 = vpack.c.b16 %v598, %v596
  %v657 = vpack.c.b16 %v599, %v597
  %v658 = vpack.c.b16 %v602, %v600
  %v659 = vpack.c.b16 %v603, %v601
  %v660 = vpack.c.b16 %v606, %v604
  %v661 = vpack.c.b16 %v607, %v605
  %v662 = vpack.c.b16 %v610, %v608
  %v663 = vpack.c.b16 %v611, %v609
  %v664 = vpack.c.b16 %v614, %v612
  %v665 = vpack.c.b16 %v615, %v613
  %v666 = vpack.c.b16 %v618, %v616
  %v667 = vpack.c.b16 %v619, %v617
  %v668 = vpack.c.b16 %v622, %v620
  %v669 = vpack.c.b16 %v623, %v621
  %v670 = vpack.c.b16 %v626, %v624
  %v671 = vpack.c.b16 %v627, %v625
  %v672 = vpack.c.b16 %v630, %v628
  %v673 = vpack.c.b16 %v631, %v629
  %v674 = vpack.c.b16 %v634, %v632
  %v675 = vpack.c.b16 %v635, %v633
  %v676 = vpack.c.b16 %v638, %v636
  %v677 = vpack.c.b16 %v639, %v637
  %v678 = vpack.c.b16 %v642, %v640
  %v679 = vpack.c.b16 %v643, %v641
  %v716 = vunpack.c.l.b16 %v511
  %v717 = vunpack.c.l.b16 %v512
  %v718 = vunpack.c.l.b16 %v513
  %v719 = vunpack.c.l.b16 %v514
  %v720 = vunpack.c.l.b16 %v515
  %v721 = vunpack.c.l.b16 %v516
  %v722 = vunpack.c.l.b16 %v517
  %v723 = vunpack.c.l.b16 %v518
  %v724 = vunpack.c.l.b16 %v519
  %v725 = vunpack.c.l.b16 %v520
  %v726 = vunpack.c.l.b16 %v521
  %v727 = vunpack.c.l.b16 %v522
  %v728 = vunpack.c.l.b16 %v523
  %v729 = vunpack.c.l.b16 %v524
  %v730 = vunpack.c.l.b16 %v525
  %v731 = vunpack.c.l.b16 %v526
  %v732 = vunpack.c.l.b16 %v527
  %v733 = vunpack.c.l.b16 %v528
  %v734 = vpack.c.b16 %v717, %v716
  %v735 = vpack.c.b16 %v719, %v718
  %v736 = vpack.c.b16 %v721, %v720
  %v737 = vpack.c.b16 %v723, %v722
  %v738 = vpack.c.b16 %v725, %v724
  %v739 = vpack.c.b16 %v727, %v726
  %v740 = vpack.c.b16 %v729, %v728
  %v741 = vpack.c.b16 %v731, %v730
  %v742 = vpack.c.b16 %v733, %v732
  %v753 = vsel %vm186, %v645, 0
  %v756 = vsel %vm186, %v647, 0
  %v759 = vsel %vm186, %v649, 0
  %v762 = vsel %vm186, %v651, 0
  %v765 = vsel %vm186, %v653, 0
  %v768 = vsel %vm186, %v655, 0
  %v771 = vsel %vm186, %v657, 0
  %v774 = vsel %vm186, %v659, 0
  %v777 = vsel %vm186, %v661, 0
  %v780 = vsel %vm186, %v663, 0
  %v783 = vsel %vm186, %v665, 0
  %v786 = vsel %vm186, %v667, 0
  %v789 = vsel %vm186, %v669, 0
  %v792 = vsel %vm186, %v671, 0
  %v795 = vsel %vm186, %v673, 0
  %v798 = vsel %vm186, %v675, 0
  %v801 = vsel %vm186, %v677, 0
  %v804 = vsel %vm186, %v679, 0
  %806 = vmatprep.subr.bf16.mxu0 0
  %807 = vmatpush1.bf16.msra.mxu0 %v734
  %808 = vmatprep.subr.bf16.mxu0 0
  %809 = vmatpush1.bf16.msra.mxu0 %v735
  %810 = vmatprep.subr.bf16.mxu0 0
  %811 = vmatpush1.bf16.msra.mxu0 %v736
  %812 = vmatprep.subr.bf16.mxu0 0
  %813 = vmatpush1.bf16.msra.mxu0 %v737
  %814 = vmatprep.subr.bf16.mxu0 0
  %815 = vmatpush1.bf16.msra.mxu0 %v738
  %816 = vmatprep.subr.bf16.mxu0 0
  %817 = vmatpush1.bf16.msra.mxu0 %v739
  %818 = vmatprep.subr.bf16.mxu0 0
  %819 = vmatpush1.bf16.msra.mxu0 %v740
  %820 = vmatprep.subr.bf16.mxu0 0
  %821 = vmatpush1.bf16.msra.mxu0 %v741
  %822 = vmatprep.subr.bf16.mxu0 0
  %823 = vmatpush1.bf16.msra.mxu0 %v742
  %824 = vmatprep.subr.bf16.mxu0 0
  %825 = vmatpush1.bf16.msra.mxu0 0
  %826 = vmatprep.subr.bf16.mxu0 0
  %827 = vmatpush1.bf16.msra.mxu0 0
  %828 = vmatprep.subr.bf16.mxu0 0
  %829 = vmatpush1.bf16.msra.mxu0 0
  %830 = vmatprep.subr.bf16.mxu0 0
  %831 = vmatpush1.bf16.msra.mxu0 0
  %832 = vmatprep.subr.bf16.mxu0 0
  %833 = vmatpush1.bf16.msra.mxu0 0
  %834 = vmatprep.subr.bf16.mxu0 0
  %835 = vmatpush1.bf16.msra.mxu0 0
  %836 = vmatprep.subr.bf16.mxu0 0
  %837 = vmatpush1.bf16.msra.mxu0 0
  %838 = vmatprep.mubr.bf16.mxu0 %v753
  %839 = vmatmul.mubr.bf16.gmra.mrb[0].mxu0 %v644
  %v840 = vpop.f32.mrb[0].mxu0
  %v841 = vadd.f32 %v534, %v840
  %v842 = vpop.f32.mrb[0].mxu0
  %v843 = vpop.f32.mrb[0].mxu0
  %v844 = vadd.f32 %v534, %v843
  %v845 = vpop.f32.mrb[0].mxu0
  %846 = vmatprep.mubr.bf16.mxu0 %v756
  %847 = vmatmul.mubr.bf16.gmra.mrb[0].mxu0 %v646
  %v848 = vpop.f32.mrb[0].mxu0
  %v849 = vadd.f32 %v534, %v848
  %v850 = vpop.f32.mrb[0].mxu0
  %v851 = vpop.f32.mrb[0].mxu0
  %v852 = vadd.f32 %v534, %v851
  %v853 = vpop.f32.mrb[0].mxu0
  %854 = vmatprep.mubr.bf16.mxu0 %v759
  %855 = vmatmul.mubr.bf16.gmra.mrb[0].mxu0 %v648
  %v856 = vpop.f32.mrb[0].mxu0
  %v857 = vadd.f32 %v534, %v856
  %v858 = vpop.f32.mrb[0].mxu0
  %v859 = vpop.f32.mrb[0].mxu0
  %v860 = vadd.f32 %v534, %v859
  %v861 = vpop.f32.mrb[0].mxu0
  %862 = vmatprep.mubr.bf16.mxu0 %v762
  %863 = vmatmul.mubr.bf16.gmra.mrb[0].mxu0 %v650
  %v864 = vpop.f32.mrb[0].mxu0
  %v865 = vadd.f32 %v534, %v864
  %v866 = vpop.f32.mrb[0].mxu0
  %v867 = vpop.f32.mrb[0].mxu0
  %v868 = vadd.f32 %v534, %v867
  %v869 = vpop.f32.mrb[0].mxu0
  %870 = vmatprep.mubr.bf16.mxu0 %v765
  %871 = vmatmul.mubr.bf16.gmra.mrb[0].mxu0 %v652
  %v872 = vpop.f32.mrb[0].mxu0
  %v873 = vadd.f32 %v534, %v872
  %v874 = vpop.f32.mrb[0].mxu0
  %v875 = vpop.f32.mrb[0].mxu0
  %v876 = vadd.f32 %v534, %v875
  %v877 = vpop.f32.mrb[0].mxu0
  %878 = vmatprep.mubr.bf16.mxu0 %v768
  %879 = vmatmul.mubr.bf16.gmra.mrb[0].mxu0 %v654
  %v880 = vpop.f32.mrb[0].mxu0
  %v881 = vadd.f32 %v534, %v880
  %v882 = vpop.f32.mrb[0].mxu0
  %v883 = vpop.f32.mrb[0].mxu0
  %v884 = vadd.f32 %v534, %v883
  %v885 = vpop.f32.mrb[0].mxu0
  %886 = vmatprep.mubr.bf16.mxu0 %v771
  %887 = vmatmul.mubr.bf16.gmra.mrb[0].mxu0 %v656
  %v888 = vpop.f32.mrb[0].mxu0
  %v889 = vadd.f32 %v534, %v888
  %v890 = vpop.f32.mrb[0].mxu0
  %v891 = vpop.f32.mrb[0].mxu0
  %v892 = vadd.f32 %v534, %v891
  %v893 = vpop.f32.mrb[0].mxu0
  %894 = vmatprep.mubr.bf16.mxu0 %v774
  %895 = vmatmul.mubr.bf16.gmra.mrb[0].mxu0 %v658
  %v896 = vpop.f32.mrb[0].mxu0
  %v897 = vadd.f32 %v534, %v896
  %v898 = vpop.f32.mrb[0].mxu0
  %v899 = vpop.f32.mrb[0].mxu0
  %v900 = vadd.f32 %v534, %v899
  %v901 = vpop.f32.mrb[0].mxu0
  %902 = vmatprep.mubr.bf16.mxu0 %v777
  %903 = vmatmul.mubr.bf16.gmra.mrb[0].mxu0 %v660
  %v904 = vpop.f32.mrb[0].mxu0
  %v905 = vadd.f32 %v534, %v904
  %v906 = vpop.f32.mrb[0].mxu0
  %v907 = vpop.f32.mrb[0].mxu0
  %v908 = vadd.f32 %v534, %v907
  %v909 = vpop.f32.mrb[0].mxu0
  %910 = vmatprep.mubr.bf16.mxu0 %v780
  %911 = vmatmul.mubr.bf16.gmra.mrb[0].mxu0 %v662
  %v912 = vpop.f32.mrb[0].mxu0
  %v913 = vadd.f32 %v534, %v912
  %v914 = vpop.f32.mrb[0].mxu0
  %v915 = vpop.f32.mrb[0].mxu0
  %v916 = vadd.f32 %v534, %v915
  %v917 = vpop.f32.mrb[0].mxu0
  %918 = vmatprep.mubr.bf16.mxu0 %v783
  %919 = vmatmul.mubr.bf16.gmra.mrb[0].mxu0 %v664
  %v920 = vpop.f32.mrb[0].mxu0
  %v921 = vadd.f32 %v534, %v920
  %v922 = vpop.f32.mrb[0].mxu0
  %v923 = vpop.f32.mrb[0].mxu0
  %v924 = vadd.f32 %v534, %v923
  %v925 = vpop.f32.mrb[0].mxu0
  %926 = vmatprep.mubr.bf16.mxu0 %v786
  %927 = vmatmul.mubr.bf16.gmra.mrb[0].mxu0 %v666
  %v928 = vpop.f32.mrb[0].mxu0
  %v929 = vadd.f32 %v534, %v928
  %v930 = vpop.f32.mrb[0].mxu0
  %v931 = vpop.f32.mrb[0].mxu0
  %v932 = vadd.f32 %v534, %v931
  %v933 = vpop.f32.mrb[0].mxu0
  %934 = vmatprep.mubr.bf16.mxu0 %v789
  %935 = vmatmul.mubr.bf16.gmra.mrb[0].mxu0 %v668
  %v936 = vpop.f32.mrb[0].mxu0
  %v937 = vadd.f32 %v534, %v936
  %v938 = vpop.f32.mrb[0].mxu0
  %v939 = vpop.f32.mrb[0].mxu0
  %v940 = vadd.f32 %v534, %v939
  %v941 = vpop.f32.mrb[0].mxu0
  %942 = vmatprep.mubr.bf16.mxu0 %v792
  %943 = vmatmul.mubr.bf16.gmra.mrb[0].mxu0 %v670
  %v944 = vpop.f32.mrb[0].mxu0
  %v945 = vadd.f32 %v534, %v944
  %v946 = vpop.f32.mrb[0].mxu0
  %v947 = vpop.f32.mrb[0].mxu0
  %v948 = vadd.f32 %v534, %v947
  %v949 = vpop.f32.mrb[0].mxu0
  %950 = vmatprep.mubr.bf16.mxu0 %v795
  %951 = vmatmul.mubr.bf16.gmra.mrb[0].mxu0 %v672
  %v952 = vpop.f32.mrb[0].mxu0
  %v953 = vadd.f32 %v534, %v952
  %v954 = vpop.f32.mrb[0].mxu0
  %v955 = vpop.f32.mrb[0].mxu0
  %v956 = vadd.f32 %v534, %v955
  %v957 = vpop.f32.mrb[0].mxu0
  %958 = vmatprep.mubr.bf16.mxu0 %v798
  %959 = vmatmul.mubr.bf16.gmra.mrb[0].mxu0 %v674
  %v960 = vpop.f32.mrb[0].mxu0
  %v961 = vadd.f32 %v534, %v960
  %v962 = vpop.f32.mrb[0].mxu0
  %v963 = vpop.f32.mrb[0].mxu0
  %v964 = vadd.f32 %v534, %v963
  %v965 = vpop.f32.mrb[0].mxu0
  %966 = vmatprep.mubr.bf16.mxu0 %v801
  %967 = vmatmul.mubr.bf16.gmra.mrb[0].mxu0 %v676
  %v968 = vpop.f32.mrb[0].mxu0
  %v969 = vadd.f32 %v534, %v968
  %v970 = vpop.f32.mrb[0].mxu0
  %v971 = vpop.f32.mrb[0].mxu0
  %v972 = vadd.f32 %v534, %v971
  %v973 = vpop.f32.mrb[0].mxu0
  %974 = vmatprep.mubr.bf16.mxu0 %v804
  %975 = vmatmul.mubr.bf16.gmra.mrb[0].mxu0 %v678
  %v976 = vpop.f32.mrb[0].mxu0
  %v977 = vadd.f32 %v534, %v976
  %v978 = vpop.f32.mrb[0].mxu0
  %v979 = vpop.f32.mrb[0].mxu0
  %v980 = vadd.f32 %v534, %v979
  %v981 = vpop.f32.mrb[0].mxu0
  %982 = vdwg.mxu0
  %v983 = vmax.f32 %v841, 0.0
  %v984 = vmax.f32 %v844, 0.0
  %v985 = vmax.f32 %v849, 0.0
  %v986 = vmax.f32 %v852, 0.0
  %v987 = vmax.f32 %v857, 0.0
  %v988 = vmax.f32 %v860, 0.0
  %v989 = vmax.f32 %v865, 0.0
  %v990 = vmax.f32 %v868, 0.0
  %v991 = vmax.f32 %v873, 0.0
  %v992 = vmax.f32 %v876, 0.0
  %v993 = vmax.f32 %v881, 0.0
  %v994 = vmax.f32 %v884, 0.0
  %v995 = vmax.f32 %v889, 0.0
  %v996 = vmax.f32 %v892, 0.0
  %v997 = vmax.f32 %v897, 0.0
  %v998 = vmax.f32 %v900, 0.0
  %v999 = vmax.f32 %v905, 0.0
  %v1000 = vmax.f32 %v908, 0.0
  %v1001 = vmax.f32 %v913, 0.0
  %v1002 = vmax.f32 %v916, 0.0
  %v1003 = vmax.f32 %v921, 0.0
  %v1004 = vmax.f32 %v924, 0.0
  %v1005 = vmax.f32 %v929, 0.0
  %v1006 = vmax.f32 %v932, 0.0
  %v1007 = vmax.f32 %v937, 0.0
  %v1008 = vmax.f32 %v940, 0.0
  %v1009 = vmax.f32 %v945, 0.0
  %v1010 = vmax.f32 %v948, 0.0
  %v1011 = vmax.f32 %v953, 0.0
  %v1012 = vmax.f32 %v956, 0.0
  %v1013 = vmax.f32 %v961, 0.0
  %v1014 = vmax.f32 %v964, 0.0
  %v1015 = vmax.f32 %v969, 0.0
  %v1016 = vmax.f32 %v972, 0.0
  %v1017 = vmax.f32 %v977, 0.0
  %v1018 = vmax.f32 %v980, 0.0
  %v1019 = vmin.f32 %v983, 6.0
  %v1020 = vmin.f32 %v984, 6.0
  %v1021 = vmin.f32 %v985, 6.0
  %v1022 = vmin.f32 %v986, 6.0
  %v1023 = vmin.f32 %v987, 6.0
  %v1024 = vmin.f32 %v988, 6.0
  %v1025 = vmin.f32 %v989, 6.0
  %v1026 = vmin.f32 %v990, 6.0
  %v1027 = vmin.f32 %v991, 6.0
  %v1028 = vmin.f32 %v992, 6.0
  %v1029 = vmin.f32 %v993, 6.0
  %v1030 = vmin.f32 %v994, 6.0
  %v1031 = vmin.f32 %v995, 6.0
  %v1032 = vmin.f32 %v996, 6.0
  %v1033 = vmin.f32 %v997, 6.0
  %v1034 = vmin.f32 %v998, 6.0
  %v1035 = vmin.f32 %v999, 6.0
  %v1036 = vmin.f32 %v1000, 6.0
  %v1037 = vmin.f32 %v1001, 6.0
  %v1038 = vmin.f32 %v1002, 6.0
  %v1039 = vmin.f32 %v1003, 6.0
  %v1040 = vmin.f32 %v1004, 6.0
  %v1041 = vmin.f32 %v1005, 6.0
  %v1042 = vmin.f32 %v1006, 6.0
  %v1043 = vmin.f32 %v1007, 6.0
  %v1044 = vmin.f32 %v1008, 6.0
  %v1045 = vmin.f32 %v1009, 6.0
  %v1046 = vmin.f32 %v1010, 6.0
  %v1047 = vmin.f32 %v1011, 6.0
  %v1048 = vmin.f32 %v1012, 6.0
  %v1049 = vmin.f32 %v1013, 6.0
  %v1050 = vmin.f32 %v1014, 6.0
  %v1051 = vmin.f32 %v1015, 6.0
  %v1052 = vmin.f32 %v1016, 6.0
  %v1053 = vmin.f32 %v1017, 6.0
  %v1054 = vmin.f32 %v1018, 6.0
  %v1055 = vpack.c.bf16 %v1020, %v1019
  %v1056 = vpack.c.bf16 %v1022, %v1021
  %v1057 = vpack.c.bf16 %v1024, %v1023
  %v1058 = vpack.c.bf16 %v1026, %v1025
  %v1059 = vpack.c.bf16 %v1028, %v1027
  %v1060 = vpack.c.bf16 %v1030, %v1029
  %v1061 = vpack.c.bf16 %v1032, %v1031
  %v1062 = vpack.c.bf16 %v1034, %v1033
  %v1063 = vpack.c.bf16 %v1036, %v1035
  %v1064 = vpack.c.bf16 %v1038, %v1037
  %v1065 = vpack.c.bf16 %v1040, %v1039
  %v1066 = vpack.c.bf16 %v1042, %v1041
  %v1067 = vpack.c.bf16 %v1044, %v1043
  %v1068 = vpack.c.bf16 %v1046, %v1045
  %v1069 = vpack.c.bf16 %v1048, %v1047
  %v1070 = vpack.c.bf16 %v1050, %v1049
  %v1071 = vpack.c.bf16 %v1052, %v1051
  %v1072 = vpack.c.bf16 %v1054, %v1053
  %v1073 = vld [vmem:[%s8] sm:$0xf]
  %v1074 = vld [vmem:[%s8 + $0x4] sm:$0xf]
  %v1075 = vld [vmem:[%s8 + $0x8] sm:$0xf]
  %v1076 = vld [vmem:[%s8 + $0xc] sm:$0xf]
  %v1077 = vld [vmem:[%s9] sm:$0x1]
  %v1079 = vlaneseq
  %v1080 = vshrl.u32 %v1079, 7
  %v1081 = vsub.s32 0, %v1080
  %v1082 = vrot.slane %v1077, %v1081
  %v1088 = vunpack.c.l.b16 %v1073
  %v1089 = vunpack.c.l.b16 %v1074
  %v1090 = vunpack.c.l.b16 %v1075
  %v1091 = vunpack.c.l.b16 %v1076
  %v1092 = vpack.c.b16 %v1089, %v1088
  %v1093 = vpack.c.b16 %v1091, %v1090
  %v1097 = vsel %vm339, %v1055, 0
  %v1100 = vsel %vm339, %v1056, 0
  %v1103 = vsel %vm339, %v1057, 0
  %v1106 = vsel %vm339, %v1058, 0
  %v1109 = vsel %vm339, %v1059, 0
  %v1112 = vsel %vm339, %v1060, 0
  %v1115 = vsel %vm339, %v1061, 0
  %v1118 = vsel %vm339, %v1062, 0
  %v1121 = vsel %vm339, %v1063, 0
  %v1124 = vsel %vm339, %v1064, 0
  %v1127 = vsel %vm339, %v1065, 0
  %v1130 = vsel %vm339, %v1066, 0
  %v1133 = vsel %vm339, %v1067, 0
  %v1136 = vsel %vm339, %v1068, 0
  %v1139 = vsel %vm339, %v1069, 0
  %v1142 = vsel %vm339, %v1070, 0
  %v1145 = vsel %vm339, %v1071, 0
  %v1148 = vsel %vm339, %v1072, 0
  %1150 = vmatprep.subr.bf16.mxu0 0
  %1151 = vmatpush1.bf16.msra.mxu0 %v1092
  %1152 = vmatprep.subr.bf16.mxu0 0
  %1153 = vmatpush1.bf16.msra.mxu0 %v1093
  %1154 = vmatprep.subr.bf16.mxu0 0
  %1155 = vmatpush1.bf16.msra.mxu0 0
  %1156 = vmatprep.subr.bf16.mxu0 0
  %1157 = vmatpush1.bf16.msra.mxu0 0
  %1158 = vmatprep.subr.bf16.mxu0 0
  %1159 = vmatpush1.bf16.msra.mxu0 0
  %1160 = vmatprep.subr.bf16.mxu0 0
  %1161 = vmatpush1.bf16.msra.mxu0 0
  %1162 = vmatprep.subr.bf16.mxu0 0
  %1163 = vmatpush1.bf16.msra.mxu0 0
  %1164 = vmatprep.subr.bf16.mxu0 0
  %1165 = vmatpush1.bf16.msra.mxu0 0
  %1166 = vmatprep.subr.bf16.mxu0 0
  %1167 = vmatpush1.bf16.msra.mxu0 0
  %1168 = vmatprep.subr.bf16.mxu0 0
  %1169 = vmatpush1.bf16.msra.mxu0 0
  %1170 = vmatprep.subr.bf16.mxu0 0
  %1171 = vmatpush1.bf16.msra.mxu0 0
  %1172 = vmatprep.subr.bf16.mxu0 0
  %1173 = vmatpush1.bf16.msra.mxu0 0
  %1174 = vmatprep.subr.bf16.mxu0 0
  %1175 = vmatpush1.bf16.msra.mxu0 0
  %1176 = vmatprep.subr.bf16.mxu0 0
  %1177 = vmatpush1.bf16.msra.mxu0 0
  %1178 = vmatprep.subr.bf16.mxu0 0
  %1179 = vmatpush1.bf16.msra.mxu0 0
  %1180 = vmatprep.subr.bf16.mxu0 0
  %1181 = vmatpush1.bf16.msra.mxu0 0
  %1182 = vmatprep.mubr.bf16.mxu0 0
  %1183 = vmatmul.mubr.bf16.gmra.mrb[0].mxu0 %v1097
  %v1184 = vpop.f32.mrb[0].mxu0
  %v1185 = vadd.f32 %v1082, %v1184
  %v1186 = vpop.f32.mrb[0].mxu0
  %v1187 = vpop.f32.mrb[0].mxu0
  %v1188 = vadd.f32 %v1082, %v1187
  %v1189 = vpop.f32.mrb[0].mxu0
  %1190 = vmatprep.mubr.bf16.mxu0 0
  %1191 = vmatmul.mubr.bf16.gmra.mrb[0].mxu0 %v1100
  %v1192 = vpop.f32.mrb[0].mxu0
  %v1193 = vadd.f32 %v1082, %v1192
  %v1194 = vpop.f32.mrb[0].mxu0
  %v1195 = vpop.f32.mrb[0].mxu0
  %v1196 = vadd.f32 %v1082, %v1195
  %v1197 = vpop.f32.mrb[0].mxu0
  %1198 = vmatprep.mubr.bf16.mxu0 0
  %1199 = vmatmul.mubr.bf16.gmra.mrb[0].mxu0 %v1103
  %v1200 = vpop.f32.mrb[0].mxu0
  %v1201 = vadd.f32 %v1082, %v1200
  %v1202 = vpop.f32.mrb[0].mxu0
  %v1203 = vpop.f32.mrb[0].mxu0
  %v1204 = vadd.f32 %v1082, %v1203
  %v1205 = vpop.f32.mrb[0].mxu0
  %1206 = vmatprep.mubr.bf16.mxu0 0
  %1207 = vmatmul.mubr.bf16.gmra.mrb[0].mxu0 %v1106
  %v1208 = vpop.f32.mrb[0].mxu0
  %v1209 = vadd.f32 %v1082, %v1208
  %v1210 = vpop.f32.mrb[0].mxu0
  %v1211 = vpop.f32.mrb[0].mxu0
  %v1212 = vadd.f32 %v1082, %v1211
  %v1213 = vpop.f32.mrb[0].mxu0
  %1214 = vmatprep.mubr.bf16.mxu0 0
  %1215 = vmatmul.mubr.bf16.gmra.mrb[0].mxu0 %v1109
  %v1216 = vpop.f32.mrb[0].mxu0
  %v1217 = vadd.f32 %v1082, %v1216
  %v1218 = vpop.f32.mrb[0].mxu0
  %v1219 = vpop.f32.mrb[0].mxu0
  %v1220 = vadd.f32 %v1082, %v1219
  %v1221 = vpop.f32.mrb[0].mxu0
  %1222 = vmatprep.mubr.bf16.mxu0 0
  %1223 = vmatmul.mubr.bf16.gmra.mrb[0].mxu0 %v1112
  %v1224 = vpop.f32.mrb[0].mxu0
  %v1225 = vadd.f32 %v1082, %v1224
  %v1226 = vpop.f32.mrb[0].mxu0
  %v1227 = vpop.f32.mrb[0].mxu0
  %v1228 = vadd.f32 %v1082, %v1227
  %v1229 = vpop.f32.mrb[0].mxu0
  %1230 = vmatprep.mubr.bf16.mxu0 0
  %1231 = vmatmul.mubr.bf16.gmra.mrb[0].mxu0 %v1115
  %v1232 = vpop.f32.mrb[0].mxu0
  %v1233 = vadd.f32 %v1082, %v1232
  %v1234 = vpop.f32.mrb[0].mxu0
  %v1235 = vpop.f32.mrb[0].mxu0
  %v1236 = vadd.f32 %v1082, %v1235
  %v1237 = vpop.f32.mrb[0].mxu0
  %1238 = vmatprep.mubr.bf16.mxu0 0
  %1239 = vmatmul.mubr.bf16.gmra.mrb[0].mxu0 %v1118
  %v1240 = vpop.f32.mrb[0].mxu0
  %v1241 = vadd.f32 %v1082, %v1240
  %v1242 = vpop.f32.mrb[0].mxu0
  %v1243 = vpop.f32.mrb[0].mxu0
  %v1244 = vadd.f32 %v1082, %v1243
  %v1245 = vpop.f32.mrb[0].mxu0
  %1246 = vmatprep.mubr.bf16.mxu0 0
  %1247 = vmatmul.mubr.bf16.gmra.mrb[0].mxu0 %v1121
  %v1248 = vpop.f32.mrb[0].mxu0
  %v1249 = vadd.f32 %v1082, %v1248
  %v1250 = vpop.f32.mrb[0].mxu0
  %v1251 = vpop.f32.mrb[0].mxu0
  %v1252 = vadd.f32 %v1082, %v1251
  %v1253 = vpop.f32.mrb[0].mxu0
  %1254 = vmatprep.mubr.bf16.mxu0 0
  %1255 = vmatmul.mubr.bf16.gmra.mrb[0].mxu0 %v1124
  %v1256 = vpop.f32.mrb[0].mxu0
  %v1257 = vadd.f32 %v1082, %v1256
  %v1258 = vpop.f32.mrb[0].mxu0
  %v1259 = vpop.f32.mrb[0].mxu0
  %v1260 = vadd.f32 %v1082, %v1259
  %v1261 = vpop.f32.mrb[0].mxu0
  %1262 = vmatprep.mubr.bf16.mxu0 0
  %1263 = vmatmul.mubr.bf16.gmra.mrb[0].mxu0 %v1127
  %v1264 = vpop.f32.mrb[0].mxu0
  %v1265 = vadd.f32 %v1082, %v1264
  %v1266 = vpop.f32.mrb[0].mxu0
  %v1267 = vpop.f32.mrb[0].mxu0
  %v1268 = vadd.f32 %v1082, %v1267
  %v1269 = vpop.f32.mrb[0].mxu0
  %1270 = vmatprep.mubr.bf16.mxu0 0
  %1271 = vmatmul.mubr.bf16.gmra.mrb[0].mxu0 %v1130
  %v1272 = vpop.f32.mrb[0].mxu0
  %v1273 = vadd.f32 %v1082, %v1272
  %v1274 = vpop.f32.mrb[0].mxu0
  %v1275 = vpop.f32.mrb[0].mxu0
  %v1276 = vadd.f32 %v1082, %v1275
  %v1277 = vpop.f32.mrb[0].mxu0
  %1278 = vmatprep.mubr.bf16.mxu0 0
  %1279 = vmatmul.mubr.bf16.gmra.mrb[0].mxu0 %v1133
  %v1280 = vpop.f32.mrb[0].mxu0
  %v1281 = vadd.f32 %v1082, %v1280
  %v1282 = vpop.f32.mrb[0].mxu0
  %v1283 = vpop.f32.mrb[0].mxu0
  %v1284 = vadd.f32 %v1082, %v1283
  %v1285 = vpop.f32.mrb[0].mxu0
  %1286 = vmatprep.mubr.bf16.mxu0 0
  %1287 = vmatmul.mubr.bf16.gmra.mrb[0].mxu0 %v1136
  %v1288 = vpop.f32.mrb[0].mxu0
  %v1289 = vadd.f32 %v1082, %v1288
  %v1290 = vpop.f32.mrb[0].mxu0
  %v1291 = vpop.f32.mrb[0].mxu0
  %v1292 = vadd.f32 %v1082, %v1291
  %v1293 = vpop.f32.mrb[0].mxu0
  %1294 = vmatprep.mubr.bf16.mxu0 0
  %1295 = vmatmul.mubr.bf16.gmra.mrb[0].mxu0 %v1139
  %v1296 = vpop.f32.mrb[0].mxu0
  %v1297 = vadd.f32 %v1082, %v1296
  %v1298 = vpop.f32.mrb[0].mxu0
  %v1299 = vpop.f32.mrb[0].mxu0
  %v1300 = vadd.f32 %v1082, %v1299
  %v1301 = vpop.f32.mrb[0].mxu0
  %1302 = vmatprep.mubr.bf16.mxu0 0
  %1303 = vmatmul.mubr.bf16.gmra.mrb[0].mxu0 %v1142
  %v1304 = vpop.f32.mrb[0].mxu0
  %v1305 = vadd.f32 %v1082, %v1304
  %v1306 = vpop.f32.mrb[0].mxu0
  %v1307 = vpop.f32.mrb[0].mxu0
  %v1308 = vadd.f32 %v1082, %v1307
  %v1309 = vpop.f32.mrb[0].mxu0
  %1310 = vmatprep.mubr.bf16.mxu0 0
  %1311 = vmatmul.mubr.bf16.gmra.mrb[0].mxu0 %v1145
  %v1312 = vpop.f32.mrb[0].mxu0
  %v1313 = vadd.f32 %v1082, %v1312
  %v1314 = vpop.f32.mrb[0].mxu0
  %v1315 = vpop.f32.mrb[0].mxu0
  %v1316 = vadd.f32 %v1082, %v1315
  %v1317 = vpop.f32.mrb[0].mxu0
  %1318 = vmatprep.mubr.bf16.mxu0 0
  %1319 = vmatmul.mubr.bf16.gmra.mrb[0].mxu0 %v1148
  %v1320 = vpop.f32.mrb[0].mxu0
  %v1321 = vadd.f32 %v1082, %v1320
  %v1322 = vpop.f32.mrb[0].mxu0
  %v1323 = vpop.f32.mrb[0].mxu0
  %v1324 = vadd.f32 %v1082, %v1323
  %v1325 = vpop.f32.mrb[0].mxu0
  %1326 = vdwg.mxu0
  %v1327 = vmax.f32 %v1185, 0.0
  %v1328 = vmax.f32 %v1188, 0.0
  %v1329 = vmax.f32 %v1193, 0.0
  %v1330 = vmax.f32 %v1196, 0.0
  %v1331 = vmax.f32 %v1201, 0.0
  %v1332 = vmax.f32 %v1204, 0.0
  %v1333 = vmax.f32 %v1209, 0.0
  %v1334 = vmax.f32 %v1212, 0.0
  %v1335 = vmax.f32 %v1217, 0.0
  %v1336 = vmax.f32 %v1220, 0.0
  %v1337 = vmax.f32 %v1225, 0.0
  %v1338 = vmax.f32 %v1228, 0.0
  %v1339 = vmax.f32 %v1233, 0.0
  %v1340 = vmax.f32 %v1236, 0.0
  %v1341 = vmax.f32 %v1241, 0.0
  %v1342 = vmax.f32 %v1244, 0.0
  %v1343 = vmax.f32 %v1249, 0.0
  %v1344 = vmax.f32 %v1252, 0.0
  %v1345 = vmax.f32 %v1257, 0.0
  %v1346 = vmax.f32 %v1260, 0.0
  %v1347 = vmax.f32 %v1265, 0.0
  %v1348 = vmax.f32 %v1268, 0.0
  %v1349 = vmax.f32 %v1273, 0.0
  %v1350 = vmax.f32 %v1276, 0.0
  %v1351 = vmax.f32 %v1281, 0.0
  %v1352 = vmax.f32 %v1284, 0.0
  %v1353 = vmax.f32 %v1289, 0.0
  %v1354 = vmax.f32 %v1292, 0.0
  %v1355 = vmax.f32 %v1297, 0.0
  %v1356 = vmax.f32 %v1300, 0.0
  %v1357 = vmax.f32 %v1305, 0.0
  %v1358 = vmax.f32 %v1308, 0.0
  %v1359 = vmax.f32 %v1313, 0.0
  %v1360 = vmax.f32 %v1316, 0.0
  %v1361 = vmax.f32 %v1321, 0.0
  %v1362 = vmax.f32 %v1324, 0.0
  %v1363 = vmin.f32 %v1327, 6.0
  %v1364 = vmin.f32 %v1328, 6.0
  %v1365 = vmin.f32 %v1329, 6.0
  %v1366 = vmin.f32 %v1330, 6.0
  %v1367 = vmin.f32 %v1331, 6.0
  %v1368 = vmin.f32 %v1332, 6.0
  %v1369 = vmin.f32 %v1333, 6.0
  %v1370 = vmin.f32 %v1334, 6.0
  %v1371 = vmin.f32 %v1335, 6.0
  %v1372 = vmin.f32 %v1336, 6.0
  %v1373 = vmin.f32 %v1337, 6.0
  %v1374 = vmin.f32 %v1338, 6.0
  %v1375 = vmin.f32 %v1339, 6.0
  %v1376 = vmin.f32 %v1340, 6.0
  %v1377 = vmin.f32 %v1341, 6.0
  %v1378 = vmin.f32 %v1342, 6.0
  %v1379 = vmin.f32 %v1343, 6.0
  %v1380 = vmin.f32 %v1344, 6.0
  %v1381 = vmin.f32 %v1345, 6.0
  %v1382 = vmin.f32 %v1346, 6.0
  %v1383 = vmin.f32 %v1347, 6.0
  %v1384 = vmin.f32 %v1348, 6.0
  %v1385 = vmin.f32 %v1349, 6.0
  %v1386 = vmin.f32 %v1350, 6.0
  %v1387 = vmin.f32 %v1351, 6.0
  %v1388 = vmin.f32 %v1352, 6.0
  %v1389 = vmin.f32 %v1353, 6.0
  %v1390 = vmin.f32 %v1354, 6.0
  %v1391 = vmin.f32 %v1355, 6.0
  %v1392 = vmin.f32 %v1356, 6.0
  %v1393 = vmin.f32 %v1357, 6.0
  %v1394 = vmin.f32 %v1358, 6.0
  %v1395 = vmin.f32 %v1359, 6.0
  %v1396 = vmin.f32 %v1360, 6.0
  %v1397 = vmin.f32 %v1361, 6.0
  %v1398 = vmin.f32 %v1362, 6.0
  %v1399 = vpack.c.bf16 %v1364, %v1363
  %v1400 = vpack.c.bf16 %v1366, %v1365
  %v1401 = vpack.c.bf16 %v1368, %v1367
  %v1402 = vpack.c.bf16 %v1370, %v1369
  %v1403 = vpack.c.bf16 %v1372, %v1371
  %v1404 = vpack.c.bf16 %v1374, %v1373
  %v1405 = vpack.c.bf16 %v1376, %v1375
  %v1406 = vpack.c.bf16 %v1378, %v1377
  %v1407 = vpack.c.bf16 %v1380, %v1379
  %v1408 = vpack.c.bf16 %v1382, %v1381
  %v1409 = vpack.c.bf16 %v1384, %v1383
  %v1410 = vpack.c.bf16 %v1386, %v1385
  %v1411 = vpack.c.bf16 %v1388, %v1387
  %v1412 = vpack.c.bf16 %v1390, %v1389
  %v1413 = vpack.c.bf16 %v1392, %v1391
  %v1414 = vpack.c.bf16 %v1394, %v1393
  %v1415 = vpack.c.bf16 %v1396, %v1395
  %v1416 = vpack.c.bf16 %v1398, %v1397
  %v1417 = vld [vmem:[%s10] sm:$0xf]
  %v1418 = vld [vmem:[%s10 + $0x4] sm:$0xf]
  %v1419 = vld [vmem:[%s10 + $0x8] sm:$0x7]
  %v1423 = vunpack.c.l.b16 %v1417
  %v1424 = vunpack.c.l.b16 %v1418
  %v1425 = vunpack.c.l.b16 %v1419
  %v1426 = vpack.c.b16 %v1424, %v1423
  %v1427 = vpack.c.b16 %v1425, %v1425
  %vm1429 = vcmask 171008
  %v1431 = vsel %vm1429, %v1399, 0
  %v1434 = vsel %vm1429, %v1400, 0
  %v1437 = vsel %vm1429, %v1401, 0
  %v1440 = vsel %vm1429, %v1402, 0
  %v1443 = vsel %vm1429, %v1403, 0
  %v1446 = vsel %vm1429, %v1404, 0
  %v1449 = vsel %vm1429, %v1405, 0
  %v1452 = vsel %vm1429, %v1406, 0
  %v1455 = vsel %vm1429, %v1407, 0
  %v1458 = vsel %vm1429, %v1408, 0
  %v1461 = vsel %vm1429, %v1409, 0
  %v1464 = vsel %vm1429, %v1410, 0
  %v1467 = vsel %vm1429, %v1411, 0
  %v1470 = vsel %vm1429, %v1412, 0
  %v1473 = vsel %vm1429, %v1413, 0
  %v1476 = vsel %vm1429, %v1414, 0
  %v1479 = vsel %vm1429, %v1415, 0
  %v1482 = vsel %vm1429, %v1416, 0
  %vm1484 = vcmask 1041408
  %vm1485 = vcmask 1042432
  %v1486 = vsel %vm1484, 4294967295, 65535
  %v1487 = vsel %vm1485, %v1486, 0
  %v1489 = vand.u32 %v1427, %v1487
  %1491 = vmatprep.subr.bf16.mxu0 0
  %1492 = vmatpush1.bf16.msra.mxu0 %v1426
  %1493 = vmatprep.subr.bf16.mxu0 0
  %1494 = vmatpush1.bf16.msra.mxu0 %v1489
  %1495 = vmatprep.subr.bf16.mxu0 0
  %1496 = vmatpush1.bf16.msra.mxu0 0
  %1497 = vmatprep.subr.bf16.mxu0 0
  %1498 = vmatpush1.bf16.msra.mxu0 0
  %1499 = vmatprep.subr.bf16.mxu0 0
  %1500 = vmatpush1.bf16.msra.mxu0 0
  %1501 = vmatprep.subr.bf16.mxu0 0
  %1502 = vmatpush1.bf16.msra.mxu0 0
  %1503 = vmatprep.subr.bf16.mxu0 0
  %1504 = vmatpush1.bf16.msra.mxu0 0
  %1505 = vmatprep.subr.bf16.mxu0 0
  %1506 = vmatpush1.bf16.msra.mxu0 0
  %1507 = vmatprep.subr.bf16.mxu0 0
  %1508 = vmatpush1.bf16.msra.mxu0 0
  %1509 = vmatprep.subr.bf16.mxu0 0
  %1510 = vmatpush1.bf16.msra.mxu0 0
  %1511 = vmatprep.subr.bf16.mxu0 0
  %1512 = vmatpush1.bf16.msra.mxu0 0
  %1513 = vmatprep.subr.bf16.mxu0 0
  %1514 = vmatpush1.bf16.msra.mxu0 0
  %1515 = vmatprep.subr.bf16.mxu0 0
  %1516 = vmatpush1.bf16.msra.mxu0 0
  %1517 = vmatprep.subr.bf16.mxu0 0
  %1518 = vmatpush1.bf16.msra.mxu0 0
  %1519 = vmatprep.subr.bf16.mxu0 0
  %1520 = vmatpush1.bf16.msra.mxu0 0
  %1521 = vmatprep.subr.bf16.mxu0 0
  %1522 = vmatpush1.bf16.msra.mxu0 0
  %1523 = vmatprep.mubr.bf16.mxu0 0
  %1524 = vmatmul.mubr.bf16.gmra.mrb[0].mxu0 %v1431
  %v1525 = vpop.f32.mrb[0].mxu0
  %v1526 = vadd.f32 0.0, %v1525
  %v1527 = vpop.f32.mrb[0].mxu0
  %v1528 = vpop.f32.mrb[0].mxu0
  %v1529 = vadd.f32 0.0, %v1528
  %v1530 = vpop.f32.mrb[0].mxu0
  %1531 = vmatprep.mubr.bf16.mxu0 0
  %1532 = vmatmul.mubr.bf16.gmra.mrb[0].mxu0 %v1434
  %v1533 = vpop.f32.mrb[0].mxu0
  %v1534 = vadd.f32 0.0, %v1533
  %v1535 = vpop.f32.mrb[0].mxu0
  %v1536 = vpop.f32.mrb[0].mxu0
  %v1537 = vadd.f32 0.0, %v1536
  %v1538 = vpop.f32.mrb[0].mxu0
  %1539 = vmatprep.mubr.bf16.mxu0 0
  %1540 = vmatmul.mubr.bf16.gmra.mrb[0].mxu0 %v1437
  %v1541 = vpop.f32.mrb[0].mxu0
  %v1542 = vadd.f32 0.0, %v1541
  %v1543 = vpop.f32.mrb[0].mxu0
  %v1544 = vpop.f32.mrb[0].mxu0
  %v1545 = vadd.f32 0.0, %v1544
  %v1546 = vpop.f32.mrb[0].mxu0
  %1547 = vmatprep.mubr.bf16.mxu0 0
  %1548 = vmatmul.mubr.bf16.gmra.mrb[0].mxu0 %v1440
  %v1549 = vpop.f32.mrb[0].mxu0
  %v1550 = vadd.f32 0.0, %v1549
  %v1551 = vpop.f32.mrb[0].mxu0
  %v1552 = vpop.f32.mrb[0].mxu0
  %v1553 = vadd.f32 0.0, %v1552
  %v1554 = vpop.f32.mrb[0].mxu0
  %1555 = vmatprep.mubr.bf16.mxu0 0
  %1556 = vmatmul.mubr.bf16.gmra.mrb[0].mxu0 %v1443
  %v1557 = vpop.f32.mrb[0].mxu0
  %v1558 = vadd.f32 0.0, %v1557
  %v1559 = vpop.f32.mrb[0].mxu0
  %v1560 = vpop.f32.mrb[0].mxu0
  %v1561 = vadd.f32 0.0, %v1560
  %v1562 = vpop.f32.mrb[0].mxu0
  %1563 = vmatprep.mubr.bf16.mxu0 0
  %1564 = vmatmul.mubr.bf16.gmra.mrb[0].mxu0 %v1446
  %v1565 = vpop.f32.mrb[0].mxu0
  %v1566 = vadd.f32 0.0, %v1565
  %v1567 = vpop.f32.mrb[0].mxu0
  %v1568 = vpop.f32.mrb[0].mxu0
  %v1569 = vadd.f32 0.0, %v1568
  %v1570 = vpop.f32.mrb[0].mxu0
  %1571 = vmatprep.mubr.bf16.mxu0 0
  %1572 = vmatmul.mubr.bf16.gmra.mrb[0].mxu0 %v1449
  %v1573 = vpop.f32.mrb[0].mxu0
  %v1574 = vadd.f32 0.0, %v1573
  %v1575 = vpop.f32.mrb[0].mxu0
  %v1576 = vpop.f32.mrb[0].mxu0
  %v1577 = vadd.f32 0.0, %v1576
  %v1578 = vpop.f32.mrb[0].mxu0
  %1579 = vmatprep.mubr.bf16.mxu0 0
  %1580 = vmatmul.mubr.bf16.gmra.mrb[0].mxu0 %v1452
  %v1581 = vpop.f32.mrb[0].mxu0
  %v1582 = vadd.f32 0.0, %v1581
  %v1583 = vpop.f32.mrb[0].mxu0
  %v1584 = vpop.f32.mrb[0].mxu0
  %v1585 = vadd.f32 0.0, %v1584
  %v1586 = vpop.f32.mrb[0].mxu0
  %1587 = vmatprep.mubr.bf16.mxu0 0
  %1588 = vmatmul.mubr.bf16.gmra.mrb[0].mxu0 %v1455
  %v1589 = vpop.f32.mrb[0].mxu0
  %v1590 = vadd.f32 0.0, %v1589
  %v1591 = vpop.f32.mrb[0].mxu0
  %v1592 = vpop.f32.mrb[0].mxu0
  %v1593 = vadd.f32 0.0, %v1592
  %v1594 = vpop.f32.mrb[0].mxu0
  %1595 = vmatprep.mubr.bf16.mxu0 0
  %1596 = vmatmul.mubr.bf16.gmra.mrb[0].mxu0 %v1458
  %v1597 = vpop.f32.mrb[0].mxu0
  %v1598 = vadd.f32 0.0, %v1597
  %v1599 = vpop.f32.mrb[0].mxu0
  %v1600 = vpop.f32.mrb[0].mxu0
  %v1601 = vadd.f32 0.0, %v1600
  %v1602 = vpop.f32.mrb[0].mxu0
  %1603 = vmatprep.mubr.bf16.mxu0 0
  %1604 = vmatmul.mubr.bf16.gmra.mrb[0].mxu0 %v1461
  %v1605 = vpop.f32.mrb[0].mxu0
  %v1606 = vadd.f32 0.0, %v1605
  %v1607 = vpop.f32.mrb[0].mxu0
  %v1608 = vpop.f32.mrb[0].mxu0
  %v1609 = vadd.f32 0.0, %v1608
  %v1610 = vpop.f32.mrb[0].mxu0
  %1611 = vmatprep.mubr.bf16.mxu0 0
  %1612 = vmatmul.mubr.bf16.gmra.mrb[0].mxu0 %v1464
  %v1613 = vpop.f32.mrb[0].mxu0
  %v1614 = vadd.f32 0.0, %v1613
  %v1615 = vpop.f32.mrb[0].mxu0
  %v1616 = vpop.f32.mrb[0].mxu0
  %v1617 = vadd.f32 0.0, %v1616
  %v1618 = vpop.f32.mrb[0].mxu0
  %1619 = vmatprep.mubr.bf16.mxu0 0
  %1620 = vmatmul.mubr.bf16.gmra.mrb[0].mxu0 %v1467
  %v1621 = vpop.f32.mrb[0].mxu0
  %v1622 = vadd.f32 0.0, %v1621
  %v1623 = vpop.f32.mrb[0].mxu0
  %v1624 = vpop.f32.mrb[0].mxu0
  %v1625 = vadd.f32 0.0, %v1624
  %v1626 = vpop.f32.mrb[0].mxu0
  %1627 = vmatprep.mubr.bf16.mxu0 0
  %1628 = vmatmul.mubr.bf16.gmra.mrb[0].mxu0 %v1470
  %v1629 = vpop.f32.mrb[0].mxu0
  %v1630 = vadd.f32 0.0, %v1629
  %v1631 = vpop.f32.mrb[0].mxu0
  %v1632 = vpop.f32.mrb[0].mxu0
  %v1633 = vadd.f32 0.0, %v1632
  %v1634 = vpop.f32.mrb[0].mxu0
  %1635 = vmatprep.mubr.bf16.mxu0 0
  %1636 = vmatmul.mubr.bf16.gmra.mrb[0].mxu0 %v1473
  %v1637 = vpop.f32.mrb[0].mxu0
  %v1638 = vadd.f32 0.0, %v1637
  %v1639 = vpop.f32.mrb[0].mxu0
  %v1640 = vpop.f32.mrb[0].mxu0
  %v1641 = vadd.f32 0.0, %v1640
  %v1642 = vpop.f32.mrb[0].mxu0
  %1643 = vmatprep.mubr.bf16.mxu0 0
  %1644 = vmatmul.mubr.bf16.gmra.mrb[0].mxu0 %v1476
  %v1645 = vpop.f32.mrb[0].mxu0
  %v1646 = vadd.f32 0.0, %v1645
  %v1647 = vpop.f32.mrb[0].mxu0
  %v1648 = vpop.f32.mrb[0].mxu0
  %v1649 = vadd.f32 0.0, %v1648
  %v1650 = vpop.f32.mrb[0].mxu0
  %1651 = vmatprep.mubr.bf16.mxu0 0
  %1652 = vmatmul.mubr.bf16.gmra.mrb[0].mxu0 %v1479
  %v1653 = vpop.f32.mrb[0].mxu0
  %v1654 = vadd.f32 0.0, %v1653
  %v1655 = vpop.f32.mrb[0].mxu0
  %v1656 = vpop.f32.mrb[0].mxu0
  %v1657 = vadd.f32 0.0, %v1656
  %v1658 = vpop.f32.mrb[0].mxu0
  %1659 = vmatprep.mubr.bf16.mxu0 0
  %1660 = vmatmul.mubr.bf16.gmra.mrb[0].mxu0 %v1482
  %v1661 = vpop.f32.mrb[0].mxu0
  %v1662 = vadd.f32 0.0, %v1661
  %v1663 = vpop.f32.mrb[0].mxu0
  %v1664 = vpop.f32.mrb[0].mxu0
  %v1665 = vadd.f32 0.0, %v1664
  %v1666 = vpop.f32.mrb[0].mxu0
  %1667 = vdwg.mxu0
  %1668 = vst.msk [vmem:[%s12] sm:$0xff] %vm1429, %v1526
  %1669 = vst.msk [vmem:[%s12 + $0x8] sm:$0xff] %vm1429, %v1529
  %1670 = vst.msk [vmem:[%s12 + $0x10] sm:$0xff] %vm1429, %v1534
  %1671 = vst.msk [vmem:[%s12 + $0x18] sm:$0xff] %vm1429, %v1537
  %1672 = vst.msk [vmem:[%s12 + $0x20] sm:$0xff] %vm1429, %v1542
  %1673 = vst.msk [vmem:[%s12 + $0x28] sm:$0xff] %vm1429, %v1545
  %1674 = vst.msk [vmem:[%s12 + $0x30] sm:$0xff] %vm1429, %v1550
  %1675 = vst.msk [vmem:[%s12 + $0x38] sm:$0xff] %vm1429, %v1553
  %1676 = vst.msk [vmem:[%s12 + $0x40] sm:$0xff] %vm1429, %v1558
  %1677 = vst.msk [vmem:[%s12 + $0x48] sm:$0xff] %vm1429, %v1561
  %1678 = vst.msk [vmem:[%s12 + $0x50] sm:$0xff] %vm1429, %v1566
  %1679 = vst.msk [vmem:[%s12 + $0x58] sm:$0xff] %vm1429, %v1569
  %1680 = vst.msk [vmem:[%s12 + $0x60] sm:$0xff] %vm1429, %v1574
  %1681 = vst.msk [vmem:[%s12 + $0x68] sm:$0xff] %vm1429, %v1577
  %1682 = vst.msk [vmem:[%s12 + $0x70] sm:$0xff] %vm1429, %v1582
  %1683 = vst.msk [vmem:[%s12 + $0x78] sm:$0xff] %vm1429, %v1585
  %1684 = vst.msk [vmem:[%s12 + $0x80] sm:$0xff] %vm1429, %v1590
  %1685 = vst.msk [vmem:[%s12 + $0x88] sm:$0xff] %vm1429, %v1593
  %1686 = vst.msk [vmem:[%s12 + $0x90] sm:$0xff] %vm1429, %v1598
  %1687 = vst.msk [vmem:[%s12 + $0x98] sm:$0xff] %vm1429, %v1601
  %1688 = vst.msk [vmem:[%s12 + $0xa0] sm:$0xff] %vm1429, %v1606
  %1689 = vst.msk [vmem:[%s12 + $0xa8] sm:$0xff] %vm1429, %v1609
  %1690 = vst.msk [vmem:[%s12 + $0xb0] sm:$0xff] %vm1429, %v1614
  %1691 = vst.msk [vmem:[%s12 + $0xb8] sm:$0xff] %vm1429, %v1617
  %1692 = vst.msk [vmem:[%s12 + $0xc0] sm:$0xff] %vm1429, %v1622
  %1693 = vst.msk [vmem:[%s12 + $0xc8] sm:$0xff] %vm1429, %v1625
  %1694 = vst.msk [vmem:[%s12 + $0xd0] sm:$0xff] %vm1429, %v1630
  %1695 = vst.msk [vmem:[%s12 + $0xd8] sm:$0xff] %vm1429, %v1633
  %1696 = vst.msk [vmem:[%s12 + $0xe0] sm:$0xff] %vm1429, %v1638
  %1697 = vst.msk [vmem:[%s12 + $0xe8] sm:$0xff] %vm1429, %v1641
  %1698 = vst.msk [vmem:[%s12 + $0xf0] sm:$0xff] %vm1429, %v1646
  %1699 = vst.msk [vmem:[%s12 + $0xf8] sm:$0xff] %vm1429, %v1649
  %1700 = vst.msk [vmem:[%s12 + $0x100] sm:$0xff] %vm1429, %v1654
  %1701 = vst.msk [vmem:[%s12 + $0x108] sm:$0xff] %vm1429, %v1657
  %1702 = vst.msk [vmem:[%s12 + $0x110] sm:$0xff] %vm1429, %v1662
  %1703 = vst.msk [vmem:[%s12 + $0x118] sm:$0xff] %vm1429, %v1665
  // Predicated region
  $region46: #{tapor_forward.4} parent=0 // pred_check
    _
  $region47: #{tapor_forward.4} parent=0 // pred_check_branch
    %1705 = sbr.rel (0) target = $region49
  $region48: #{tapor_forward.4} parent=0 // pred_region
    _
  $region49: #{tapor_forward.4} parent=0 // pred_fallthru
    _
  // Predicated region
  $region50: #{tapor_forward.4} parent=0 // pred_check
    _
  $region51: #{tapor_forward.4} parent=0 // pred_check_branch
    %1707 = sbr.rel (0) target = $region53
  $region52: #{tapor_forward.4} parent=0 // pred_region
    _
  $region53: #{tapor_forward.4} parent=0 // pred_fallthru
    _
  // Predicated region
  $region54: #{tapor_forward.4} parent=0 // pred_check
    _
  $region55: #{tapor_forward.4} parent=0 // pred_check_branch
    %1709 = sbr.rel (0) target = $region57
  $region56: #{tapor_forward.4} parent=0 // pred_region
    _
  $region57: #{tapor_forward.4} parent=0 // pred_fallthru
    _
  // Predicated region
  $region58: #{tapor_forward.4} parent=0 // pred_check
    _
  $region59: #{tapor_forward.4} parent=0 // pred_check_branch
    %1711 = sbr.rel (0) target = $region61
  $region60: #{tapor_forward.4} parent=0 // pred_region
    _
  $region61: #{tapor_forward.4} parent=0 // pred_fallthru
    _

// kernel: tapor_forward.5
$region0: #{tapor_forward.5}
  #allocation0 [shape = 'u32[]', space=smem, size = 0x4, offset = 0x4, fixed_abs, tag = 'smem constant byte address 0x4 - core index']
  #allocation1 [shape = 'u32[144,128]{1,0:T(1,128)}', space=vmem, size = 0x12000, scoped, tag = 'internal scratch']
  %s0 = inlined_call_operand.vmem [shape: f32[2,21,48], index: 0, kind: input, shape index: {}]
  %s1 = inlined_call_operand.vmem [shape: bf16[2,48,32], index: 1, kind: input, shape index: {}]
  %s2 = inlined_call_operand.vmem [shape: bf16[2,48,48], index: 2, kind: input, shape index: {}]
  %s3 = inlined_call_operand.vmem [shape: f32[2,1,48], index: 3, kind: input, shape index: {}]
  %s4 = inlined_call_operand.vmem [shape: bf16[2,48,48], index: 4, kind: input, shape index: {}]
  %s5 = inlined_call_operand.vmem [shape: f32[2,1,48], index: 5, kind: input, shape index: {}]
  %s6 = inlined_call_operand.vmem [shape: bf16[2,32,48], index: 6, kind: input, shape index: {}]
  %s7 = inlined_call_operand.vmem [shape: f32[2,1,48], index: 7, kind: input, shape index: {}]
  %s8 = inlined_call_operand.vmem [shape: bf16[2,32,48], index: 8, kind: input, shape index: {}]
  %s9 = inlined_call_operand.vmem [shape: f32[2,1,48], index: 9, kind: input, shape index: {}]
  %s10 = inlined_call_operand.vmem [shape: bf16[2,2,24,48], index: 10, kind: input, shape index: {}]
  %s11 = inlined_call_operand.vmem [shape: f32[2,1,48], index: 11, kind: input, shape index: {}]
  %s12 = inlined_call_operand.vmem [shape: f32[2,1,48], index: 12, kind: input, shape index: {}]
  %s13 = inlined_call_operand.vmem [shape: f32[2,1,48], index: 13, kind: input, shape index: {}]
  %s14 = inlined_call_operand.vmem [shape: bf16[2,48,64], index: 14, kind: input, shape index: {}]
  %s15 = inlined_call_operand.vmem [shape: f32[2,1,64], index: 15, kind: input, shape index: {}]
  %s16 = inlined_call_operand.vmem [shape: bf16[2,64,48], index: 16, kind: input, shape index: {}]
  %s17 = inlined_call_operand.vmem [shape: f32[2,1,48], index: 17, kind: input, shape index: {}]
  %s18 = inlined_call_operand.vmem [shape: f32[2,1,48], index: 18, kind: input, shape index: {}]
  %s19 = inlined_call_operand.vmem [shape: f32[2,1,48], index: 19, kind: input, shape index: {}]
  %s20 = inlined_call_operand.vmem [shape: bf16[48,24], index: 20, kind: input, shape index: {}]
  %s21 = inlined_call_operand.vmem [shape: f32[1,24], index: 21, kind: input, shape index: {}]
  %s22 = inlined_call_operand.vmem [shape: bf16[24,3], index: 22, kind: input, shape index: {}]
  %s23 = inlined_call_operand.vmem [shape: f32[1,3], index: 23, kind: input, shape index: {}]
  %s24 = inlined_call_operand.vmem [shape: f32[2,21,48], index: 24, kind: output, shape index: {0}]
  %s25 = inlined_call_operand.vmem [shape: f32[2,21,3], index: 25, kind: output, shape index: {1}]
  %s26 = inlined_call_operand.vmem [shape: f32[2,21,48], index: 26, kind: output, shape index: {2}]
  %27 = xla_tuple %s24, %s25, %s26
  %s28 = sld [smem:[#allocation0]]
  $region145: #{tapor_forward.5} parent=0
    _
  %s30 = ssub.s32 1, %s28
  %s31 = scalar_select 0, %s30, %s28
  loop: start=0, step=1, limit=4
  $region2: #{tapor_forward.5} parent=0 // loop_pre_header
    _
  $region3: #{tapor_forward.5} parent=0 // loop_header
    %s33 = sphi 0, %s37
    %p34 = scmp.ge.s32.totalorder %s33, 4
    %s43 = sphi 0, %s45
    %s46 = sphi 0, %s43
    %s47 = sphi 0, %s46
    %s63 = sphi 0, %s47
    %s69 = sphi 0, %s71
    %s72 = sphi 0, %s69
    %s73 = sphi 0, %s72
    %s89 = sphi 0, %s73
    %s93 = sphi 0, %s93
    %s95 = sphi 0, %s93
    %s96 = sphi 0, %s95
    %s110 = sphi 0, %s96
    %s114 = sphi 0, %s114
    %s116 = sphi 0, %s114
    %s117 = sphi 0, %s116
    %s131 = sphi 0, %s117
    %s135 = sphi 0, %s135
    %s137 = sphi 0, %s135
    %s138 = sphi 0, %s137
    %s152 = sphi 0, %s138
    %s156 = sphi 0, %s156
    %s158 = sphi 0, %s156
    %s159 = sphi 0, %s158
    %s173 = sphi 0, %s159
    %s177 = sphi 0, %s177
    %s179 = sphi 0, %s177
    %s180 = sphi 0, %s179
    %s194 = sphi 0, %s180
    %s198 = sphi 0, %s198
    %s200 = sphi 0, %s198
    %s201 = sphi 0, %s200
    %s215 = sphi 0, %s201
    %s219 = sphi 0, %s219
    %s221 = sphi 0, %s219
    %s222 = sphi 0, %s221
    %s236 = sphi 0, %s222
    %s240 = sphi 0, %s240
    %s242 = sphi 0, %s240
    %s243 = sphi 0, %s242
    %s257 = sphi 0, %s243
    %s261 = sphi 0, %s261
    %s263 = sphi 0, %s261
    %s264 = sphi 0, %s263
    %s278 = sphi 0, %s264
    %s282 = sphi 0, %s282
    %s284 = sphi 0, %s282
    %s285 = sphi 0, %s284
    %s299 = sphi 0, %s285
    %s303 = sphi 0, %s303
    %s305 = sphi 0, %s303
    %s306 = sphi 0, %s305
    %s320 = sphi 0, %s306
    %s324 = sphi 0, %s324
    %s326 = sphi 0, %s324
    %s327 = sphi 0, %s326
    %s341 = sphi 0, %s327
    %s345 = sphi 0, %s345
    %s347 = sphi 0, %s345
    %s348 = sphi 0, %s347
    %s362 = sphi 0, %s348
    %s366 = sphi 0, %s366
    %s368 = sphi 0, %s366
    %s369 = sphi 0, %s368
    %s383 = sphi 0, %s369
    %s387 = sphi 0, %s387
    %s389 = sphi 0, %s387
    %s390 = sphi 0, %s389
    %s404 = sphi 0, %s390
    %s408 = sphi 0, %s408
    %s410 = sphi 0, %s408
    %s411 = sphi 0, %s410
    %s425 = sphi 0, %s411
    %s429 = sphi 0, %s429
    %s431 = sphi 0, %s429
    %s432 = sphi 0, %s431
    %s446 = sphi 0, %s432
    %s450 = sphi 0, %s450
    %s452 = sphi 0, %s450
    %s453 = sphi 0, %s452
    %s467 = sphi 0, %s453
    %s471 = sphi 0, %s471
    %s473 = sphi 0, %s471
    %s474 = sphi 0, %s473
    %s488 = sphi 0, %s474
    %s492 = sphi 0, %s492
    %s494 = sphi 0, %s492
    %s495 = sphi 0, %s494
    %s509 = sphi 0, %s495
    %s513 = sphi 0, %s513
    %s515 = sphi 0, %s513
    %s516 = sphi 0, %s515
    %s530 = sphi 0, %s516
    %s534 = sphi 0, %s534
    %s536 = sphi 0, %s534
    %s537 = sphi 0, %s536
    %s551 = sphi 0, %s537
    %s557 = sphi 0, %s559
    %s560 = sphi 0, %s557
    %s561 = sphi 0, %s560
    %s577 = sphi 0, %s561
    %s583 = sphi 0, %s585
    %s586 = sphi 0, %s583
    %s587 = sphi 0, %s586
    %s603 = sphi 0, %s587
    %s609 = sphi 0, %s611
    %s612 = sphi 0, %s609
    %s613 = sphi 0, %s612
    %s629 = sphi 0, %s613
  $region4: #{tapor_forward.5} parent=0 // loop_header_branch
    %36 = sbr.rel (%p34) target = $region8
  $region5: #{tapor_forward.5} parent=0 // loop_body
    %s38 = ssub.s32 %s33, 1
    %s39 = ssub.s32 %s33, 2
    %s40 = sadd.s32 %s33, 1
    %s41 = ssub.s32 %s33, %s40
    %p42 = scmp.eq.s32.totalorder %s41, 0
    %s44 = sadd.s32 %s43, 1
    %s45 = scalar_select %p42, %s43, %s44
    %p48 = pneg %p42
    %p49 = scmp.eq.s32.totalorder %s33, 1
    %p50 = por %p48, %p49
    %p51 = scmp.ne.s32.totalorder %s43, %s46
    %p52 = scmp.eq.s32.totalorder %s33, 0
    %p53 = por %p51, %p52
    %p54 = scmp.ne.s32.totalorder %s43, %s46
    %p55 = scmp.eq.s32.totalorder %s38, 1
    %p56 = por %p54, %p55
    %p57 = scmp.ne.s32.totalorder %s46, %s47
    %p58 = scmp.eq.s32.totalorder %s38, 0
    %p59 = por %p57, %p58
    %p60 = scmp.ne.s32.totalorder %s46, %s47
    %p61 = scmp.eq.s32.totalorder %s39, 1
    %p62 = por %p60, %p61
    %p64 = scmp.ne.s32.totalorder %s47, %s63
    %p65 = scmp.eq.s32.totalorder %s39, 0
    %p66 = por %p64, %p65
    %s67 = ssub.s32 %s33, %s40
    %p68 = scmp.eq.s32.totalorder %s67, 0
    %s70 = sadd.s32 %s69, 1
    %s71 = scalar_select %p68, %s69, %s70
    %p74 = pneg %p68
    %p75 = scmp.eq.s32.totalorder %s33, 1
    %p76 = por %p74, %p75
    %p77 = scmp.ne.s32.totalorder %s69, %s72
    %p78 = scmp.eq.s32.totalorder %s33, 0
    %p79 = por %p77, %p78
    %p80 = scmp.ne.s32.totalorder %s69, %s72
    %p81 = scmp.eq.s32.totalorder %s38, 1
    %p82 = por %p80, %p81
    %p83 = scmp.ne.s32.totalorder %s72, %s73
    %p84 = scmp.eq.s32.totalorder %s38, 0
    %p85 = por %p83, %p84
    %p86 = scmp.ne.s32.totalorder %s72, %s73
    %p87 = scmp.eq.s32.totalorder %s39, 1
    %p88 = por %p86, %p87
    %p90 = scmp.ne.s32.totalorder %s73, %s89
    %p91 = scmp.eq.s32.totalorder %s39, 0
    %p92 = por %p90, %p91
    %s94 = sadd.s32 %s93, 1
    %p97 = scmp.eq.s32.totalorder %s33, 1
    %p98 = scmp.ne.s32.totalorder %s93, %s95
    %p99 = scmp.eq.s32.totalorder %s33, 0
    %p100 = por %p98, %p99
    %p101 = scmp.ne.s32.totalorder %s93, %s95
    %p102 = scmp.eq.s32.totalorder %s38, 1
    %p103 = por %p101, %p102
    %p104 = scmp.ne.s32.totalorder %s95, %s96
    %p105 = scmp.eq.s32.totalorder %s38, 0
    %p106 = por %p104, %p105
    %p107 = scmp.ne.s32.totalorder %s95, %s96
    %p108 = scmp.eq.s32.totalorder %s39, 1
    %p109 = por %p107, %p108
    %p111 = scmp.ne.s32.totalorder %s96, %s110
    %p112 = scmp.eq.s32.totalorder %s39, 0
    %p113 = por %p111, %p112
    %s115 = sadd.s32 %s114, 1
    %p118 = scmp.eq.s32.totalorder %s33, 1
    %p119 = scmp.ne.s32.totalorder %s114, %s116
    %p120 = scmp.eq.s32.totalorder %s33, 0
    %p121 = por %p119, %p120
    %p122 = scmp.ne.s32.totalorder %s114, %s116
    %p123 = scmp.eq.s32.totalorder %s38, 1
    %p124 = por %p122, %p123
    %p125 = scmp.ne.s32.totalorder %s116, %s117
    %p126 = scmp.eq.s32.totalorder %s38, 0
    %p127 = por %p125, %p126
    %p128 = scmp.ne.s32.totalorder %s116, %s117
    %p129 = scmp.eq.s32.totalorder %s39, 1
    %p130 = por %p128, %p129
    %p132 = scmp.ne.s32.totalorder %s117, %s131
    %p133 = scmp.eq.s32.totalorder %s39, 0
    %p134 = por %p132, %p133
    %s136 = sadd.s32 %s135, 1
    %p139 = scmp.eq.s32.totalorder %s33, 1
    %p140 = scmp.ne.s32.totalorder %s135, %s137
    %p141 = scmp.eq.s32.totalorder %s33, 0
    %p142 = por %p140, %p141
    %p143 = scmp.ne.s32.totalorder %s135, %s137
    %p144 = scmp.eq.s32.totalorder %s38, 1
    %p145 = por %p143, %p144
    %p146 = scmp.ne.s32.totalorder %s137, %s138
    %p147 = scmp.eq.s32.totalorder %s38, 0
    %p148 = por %p146, %p147
    %p149 = scmp.ne.s32.totalorder %s137, %s138
    %p150 = scmp.eq.s32.totalorder %s39, 1
    %p151 = por %p149, %p150
    %p153 = scmp.ne.s32.totalorder %s138, %s152
    %p154 = scmp.eq.s32.totalorder %s39, 0
    %p155 = por %p153, %p154
    %s157 = sadd.s32 %s156, 1
    %p160 = scmp.eq.s32.totalorder %s33, 1
    %p161 = scmp.ne.s32.totalorder %s156, %s158
    %p162 = scmp.eq.s32.totalorder %s33, 0
    %p163 = por %p161, %p162
    %p164 = scmp.ne.s32.totalorder %s156, %s158
    %p165 = scmp.eq.s32.totalorder %s38, 1
    %p166 = por %p164, %p165
    %p167 = scmp.ne.s32.totalorder %s158, %s159
    %p168 = scmp.eq.s32.totalorder %s38, 0
    %p169 = por %p167, %p168
    %p170 = scmp.ne.s32.totalorder %s158, %s159
    %p171 = scmp.eq.s32.totalorder %s39, 1
    %p172 = por %p170, %p171
    %p174 = scmp.ne.s32.totalorder %s159, %s173
    %p175 = scmp.eq.s32.totalorder %s39, 0
    %p176 = por %p174, %p175
    %s178 = sadd.s32 %s177, 1
    %p181 = scmp.eq.s32.totalorder %s33, 1
    %p182 = scmp.ne.s32.totalorder %s177, %s179
    %p183 = scmp.eq.s32.totalorder %s33, 0
    %p184 = por %p182, %p183
    %p185 = scmp.ne.s32.totalorder %s177, %s179
    %p186 = scmp.eq.s32.totalorder %s38, 1
    %p187 = por %p185, %p186
    %p188 = scmp.ne.s32.totalorder %s179, %s180
    %p189 = scmp.eq.s32.totalorder %s38, 0
    %p190 = por %p188, %p189
    %p191 = scmp.ne.s32.totalorder %s179, %s180
    %p192 = scmp.eq.s32.totalorder %s39, 1
    %p193 = por %p191, %p192
    %p195 = scmp.ne.s32.totalorder %s180, %s194
    %p196 = scmp.eq.s32.totalorder %s39, 0
    %p197 = por %p195, %p196
    %s199 = sadd.s32 %s198, 1
    %p202 = scmp.eq.s32.totalorder %s33, 1
    %p203 = scmp.ne.s32.totalorder %s198, %s200
    %p204 = scmp.eq.s32.totalorder %s33, 0
    %p205 = por %p203, %p204
    %p206 = scmp.ne.s32.totalorder %s198, %s200
    %p207 = scmp.eq.s32.totalorder %s38, 1
    %p208 = por %p206, %p207
    %p209 = scmp.ne.s32.totalorder %s200, %s201
    %p210 = scmp.eq.s32.totalorder %s38, 0
    %p211 = por %p209, %p210
    %p212 = scmp.ne.s32.totalorder %s200, %s201
    %p213 = scmp.eq.s32.totalorder %s39, 1
    %p214 = por %p212, %p213
    %p216 = scmp.ne.s32.totalorder %s201, %s215
    %p217 = scmp.eq.s32.totalorder %s39, 0
    %p218 = por %p216, %p217
    %s220 = sadd.s32 %s219, 1
    %p223 = scmp.eq.s32.totalorder %s33, 1
    %p224 = scmp.ne.s32.totalorder %s219, %s221
    %p225 = scmp.eq.s32.totalorder %s33, 0
    %p226 = por %p224, %p225
    %p227 = scmp.ne.s32.totalorder %s219, %s221
    %p228 = scmp.eq.s32.totalorder %s38, 1
    %p229 = por %p227, %p228
    %p230 = scmp.ne.s32.totalorder %s221, %s222
    %p231 = scmp.eq.s32.totalorder %s38, 0
    %p232 = por %p230, %p231
    %p233 = scmp.ne.s32.totalorder %s221, %s222
    %p234 = scmp.eq.s32.totalorder %s39, 1
    %p235 = por %p233, %p234
    %p237 = scmp.ne.s32.totalorder %s222, %s236
    %p238 = scmp.eq.s32.totalorder %s39, 0
    %p239 = por %p237, %p238
    %s241 = sadd.s32 %s240, 1
    %p244 = scmp.eq.s32.totalorder %s33, 1
    %p245 = scmp.ne.s32.totalorder %s240, %s242
    %p246 = scmp.eq.s32.totalorder %s33, 0
    %p247 = por %p245, %p246
    %p248 = scmp.ne.s32.totalorder %s240, %s242
    %p249 = scmp.eq.s32.totalorder %s38, 1
    %p250 = por %p248, %p249
    %p251 = scmp.ne.s32.totalorder %s242, %s243
    %p252 = scmp.eq.s32.totalorder %s38, 0
    %p253 = por %p251, %p252
    %p254 = scmp.ne.s32.totalorder %s242, %s243
    %p255 = scmp.eq.s32.totalorder %s39, 1
    %p256 = por %p254, %p255
    %p258 = scmp.ne.s32.totalorder %s243, %s257
    %p259 = scmp.eq.s32.totalorder %s39, 0
    %p260 = por %p258, %p259
    %s262 = sadd.s32 %s261, 1
    %p265 = scmp.eq.s32.totalorder %s33, 1
    %p266 = scmp.ne.s32.totalorder %s261, %s263
    %p267 = scmp.eq.s32.totalorder %s33, 0
    %p268 = por %p266, %p267
    %p269 = scmp.ne.s32.totalorder %s261, %s263
    %p270 = scmp.eq.s32.totalorder %s38, 1
    %p271 = por %p269, %p270
    %p272 = scmp.ne.s32.totalorder %s263, %s264
    %p273 = scmp.eq.s32.totalorder %s38, 0
    %p274 = por %p272, %p273
    %p275 = scmp.ne.s32.totalorder %s263, %s264
    %p276 = scmp.eq.s32.totalorder %s39, 1
    %p277 = por %p275, %p276
    %p279 = scmp.ne.s32.totalorder %s264, %s278
    %p280 = scmp.eq.s32.totalorder %s39, 0
    %p281 = por %p279, %p280
    %s283 = sadd.s32 %s282, 1
    %p286 = scmp.eq.s32.totalorder %s33, 1
    %p287 = scmp.ne.s32.totalorder %s282, %s284
    %p288 = scmp.eq.s32.totalorder %s33, 0
    %p289 = por %p287, %p288
    %p290 = scmp.ne.s32.totalorder %s282, %s284
    %p291 = scmp.eq.s32.totalorder %s38, 1
    %p292 = por %p290, %p291
    %p293 = scmp.ne.s32.totalorder %s284, %s285
    %p294 = scmp.eq.s32.totalorder %s38, 0
    %p295 = por %p293, %p294
    %p296 = scmp.ne.s32.totalorder %s284, %s285
    %p297 = scmp.eq.s32.totalorder %s39, 1
    %p298 = por %p296, %p297
    %p300 = scmp.ne.s32.totalorder %s285, %s299
    %p301 = scmp.eq.s32.totalorder %s39, 0
    %p302 = por %p300, %p301
    %s304 = sadd.s32 %s303, 1
    %p307 = scmp.eq.s32.totalorder %s33, 1
    %p308 = scmp.ne.s32.totalorder %s303, %s305
    %p309 = scmp.eq.s32.totalorder %s33, 0
    %p310 = por %p308, %p309
    %p311 = scmp.ne.s32.totalorder %s303, %s305
    %p312 = scmp.eq.s32.totalorder %s38, 1
    %p313 = por %p311, %p312
    %p314 = scmp.ne.s32.totalorder %s305, %s306
    %p315 = scmp.eq.s32.totalorder %s38, 0
    %p316 = por %p314, %p315
    %p317 = scmp.ne.s32.totalorder %s305, %s306
    %p318 = scmp.eq.s32.totalorder %s39, 1
    %p319 = por %p317, %p318
    %p321 = scmp.ne.s32.totalorder %s306, %s320
    %p322 = scmp.eq.s32.totalorder %s39, 0
    %p323 = por %p321, %p322
    %s325 = sadd.s32 %s324, 1
    %p328 = scmp.eq.s32.totalorder %s33, 1
    %p329 = scmp.ne.s32.totalorder %s324, %s326
    %p330 = scmp.eq.s32.totalorder %s33, 0
    %p331 = por %p329, %p330
    %p332 = scmp.ne.s32.totalorder %s324, %s326
    %p333 = scmp.eq.s32.totalorder %s38, 1
    %p334 = por %p332, %p333
    %p335 = scmp.ne.s32.totalorder %s326, %s327
    %p336 = scmp.eq.s32.totalorder %s38, 0
    %p337 = por %p335, %p336
    %p338 = scmp.ne.s32.totalorder %s326, %s327
    %p339 = scmp.eq.s32.totalorder %s39, 1
    %p340 = por %p338, %p339
    %p342 = scmp.ne.s32.totalorder %s327, %s341
    %p343 = scmp.eq.s32.totalorder %s39, 0
    %p344 = por %p342, %p343
    %s346 = sadd.s32 %s345, 1
    %p349 = scmp.eq.s32.totalorder %s33, 1
    %p350 = scmp.ne.s32.totalorder %s345, %s347
    %p351 = scmp.eq.s32.totalorder %s33, 0
    %p352 = por %p350, %p351
    %p353 = scmp.ne.s32.totalorder %s345, %s347
    %p354 = scmp.eq.s32.totalorder %s38, 1
    %p355 = por %p353, %p354
    %p356 = scmp.ne.s32.totalorder %s347, %s348
    %p357 = scmp.eq.s32.totalorder %s38, 0
    %p358 = por %p356, %p357
    %p359 = scmp.ne.s32.totalorder %s347, %s348
    %p360 = scmp.eq.s32.totalorder %s39, 1
    %p361 = por %p359, %p360
    %p363 = scmp.ne.s32.totalorder %s348, %s362
    %p364 = scmp.eq.s32.totalorder %s39, 0
    %p365 = por %p363, %p364
    %s367 = sadd.s32 %s366, 1
    %p370 = scmp.eq.s32.totalorder %s33, 1
    %p371 = scmp.ne.s32.totalorder %s366, %s368
    %p372 = scmp.eq.s32.totalorder %s33, 0
    %p373 = por %p371, %p372
    %p374 = scmp.ne.s32.totalorder %s366, %s368
    %p375 = scmp.eq.s32.totalorder %s38, 1
    %p376 = por %p374, %p375
    %p377 = scmp.ne.s32.totalorder %s368, %s369
    %p378 = scmp.eq.s32.totalorder %s38, 0
    %p379 = por %p377, %p378
    %p380 = scmp.ne.s32.totalorder %s368, %s369
    %p381 = scmp.eq.s32.totalorder %s39, 1
    %p382 = por %p380, %p381
    %p384 = scmp.ne.s32.totalorder %s369, %s383
    %p385 = scmp.eq.s32.totalorder %s39, 0
    %p386 = por %p384, %p385
    %s388 = sadd.s32 %s387, 1
    %p391 = scmp.eq.s32.totalorder %s33, 1
    %p392 = scmp.ne.s32.totalorder %s387, %s389
    %p393 = scmp.eq.s32.totalorder %s33, 0
    %p394 = por %p392, %p393
    %p395 = scmp.ne.s32.totalorder %s387, %s389
    %p396 = scmp.eq.s32.totalorder %s38, 1
    %p397 = por %p395, %p396
    %p398 = scmp.ne.s32.totalorder %s389, %s390
    %p399 = scmp.eq.s32.totalorder %s38, 0
    %p400 = por %p398, %p399
    %p401 = scmp.ne.s32.totalorder %s389, %s390
    %p402 = scmp.eq.s32.totalorder %s39, 1
    %p403 = por %p401, %p402
    %p405 = scmp.ne.s32.totalorder %s390, %s404
    %p406 = scmp.eq.s32.totalorder %s39, 0
    %p407 = por %p405, %p406
    %s409 = sadd.s32 %s408, 1
    %p412 = scmp.eq.s32.totalorder %s33, 1
    %p413 = scmp.ne.s32.totalorder %s408, %s410
    %p414 = scmp.eq.s32.totalorder %s33, 0
    %p415 = por %p413, %p414
    %p416 = scmp.ne.s32.totalorder %s408, %s410
    %p417 = scmp.eq.s32.totalorder %s38, 1
    %p418 = por %p416, %p417
    %p419 = scmp.ne.s32.totalorder %s410, %s411
    %p420 = scmp.eq.s32.totalorder %s38, 0
    %p421 = por %p419, %p420
    %p422 = scmp.ne.s32.totalorder %s410, %s411
    %p423 = scmp.eq.s32.totalorder %s39, 1
    %p424 = por %p422, %p423
    %p426 = scmp.ne.s32.totalorder %s411, %s425
    %p427 = scmp.eq.s32.totalorder %s39, 0
    %p428 = por %p426, %p427
    %s430 = sadd.s32 %s429, 1
    %p433 = scmp.eq.s32.totalorder %s33, 1
    %p434 = scmp.ne.s32.totalorder %s429, %s431
    %p435 = scmp.eq.s32.totalorder %s33, 0
    %p436 = por %p434, %p435
    %p437 = scmp.ne.s32.totalorder %s429, %s431
    %p438 = scmp.eq.s32.totalorder %s38, 1
    %p439 = por %p437, %p438
    %p440 = scmp.ne.s32.totalorder %s431, %s432
    %p441 = scmp.eq.s32.totalorder %s38, 0
    %p442 = por %p440, %p441
    %p443 = scmp.ne.s32.totalorder %s431, %s432
    %p444 = scmp.eq.s32.totalorder %s39, 1
    %p445 = por %p443, %p444
    %p447 = scmp.ne.s32.totalorder %s432, %s446
    %p448 = scmp.eq.s32.totalorder %s39, 0
    %p449 = por %p447, %p448
    %s451 = sadd.s32 %s450, 1
    %p454 = scmp.eq.s32.totalorder %s33, 1
    %p455 = scmp.ne.s32.totalorder %s450, %s452
    %p456 = scmp.eq.s32.totalorder %s33, 0
    %p457 = por %p455, %p456
    %p458 = scmp.ne.s32.totalorder %s450, %s452
    %p459 = scmp.eq.s32.totalorder %s38, 1
    %p460 = por %p458, %p459
    %p461 = scmp.ne.s32.totalorder %s452, %s453
    %p462 = scmp.eq.s32.totalorder %s38, 0
    %p463 = por %p461, %p462
    %p464 = scmp.ne.s32.totalorder %s452, %s453
    %p465 = scmp.eq.s32.totalorder %s39, 1
    %p466 = por %p464, %p465
    %p468 = scmp.ne.s32.totalorder %s453, %s467
    %p469 = scmp.eq.s32.totalorder %s39, 0
    %p470 = por %p468, %p469
    %s472 = sadd.s32 %s471, 1
    %p475 = scmp.eq.s32.totalorder %s33, 1
    %p476 = scmp.ne.s32.totalorder %s471, %s473
    %p477 = scmp.eq.s32.totalorder %s33, 0
    %p478 = por %p476, %p477
    %p479 = scmp.ne.s32.totalorder %s471, %s473
    %p480 = scmp.eq.s32.totalorder %s38, 1
    %p481 = por %p479, %p480
    %p482 = scmp.ne.s32.totalorder %s473, %s474
    %p483 = scmp.eq.s32.totalorder %s38, 0
    %p484 = por %p482, %p483
    %p485 = scmp.ne.s32.totalorder %s473, %s474
    %p486 = scmp.eq.s32.totalorder %s39, 1
    %p487 = por %p485, %p486
    %p489 = scmp.ne.s32.totalorder %s474, %s488
    %p490 = scmp.eq.s32.totalorder %s39, 0
    %p491 = por %p489, %p490
    %s493 = sadd.s32 %s492, 1
    %p496 = scmp.eq.s32.totalorder %s33, 1
    %p497 = scmp.ne.s32.totalorder %s492, %s494
    %p498 = scmp.eq.s32.totalorder %s33, 0
    %p499 = por %p497, %p498
    %p500 = scmp.ne.s32.totalorder %s492, %s494
    %p501 = scmp.eq.s32.totalorder %s38, 1
    %p502 = por %p500, %p501
    %p503 = scmp.ne.s32.totalorder %s494, %s495
    %p504 = scmp.eq.s32.totalorder %s38, 0
    %p505 = por %p503, %p504
    %p506 = scmp.ne.s32.totalorder %s494, %s495
    %p507 = scmp.eq.s32.totalorder %s39, 1
    %p508 = por %p506, %p507
    %p510 = scmp.ne.s32.totalorder %s495, %s509
    %p511 = scmp.eq.s32.totalorder %s39, 0
    %p512 = por %p510, %p511
    %s514 = sadd.s32 %s513, 1
    %p517 = scmp.eq.s32.totalorder %s33, 1
    %p518 = scmp.ne.s32.totalorder %s513, %s515
    %p519 = scmp.eq.s32.totalorder %s33, 0
    %p520 = por %p518, %p519
    %p521 = scmp.ne.s32.totalorder %s513, %s515
    %p522 = scmp.eq.s32.totalorder %s38, 1
    %p523 = por %p521, %p522
    %p524 = scmp.ne.s32.totalorder %s515, %s516
    %p525 = scmp.eq.s32.totalorder %s38, 0
    %p526 = por %p524, %p525
    %p527 = scmp.ne.s32.totalorder %s515, %s516
    %p528 = scmp.eq.s32.totalorder %s39, 1
    %p529 = por %p527, %p528
    %p531 = scmp.ne.s32.totalorder %s516, %s530
    %p532 = scmp.eq.s32.totalorder %s39, 0
    %p533 = por %p531, %p532
    %s535 = sadd.s32 %s534, 1
    %p538 = scmp.eq.s32.totalorder %s33, 1
    %p539 = scmp.ne.s32.totalorder %s534, %s536
    %p540 = scmp.eq.s32.totalorder %s33, 0
    %p541 = por %p539, %p540
    %p542 = scmp.ne.s32.totalorder %s534, %s536
    %p543 = scmp.eq.s32.totalorder %s38, 1
    %p544 = por %p542, %p543
    %p545 = scmp.ne.s32.totalorder %s536, %s537
    %p546 = scmp.eq.s32.totalorder %s38, 0
    %p547 = por %p545, %p546
    %p548 = scmp.ne.s32.totalorder %s536, %s537
    %p549 = scmp.eq.s32.totalorder %s39, 1
    %p550 = por %p548, %p549
    %p552 = scmp.ne.s32.totalorder %s537, %s551
    %p553 = scmp.eq.s32.totalorder %s39, 0
    %p554 = por %p552, %p553
    %s555 = ssub.s32 %s33, %s40
    %p556 = scmp.eq.s32.totalorder %s555, 0
    %s558 = sadd.s32 %s557, 1
    %s559 = scalar_select %p556, %s557, %s558
    %p562 = pneg %p556
    %p563 = scmp.eq.s32.totalorder %s33, 1
    %p564 = por %p562, %p563
    %p565 = scmp.ne.s32.totalorder %s557, %s560
    %p566 = scmp.eq.s32.totalorder %s33, 0
    %p567 = por %p565, %p566
    %p568 = scmp.ne.s32.totalorder %s557, %s560
    %p569 = scmp.eq.s32.totalorder %s38, 1
    %p570 = por %p568, %p569
    %p571 = scmp.ne.s32.totalorder %s560, %s561
    %p572 = scmp.eq.s32.totalorder %s38, 0
    %p573 = por %p571, %p572
    %p574 = scmp.ne.s32.totalorder %s560, %s561
    %p575 = scmp.eq.s32.totalorder %s39, 1
    %p576 = por %p574, %p575
    %p578 = scmp.ne.s32.totalorder %s561, %s577
    %p579 = scmp.eq.s32.totalorder %s39, 0
    %p580 = por %p578, %p579
    %s581 = ssub.s32 %s33, %s40
    %p582 = scmp.eq.s32.totalorder %s581, 0
    %s584 = sadd.s32 %s583, 1
    %s585 = scalar_select %p582, %s583, %s584
    %p588 = pneg %p582
    %p589 = scmp.eq.s32.totalorder %s33, 1
    %p590 = por %p588, %p589
    %p591 = scmp.ne.s32.totalorder %s583, %s586
    %p592 = scmp.eq.s32.totalorder %s33, 0
    %p593 = por %p591, %p592
    %p594 = scmp.ne.s32.totalorder %s583, %s586
    %p595 = scmp.eq.s32.totalorder %s38, 1
    %p596 = por %p594, %p595
    %p597 = scmp.ne.s32.totalorder %s586, %s587
    %p598 = scmp.eq.s32.totalorder %s38, 0
    %p599 = por %p597, %p598
    %p600 = scmp.ne.s32.totalorder %s586, %s587
    %p601 = scmp.eq.s32.totalorder %s39, 1
    %p602 = por %p600, %p601
    %p604 = scmp.ne.s32.totalorder %s587, %s603
    %p605 = scmp.eq.s32.totalorder %s39, 0
    %p606 = por %p604, %p605
    %s607 = ssub.s32 %s33, %s40
    %p608 = scmp.eq.s32.totalorder %s607, 0
    %s610 = sadd.s32 %s609, 1
    %s611 = scalar_select %p608, %s609, %s610
    %p614 = pneg %p608
    %p615 = scmp.eq.s32.totalorder %s33, 1
    %p616 = por %p614, %p615
    %p617 = scmp.ne.s32.totalorder %s609, %s612
    %p618 = scmp.eq.s32.totalorder %s33, 0
    %p619 = por %p617, %p618
    %p620 = scmp.ne.s32.totalorder %s609, %s612
    %p621 = scmp.eq.s32.totalorder %s38, 1
    %p622 = por %p620, %p621
    %p623 = scmp.ne.s32.totalorder %s612, %s613
    %p624 = scmp.eq.s32.totalorder %s38, 0
    %p625 = por %p623, %p624
    %p626 = scmp.ne.s32.totalorder %s612, %s613
    %p627 = scmp.eq.s32.totalorder %s39, 1
    %p628 = por %p626, %p627
    %p630 = scmp.ne.s32.totalorder %s613, %s629
    %p631 = scmp.eq.s32.totalorder %s39, 0
    %p632 = por %p630, %p631
    %p633 = scmp.le.s32.totalorder 1, %s33
    %p634 = scmp.lt.s32.totalorder %s33, 3
    %p635 = pnand %p633, %p634
    %p636 = pneg %p635
    // Predicated region
    $region9: #{tapor_forward.5} parent=5 // pred_check
      _
    $region10: #{tapor_forward.5} parent=5 // pred_check_branch
      %638 = sbr.rel (%p635) target = $region12
    $region11: #{tapor_forward.5} parent=5 // pred_region
      %s639 = ssub.s32 %s33, 1
      // Predicated region
      $region13: #{tapor_forward.5} parent=11 // pred_check
        %p640 = pneg %p106
      $region14: #{tapor_forward.5} parent=11 // pred_check_branch
        %642 = sbr.rel (%p640) target = $region16
      $region15: #{tapor_forward.5} parent=11 // pred_region
        _
      $region16: #{tapor_forward.5} parent=11 // pred_fallthru
        _
      // Predicated region
      $region17: #{tapor_forward.5} parent=11 // pred_check
        %p643 = pneg %p127
      $region18: #{tapor_forward.5} parent=11 // pred_check_branch
        %645 = sbr.rel (%p643) target = $region20
      $region19: #{tapor_forward.5} parent=11 // pred_region
        _
      $region20: #{tapor_forward.5} parent=11 // pred_fallthru
        _
      // Predicated region
      $region21: #{tapor_forward.5} parent=11 // pred_check
        %p646 = pneg %p148
      $region22: #{tapor_forward.5} parent=11 // pred_check_branch
        %648 = sbr.rel (%p646) target = $region24
      $region23: #{tapor_forward.5} parent=11 // pred_region
        _
      $region24: #{tapor_forward.5} parent=11 // pred_fallthru
        _
      // Predicated region
      $region25: #{tapor_forward.5} parent=11 // pred_check
        %p649 = pneg %p169
      $region26: #{tapor_forward.5} parent=11 // pred_check_branch
        %651 = sbr.rel (%p649) target = $region28
      $region27: #{tapor_forward.5} parent=11 // pred_region
        _
      $region28: #{tapor_forward.5} parent=11 // pred_fallthru
        _
      // Predicated region
      $region29: #{tapor_forward.5} parent=11 // pred_check
        %p652 = pneg %p190
      $region30: #{tapor_forward.5} parent=11 // pred_check_branch
        %654 = sbr.rel (%p652) target = $region32
      $region31: #{tapor_forward.5} parent=11 // pred_region
        _
      $region32: #{tapor_forward.5} parent=11 // pred_fallthru
        _
      // Predicated region
      $region33: #{tapor_forward.5} parent=11 // pred_check
        %p655 = pneg %p211
      $region34: #{tapor_forward.5} parent=11 // pred_check_branch
        %657 = sbr.rel (%p655) target = $region36
      $region35: #{tapor_forward.5} parent=11 // pred_region
        _
      $region36: #{tapor_forward.5} parent=11 // pred_fallthru
        _
      // Predicated region
      $region37: #{tapor_forward.5} parent=11 // pred_check
        %p658 = pneg %p232
      $region38: #{tapor_forward.5} parent=11 // pred_check_branch
        %660 = sbr.rel (%p658) target = $region40
      $region39: #{tapor_forward.5} parent=11 // pred_region
        _
      $region40: #{tapor_forward.5} parent=11 // pred_fallthru
        _
      // Predicated region
      $region41: #{tapor_forward.5} parent=11 // pred_check
        %p661 = pneg %p253
      $region42: #{tapor_forward.5} parent=11 // pred_check_branch
        %663 = sbr.rel (%p661) target = $region44
      $region43: #{tapor_forward.5} parent=11 // pred_region
        _
      $region44: #{tapor_forward.5} parent=11 // pred_fallthru
        _
      // Predicated region
      $region45: #{tapor_forward.5} parent=11 // pred_check
        %p664 = pneg %p274
      $region46: #{tapor_forward.5} parent=11 // pred_check_branch
        %666 = sbr.rel (%p664) target = $region48
      $region47: #{tapor_forward.5} parent=11 // pred_region
        _
      $region48: #{tapor_forward.5} parent=11 // pred_fallthru
        _
      // Predicated region
      $region49: #{tapor_forward.5} parent=11 // pred_check
        %p667 = pneg %p295
      $region50: #{tapor_forward.5} parent=11 // pred_check_branch
        %669 = sbr.rel (%p667) target = $region52
      $region51: #{tapor_forward.5} parent=11 // pred_region
        _
      $region52: #{tapor_forward.5} parent=11 // pred_fallthru
        _
      // Predicated region
      $region53: #{tapor_forward.5} parent=11 // pred_check
        %p670 = pneg %p316
      $region54: #{tapor_forward.5} parent=11 // pred_check_branch
        %672 = sbr.rel (%p670) target = $region56
      $region55: #{tapor_forward.5} parent=11 // pred_region
        _
      $region56: #{tapor_forward.5} parent=11 // pred_fallthru
        _
      // Predicated region
      $region57: #{tapor_forward.5} parent=11 // pred_check
        %p673 = pneg %p337
      $region58: #{tapor_forward.5} parent=11 // pred_check_branch
        %675 = sbr.rel (%p673) target = $region60
      $region59: #{tapor_forward.5} parent=11 // pred_region
        _
      $region60: #{tapor_forward.5} parent=11 // pred_fallthru
        _
      // Predicated region
      $region61: #{tapor_forward.5} parent=11 // pred_check
        %p676 = pneg %p358
      $region62: #{tapor_forward.5} parent=11 // pred_check_branch
        %678 = sbr.rel (%p676) target = $region64
      $region63: #{tapor_forward.5} parent=11 // pred_region
        _
      $region64: #{tapor_forward.5} parent=11 // pred_fallthru
        _
      // Predicated region
      $region65: #{tapor_forward.5} parent=11 // pred_check
        %p679 = pneg %p379
      $region66: #{tapor_forward.5} parent=11 // pred_check_branch
        %681 = sbr.rel (%p679) target = $region68
      $region67: #{tapor_forward.5} parent=11 // pred_region
        _
      $region68: #{tapor_forward.5} parent=11 // pred_fallthru
        _
      // Predicated region
      $region69: #{tapor_forward.5} parent=11 // pred_check
        %p682 = pneg %p400
      $region70: #{tapor_forward.5} parent=11 // pred_check_branch
        %684 = sbr.rel (%p682) target = $region72
      $region71: #{tapor_forward.5} parent=11 // pred_region
        _
      $region72: #{tapor_forward.5} parent=11 // pred_fallthru
        _
      // Predicated region
      $region73: #{tapor_forward.5} parent=11 // pred_check
        %p685 = pneg %p421
      $region74: #{tapor_forward.5} parent=11 // pred_check_branch
        %687 = sbr.rel (%p685) target = $region76
      $region75: #{tapor_forward.5} parent=11 // pred_region
        _
      $region76: #{tapor_forward.5} parent=11 // pred_fallthru
        _
      // Predicated region
      $region77: #{tapor_forward.5} parent=11 // pred_check
        %p688 = pneg %p442
      $region78: #{tapor_forward.5} parent=11 // pred_check_branch
        %690 = sbr.rel (%p688) target = $region80
      $region79: #{tapor_forward.5} parent=11 // pred_region
        _
      $region80: #{tapor_forward.5} parent=11 // pred_fallthru
        _
      // Predicated region
      $region81: #{tapor_forward.5} parent=11 // pred_check
        %p691 = pneg %p463
      $region82: #{tapor_forward.5} parent=11 // pred_check_branch
        %693 = sbr.rel (%p691) target = $region84
      $region83: #{tapor_forward.5} parent=11 // pred_region
        _
      $region84: #{tapor_forward.5} parent=11 // pred_fallthru
        _
      // Predicated region
      $region85: #{tapor_forward.5} parent=11 // pred_check
        %p694 = pneg %p484
      $region86: #{tapor_forward.5} parent=11 // pred_check_branch
        %696 = sbr.rel (%p694) target = $region88
      $region87: #{tapor_forward.5} parent=11 // pred_region
        _
      $region88: #{tapor_forward.5} parent=11 // pred_fallthru
        _
      // Predicated region
      $region89: #{tapor_forward.5} parent=11 // pred_check
        %p697 = pneg %p505
      $region90: #{tapor_forward.5} parent=11 // pred_check_branch
        %699 = sbr.rel (%p697) target = $region92
      $region91: #{tapor_forward.5} parent=11 // pred_region
        _
      $region92: #{tapor_forward.5} parent=11 // pred_fallthru
        _
      // Predicated region
      $region93: #{tapor_forward.5} parent=11 // pred_check
        %p700 = pneg %p526
      $region94: #{tapor_forward.5} parent=11 // pred_check_branch
        %702 = sbr.rel (%p700) target = $region96
      $region95: #{tapor_forward.5} parent=11 // pred_region
        _
      $region96: #{tapor_forward.5} parent=11 // pred_fallthru
        _
      // Predicated region
      $region97: #{tapor_forward.5} parent=11 // pred_check
        %p703 = pneg %p547
      $region98: #{tapor_forward.5} parent=11 // pred_check_branch
        %705 = sbr.rel (%p703) target = $region100
      $region99: #{tapor_forward.5} parent=11 // pred_region
        _
      $region100: #{tapor_forward.5} parent=11 // pred_fallthru
        _
    $region12: #{tapor_forward.5} parent=5 // pred_fallthru
      _
    %p706 = scmp.lt.s32.totalorder %s33, 2
    // Predicated region
    $region101: #{tapor_forward.5} parent=5 // pred_check
      %p707 = pneg %p706
    $region102: #{tapor_forward.5} parent=5 // pred_check_branch
      %709 = sbr.rel (%p707) target = $region104
    $region103: #{tapor_forward.5} parent=5 // pred_region
      // Predicated region
      $region105: #{tapor_forward.5} parent=103 // pred_check
        %p710 = pneg %p53
      $region106: #{tapor_forward.5} parent=103 // pred_check_branch
        %712 = sbr.rel (%p710) target = $region108
      $region107: #{tapor_forward.5} parent=103 // pred_region
        %p713 = scmp.lt.s32.totalorder %s33, 1
        %s714 = scalar_select %p713, %s33, 1
        %s715 = smul.addr %s714, 3
        %s716 = smul.addr %s715, 8
        %s717 = scalar_lea.vmem %s0, %s716
      $region108: #{tapor_forward.5} parent=103 // pred_fallthru
        _
      // Predicated region
      $region109: #{tapor_forward.5} parent=103 // pred_check
        %p718 = pneg %p79
      $region110: #{tapor_forward.5} parent=103 // pred_check_branch
        %720 = sbr.rel (%p718) target = $region112
      $region111: #{tapor_forward.5} parent=103 // pred_region
        %p721 = scmp.lt.s32.totalorder %s33, 1
        %s722 = scalar_select %p721, %s33, 1
        %s723 = smul.addr %s722, 6
        %s724 = smul.addr %s723, 4
        %s725 = scalar_lea.vmem %s1, %s724
      $region112: #{tapor_forward.5} parent=103 // pred_fallthru
        _
    $region104: #{tapor_forward.5} parent=5 // pred_fallthru
      _
    %p726 = scmp.le.s32.totalorder 1, %s33
    %p727 = scmp.lt.s32.totalorder %s33, 3
    %p728 = pnand %p726, %p727
    %p729 = pneg %p728
    // Predicated region
    $region113: #{tapor_forward.5} parent=5 // pred_check
      _
    $region114: #{tapor_forward.5} parent=5 // pred_check_branch
      %731 = sbr.rel (%p728) target = $region116
    $region115: #{tapor_forward.5} parent=5 // pred_region
      %s732 = ssub.s32 %s33, 1
      %p733 = scmp.lt.s32.totalorder %s38, 1
      %s734 = scalar_select %p733, %s38, 1
      %s735 = smul.addr %s734, 3
      %s736 = smul.addr %s735, 8
      %s737 = scalar_lea.vmem %s0, %s736
      %p738 = pneg %p59
      %p739 = pneg %p56
      %p740 = scmp.lt.s32.totalorder %s38, 1
      %s741 = scalar_select %p740, %s38, 1
      %s742 = smul.addr %s741, 6
      %s743 = smul.addr %s742, 4
      %s744 = scalar_lea.vmem %s1, %s743
      %p745 = pneg %p85
      %p746 = pneg %p82
      %p747 = pneg %p106
      %p748 = pneg %p103
      %p749 = pneg %p127
      %p750 = pneg %p124
      %p751 = pneg %p148
      %p752 = pneg %p145
      %p753 = pneg %p169
      %p754 = pneg %p166
      %p755 = pneg %p190
      %p756 = pneg %p187
      %p757 = pneg %p211
      %p758 = pneg %p208
      %p759 = pneg %p232
      %p760 = pneg %p229
      %p761 = pneg %p253
      %p762 = pneg %p250
      %p763 = pneg %p274
      %p764 = pneg %p271
      %p765 = pneg %p295
      %p766 = pneg %p292
      %p767 = pneg %p316
      %p768 = pneg %p313
      %p769 = pneg %p337
      %p770 = pneg %p334
      %p771 = pneg %p358
      %p772 = pneg %p355
      %p773 = pneg %p379
      %p774 = pneg %p376
      %p775 = pneg %p400
      %p776 = pneg %p397
      %p777 = pneg %p421
      %p778 = pneg %p418
      %p779 = pneg %p442
      %p780 = pneg %p439
      %p781 = pneg %p463
      %p782 = pneg %p460
      %p783 = pneg %p484
      %p784 = pneg %p481
      %p785 = pneg %p505
      %p786 = pneg %p502
      %p787 = pneg %p526
      %p788 = pneg %p523
      %p789 = pneg %p547
      %p790 = pneg %p544
      %p791 = pneg %p573
      %p792 = pneg %p570
      %p793 = scmp.lt.s32.totalorder %s38, 1
      %s794 = scalar_select %p793, %s38, 1
      %s795 = smul.addr %s794, 3
      %s796 = smul.addr %s795, 8
      %s797 = scalar_lea.vmem %s24, %s796
      %p798 = pneg %p599
      %p799 = pneg %p596
      %p800 = scmp.lt.s32.totalorder %s38, 1
      %s801 = scalar_select %p800, %s38, 1
      %s802 = smul.addr %s801, 3
      %s803 = smul.addr %s802, 8
      %s804 = scalar_lea.vmem %s25, %s803
      %p805 = pneg %p625
      %p806 = pneg %p622
      %p807 = scmp.lt.s32.totalorder %s38, 1
      %s808 = scalar_select %p807, %s38, 1
      %s809 = smul.addr %s808, 3
      %s810 = smul.addr %s809, 8
      %s811 = scalar_lea.vmem %s26, %s810
      %p812 = scmp.lt.s32.totalorder %s38, 1
      %s813 = scalar_select %p812, %s38, 1
      %s814 = smul.addr %s813, 3
      %s815 = smul.addr %s814, 8
      %s816 = scalar_lea.vmem %s0, %s815
      %p817 = scmp.lt.s32.totalorder %s38, 1
      %s818 = scalar_select %p817, %s38, 1
      %s819 = smul.addr %s818, 6
      %s820 = smul.addr %s819, 4
      %s821 = scalar_lea.vmem %s1, %s820
      %p822 = scmp.lt.s32.totalorder %s38, 1
      %s823 = scalar_select %p822, %s38, 1
      %s824 = smul.addr %s823, 3
      %s825 = smul.addr %s824, 8
      %s826 = scalar_lea.vmem %s24, %s825
      %p827 = scmp.lt.s32.totalorder %s38, 1
      %s828 = scalar_select %p827, %s38, 1
      %s829 = smul.addr %s828, 3
      %s830 = smul.addr %s829, 8
      %s831 = scalar_lea.vmem %s25, %s830
      %p832 = scmp.lt.s32.totalorder %s38, 1
      %s833 = scalar_select %p832, %s38, 1
      %s834 = smul.addr %s833, 3
      %s835 = smul.addr %s834, 8
      %s836 = scalar_lea.vmem %s26, %s835
      %v838 = vld [vmem:[%s816] sm:$0xff]
      %v839 = vld [vmem:[%s816 + $0x8] sm:$0xff]
      %v840 = vld [vmem:[%s816 + $0x10] sm:$0x1f]
      %v841 = vpack.c.bf16 %v839, %v838
      %v842 = vpack.c.bf16 %v840, %v840
      %v843 = vld [vmem:[%s2] sm:$0xf]
      %v844 = vld [vmem:[%s2 + $0x4] sm:$0xf]
      %v845 = vld [vmem:[%s2 + $0x8] sm:$0xf]
      %v846 = vld [vmem:[%s2 + $0xc] sm:$0xf]
      %v847 = vld [vmem:[%s2 + $0x10] sm:$0xf]
      %v848 = vld [vmem:[%s2 + $0x14] sm:$0xf]
      %v849 = vld [vmem:[%s3] sm:$0x1]
      %v851 = vlaneseq
      %v852 = vshrl.u32 %v851, 7
      %v853 = vsub.s32 0, %v852
      %v854 = vrot.slane %v849, %v853
      %v862 = vunpack.c.l.b16 %v843
      %v863 = vunpack.c.l.b16 %v844
      %v864 = vunpack.c.l.b16 %v845
      %v865 = vunpack.c.l.b16 %v846
      %v866 = vunpack.c.l.b16 %v847
      %v867 = vunpack.c.l.b16 %v848
      %v868 = vpack.c.b16 %v863, %v862
      %v869 = vpack.c.b16 %v865, %v864
      %v870 = vpack.c.b16 %v867, %v866
      %vm874 = vcmask 392192
      %v876 = vsel %vm874, %v841, 0
      %v879 = vsel %vm874, %v842, 0
      %881 = vmatprep.subr.bf16.mxu0 0
      %882 = vmatpush1.bf16.msra.mxu0 %v868
      %883 = vmatprep.subr.bf16.mxu0 0
      %884 = vmatpush1.bf16.msra.mxu0 %v869
      %885 = vmatprep.subr.bf16.mxu0 0
      %886 = vmatpush1.bf16.msra.mxu0 %v870
      %887 = vmatprep.subr.bf16.mxu0 0
      %888 = vmatpush1.bf16.msra.mxu0 0
      %889 = vmatprep.subr.bf16.mxu0 0
      %890 = vmatpush1.bf16.msra.mxu0 0
      %891 = vmatprep.subr.bf16.mxu0 0
      %892 = vmatpush1.bf16.msra.mxu0 0
      %893 = vmatprep.subr.bf16.mxu0 0
      %894 = vmatpush1.bf16.msra.mxu0 0
      %895 = vmatprep.subr.bf16.mxu0 0
      %896 = vmatpush1.bf16.msra.mxu0 0
      %897 = vmatprep.subr.bf16.mxu0 0
      %898 = vmatpush1.bf16.msra.mxu0 0
      %899 = vmatprep.subr.bf16.mxu0 0
      %900 = vmatpush1.bf16.msra.mxu0 0
      %901 = vmatprep.subr.bf16.mxu0 0
      %902 = vmatpush1.bf16.msra.mxu0 0
      %903 = vmatprep.subr.bf16.mxu0 0
      %904 = vmatpush1.bf16.msra.mxu0 0
      %905 = vmatprep.subr.bf16.mxu0 0
      %906 = vmatpush1.bf16.msra.mxu0 0
      %907 = vmatprep.subr.bf16.mxu0 0
      %908 = vmatpush1.bf16.msra.mxu0 0
      %909 = vmatprep.subr.bf16.mxu0 0
      %910 = vmatpush1.bf16.msra.mxu0 0
      %911 = vmatprep.subr.bf16.mxu0 0
      %912 = vmatpush1.bf16.msra.mxu0 0
      %913 = vmatprep.mubr.bf16.mxu0 0
      %914 = vmatmul.mubr.bf16.gmra.mrb[0].mxu0 %v876
      %v915 = vpop.f32.mrb[0].mxu0
      %v916 = vadd.f32 %v854, %v915
      %v917 = vpop.f32.mrb[0].mxu0
      %v918 = vpop.f32.mrb[0].mxu0
      %v919 = vadd.f32 %v854, %v918
      %v920 = vpop.f32.mrb[0].mxu0
      %921 = vmatprep.mubr.bf16.mxu0 0
      %922 = vmatmul.mubr.bf16.gmra.mrb[0].mxu0 %v879
      %v923 = vpop.f32.mrb[0].mxu0
      %v924 = vadd.f32 %v854, %v923
      %v925 = vpop.f32.mrb[0].mxu0
      %v926 = vpop.f32.mrb[0].mxu0
      %v927 = vpop.f32.mrb[0].mxu0
      %928 = vdwg.mxu0
      %v929 = vmax.f32 %v916, 0.0
      %v930 = vmax.f32 %v919, 0.0
      %v931 = vmax.f32 %v924, 0.0
      %v932 = vadd.f32 %v929, %v838
      %v933 = vadd.f32 %v930, %v839
      %v934 = vadd.f32 %v931, %v840
      %v935 = vpack.c.bf16 %v933, %v932
      %v936 = vpack.c.bf16 %v934, %v934
      %s937 = scalar_lea.vmem %s2, 24
      %v938 = vld [vmem:[%s937] sm:$0xf]
      %v939 = vld [vmem:[%s937 + $0x4] sm:$0xf]
      %v940 = vld [vmem:[%s937 + $0x8] sm:$0xf]
      %v941 = vld [vmem:[%s937 + $0xc] sm:$0xf]
      %v942 = vld [vmem:[%s937 + $0x10] sm:$0xf]
      %v943 = vld [vmem:[%s937 + $0x14] sm:$0xf]
      %s944 = scalar_lea.vmem %s3, 1
      %v945 = vld [vmem:[%s944] sm:$0x1]
      %v947 = vlaneseq
      %v948 = vshrl.u32 %v947, 7
      %v949 = vsub.s32 0, %v948
      %v950 = vrot.slane %v945, %v949
      %v958 = vunpack.c.l.b16 %v938
      %v959 = vunpack.c.l.b16 %v939
      %v960 = vunpack.c.l.b16 %v940
      %v961 = vunpack.c.l.b16 %v941
      %v962 = vunpack.c.l.b16 %v942
      %v963 = vunpack.c.l.b16 %v943
      %v964 = vpack.c.b16 %v959, %v958
      %v965 = vpack.c.b16 %v961, %v960
      %v966 = vpack.c.b16 %v963, %v962
      %v971 = vsel %vm874, %v935, 0
      %v974 = vsel %vm874, %v936, 0
      %976 = vmatprep.subr.bf16.mxu0 0
      %977 = vmatpush1.bf16.msra.mxu0 %v964
      %978 = vmatprep.subr.bf16.mxu0 0
      %979 = vmatpush1.bf16.msra.mxu0 %v965
      %980 = vmatprep.subr.bf16.mxu0 0
      %981 = vmatpush1.bf16.msra.mxu0 %v966
      %982 = vmatprep.subr.bf16.mxu0 0
      %983 = vmatpush1.bf16.msra.mxu0 0
      %984 = vmatprep.subr.bf16.mxu0 0
      %985 = vmatpush1.bf16.msra.mxu0 0
      %986 = vmatprep.subr.bf16.mxu0 0
      %987 = vmatpush1.bf16.msra.mxu0 0
      %988 = vmatprep.subr.bf16.mxu0 0
      %989 = vmatpush1.bf16.msra.mxu0 0
      %990 = vmatprep.subr.bf16.mxu0 0
      %991 = vmatpush1.bf16.msra.mxu0 0
      %992 = vmatprep.subr.bf16.mxu0 0
      %993 = vmatpush1.bf16.msra.mxu0 0
      %994 = vmatprep.subr.bf16.mxu0 0
      %995 = vmatpush1.bf16.msra.mxu0 0
      %996 = vmatprep.subr.bf16.mxu0 0
      %997 = vmatpush1.bf16.msra.mxu0 0
      %998 = vmatprep.subr.bf16.mxu0 0
      %999 = vmatpush1.bf16.msra.mxu0 0
      %1000 = vmatprep.subr.bf16.mxu0 0
      %1001 = vmatpush1.bf16.msra.mxu0 0
      %1002 = vmatprep.subr.bf16.mxu0 0
      %1003 = vmatpush1.bf16.msra.mxu0 0
      %1004 = vmatprep.subr.bf16.mxu0 0
      %1005 = vmatpush1.bf16.msra.mxu0 0
      %1006 = vmatprep.subr.bf16.mxu0 0
      %1007 = vmatpush1.bf16.msra.mxu0 0
      %1008 = vmatprep.mubr.bf16.mxu0 0
      %1009 = vmatmul.mubr.bf16.gmra.mrb[0].mxu0 %v971
      %v1010 = vpop.f32.mrb[0].mxu0
      %v1011 = vadd.f32 %v950, %v1010
      %v1012 = vpop.f32.mrb[0].mxu0
      %v1013 = vpop.f32.mrb[0].mxu0
      %v1014 = vadd.f32 %v950, %v1013
      %v1015 = vpop.f32.mrb[0].mxu0
      %1016 = vmatprep.mubr.bf16.mxu0 0
      %1017 = vmatmul.mubr.bf16.gmra.mrb[0].mxu0 %v974
      %v1018 = vpop.f32.mrb[0].mxu0
      %v1019 = vadd.f32 %v950, %v1018
      %v1020 = vpop.f32.mrb[0].mxu0
      %v1021 = vpop.f32.mrb[0].mxu0
      %v1022 = vpop.f32.mrb[0].mxu0
      %1023 = vdwg.mxu0
      %v1024 = vmax.f32 %v1011, 0.0
      %v1025 = vmax.f32 %v1014, 0.0
      %v1026 = vmax.f32 %v1019, 0.0
      %v1027 = vadd.f32 %v1024, %v932
      %v1028 = vadd.f32 %v1025, %v933
      %v1029 = vadd.f32 %v1026, %v934
      %1030 = vst.msk [vmem:[%s826] sm:$0xff] %vm874, %v1027
      %1031 = vst.msk [vmem:[%s826 + $0x8] sm:$0xff] %vm874, %v1028
      %vm1032 = vcmask 389120
      %1033 = vst.msk [vmem:[%s826 + $0x10] sm:$0x1f] %vm1032, %v1029
      %v1034 = vld [vmem:[%s821] sm:$0xf]
      %v1035 = vld [vmem:[%s821 + $0x4] sm:$0xf]
      %v1036 = vld [vmem:[%s821 + $0x8] sm:$0xf]
      %v1037 = vld [vmem:[%s821 + $0xc] sm:$0xf]
      %v1038 = vld [vmem:[%s821 + $0x10] sm:$0xf]
      %v1039 = vld [vmem:[%s821 + $0x14] sm:$0xf]
      %v1040 = vpack.c.bf16 %v1028, %v1027
      %v1041 = vpack.c.bf16 %v1029, %v1029
      %v1042 = vld [vmem:[%s4] sm:$0xf]
      %v1043 = vld [vmem:[%s4 + $0x4] sm:$0xf]
      %v1044 = vld [vmem:[%s4 + $0x8] sm:$0xf]
      %v1045 = vld [vmem:[%s4 + $0xc] sm:$0xf]
      %v1046 = vld [vmem:[%s4 + $0x10] sm:$0xf]
      %v1047 = vld [vmem:[%s4 + $0x14] sm:$0xf]
      %v1048 = vld [vmem:[%s5] sm:$0x1]
      %v1050 = vlaneseq
      %v1051 = vshrl.u32 %v1050, 7
      %v1052 = vsub.s32 0, %v1051
      %v1053 = vrot.slane %v1048, %v1052
      %v1061 = vunpack.c.l.b16 %v1042
      %v1062 = vunpack.c.l.b16 %v1043
      %v1063 = vunpack.c.l.b16 %v1044
      %v1064 = vunpack.c.l.b16 %v1045
      %v1065 = vunpack.c.l.b16 %v1046
      %v1066 = vunpack.c.l.b16 %v1047
      %v1067 = vpack.c.b16 %v1062, %v1061
      %v1068 = vpack.c.b16 %v1064, %v1063
      %v1069 = vpack.c.b16 %v1066, %v1065
      %v1074 = vsel %vm874, %v1040, 0
      %v1077 = vsel %vm874, %v1041, 0
      %1079 = vmatprep.subr.bf16.mxu0 0
      %1080 = vmatpush1.bf16.msra.mxu0 %v1067
      %1081 = vmatprep.subr.bf16.mxu0 0
      %1082 = vmatpush1.bf16.msra.mxu0 %v1068
      %1083 = vmatprep.subr.bf16.mxu0 0
      %1084 = vmatpush1.bf16.msra.mxu0 %v1069
      %1085 = vmatprep.subr.bf16.mxu0 0
      %1086 = vmatpush1.bf16.msra.mxu0 0
      %1087 = vmatprep.subr.bf16.mxu0 0
      %1088 = vmatpush1.bf16.msra.mxu0 0
      %1089 = vmatprep.subr.bf16.mxu0 0
      %1090 = vmatpush1.bf16.msra.mxu0 0
      %1091 = vmatprep.subr.bf16.mxu0 0
      %1092 = vmatpush1.bf16.msra.mxu0 0
      %1093 = vmatprep.subr.bf16.mxu0 0
      %1094 = vmatpush1.bf16.msra.mxu0 0
      %1095 = vmatprep.subr.bf16.mxu0 0
      %1096 = vmatpush1.bf16.msra.mxu0 0
      %1097 = vmatprep.subr.bf16.mxu0 0
      %1098 = vmatpush1.bf16.msra.mxu0 0
      %1099 = vmatprep.subr.bf16.mxu0 0
      %1100 = vmatpush1.bf16.msra.mxu0 0
      %1101 = vmatprep.subr.bf16.mxu0 0
      %1102 = vmatpush1.bf16.msra.mxu0 0
      %1103 = vmatprep.subr.bf16.mxu0 0
      %1104 = vmatpush1.bf16.msra.mxu0 0
      %1105 = vmatprep.subr.bf16.mxu0 0
      %1106 = vmatpush1.bf16.msra.mxu0 0
      %1107 = vmatprep.subr.bf16.mxu0 0
      %1108 = vmatpush1.bf16.msra.mxu0 0
      %1109 = vmatprep.subr.bf16.mxu0 0
      %1110 = vmatpush1.bf16.msra.mxu0 0
      %1111 = vmatprep.mubr.bf16.mxu0 0
      %1112 = vmatmul.mubr.bf16.gmra.mrb[0].mxu0 %v1074
      %v1113 = vpop.f32.mrb[0].mxu0
      %v1114 = vadd.f32 %v1053, %v1113
      %v1115 = vpop.f32.mrb[0].mxu0
      %v1116 = vpop.f32.mrb[0].mxu0
      %v1117 = vadd.f32 %v1053, %v1116
      %v1118 = vpop.f32.mrb[0].mxu0
      %1119 = vmatprep.mubr.bf16.mxu0 0
      %1120 = vmatmul.mubr.bf16.gmra.mrb[0].mxu0 %v1077
      %v1121 = vpop.f32.mrb[0].mxu0
      %v1122 = vadd.f32 %v1053, %v1121
      %v1123 = vpop.f32.mrb[0].mxu0
      %v1124 = vpop.f32.mrb[0].mxu0
      %v1125 = vpop.f32.mrb[0].mxu0
      %1126 = vdwg.mxu0
      %v1127 = vld [vmem:[%s6] sm:$0xf]
      %v1128 = vld [vmem:[%s6 + $0x4] sm:$0xf]
      %v1129 = vld [vmem:[%s6 + $0x8] sm:$0xf]
      %v1130 = vld [vmem:[%s6 + $0xc] sm:$0xf]
      %v1131 = vld [vmem:[%s7] sm:$0x1]
      %v1133 = vlaneseq
      %v1134 = vshrl.u32 %v1133, 7
      %v1135 = vsub.s32 0, %v1134
      %v1136 = vrot.slane %v1131, %v1135
      %v1144 = vunpack.c.l.b16 %v1034
      %v1145 = vunpack.c.l.b16 %v1035
      %v1146 = vunpack.c.l.b16 %v1036
      %v1147 = vunpack.c.l.b16 %v1037
      %v1148 = vunpack.c.l.b16 %v1038
      %v1149 = vunpack.c.l.b16 %v1039
      %v1150 = vpack.c.b16 %v1145, %v1144
      %v1151 = vpack.c.b16 %v1147, %v1146
      %v1152 = vpack.c.b16 %v1149, %v1148
      %v1157 = vunpack.c.l.b16 %v1127
      %v1158 = vunpack.c.l.b16 %v1128
      %v1159 = vunpack.c.l.b16 %v1129
      %v1160 = vunpack.c.l.b16 %v1130
      %v1161 = vpack.c.b16 %v1158, %v1157
      %v1162 = vpack.c.b16 %v1160, %v1159
      %vm1165 = vcmask 261120
      %v1167 = vsel %vm1165, %v1150, 0
      %v1170 = vsel %vm1165, %v1151, 0
      %v1173 = vsel %vm1165, %v1152, 0
      %1175 = vmatprep.subr.bf16.mxu0 0
      %1176 = vmatpush1.bf16.msra.mxu0 %v1161
      %1177 = vmatprep.subr.bf16.mxu0 0
      %1178 = vmatpush1.bf16.msra.mxu0 %v1162
      %1179 = vmatprep.subr.bf16.mxu0 0
      %1180 = vmatpush1.bf16.msra.mxu0 0
      %1181 = vmatprep.subr.bf16.mxu0 0
      %1182 = vmatpush1.bf16.msra.mxu0 0
      %1183 = vmatprep.subr.bf16.mxu0 0
      %1184 = vmatpush1.bf16.msra.mxu0 0
      %1185 = vmatprep.subr.bf16.mxu0 0
      %1186 = vmatpush1.bf16.msra.mxu0 0
      %1187 = vmatprep.subr.bf16.mxu0 0
      %1188 = vmatpush1.bf16.msra.mxu0 0
      %1189 = vmatprep.subr.bf16.mxu0 0
      %1190 = vmatpush1.bf16.msra.mxu0 0
      %1191 = vmatprep.subr.bf16.mxu0 0
      %1192 = vmatpush1.bf16.msra.mxu0 0
      %1193 = vmatprep.subr.bf16.mxu0 0
      %1194 = vmatpush1.bf16.msra.mxu0 0
      %1195 = vmatprep.subr.bf16.mxu0 0
      %1196 = vmatpush1.bf16.msra.mxu0 0
      %1197 = vmatprep.subr.bf16.mxu0 0
      %1198 = vmatpush1.bf16.msra.mxu0 0
      %1199 = vmatprep.subr.bf16.mxu0 0
      %1200 = vmatpush1.bf16.msra.mxu0 0
      %1201 = vmatprep.subr.bf16.mxu0 0
      %1202 = vmatpush1.bf16.msra.mxu0 0
      %1203 = vmatprep.subr.bf16.mxu0 0
      %1204 = vmatpush1.bf16.msra.mxu0 0
      %1205 = vmatprep.subr.bf16.mxu0 0
      %1206 = vmatpush1.bf16.msra.mxu0 0
      %1207 = vmatprep.mubr.bf16.mxu0 0
      %1208 = vmatmul.mubr.bf16.gmra.mrb[0].mxu0 %v1167
      %v1209 = vpop.f32.mrb[0].mxu0
      %v1210 = vadd.f32 %v1136, %v1209
      %v1211 = vpop.f32.mrb[0].mxu0
      %v1212 = vpop.f32.mrb[0].mxu0
      %v1213 = vadd.f32 %v1136, %v1212
      %v1214 = vpop.f32.mrb[0].mxu0
      %1215 = vmatprep.mubr.bf16.mxu0 0
      %1216 = vmatmul.mubr.bf16.gmra.mrb[0].mxu0 %v1170
      %v1217 = vpop.f32.mrb[0].mxu0
      %v1218 = vadd.f32 %v1136, %v1217
      %v1219 = vpop.f32.mrb[0].mxu0
      %v1220 = vpop.f32.mrb[0].mxu0
      %v1221 = vadd.f32 %v1136, %v1220
      %v1222 = vpop.f32.mrb[0].mxu0
      %1223 = vmatprep.mubr.bf16.mxu0 0
      %1224 = vmatmul.mubr.bf16.gmra.mrb[0].mxu0 %v1173
      %v1225 = vpop.f32.mrb[0].mxu0
      %v1226 = vadd.f32 %v1136, %v1225
      %v1227 = vpop.f32.mrb[0].mxu0
      %v1228 = vpop.f32.mrb[0].mxu0
      %v1229 = vadd.f32 %v1136, %v1228
      %v1230 = vpop.f32.mrb[0].mxu0
      %1231 = vdwg.mxu0
      %v1232 = vld [vmem:[%s8] sm:$0xf]
      %v1233 = vld [vmem:[%s8 + $0x4] sm:$0xf]
      %v1234 = vld [vmem:[%s8 + $0x8] sm:$0xf]
      %v1235 = vld [vmem:[%s8 + $0xc] sm:$0xf]
      %v1236 = vld [vmem:[%s9] sm:$0x1]
      %v1238 = vlaneseq
      %v1239 = vshrl.u32 %v1238, 7
      %v1240 = vsub.s32 0, %v1239
      %v1241 = vrot.slane %v1236, %v1240
      %v1247 = vunpack.c.l.b16 %v1232
      %v1248 = vunpack.c.l.b16 %v1233
      %v1249 = vunpack.c.l.b16 %v1234
      %v1250 = vunpack.c.l.b16 %v1235
      %v1251 = vpack.c.b16 %v1248, %v1247
      %v1252 = vpack.c.b16 %v1250, %v1249
      %1255 = vmatprep.subr.bf16.mxu0 0
      %1256 = vmatpush1.bf16.msra.mxu0 %v1251
      %1257 = vmatprep.subr.bf16.mxu0 0
      %1258 = vmatpush1.bf16.msra.mxu0 %v1252
      %1259 = vmatprep.subr.bf16.mxu0 0
      %1260 = vmatpush1.bf16.msra.mxu0 0
      %1261 = vmatprep.subr.bf16.mxu0 0
      %1262 = vmatpush1.bf16.msra.mxu0 0
      %1263 = vmatprep.subr.bf16.mxu0 0
      %1264 = vmatpush1.bf16.msra.mxu0 0
      %1265 = vmatprep.subr.bf16.mxu0 0
      %1266 = vmatpush1.bf16.msra.mxu0 0
      %1267 = vmatprep.subr.bf16.mxu0 0
      %1268 = vmatpush1.bf16.msra.mxu0 0
      %1269 = vmatprep.subr.bf16.mxu0 0
      %1270 = vmatpush1.bf16.msra.mxu0 0
      %1271 = vmatprep.subr.bf16.mxu0 0
      %1272 = vmatpush1.bf16.msra.mxu0 0
      %1273 = vmatprep.subr.bf16.mxu0 0
      %1274 = vmatpush1.bf16.msra.mxu0 0
      %1275 = vmatprep.subr.bf16.mxu0 0
      %1276 = vmatpush1.bf16.msra.mxu0 0
      %1277 = vmatprep.subr.bf16.mxu0 0
      %1278 = vmatpush1.bf16.msra.mxu0 0
      %1279 = vmatprep.subr.bf16.mxu0 0
      %1280 = vmatpush1.bf16.msra.mxu0 0
      %1281 = vmatprep.subr.bf16.mxu0 0
      %1282 = vmatpush1.bf16.msra.mxu0 0
      %1283 = vmatprep.subr.bf16.mxu0 0
      %1284 = vmatpush1.bf16.msra.mxu0 0
      %1285 = vmatprep.subr.bf16.mxu0 0
      %1286 = vmatpush1.bf16.msra.mxu0 0
      %1287 = vmatprep.mubr.bf16.mxu0 0
      %1288 = vmatmul.mubr.bf16.gmra.mrb[0].mxu0 %v1167
      %v1289 = vpop.f32.mrb[0].mxu0
      %v1290 = vadd.f32 %v1241, %v1289
      %v1291 = vpop.f32.mrb[0].mxu0
      %v1292 = vpop.f32.mrb[0].mxu0
      %v1293 = vadd.f32 %v1241, %v1292
      %v1294 = vpop.f32.mrb[0].mxu0
      %1295 = vmatprep.mubr.bf16.mxu0 0
      %1296 = vmatmul.mubr.bf16.gmra.mrb[0].mxu0 %v1170
      %v1297 = vpop.f32.mrb[0].mxu0
      %v1298 = vadd.f32 %v1241, %v1297
      %v1299 = vpop.f32.mrb[0].mxu0
      %v1300 = vpop.f32.mrb[0].mxu0
      %v1301 = vadd.f32 %v1241, %v1300
      %v1302 = vpop.f32.mrb[0].mxu0
      %1303 = vmatprep.mubr.bf16.mxu0 0
      %1304 = vmatmul.mubr.bf16.gmra.mrb[0].mxu0 %v1173
      %v1305 = vpop.f32.mrb[0].mxu0
      %v1306 = vadd.f32 %v1241, %v1305
      %v1307 = vpop.f32.mrb[0].mxu0
      %v1308 = vpop.f32.mrb[0].mxu0
      %v1309 = vadd.f32 %v1241, %v1308
      %v1310 = vpop.f32.mrb[0].mxu0
      %1311 = vdwg.mxu0
      %v1312 = vpack.c.bf16 %v1117, %v1114
      %v1313 = vpack.c.bf16 %v1122, %v1122
      %v1314 = vpack.c.bf16 %v1213, %v1210
      %v1315 = vpack.c.bf16 %v1221, %v1218
      %v1316 = vpack.c.bf16 %v1229, %v1226
      %v1317 = vpack.c.bf16 %v1293, %v1290
      %v1318 = vpack.c.bf16 %v1301, %v1298
      %v1319 = vpack.c.bf16 %v1309, %v1306
      %vm1320 = vcmask 195584
      %v1322 = vsel %vm1320, %v1312, 0
      %v1325 = vsel %vm1320, %v1313, 0
      %v1328 = vsel %vm1320, %v1314, 0
      %v1331 = vsel %vm1320, %v1315, 0
      %v1334 = vsel %vm1320, %v1316, 0
      %1336 = vmatprep.subr.bf16.mxu0 0
      %1337 = vmatpush1.bf16.xpose.msra.mxu0 %v1328
      %1338 = vmatprep.subr.bf16.mxu0 0
      %1339 = vmatpush1.bf16.xpose.msra.mxu0 %v1331
      %1340 = vmatprep.subr.bf16.mxu0 0
      %1341 = vmatpush1.bf16.xpose.msra.mxu0 %v1334
      %1342 = vmatprep.subr.bf16.mxu0 0
      %1343 = vmatpush1.bf16.xpose.msra.mxu0 0
      %1344 = vmatprep.subr.bf16.mxu0 0
      %1345 = vmatpush1.bf16.xpose.msra.mxu0 0
      %1346 = vmatprep.subr.bf16.mxu0 0
      %1347 = vmatpush1.bf16.xpose.msra.mxu0 0
      %1348 = vmatprep.subr.bf16.mxu0 0
      %1349 = vmatpush1.bf16.xpose.msra.mxu0 0
      %1350 = vmatprep.subr.bf16.mxu0 0
      %1351 = vmatpush1.bf16.xpose.msra.mxu0 0
      %1352 = vmatprep.subr.bf16.mxu0 0
      %1353 = vmatpush1.bf16.xpose.msra.mxu0 0
      %1354 = vmatprep.subr.bf16.mxu0 0
      %1355 = vmatpush1.bf16.xpose.msra.mxu0 0
      %1356 = vmatprep.subr.bf16.mxu0 0
      %1357 = vmatpush1.bf16.xpose.msra.mxu0 0
      %1358 = vmatprep.subr.bf16.mxu0 0
      %1359 = vmatpush1.bf16.xpose.msra.mxu0 0
      %1360 = vmatprep.subr.bf16.mxu0 0
      %1361 = vmatpush1.bf16.xpose.msra.mxu0 0
      %1362 = vmatprep.subr.bf16.mxu0 0
      %1363 = vmatpush1.bf16.xpose.msra.mxu0 0
      %1364 = vmatprep.subr.bf16.mxu0 0
      %1365 = vmatpush1.bf16.xpose.msra.mxu0 0
      %1366 = vmatprep.subr.bf16.mxu0 0
      %1367 = vmatpush1.bf16.xpose.msra.mxu0 0
      %1368 = vmatprep.mubr.bf16.mxu0 0
      %1369 = vmatmul.mubr.bf16.gmra.mrb[0].mxu0 %v1322
      %v1370 = vpop.f32.mrb[0].mxu0
      %v1371 = vadd.f32 0.0, %v1370
      %v1372 = vpop.f32.mrb[0].mxu0
      %v1373 = vpop.f32.mrb[0].mxu0
      %v1374 = vadd.f32 0.0, %v1373
      %v1375 = vpop.f32.mrb[0].mxu0
      %1376 = vmatprep.mubr.bf16.mxu0 0
      %1377 = vmatmul.mubr.bf16.gmra.mrb[0].mxu0 %v1325
      %v1378 = vpop.f32.mrb[0].mxu0
      %v1379 = vadd.f32 0.0, %v1378
      %v1380 = vpop.f32.mrb[0].mxu0
      %v1381 = vpop.f32.mrb[0].mxu0
      %v1382 = vpop.f32.mrb[0].mxu0
      %1383 = vdwg.mxu0
      %v1384 = vmul.f32 %v1371, 0.20412415
      %v1385 = vmul.f32 %v1374, 0.20412415
      %v1386 = vmul.f32 %v1379, 0.20412415
      %v1387 = vsel %vm874, %v1384, -inf
      %1388 = vmax.xlane.f32.xlu0 %v1387
      %v1389 = vpop.xlane.xlu0 %1388
      %v1390 = vsel %vm874, %v1385, -inf
      %1391 = vmax.xlane.f32.xlu0 %v1390
      %v1392 = vpop.xlane.xlu0 %1391
      %v1393 = vsel %vm1032, %v1386, -inf
      %1394 = vmax.xlane.f32.xlu0 %v1393
      %v1395 = vpop.xlane.xlu0 %1394
      %v1396 = vsub.f32 %v1384, %v1389
      %v1397 = vsub.f32 %v1385, %v1392
      %v1398 = vsub.f32 %v1386, %v1395
      %v1399 = vmul.f32 %v1396, 1.442695
      %v1400 = vpow.pop %v1399
      %v1401 = vmul.f32 %v1397, 1.442695
      %v1402 = vpow.pop %v1401
      %v1403 = vmul.f32 %v1398, 1.442695
      %v1404 = vpow.pop %v1403
      %v1405 = vsel %vm874, %v1400, 0.0
      %1406 = vadd.xlane.f32.xlu0 %v1405
      %v1407 = vpop.xlane.xlu0 %1406
      %v1408 = vsel %vm874, %v1402, 0.0
      %1409 = vadd.xlane.f32.xlu0 %v1408
      %v1410 = vpop.xlane.xlu0 %1409
      %v1411 = vsel %vm1032, %v1404, 0.0
      %1412 = vadd.xlane.f32.xlu0 %v1411
      %v1413 = vpop.xlane.xlu0 %1412
      %v1414 = vrcp.pop %v1407
      %v1415 = vrcp.pop %v1410
      %v1416 = vrcp.pop %v1413
      %v1417 = vmul.f32 %v1400, %v1414
      %v1418 = vmul.f32 %v1402, %v1415
      %v1419 = vmul.f32 %v1404, %v1416
      %v1420 = vpack.c.bf16 %v1418, %v1417
      %v1421 = vpack.c.bf16 %v1419, %v1419
      %v1423 = vsel %vm874, %v1420, 0
      %v1426 = vsel %vm874, %v1421, 0
      %1428 = vmatprep.subr.bf16.mxu0 0
      %1429 = vmatpush1.bf16.msra.mxu0 %v1317
      %1430 = vmatprep.subr.bf16.mxu0 0
      %1431 = vmatpush1.bf16.msra.mxu0 %v1318
      %1432 = vmatprep.subr.bf16.mxu0 0
      %1433 = vmatpush1.bf16.msra.mxu0 %v1319
      %1434 = vmatprep.subr.bf16.mxu0 0
      %1435 = vmatpush1.bf16.msra.mxu0 0
      %1436 = vmatprep.subr.bf16.mxu0 0
      %1437 = vmatpush1.bf16.msra.mxu0 0
      %1438 = vmatprep.subr.bf16.mxu0 0
      %1439 = vmatpush1.bf16.msra.mxu0 0
      %1440 = vmatprep.subr.bf16.mxu0 0
      %1441 = vmatpush1.bf16.msra.mxu0 0
      %1442 = vmatprep.subr.bf16.mxu0 0
      %1443 = vmatpush1.bf16.msra.mxu0 0
      %1444 = vmatprep.subr.bf16.mxu0 0
      %1445 = vmatpush1.bf16.msra.mxu0 0
      %1446 = vmatprep.subr.bf16.mxu0 0
      %1447 = vmatpush1.bf16.msra.mxu0 0
      %1448 = vmatprep.subr.bf16.mxu0 0
      %1449 = vmatpush1.bf16.msra.mxu0 0
      %1450 = vmatprep.subr.bf16.mxu0 0
      %1451 = vmatpush1.bf16.msra.mxu0 0
      %1452 = vmatprep.subr.bf16.mxu0 0
      %1453 = vmatpush1.bf16.msra.mxu0 0
      %1454 = vmatprep.subr.bf16.mxu0 0
      %1455 = vmatpush1.bf16.msra.mxu0 0
      %1456 = vmatprep.subr.bf16.mxu0 0
      %1457 = vmatpush1.bf16.msra.mxu0 0
      %1458 = vmatprep.subr.bf16.mxu0 0
      %1459 = vmatpush1.bf16.msra.mxu0 0
      %1460 = vmatprep.mubr.bf16.mxu0 0
      %1461 = vmatmul.mubr.bf16.gmra.mrb[0].mxu0 %v1423
      %v1462 = vpop.f32.mrb[0].mxu0
      %v1463 = vadd.f32 0.0, %v1462
      %v1464 = vpop.f32.mrb[0].mxu0
      %v1465 = vpop.f32.mrb[0].mxu0
      %v1466 = vadd.f32 0.0, %v1465
      %v1467 = vpop.f32.mrb[0].mxu0
      %1468 = vmatprep.mubr.bf16.mxu0 0
      %1469 = vmatmul.mubr.bf16.gmra.mrb[0].mxu0 %v1426
      %v1470 = vpop.f32.mrb[0].mxu0
      %v1471 = vadd.f32 0.0, %v1470
      %v1472 = vpop.f32.mrb[0].mxu0
      %v1473 = vpop.f32.mrb[0].mxu0
      %v1474 = vpop.f32.mrb[0].mxu0
      %1475 = vdwg.mxu0
      %v1476 = vpack.c.bf16 %v1466, %v1463
      %v1477 = vpack.c.bf16 %v1471, %v1471
      %v1478 = vld [vmem:[%s10] sm:$0xf]
      %v1479 = vld [vmem:[%s10 + $0x4] sm:$0xf]
      %v1480 = vld [vmem:[%s10 + $0x8] sm:$0xf]
      %1483 = vrot.lane.b32.xlu0 %v1312, 104
      %v1484 = vpop.permute.xlu0 %1483
      %1485 = vrot.lane.b32.xlu0 %v1313, 104
      %v1486 = vpop.permute.xlu0 %1485
      %1490 = vrot.lane.b32.xlu0 %v1314, 104
      %v1491 = vpop.permute.xlu0 %1490
      %1492 = vrot.lane.b32.xlu0 %v1315, 104
      %v1493 = vpop.permute.xlu0 %1492
      %1494 = vrot.lane.b32.xlu0 %v1316, 104
      %v1495 = vpop.permute.xlu0 %1494
      %v1497 = vsel %vm1320, %v1484, 0
      %v1500 = vsel %vm1320, %v1486, 0
      %v1503 = vsel %vm1320, %v1491, 0
      %v1506 = vsel %vm1320, %v1493, 0
      %v1509 = vsel %vm1320, %v1495, 0
      %1511 = vmatprep.subr.bf16.mxu0 0
      %1512 = vmatpush1.bf16.xpose.msra.mxu0 %v1503
      %1513 = vmatprep.subr.bf16.mxu0 0
      %1514 = vmatpush1.bf16.xpose.msra.mxu0 %v1506
      %1515 = vmatprep.subr.bf16.mxu0 0
      %1516 = vmatpush1.bf16.xpose.msra.mxu0 %v1509
      %1517 = vmatprep.subr.bf16.mxu0 0
      %1518 = vmatpush1.bf16.xpose.msra.mxu0 0
      %1519 = vmatprep.subr.bf16.mxu0 0
      %1520 = vmatpush1.bf16.xpose.msra.mxu0 0
      %1521 = vmatprep.subr.bf16.mxu0 0
      %1522 = vmatpush1.bf16.xpose.msra.mxu0 0
      %1523 = vmatprep.subr.bf16.mxu0 0
      %1524 = vmatpush1.bf16.xpose.msra.mxu0 0
      %1525 = vmatprep.subr.bf16.mxu0 0
      %1526 = vmatpush1.bf16.xpose.msra.mxu0 0
      %1527 = vmatprep.subr.bf16.mxu0 0
      %1528 = vmatpush1.bf16.xpose.msra.mxu0 0
      %1529 = vmatprep.subr.bf16.mxu0 0
      %1530 = vmatpush1.bf16.xpose.msra.mxu0 0
      %1531 = vmatprep.subr.bf16.mxu0 0
      %1532 = vmatpush1.bf16.xpose.msra.mxu0 0
      %1533 = vmatprep.subr.bf16.mxu0 0
      %1534 = vmatpush1.bf16.xpose.msra.mxu0 0
      %1535 = vmatprep.subr.bf16.mxu0 0
      %1536 = vmatpush1.bf16.xpose.msra.mxu0 0
      %1537 = vmatprep.subr.bf16.mxu0 0
      %1538 = vmatpush1.bf16.xpose.msra.mxu0 0
      %1539 = vmatprep.subr.bf16.mxu0 0
      %1540 = vmatpush1.bf16.xpose.msra.mxu0 0
      %1541 = vmatprep.subr.bf16.mxu0 0
      %1542 = vmatpush1.bf16.xpose.msra.mxu0 0
      %1543 = vmatprep.mubr.bf16.mxu0 0
      %1544 = vmatmul.mubr.bf16.gmra.mrb[0].mxu0 %v1497
      %v1545 = vpop.f32.mrb[0].mxu0
      %v1546 = vadd.f32 0.0, %v1545
      %v1547 = vpop.f32.mrb[0].mxu0
      %v1548 = vpop.f32.mrb[0].mxu0
      %v1549 = vadd.f32 0.0, %v1548
      %v1550 = vpop.f32.mrb[0].mxu0
      %1551 = vmatprep.mubr.bf16.mxu0 0
      %1552 = vmatmul.mubr.bf16.gmra.mrb[0].mxu0 %v1500
      %v1553 = vpop.f32.mrb[0].mxu0
      %v1554 = vadd.f32 0.0, %v1553
      %v1555 = vpop.f32.mrb[0].mxu0
      %v1556 = vpop.f32.mrb[0].mxu0
      %v1557 = vpop.f32.mrb[0].mxu0
      %1558 = vdwg.mxu0
      %v1559 = vmul.f32 %v1546, 0.20412415
      %v1560 = vmul.f32 %v1549, 0.20412415
      %v1561 = vmul.f32 %v1554, 0.20412415
      %v1562 = vsel %vm874, %v1559, -inf
      %1563 = vmax.xlane.f32.xlu0 %v1562
      %v1564 = vpop.xlane.xlu0 %1563
      %v1565 = vsel %vm874, %v1560, -inf
      %1566 = vmax.xlane.f32.xlu0 %v1565
      %v1567 = vpop.xlane.xlu0 %1566
      %v1568 = vsel %vm1032, %v1561, -inf
      %1569 = vmax.xlane.f32.xlu0 %v1568
      %v1570 = vpop.xlane.xlu0 %1569
      %v1571 = vsub.f32 %v1559, %v1564
      %v1572 = vsub.f32 %v1560, %v1567
      %v1573 = vsub.f32 %v1561, %v1570
      %v1574 = vmul.f32 %v1571, 1.442695
      %v1575 = vpow.pop %v1574
      %v1576 = vmul.f32 %v1572, 1.442695
      %v1577 = vpow.pop %v1576
      %v1578 = vmul.f32 %v1573, 1.442695
      %v1579 = vpow.pop %v1578
      %v1580 = vsel %vm874, %v1575, 0.0
      %1581 = vadd.xlane.f32.xlu0 %v1580
      %v1582 = vpop.xlane.xlu0 %1581
      %v1583 = vsel %vm874, %v1577, 0.0
      %1584 = vadd.xlane.f32.xlu0 %v1583
      %v1585 = vpop.xlane.xlu0 %1584
      %v1586 = vsel %vm1032, %v1579, 0.0
      %1587 = vadd.xlane.f32.xlu0 %v1586
      %v1588 = vpop.xlane.xlu0 %1587
      %v1589 = vrcp.pop %v1582
      %v1590 = vrcp.pop %v1585
      %v1591 = vrcp.pop %v1588
      %v1592 = vmul.f32 %v1575, %v1589
      %v1593 = vmul.f32 %v1577, %v1590
      %v1594 = vmul.f32 %v1579, %v1591
      %v1595 = vpack.c.bf16 %v1593, %v1592
      %v1596 = vpack.c.bf16 %v1594, %v1594
      %1600 = vrot.lane.b32.xlu0 %v1317, 104
      %v1601 = vpop.permute.xlu0 %1600
      %1602 = vrot.lane.b32.xlu0 %v1318, 104
      %v1603 = vpop.permute.xlu0 %1602
      %1604 = vrot.lane.b32.xlu0 %v1319, 104
      %v1605 = vpop.permute.xlu0 %1604
      %v1610 = vsel %vm874, %v1595, 0
      %v1613 = vsel %vm874, %v1596, 0
      %1615 = vmatprep.subr.bf16.mxu0 0
      %1616 = vmatpush1.bf16.msra.mxu0 %v1601
      %1617 = vmatprep.subr.bf16.mxu0 0
      %1618 = vmatpush1.bf16.msra.mxu0 %v1603
      %1619 = vmatprep.subr.bf16.mxu0 0
      %1620 = vmatpush1.bf16.msra.mxu0 %v1605
      %1621 = vmatprep.subr.bf16.mxu0 0
      %1622 = vmatpush1.bf16.msra.mxu0 0
      %1623 = vmatprep.subr.bf16.mxu0 0
      %1624 = vmatpush1.bf16.msra.mxu0 0
      %1625 = vmatprep.subr.bf16.mxu0 0
      %1626 = vmatpush1.bf16.msra.mxu0 0
      %1627 = vmatprep.subr.bf16.mxu0 0
      %1628 = vmatpush1.bf16.msra.mxu0 0
      %1629 = vmatprep.subr.bf16.mxu0 0
      %1630 = vmatpush1.bf16.msra.mxu0 0
      %1631 = vmatprep.subr.bf16.mxu0 0
      %1632 = vmatpush1.bf16.msra.mxu0 0
      %1633 = vmatprep.subr.bf16.mxu0 0
      %1634 = vmatpush1.bf16.msra.mxu0 0
      %1635 = vmatprep.subr.bf16.mxu0 0
      %1636 = vmatpush1.bf16.msra.mxu0 0
      %1637 = vmatprep.subr.bf16.mxu0 0
      %1638 = vmatpush1.bf16.msra.mxu0 0
      %1639 = vmatprep.subr.bf16.mxu0 0
      %1640 = vmatpush1.bf16.msra.mxu0 0
      %1641 = vmatprep.subr.bf16.mxu0 0
      %1642 = vmatpush1.bf16.msra.mxu0 0
      %1643 = vmatprep.subr.bf16.mxu0 0
      %1644 = vmatpush1.bf16.msra.mxu0 0
      %1645 = vmatprep.subr.bf16.mxu0 0
      %1646 = vmatpush1.bf16.msra.mxu0 0
      %1647 = vmatprep.mubr.bf16.mxu0 0
      %1648 = vmatmul.mubr.bf16.gmra.mrb[0].mxu0 %v1610
      %v1649 = vpop.f32.mrb[0].mxu0
      %v1650 = vadd.f32 0.0, %v1649
      %v1651 = vpop.f32.mrb[0].mxu0
      %v1652 = vpop.f32.mrb[0].mxu0
      %v1653 = vadd.f32 0.0, %v1652
      %v1654 = vpop.f32.mrb[0].mxu0
      %1655 = vmatprep.mubr.bf16.mxu0 0
      %1656 = vmatmul.mubr.bf16.gmra.mrb[0].mxu0 %v1613
      %v1657 = vpop.f32.mrb[0].mxu0
      %v1658 = vadd.f32 0.0, %v1657
      %v1659 = vpop.f32.mrb[0].mxu0
      %v1660 = vpop.f32.mrb[0].mxu0
      %v1661 = vpop.f32.mrb[0].mxu0
      %1662 = vdwg.mxu0
      %v1663 = vpack.c.bf16 %v1653, %v1650
      %v1664 = vpack.c.bf16 %v1658, %v1658
      %s1665 = scalar_lea.vmem %s10, 12
      %v1666 = vld [vmem:[%s1665] sm:$0xf]
      %v1667 = vld [vmem:[%s1665 + $0x4] sm:$0xf]
      %v1668 = vld [vmem:[%s1665 + $0x8] sm:$0xf]
      %v1672 = vunpack.c.l.b16 %v1666
      %v1673 = vunpack.c.l.b16 %v1667
      %v1674 = vunpack.c.l.b16 %v1668
      %v1675 = vpack.c.b16 %v1673, %v1672
      %v1676 = vpack.c.b16 %v1674, %v1674
      %v1679 = vsel %vm1320, %v1663, 0
      %v1682 = vsel %vm1320, %v1664, 0
      %vm1684 = vcmask 1043456
      %v1686 = vsel %vm1684, %v1676, 0
      %1688 = vmatprep.subr.bf16.mxu0 0
      %1689 = vmatpush1.bf16.msra.mxu0 %v1675
      %1690 = vmatprep.subr.bf16.mxu0 0
      %1691 = vmatpush1.bf16.msra.mxu0 %v1686
      %1692 = vmatprep.subr.bf16.mxu0 0
      %1693 = vmatpush1.bf16.msra.mxu0 0
      %1694 = vmatprep.subr.bf16.mxu0 0
      %1695 = vmatpush1.bf16.msra.mxu0 0
      %1696 = vmatprep.subr.bf16.mxu0 0
      %1697 = vmatpush1.bf16.msra.mxu0 0
      %1698 = vmatprep.subr.bf16.mxu0 0
      %1699 = vmatpush1.bf16.msra.mxu0 0
      %1700 = vmatprep.subr.bf16.mxu0 0
      %1701 = vmatpush1.bf16.msra.mxu0 0
      %1702 = vmatprep.subr.bf16.mxu0 0
      %1703 = vmatpush1.bf16.msra.mxu0 0
      %1704 = vmatprep.subr.bf16.mxu0 0
      %1705 = vmatpush1.bf16.msra.mxu0 0
      %1706 = vmatprep.subr.bf16.mxu0 0
      %1707 = vmatpush1.bf16.msra.mxu0 0
      %1708 = vmatprep.subr.bf16.mxu0 0
      %1709 = vmatpush1.bf16.msra.mxu0 0
      %1710 = vmatprep.subr.bf16.mxu0 0
      %1711 = vmatpush1.bf16.msra.mxu0 0
      %1712 = vmatprep.subr.bf16.mxu0 0
      %1713 = vmatpush1.bf16.msra.mxu0 0
      %1714 = vmatprep.subr.bf16.mxu0 0
      %1715 = vmatpush1.bf16.msra.mxu0 0
      %1716 = vmatprep.subr.bf16.mxu0 0
      %1717 = vmatpush1.bf16.msra.mxu0 0
      %1718 = vmatprep.subr.bf16.mxu0 0
      %1719 = vmatpush1.bf16.msra.mxu0 0
      %1720 = vmatprep.mubr.bf16.mxu0 0
      %1721 = vmatmul.mubr.bf16.gmra.mrb[0].mxu0 %v1679
      %v1722 = vpop.f32.mrb[0].mxu0
      %v1723 = vadd.f32 0.0, %v1722
      %v1724 = vpop.f32.mrb[0].mxu0
      %v1725 = vpop.f32.mrb[0].mxu0
      %v1726 = vadd.f32 0.0, %v1725
      %v1727 = vpop.f32.mrb[0].mxu0
      %1728 = vmatprep.mubr.bf16.mxu0 0
      %1729 = vmatmul.mubr.bf16.gmra.mrb[0].mxu0 %v1682
      %v1730 = vpop.f32.mrb[0].mxu0
      %v1731 = vadd.f32 0.0, %v1730
      %v1732 = vpop.f32.mrb[0].mxu0
      %v1733 = vpop.f32.mrb[0].mxu0
      %v1734 = vpop.f32.mrb[0].mxu0
      %1735 = vdwg.mxu0
      %v1739 = vunpack.c.l.b16 %v1478
      %v1740 = vunpack.c.l.b16 %v1479
      %v1741 = vunpack.c.l.b16 %v1480
      %v1742 = vpack.c.b16 %v1740, %v1739
      %v1743 = vpack.c.b16 %v1741, %v1741
      %v1746 = vsel %vm1320, %v1476, 0
      %v1749 = vsel %vm1320, %v1477, 0
      %v1752 = vsel %vm1684, %v1743, 0
      %1754 = vmatprep.subr.bf16.mxu0 0
      %1755 = vmatpush1.bf16.msra.mxu0 %v1742
      %1756 = vmatprep.subr.bf16.mxu0 0
      %1757 = vmatpush1.bf16.msra.mxu0 %v1752
      %1758 = vmatprep.subr.bf16.mxu0 0
      %1759 = vmatpush1.bf16.msra.mxu0 0
      %1760 = vmatprep.subr.bf16.mxu0 0
      %1761 = vmatpush1.bf16.msra.mxu0 0
      %1762 = vmatprep.subr.bf16.mxu0 0
      %1763 = vmatpush1.bf16.msra.mxu0 0
      %1764 = vmatprep.subr.bf16.mxu0 0
      %1765 = vmatpush1.bf16.msra.mxu0 0
      %1766 = vmatprep.subr.bf16.mxu0 0
      %1767 = vmatpush1.bf16.msra.mxu0 0
      %1768 = vmatprep.subr.bf16.mxu0 0
      %1769 = vmatpush1.bf16.msra.mxu0 0
      %1770 = vmatprep.subr.bf16.mxu0 0
      %1771 = vmatpush1.bf16.msra.mxu0 0
      %1772 = vmatprep.subr.bf16.mxu0 0
      %1773 = vmatpush1.bf16.msra.mxu0 0
      %1774 = vmatprep.subr.bf16.mxu0 0
      %1775 = vmatpush1.bf16.msra.mxu0 0
      %1776 = vmatprep.subr.bf16.mxu0 0
      %1777 = vmatpush1.bf16.msra.mxu0 0
      %1778 = vmatprep.subr.bf16.mxu0 0
      %1779 = vmatpush1.bf16.msra.mxu0 0
      %1780 = vmatprep.subr.bf16.mxu0 0
      %1781 = vmatpush1.bf16.msra.mxu0 0
      %1782 = vmatprep.subr.bf16.mxu0 0
      %1783 = vmatpush1.bf16.msra.mxu0 0
      %1784 = vmatprep.subr.bf16.mxu0 0
      %1785 = vmatpush1.bf16.msra.mxu0 0
      %1786 = vmatprep.mubr.bf16.mxu0 0
      %1787 = vmatmul.mubr.bf16.gmra.mrb[0].mxu0 %v1746
      %v1788 = vpop.f32.mrb[0].mxu0
      %v1789 = vadd.f32 %v1723, %v1788
      %v1790 = vpop.f32.mrb[0].mxu0
      %v1791 = vpop.f32.mrb[0].mxu0
      %v1792 = vadd.f32 %v1726, %v1791
      %v1793 = vpop.f32.mrb[0].mxu0
      %1794 = vmatprep.mubr.bf16.mxu0 0
      %1795 = vmatmul.mubr.bf16.gmra.mrb[0].mxu0 %v1749
      %v1796 = vpop.f32.mrb[0].mxu0
      %v1797 = vadd.f32 %v1731, %v1796
      %v1798 = vpop.f32.mrb[0].mxu0
      %v1799 = vpop.f32.mrb[0].mxu0
      %v1800 = vpop.f32.mrb[0].mxu0
      %1801 = vdwg.mxu0
      %v1802 = vld [vmem:[%s11] sm:$0x1]
      %v1804 = vlaneseq
      %v1805 = vshrl.u32 %v1804, 7
      %v1806 = vsub.s32 0, %v1805
      %v1807 = vrot.slane %v1802, %v1806
      %v1809 = vadd.f32 %v1789, %v1807
      %v1810 = vadd.f32 %v1792, %v1807
      %v1811 = vadd.f32 %v1797, %v1807
      %v1812 = vadd.f32 %v1027, %v1809
      %v1813 = vadd.f32 %v1028, %v1810
      %v1814 = vadd.f32 %v1029, %v1811
      %v1815 = vld [vmem:[%s12] sm:$0x1]
      %v1816 = vld [vmem:[%s13] sm:$0x1]
      %v1817 = vsel %vm874, %v1812, 0.0
      %1818 = vadd.xlane.f32.xlu0 %v1817
      %v1819 = vpop.xlane.xlu0 %1818
      %v1820 = vsel %vm874, %v1813, 0.0
      %1821 = vadd.xlane.f32.xlu0 %v1820
      %v1822 = vpop.xlane.xlu0 %1821
      %v1823 = vsel %vm1032, %v1814, 0.0
      %1824 = vadd.xlane.f32.xlu0 %v1823
      %v1825 = vpop.xlane.xlu0 %1824
      %v1826 = vrcp.pop 48.0
      %v1827 = vmul.f32 %v1819, %v1826
      %v1828 = vmul.f32 %v1822, %v1826
      %v1829 = vmul.f32 %v1825, %v1826
      %v1830 = vsub.f32 %v1812, %v1827
      %v1831 = vsub.f32 %v1813, %v1828
      %v1832 = vsub.f32 %v1814, %v1829
      %v1833 = vmul.f32 %v1830, %v1830
      %v1834 = vmul.f32 %v1831, %v1831
      %v1835 = vmul.f32 %v1832, %v1832
      %v1836 = vsel %vm874, %v1833, 0.0
      %1837 = vadd.xlane.f32.xlu0 %v1836
      %v1838 = vpop.xlane.xlu0 %1837
      %v1839 = vsel %vm874, %v1834, 0.0
      %1840 = vadd.xlane.f32.xlu0 %v1839
      %v1841 = vpop.xlane.xlu0 %1840
      %v1842 = vsel %vm1032, %v1835, 0.0
      %1843 = vadd.xlane.f32.xlu0 %v1842
      %v1844 = vpop.xlane.xlu0 %1843
      %v1845 = vmul.f32 %v1838, %v1826
      %v1846 = vmul.f32 %v1841, %v1826
      %v1847 = vmul.f32 %v1844, %v1826
      %v1848 = vadd.f32 %v1845, 1e-05
      %v1849 = vadd.f32 %v1846, 1e-05
      %v1850 = vadd.f32 %v1847, 1e-05
      %v1851 = vrsqrt.pop %v1848
      %v1852 = vrsqrt.pop %v1849
      %v1853 = vrsqrt.pop %v1850
      %v1854 = vmul.f32 %v1830, %v1851
      %v1855 = vmul.f32 %v1831, %v1852
      %v1856 = vmul.f32 %v1832, %v1853
      %v1858 = vlaneseq
      %v1859 = vshrl.u32 %v1858, 7
      %v1860 = vsub.s32 0, %v1859
      %v1861 = vrot.slane %v1815, %v1860
      %v1863 = vmul.f32 %v1854, %v1861
      %v1864 = vmul.f32 %v1855, %v1861
      %v1865 = vmul.f32 %v1856, %v1861
      %v1867 = vlaneseq
      %v1868 = vshrl.u32 %v1867, 7
      %v1869 = vsub.s32 0, %v1868
      %v1870 = vrot.slane %v1816, %v1869
      %v1872 = vadd.f32 %v1863, %v1870
      %v1873 = vadd.f32 %v1864, %v1870
      %v1874 = vadd.f32 %v1865, %v1870
      %v1875 = vpack.c.bf16 %v1873, %v1872
      %v1876 = vpack.c.bf16 %v1874, %v1874
      %v1877 = vld [vmem:[%s14] sm:$0xf]
      %v1878 = vld [vmem:[%s14 + $0x4] sm:$0xf]
      %v1879 = vld [vmem:[%s14 + $0x8] sm:$0xf]
      %v1880 = vld [vmem:[%s14 + $0xc] sm:$0xf]
      %v1881 = vld [vmem:[%s14 + $0x10] sm:$0xf]
      %v1882 = vld [vmem:[%s14 + $0x14] sm:$0xf]
      %v1883 = vld [vmem:[%s15] sm:$0x1]
      %v1885 = vlaneseq
      %v1886 = vshrl.u32 %v1885, 7
      %v1887 = vsub.s32 0, %v1886
      %v1888 = vrot.slane %v1883, %v1887
      %v1896 = vunpack.c.l.b16 %v1877
      %v1897 = vunpack.c.l.b16 %v1878
      %v1898 = vunpack.c.l.b16 %v1879
      %v1899 = vunpack.c.l.b16 %v1880
      %v1900 = vunpack.c.l.b16 %v1881
      %v1901 = vunpack.c.l.b16 %v1882
      %v1902 = vpack.c.b16 %v1897, %v1896
      %v1903 = vpack.c.b16 %v1899, %v1898
      %v1904 = vpack.c.b16 %v1901, %v1900
      %v1909 = vsel %vm874, %v1875, 0
      %v1912 = vsel %vm874, %v1876, 0
      %1914 = vmatprep.subr.bf16.mxu0 0
      %1915 = vmatpush1.bf16.msra.mxu0 %v1902
      %1916 = vmatprep.subr.bf16.mxu0 0
      %1917 = vmatpush1.bf16.msra.mxu0 %v1903
      %1918 = vmatprep.subr.bf16.mxu0 0
      %1919 = vmatpush1.bf16.msra.mxu0 %v1904
      %1920 = vmatprep.subr.bf16.mxu0 0
      %1921 = vmatpush1.bf16.msra.mxu0 0
      %1922 = vmatprep.subr.bf16.mxu0 0
      %1923 = vmatpush1.bf16.msra.mxu0 0
      %1924 = vmatprep.subr.bf16.mxu0 0
      %1925 = vmatpush1.bf16.msra.mxu0 0
      %1926 = vmatprep.subr.bf16.mxu0 0
      %1927 = vmatpush1.bf16.msra.mxu0 0
      %1928 = vmatprep.subr.bf16.mxu0 0
      %1929 = vmatpush1.bf16.msra.mxu0 0
      %1930 = vmatprep.subr.bf16.mxu0 0
      %1931 = vmatpush1.bf16.msra.mxu0 0
      %1932 = vmatprep.subr.bf16.mxu0 0
      %1933 = vmatpush1.bf16.msra.mxu0 0
      %1934 = vmatprep.subr.bf16.mxu0 0
      %1935 = vmatpush1.bf16.msra.mxu0 0
      %1936 = vmatprep.subr.bf16.mxu0 0
      %1937 = vmatpush1.bf16.msra.mxu0 0
      %1938 = vmatprep.subr.bf16.mxu0 0
      %1939 = vmatpush1.bf16.msra.mxu0 0
      %1940 = vmatprep.subr.bf16.mxu0 0
      %1941 = vmatpush1.bf16.msra.mxu0 0
      %1942 = vmatprep.subr.bf16.mxu0 0
      %1943 = vmatpush1.bf16.msra.mxu0 0
      %1944 = vmatprep.subr.bf16.mxu0 0
      %1945 = vmatpush1.bf16.msra.mxu0 0
      %1946 = vmatprep.mubr.bf16.mxu0 0
      %1947 = vmatmul.mubr.bf16.gmra.mrb[0].mxu0 %v1909
      %v1948 = vpop.f32.mrb[0].mxu0
      %v1949 = vadd.f32 %v1888, %v1948
      %v1950 = vpop.f32.mrb[0].mxu0
      %v1951 = vpop.f32.mrb[0].mxu0
      %v1952 = vadd.f32 %v1888, %v1951
      %v1953 = vpop.f32.mrb[0].mxu0
      %1954 = vmatprep.mubr.bf16.mxu0 0
      %1955 = vmatmul.mubr.bf16.gmra.mrb[0].mxu0 %v1912
      %v1956 = vpop.f32.mrb[0].mxu0
      %v1957 = vadd.f32 %v1888, %v1956
      %v1958 = vpop.f32.mrb[0].mxu0
      %v1959 = vpop.f32.mrb[0].mxu0
      %v1960 = vpop.f32.mrb[0].mxu0
      %1961 = vdwg.mxu0
      %v1962 = vmax.f32 %v1949, 0.0
      %v1963 = vmax.f32 %v1952, 0.0
      %v1964 = vmax.f32 %v1957, 0.0
      %v1965 = vpack.c.bf16 %v1963, %v1962
      %v1966 = vpack.c.bf16 %v1964, %v1964
      %v1967 = vld [vmem:[%s16] sm:$0xf]
      %v1968 = vld [vmem:[%s16 + $0x4] sm:$0xf]
      %v1969 = vld [vmem:[%s16 + $0x8] sm:$0xf]
      %v1970 = vld [vmem:[%s16 + $0xc] sm:$0xf]
      %v1971 = vld [vmem:[%s16 + $0x10] sm:$0xf]
      %v1972 = vld [vmem:[%s16 + $0x14] sm:$0xf]
      %v1973 = vld [vmem:[%s16 + $0x18] sm:$0xf]
      %v1974 = vld [vmem:[%s16 + $0x1c] sm:$0xf]
      %v1975 = vld [vmem:[%s17] sm:$0x1]
      %v1977 = vlaneseq
      %v1978 = vshrl.u32 %v1977, 7
      %v1979 = vsub.s32 0, %v1978
      %v1980 = vrot.slane %v1975, %v1979
      %v1990 = vunpack.c.l.b16 %v1967
      %v1991 = vunpack.c.l.b16 %v1968
      %v1992 = vunpack.c.l.b16 %v1969
      %v1993 = vunpack.c.l.b16 %v1970
      %v1994 = vunpack.c.l.b16 %v1971
      %v1995 = vunpack.c.l.b16 %v1972
      %v1996 = vunpack.c.l.b16 %v1973
      %v1997 = vunpack.c.l.b16 %v1974
      %v1998 = vpack.c.b16 %v1991, %v1990
      %v1999 = vpack.c.b16 %v1993, %v1992
      %v2000 = vpack.c.b16 %v1995, %v1994
      %v2001 = vpack.c.b16 %v1997, %v1996
      %vm2006 = vcmask 523264
      %v2008 = vsel %vm2006, %v1965, 0
      %v2011 = vsel %vm2006, %v1966, 0
      %2013 = vmatprep.subr.bf16.mxu0 0
      %2014 = vmatpush1.bf16.msra.mxu0 %v1998
      %2015 = vmatprep.subr.bf16.mxu0 0
      %2016 = vmatpush1.bf16.msra.mxu0 %v1999
      %2017 = vmatprep.subr.bf16.mxu0 0
      %2018 = vmatpush1.bf16.msra.mxu0 %v2000
      %2019 = vmatprep.subr.bf16.mxu0 0
      %2020 = vmatpush1.bf16.msra.mxu0 %v2001
      %2021 = vmatprep.subr.bf16.mxu0 0
      %2022 = vmatpush1.bf16.msra.mxu0 0
      %2023 = vmatprep.subr.bf16.mxu0 0
      %2024 = vmatpush1.bf16.msra.mxu0 0
      %2025 = vmatprep.subr.bf16.mxu0 0
      %2026 = vmatpush1.bf16.msra.mxu0 0
      %2027 = vmatprep.subr.bf16.mxu0 0
      %2028 = vmatpush1.bf16.msra.mxu0 0
      %2029 = vmatprep.subr.bf16.mxu0 0
      %2030 = vmatpush1.bf16.msra.mxu0 0
      %2031 = vmatprep.subr.bf16.mxu0 0
      %2032 = vmatpush1.bf16.msra.mxu0 0
      %2033 = vmatprep.subr.bf16.mxu0 0
      %2034 = vmatpush1.bf16.msra.mxu0 0
      %2035 = vmatprep.subr.bf16.mxu0 0
      %2036 = vmatpush1.bf16.msra.mxu0 0
      %2037 = vmatprep.subr.bf16.mxu0 0
      %2038 = vmatpush1.bf16.msra.mxu0 0
      %2039 = vmatprep.subr.bf16.mxu0 0
      %2040 = vmatpush1.bf16.msra.mxu0 0
      %2041 = vmatprep.subr.bf16.mxu0 0
      %2042 = vmatpush1.bf16.msra.mxu0 0
      %2043 = vmatprep.subr.bf16.mxu0 0
      %2044 = vmatpush1.bf16.msra.mxu0 0
      %2045 = vmatprep.mubr.bf16.mxu0 0
      %2046 = vmatmul.mubr.bf16.gmra.mrb[0].mxu0 %v2008
      %v2047 = vpop.f32.mrb[0].mxu0
      %v2048 = vadd.f32 %v1980, %v2047
      %v2049 = vpop.f32.mrb[0].mxu0
      %v2050 = vpop.f32.mrb[0].mxu0
      %v2051 = vadd.f32 %v1980, %v2050
      %v2052 = vpop.f32.mrb[0].mxu0
      %2053 = vmatprep.mubr.bf16.mxu0 0
      %2054 = vmatmul.mubr.bf16.gmra.mrb[0].mxu0 %v2011
      %v2055 = vpop.f32.mrb[0].mxu0
      %v2056 = vadd.f32 %v1980, %v2055
      %v2057 = vpop.f32.mrb[0].mxu0
      %v2058 = vpop.f32.mrb[0].mxu0
      %v2059 = vpop.f32.mrb[0].mxu0
      %2060 = vdwg.mxu0
      %v2061 = vadd.f32 %v1872, %v2048
      %v2062 = vadd.f32 %v1873, %v2051
      %v2063 = vadd.f32 %v1874, %v2056
      %v2064 = vld [vmem:[%s18] sm:$0x1]
      %v2065 = vld [vmem:[%s19] sm:$0x1]
      %v2066 = vsel %vm874, %v2061, 0.0
      %2067 = vadd.xlane.f32.xlu0 %v2066
      %v2068 = vpop.xlane.xlu0 %2067
      %v2069 = vsel %vm874, %v2062, 0.0
      %2070 = vadd.xlane.f32.xlu0 %v2069
      %v2071 = vpop.xlane.xlu0 %2070
      %v2072 = vsel %vm1032, %v2063, 0.0
      %2073 = vadd.xlane.f32.xlu0 %v2072
      %v2074 = vpop.xlane.xlu0 %2073
      %v2075 = vmul.f32 %v2068, %v1826
      %v2076 = vmul.f32 %v2071, %v1826
      %v2077 = vmul.f32 %v2074, %v1826
      %v2078 = vsub.f32 %v2061, %v2075
      %v2079 = vsub.f32 %v2062, %v2076
      %v2080 = vsub.f32 %v2063, %v2077
      %v2081 = vmul.f32 %v2078, %v2078
      %v2082 = vmul.f32 %v2079, %v2079
      %v2083 = vmul.f32 %v2080, %v2080
      %v2084 = vsel %vm874, %v2081, 0.0
      %2085 = vadd.xlane.f32.xlu0 %v2084
      %v2086 = vpop.xlane.xlu0 %2085
      %v2087 = vsel %vm874, %v2082, 0.0
      %2088 = vadd.xlane.f32.xlu0 %v2087
      %v2089 = vpop.xlane.xlu0 %2088
      %v2090 = vsel %vm1032, %v2083, 0.0
      %2091 = vadd.xlane.f32.xlu0 %v2090
      %v2092 = vpop.xlane.xlu0 %2091
      %v2093 = vmul.f32 %v2086, %v1826
      %v2094 = vmul.f32 %v2089, %v1826
      %v2095 = vmul.f32 %v2092, %v1826
      %v2096 = vadd.f32 %v2093, 1e-05
      %v2097 = vadd.f32 %v2094, 1e-05
      %v2098 = vadd.f32 %v2095, 1e-05
      %v2099 = vrsqrt.pop %v2096
      %v2100 = vrsqrt.pop %v2097
      %v2101 = vrsqrt.pop %v2098
      %v2102 = vmul.f32 %v2078, %v2099
      %v2103 = vmul.f32 %v2079, %v2100
      %v2104 = vmul.f32 %v2080, %v2101
      %v2106 = vlaneseq
      %v2107 = vshrl.u32 %v2106, 7
      %v2108 = vsub.s32 0, %v2107
      %v2109 = vrot.slane %v2064, %v2108
      %v2111 = vmul.f32 %v2102, %v2109
      %v2112 = vmul.f32 %v2103, %v2109
      %v2113 = vmul.f32 %v2104, %v2109
      %v2115 = vlaneseq
      %v2116 = vshrl.u32 %v2115, 7
      %v2117 = vsub.s32 0, %v2116
      %v2118 = vrot.slane %v2065, %v2117
      %v2120 = vadd.f32 %v2111, %v2118
      %v2121 = vadd.f32 %v2112, %v2118
      %v2122 = vadd.f32 %v2113, %v2118
      %v2123 = vpack.c.bf16 %v2121, %v2120
      %v2124 = vpack.c.bf16 %v2122, %v2122
      %s2125 = scalar_lea.vmem %s4, 24
      %v2126 = vld [vmem:[%s2125] sm:$0xf]
      %v2127 = vld [vmem:[%s2125 + $0x4] sm:$0xf]
      %v2128 = vld [vmem:[%s2125 + $0x8] sm:$0xf]
      %v2129 = vld [vmem:[%s2125 + $0xc] sm:$0xf]
      %v2130 = vld [vmem:[%s2125 + $0x10] sm:$0xf]
      %v2131 = vld [vmem:[%s2125 + $0x14] sm:$0xf]
      %s2132 = scalar_lea.vmem %s5, 1
      %v2133 = vld [vmem:[%s2132] sm:$0x1]
      %v2135 = vlaneseq
      %v2136 = vshrl.u32 %v2135, 7
      %v2137 = vsub.s32 0, %v2136
      %v2138 = vrot.slane %v2133, %v2137
      %v2146 = vunpack.c.l.b16 %v2126
      %v2147 = vunpack.c.l.b16 %v2127
      %v2148 = vunpack.c.l.b16 %v2128
      %v2149 = vunpack.c.l.b16 %v2129
      %v2150 = vunpack.c.l.b16 %v2130
      %v2151 = vunpack.c.l.b16 %v2131
      %v2152 = vpack.c.b16 %v2147, %v2146
      %v2153 = vpack.c.b16 %v2149, %v2148
      %v2154 = vpack.c.b16 %v2151, %v2150
      %v2159 = vsel %vm874, %v2123, 0
      %v2162 = vsel %vm874, %v2124, 0
      %2164 = vmatprep.subr.bf16.mxu0 0
      %2165 = vmatpush1.bf16.msra.mxu0 %v2152
      %2166 = vmatprep.subr.bf16.mxu0 0
      %2167 = vmatpush1.bf16.msra.mxu0 %v2153
      %2168 = vmatprep.subr.bf16.mxu0 0
      %2169 = vmatpush1.bf16.msra.mxu0 %v2154
      %2170 = vmatprep.subr.bf16.mxu0 0
      %2171 = vmatpush1.bf16.msra.mxu0 0
      %2172 = vmatprep.subr.bf16.mxu0 0
      %2173 = vmatpush1.bf16.msra.mxu0 0
      %2174 = vmatprep.subr.bf16.mxu0 0
      %2175 = vmatpush1.bf16.msra.mxu0 0
      %2176 = vmatprep.subr.bf16.mxu0 0
      %2177 = vmatpush1.bf16.msra.mxu0 0
      %2178 = vmatprep.subr.bf16.mxu0 0
      %2179 = vmatpush1.bf16.msra.mxu0 0
      %2180 = vmatprep.subr.bf16.mxu0 0
      %2181 = vmatpush1.bf16.msra.mxu0 0
      %2182 = vmatprep.subr.bf16.mxu0 0
      %2183 = vmatpush1.bf16.msra.mxu0 0
      %2184 = vmatprep.subr.bf16.mxu0 0
      %2185 = vmatpush1.bf16.msra.mxu0 0
      %2186 = vmatprep.subr.bf16.mxu0 0
      %2187 = vmatpush1.bf16.msra.mxu0 0
      %2188 = vmatprep.subr.bf16.mxu0 0
      %2189 = vmatpush1.bf16.msra.mxu0 0
      %2190 = vmatprep.subr.bf16.mxu0 0
      %2191 = vmatpush1.bf16.msra.mxu0 0
      %2192 = vmatprep.subr.bf16.mxu0 0
      %2193 = vmatpush1.bf16.msra.mxu0 0
      %2194 = vmatprep.subr.bf16.mxu0 0
      %2195 = vmatpush1.bf16.msra.mxu0 0
      %2196 = vmatprep.mubr.bf16.mxu0 0
      %2197 = vmatmul.mubr.bf16.gmra.mrb[0].mxu0 %v2159
      %v2198 = vpop.f32.mrb[0].mxu0
      %v2199 = vadd.f32 %v2138, %v2198
      %v2200 = vpop.f32.mrb[0].mxu0
      %v2201 = vpop.f32.mrb[0].mxu0
      %v2202 = vadd.f32 %v2138, %v2201
      %v2203 = vpop.f32.mrb[0].mxu0
      %2204 = vmatprep.mubr.bf16.mxu0 0
      %2205 = vmatmul.mubr.bf16.gmra.mrb[0].mxu0 %v2162
      %v2206 = vpop.f32.mrb[0].mxu0
      %v2207 = vadd.f32 %v2138, %v2206
      %v2208 = vpop.f32.mrb[0].mxu0
      %v2209 = vpop.f32.mrb[0].mxu0
      %v2210 = vpop.f32.mrb[0].mxu0
      %2211 = vdwg.mxu0
      %s2212 = scalar_lea.vmem %s6, 16
      %v2213 = vld [vmem:[%s2212] sm:$0xf]
      %v2214 = vld [vmem:[%s2212 + $0x4] sm:$0xf]
      %v2215 = vld [vmem:[%s2212 + $0x8] sm:$0xf]
      %v2216 = vld [vmem:[%s2212 + $0xc] sm:$0xf]
      %s2217 = scalar_lea.vmem %s7, 1
      %v2218 = vld [vmem:[%s2217] sm:$0x1]
      %v2220 = vlaneseq
      %v2221 = vshrl.u32 %v2220, 7
      %v2222 = vsub.s32 0, %v2221
      %v2223 = vrot.slane %v2218, %v2222
      %v2229 = vunpack.c.l.b16 %v2213
      %v2230 = vunpack.c.l.b16 %v2214
      %v2231 = vunpack.c.l.b16 %v2215
      %v2232 = vunpack.c.l.b16 %v2216
      %v2233 = vpack.c.b16 %v2230, %v2229
      %v2234 = vpack.c.b16 %v2232, %v2231
      %2237 = vmatprep.subr.bf16.mxu0 0
      %2238 = vmatpush1.bf16.msra.mxu0 %v2233
      %2239 = vmatprep.subr.bf16.mxu0 0
      %2240 = vmatpush1.bf16.msra.mxu0 %v2234
      %2241 = vmatprep.subr.bf16.mxu0 0
      %2242 = vmatpush1.bf16.msra.mxu0 0
      %2243 = vmatprep.subr.bf16.mxu0 0
      %2244 = vmatpush1.bf16.msra.mxu0 0
      %2245 = vmatprep.subr.bf16.mxu0 0
      %2246 = vmatpush1.bf16.msra.mxu0 0
      %2247 = vmatprep.subr.bf16.mxu0 0
      %2248 = vmatpush1.bf16.msra.mxu0 0
      %2249 = vmatprep.subr.bf16.mxu0 0
      %2250 = vmatpush1.bf16.msra.mxu0 0
      %2251 = vmatprep.subr.bf16.mxu0 0
      %2252 = vmatpush1.bf16.msra.mxu0 0
      %2253 = vmatprep.subr.bf16.mxu0 0
      %2254 = vmatpush1.bf16.msra.mxu0 0
      %2255 = vmatprep.subr.bf16.mxu0 0
      %2256 = vmatpush1.bf16.msra.mxu0 0
      %2257 = vmatprep.subr.bf16.mxu0 0
      %2258 = vmatpush1.bf16.msra.mxu0 0
      %2259 = vmatprep.subr.bf16.mxu0 0
      %2260 = vmatpush1.bf16.msra.mxu0 0
      %2261 = vmatprep.subr.bf16.mxu0 0
      %2262 = vmatpush1.bf16.msra.mxu0 0
      %2263 = vmatprep.subr.bf16.mxu0 0
      %2264 = vmatpush1.bf16.msra.mxu0 0
      %2265 = vmatprep.subr.bf16.mxu0 0
      %2266 = vmatpush1.bf16.msra.mxu0 0
      %2267 = vmatprep.subr.bf16.mxu0 0
      %2268 = vmatpush1.bf16.msra.mxu0 0
      %2269 = vmatprep.mubr.bf16.mxu0 0
      %2270 = vmatmul.mubr.bf16.gmra.mrb[0].mxu0 %v1167
      %v2271 = vpop.f32.mrb[0].mxu0
      %v2272 = vadd.f32 %v2223, %v2271
      %v2273 = vpop.f32.mrb[0].mxu0
      %v2274 = vpop.f32.mrb[0].mxu0
      %v2275 = vadd.f32 %v2223, %v2274
      %v2276 = vpop.f32.mrb[0].mxu0
      %2277 = vmatprep.mubr.bf16.mxu0 0
      %2278 = vmatmul.mubr.bf16.gmra.mrb[0].mxu0 %v1170
      %v2279 = vpop.f32.mrb[0].mxu0
      %v2280 = vadd.f32 %v2223, %v2279
      %v2281 = vpop.f32.mrb[0].mxu0
      %v2282 = vpop.f32.mrb[0].mxu0
      %v2283 = vadd.f32 %v2223, %v2282
      %v2284 = vpop.f32.mrb[0].mxu0
      %2285 = vmatprep.mubr.bf16.mxu0 0
      %2286 = vmatmul.mubr.bf16.gmra.mrb[0].mxu0 %v1173
      %v2287 = vpop.f32.mrb[0].mxu0
      %v2288 = vadd.f32 %v2223, %v2287
      %v2289 = vpop.f32.mrb[0].mxu0
      %v2290 = vpop.f32.mrb[0].mxu0
      %v2291 = vadd.f32 %v2223, %v2290
      %v2292 = vpop.f32.mrb[0].mxu0
      %2293 = vdwg.mxu0
      %s2294 = scalar_lea.vmem %s8, 16
      %v2295 = vld [vmem:[%s2294] sm:$0xf]
      %v2296 = vld [vmem:[%s2294 + $0x4] sm:$0xf]
      %v2297 = vld [vmem:[%s2294 + $0x8] sm:$0xf]
      %v2298 = vld [vmem:[%s2294 + $0xc] sm:$0xf]
      %s2299 = scalar_lea.vmem %s9, 1
      %v2300 = vld [vmem:[%s2299] sm:$0x1]
      %v2302 = vlaneseq
      %v2303 = vshrl.u32 %v2302, 7
      %v2304 = vsub.s32 0, %v2303
      %v2305 = vrot.slane %v2300, %v2304
      %v2311 = vunpack.c.l.b16 %v2295
      %v2312 = vunpack.c.l.b16 %v2296
      %v2313 = vunpack.c.l.b16 %v2297
      %v2314 = vunpack.c.l.b16 %v2298
      %v2315 = vpack.c.b16 %v2312, %v2311
      %v2316 = vpack.c.b16 %v2314, %v2313
      %2319 = vmatprep.subr.bf16.mxu0 0
      %2320 = vmatpush1.bf16.msra.mxu0 %v2315
      %2321 = vmatprep.subr.bf16.mxu0 0
      %2322 = vmatpush1.bf16.msra.mxu0 %v2316
      %2323 = vmatprep.subr.bf16.mxu0 0
      %2324 = vmatpush1.bf16.msra.mxu0 0
      %2325 = vmatprep.subr.bf16.mxu0 0
      %2326 = vmatpush1.bf16.msra.mxu0 0
      %2327 = vmatprep.subr.bf16.mxu0 0
      %2328 = vmatpush1.bf16.msra.mxu0 0
      %2329 = vmatprep.subr.bf16.mxu0 0
      %2330 = vmatpush1.bf16.msra.mxu0 0
      %2331 = vmatprep.subr.bf16.mxu0 0
      %2332 = vmatpush1.bf16.msra.mxu0 0
      %2333 = vmatprep.subr.bf16.mxu0 0
      %2334 = vmatpush1.bf16.msra.mxu0 0
      %2335 = vmatprep.subr.bf16.mxu0 0
      %2336 = vmatpush1.bf16.msra.mxu0 0
      %2337 = vmatprep.subr.bf16.mxu0 0
      %2338 = vmatpush1.bf16.msra.mxu0 0
      %2339 = vmatprep.subr.bf16.mxu0 0
      %2340 = vmatpush1.bf16.msra.mxu0 0
      %2341 = vmatprep.subr.bf16.mxu0 0
      %2342 = vmatpush1.bf16.msra.mxu0 0
      %2343 = vmatprep.subr.bf16.mxu0 0
      %2344 = vmatpush1.bf16.msra.mxu0 0
      %2345 = vmatprep.subr.bf16.mxu0 0
      %2346 = vmatpush1.bf16.msra.mxu0 0
      %2347 = vmatprep.subr.bf16.mxu0 0
      %2348 = vmatpush1.bf16.msra.mxu0 0
      %2349 = vmatprep.subr.bf16.mxu0 0
      %2350 = vmatpush1.bf16.msra.mxu0 0
      %2351 = vmatprep.mubr.bf16.mxu0 0
      %2352 = vmatmul.mubr.bf16.gmra.mrb[0].mxu0 %v1167
      %v2353 = vpop.f32.mrb[0].mxu0
      %v2354 = vadd.f32 %v2305, %v2353
      %v2355 = vpop.f32.mrb[0].mxu0
      %v2356 = vpop.f32.mrb[0].mxu0
      %v2357 = vadd.f32 %v2305, %v2356
      %v2358 = vpop.f32.mrb[0].mxu0
      %2359 = vmatprep.mubr.bf16.mxu0 0
      %2360 = vmatmul.mubr.bf16.gmra.mrb[0].mxu0 %v1170
      %v2361 = vpop.f32.mrb[0].mxu0
      %v2362 = vadd.f32 %v2305, %v2361
      %v2363 = vpop.f32.mrb[0].mxu0
      %v2364 = vpop.f32.mrb[0].mxu0
      %v2365 = vadd.f32 %v2305, %v2364
      %v2366 = vpop.f32.mrb[0].mxu0
      %2367 = vmatprep.mubr.bf16.mxu0 0
      %2368 = vmatmul.mubr.bf16.gmra.mrb[0].mxu0 %v1173
      %v2369 = vpop.f32.mrb[0].mxu0
      %v2370 = vadd.f32 %v2305, %v2369
      %v2371 = vpop.f32.mrb[0].mxu0
      %v2372 = vpop.f32.mrb[0].mxu0
      %v2373 = vadd.f32 %v2305, %v2372
      %v2374 = vpop.f32.mrb[0].mxu0
      %2375 = vdwg.mxu0
      %v2376 = vpack.c.bf16 %v2202, %v2199
      %v2377 = vpack.c.bf16 %v2207, %v2207
      %v2378 = vpack.c.bf16 %v2275, %v2272
      %v2379 = vpack.c.bf16 %v2283, %v2280
      %v2380 = vpack.c.bf16 %v2291, %v2288
      %v2381 = vpack.c.bf16 %v2357, %v2354
      %v2382 = vpack.c.bf16 %v2365, %v2362
      %v2383 = vpack.c.bf16 %v2373, %v2370
      %v2385 = vsel %vm1320, %v2376, 0
      %v2388 = vsel %vm1320, %v2377, 0
      %v2391 = vsel %vm1320, %v2378, 0
      %v2394 = vsel %vm1320, %v2379, 0
      %v2397 = vsel %vm1320, %v2380, 0
      %2399 = vmatprep.subr.bf16.mxu0 0
      %2400 = vmatpush1.bf16.xpose.msra.mxu0 %v2391
      %2401 = vmatprep.subr.bf16.mxu0 0
      %2402 = vmatpush1.bf16.xpose.msra.mxu0 %v2394
      %2403 = vmatprep.subr.bf16.mxu0 0
      %2404 = vmatpush1.bf16.xpose.msra.mxu0 %v2397
      %2405 = vmatprep.subr.bf16.mxu0 0
      %2406 = vmatpush1.bf16.xpose.msra.mxu0 0
      %2407 = vmatprep.subr.bf16.mxu0 0
      %2408 = vmatpush1.bf16.xpose.msra.mxu0 0
      %2409 = vmatprep.subr.bf16.mxu0 0
      %2410 = vmatpush1.bf16.xpose.msra.mxu0 0
      %2411 = vmatprep.subr.bf16.mxu0 0
      %2412 = vmatpush1.bf16.xpose.msra.mxu0 0
      %2413 = vmatprep.subr.bf16.mxu0 0
      %2414 = vmatpush1.bf16.xpose.msra.mxu0 0
      %2415 = vmatprep.subr.bf16.mxu0 0
      %2416 = vmatpush1.bf16.xpose.msra.mxu0 0
      %2417 = vmatprep.subr.bf16.mxu0 0
      %2418 = vmatpush1.bf16.xpose.msra.mxu0 0
      %2419 = vmatprep.subr.bf16.mxu0 0
      %2420 = vmatpush1.bf16.xpose.msra.mxu0 0
      %2421 = vmatprep.subr.bf16.mxu0 0
      %2422 = vmatpush1.bf16.xpose.msra.mxu0 0
      %2423 = vmatprep.subr.bf16.mxu0 0
      %2424 = vmatpush1.bf16.xpose.msra.mxu0 0
      %2425 = vmatprep.subr.bf16.mxu0 0
      %2426 = vmatpush1.bf16.xpose.msra.mxu0 0
      %2427 = vmatprep.subr.bf16.mxu0 0
      %2428 = vmatpush1.bf16.xpose.msra.mxu0 0
      %2429 = vmatprep.subr.bf16.mxu0 0
      %2430 = vmatpush1.bf16.xpose.msra.mxu0 0
      %2431 = vmatprep.mubr.bf16.mxu0 0
      %2432 = vmatmul.mubr.bf16.gmra.mrb[0].mxu0 %v2385
      %v2433 = vpop.f32.mrb[0].mxu0
      %v2434 = vadd.f32 0.0, %v2433
      %v2435 = vpop.f32.mrb[0].mxu0
      %v2436 = vpop.f32.mrb[0].mxu0
      %v2437 = vadd.f32 0.0, %v2436
      %v2438 = vpop.f32.mrb[0].mxu0
      %2439 = vmatprep.mubr.bf16.mxu0 0
      %2440 = vmatmul.mubr.bf16.gmra.mrb[0].mxu0 %v2388
      %v2441 = vpop.f32.mrb[0].mxu0
      %v2442 = vadd.f32 0.0, %v2441
      %v2443 = vpop.f32.mrb[0].mxu0
      %v2444 = vpop.f32.mrb[0].mxu0
      %v2445 = vpop.f32.mrb[0].mxu0
      %2446 = vdwg.mxu0
      %v2447 = vmul.f32 %v2434, 0.20412415
      %v2448 = vmul.f32 %v2437, 0.20412415
      %v2449 = vmul.f32 %v2442, 0.20412415
      %v2450 = vsel %vm874, %v2447, -inf
      %2451 = vmax.xlane.f32.xlu0 %v2450
      %v2452 = vpop.xlane.xlu0 %2451
      %v2453 = vsel %vm874, %v2448, -inf
      %2454 = vmax.xlane.f32.xlu0 %v2453
      %v2455 = vpop.xlane.xlu0 %2454
      %v2456 = vsel %vm1032, %v2449, -inf
      %2457 = vmax.xlane.f32.xlu0 %v2456
      %v2458 = vpop.xlane.xlu0 %2457
      %v2459 = vsub.f32 %v2447, %v2452
      %v2460 = vsub.f32 %v2448, %v2455
      %v2461 = vsub.f32 %v2449, %v2458
      %v2462 = vmul.f32 %v2459, 1.442695
      %v2463 = vpow.pop %v2462
      %v2464 = vmul.f32 %v2460, 1.442695
      %v2465 = vpow.pop %v2464
      %v2466 = vmul.f32 %v2461, 1.442695
      %v2467 = vpow.pop %v2466
      %v2468 = vsel %vm874, %v2463, 0.0
      %2469 = vadd.xlane.f32.xlu0 %v2468
      %v2470 = vpop.xlane.xlu0 %2469
      %v2471 = vsel %vm874, %v2465, 0.0
      %2472 = vadd.xlane.f32.xlu0 %v2471
      %v2473 = vpop.xlane.xlu0 %2472
      %v2474 = vsel %vm1032, %v2467, 0.0
      %2475 = vadd.xlane.f32.xlu0 %v2474
      %v2476 = vpop.xlane.xlu0 %2475
      %v2477 = vrcp.pop %v2470
      %v2478 = vrcp.pop %v2473
      %v2479 = vrcp.pop %v2476
      %v2480 = vmul.f32 %v2463, %v2477
      %v2481 = vmul.f32 %v2465, %v2478
      %v2482 = vmul.f32 %v2467, %v2479
      %v2483 = vadd.f32 %v2480, 0.0
      %v2484 = vadd.f32 %v2481, 0.0
      %v2485 = vadd.f32 %v2482, 0.0
      %v2486 = vpack.c.bf16 %v2481, %v2480
      %v2487 = vpack.c.bf16 %v2482, %v2482
      %v2489 = vsel %vm874, %v2486, 0
      %v2492 = vsel %vm874, %v2487, 0
      %2494 = vmatprep.subr.bf16.mxu0 0
      %2495 = vmatpush1.bf16.msra.mxu0 %v2381
      %2496 = vmatprep.subr.bf16.mxu0 0
      %2497 = vmatpush1.bf16.msra.mxu0 %v2382
      %2498 = vmatprep.subr.bf16.mxu0 0
      %2499 = vmatpush1.bf16.msra.mxu0 %v2383
      %2500 = vmatprep.subr.bf16.mxu0 0
      %2501 = vmatpush1.bf16.msra.mxu0 0
      %2502 = vmatprep.subr.bf16.mxu0 0
      %2503 = vmatpush1.bf16.msra.mxu0 0
      %2504 = vmatprep.subr.bf16.mxu0 0
      %2505 = vmatpush1.bf16.msra.mxu0 0
      %2506 = vmatprep.subr.bf16.mxu0 0
      %2507 = vmatpush1.bf16.msra.mxu0 0
      %2508 = vmatprep.subr.bf16.mxu0 0
      %2509 = vmatpush1.bf16.msra.mxu0 0
      %2510 = vmatprep.subr.bf16.mxu0 0
      %2511 = vmatpush1.bf16.msra.mxu0 0
      %2512 = vmatprep.subr.bf16.mxu0 0
      %2513 = vmatpush1.bf16.msra.mxu0 0
      %2514 = vmatprep.subr.bf16.mxu0 0
      %2515 = vmatpush1.bf16.msra.mxu0 0
      %2516 = vmatprep.subr.bf16.mxu0 0
      %2517 = vmatpush1.bf16.msra.mxu0 0
      %2518 = vmatprep.subr.bf16.mxu0 0
      %2519 = vmatpush1.bf16.msra.mxu0 0
      %2520 = vmatprep.subr.bf16.mxu0 0
      %2521 = vmatpush1.bf16.msra.mxu0 0
      %2522 = vmatprep.subr.bf16.mxu0 0
      %2523 = vmatpush1.bf16.msra.mxu0 0
      %2524 = vmatprep.subr.bf16.mxu0 0
      %2525 = vmatpush1.bf16.msra.mxu0 0
      %2526 = vmatprep.mubr.bf16.mxu0 0
      %2527 = vmatmul.mubr.bf16.gmra.mrb[0].mxu0 %v2489
      %v2528 = vpop.f32.mrb[0].mxu0
      %v2529 = vadd.f32 0.0, %v2528
      %v2530 = vpop.f32.mrb[0].mxu0
      %v2531 = vpop.f32.mrb[0].mxu0
      %v2532 = vadd.f32 0.0, %v2531
      %v2533 = vpop.f32.mrb[0].mxu0
      %2534 = vmatprep.mubr.bf16.mxu0 0
      %2535 = vmatmul.mubr.bf16.gmra.mrb[0].mxu0 %v2492
      %v2536 = vpop.f32.mrb[0].mxu0
      %v2537 = vadd.f32 0.0, %v2536
      %v2538 = vpop.f32.mrb[0].mxu0
      %v2539 = vpop.f32.mrb[0].mxu0
      %v2540 = vpop.f32.mrb[0].mxu0
      %2541 = vdwg.mxu0
      %v2542 = vpack.c.bf16 %v2532, %v2529
      %v2543 = vpack.c.bf16 %v2537, %v2537
      %s2544 = scalar_lea.vmem %s10, 24
      %v2545 = vld [vmem:[%s2544] sm:$0xf]
      %v2546 = vld [vmem:[%s2544 + $0x4] sm:$0xf]
      %v2547 = vld [vmem:[%s2544 + $0x8] sm:$0xf]
      %2550 = vrot.lane.b32.xlu0 %v2376, 104
      %v2551 = vpop.permute.xlu0 %2550
      %2552 = vrot.lane.b32.xlu0 %v2377, 104
      %v2553 = vpop.permute.xlu0 %2552
      %2557 = vrot.lane.b32.xlu0 %v2378, 104
      %v2558 = vpop.permute.xlu0 %2557
      %2559 = vrot.lane.b32.xlu0 %v2379, 104
      %v2560 = vpop.permute.xlu0 %2559
      %2561 = vrot.lane.b32.xlu0 %v2380, 104
      %v2562 = vpop.permute.xlu0 %2561
      %v2564 = vsel %vm1320, %v2551, 0
      %v2567 = vsel %vm1320, %v2553, 0
      %v2570 = vsel %vm1320, %v2558, 0
      %v2573 = vsel %vm1320, %v2560, 0
      %v2576 = vsel %vm1320, %v2562, 0
      %2578 = vmatprep.subr.bf16.mxu0 0
      %2579 = vmatpush1.bf16.xpose.msra.mxu0 %v2570
      %2580 = vmatprep.subr.bf16.mxu0 0
      %2581 = vmatpush1.bf16.xpose.msra.mxu0 %v2573
      %2582 = vmatprep.subr.bf16.mxu0 0
      %2583 = vmatpush1.bf16.xpose.msra.mxu0 %v2576
      %2584 = vmatprep.subr.bf16.mxu0 0
      %2585 = vmatpush1.bf16.xpose.msra.mxu0 0
      %2586 = vmatprep.subr.bf16.mxu0 0
      %2587 = vmatpush1.bf16.xpose.msra.mxu0 0
      %2588 = vmatprep.subr.bf16.mxu0 0
      %2589 = vmatpush1.bf16.xpose.msra.mxu0 0
      %2590 = vmatprep.subr.bf16.mxu0 0
      %2591 = vmatpush1.bf16.xpose.msra.mxu0 0
      %2592 = vmatprep.subr.bf16.mxu0 0
      %2593 = vmatpush1.bf16.xpose.msra.mxu0 0
      %2594 = vmatprep.subr.bf16.mxu0 0
      %2595 = vmatpush1.bf16.xpose.msra.mxu0 0
      %2596 = vmatprep.subr.bf16.mxu0 0
      %2597 = vmatpush1.bf16.xpose.msra.mxu0 0
      %2598 = vmatprep.subr.bf16.mxu0 0
      %2599 = vmatpush1.bf16.xpose.msra.mxu0 0
      %2600 = vmatprep.subr.bf16.mxu0 0
      %2601 = vmatpush1.bf16.xpose.msra.mxu0 0
      %2602 = vmatprep.subr.bf16.mxu0 0
      %2603 = vmatpush1.bf16.xpose.msra.mxu0 0
      %2604 = vmatprep.subr.bf16.mxu0 0
      %2605 = vmatpush1.bf16.xpose.msra.mxu0 0
      %2606 = vmatprep.subr.bf16.mxu0 0
      %2607 = vmatpush1.bf16.xpose.msra.mxu0 0
      %2608 = vmatprep.subr.bf16.mxu0 0
      %2609 = vmatpush1.bf16.xpose.msra.mxu0 0
      %2610 = vmatprep.mubr.bf16.mxu0 0
      %2611 = vmatmul.mubr.bf16.gmra.mrb[0].mxu0 %v2564
      %v2612 = vpop.f32.mrb[0].mxu0
      %v2613 = vadd.f32 0.0, %v2612
      %v2614 = vpop.f32.mrb[0].mxu0
      %v2615 = vpop.f32.mrb[0].mxu0
      %v2616 = vadd.f32 0.0, %v2615
      %v2617 = vpop.f32.mrb[0].mxu0
      %2618 = vmatprep.mubr.bf16.mxu0 0
      %2619 = vmatmul.mubr.bf16.gmra.mrb[0].mxu0 %v2567
      %v2620 = vpop.f32.mrb[0].mxu0
      %v2621 = vadd.f32 0.0, %v2620
      %v2622 = vpop.f32.mrb[0].mxu0
      %v2623 = vpop.f32.mrb[0].mxu0
      %v2624 = vpop.f32.mrb[0].mxu0
      %2625 = vdwg.mxu0
      %v2626 = vmul.f32 %v2613, 0.20412415
      %v2627 = vmul.f32 %v2616, 0.20412415
      %v2628 = vmul.f32 %v2621, 0.20412415
      %v2629 = vsel %vm874, %v2626, -inf
      %2630 = vmax.xlane.f32.xlu0 %v2629
      %v2631 = vpop.xlane.xlu0 %2630
      %v2632 = vsel %vm874, %v2627, -inf
      %2633 = vmax.xlane.f32.xlu0 %v2632
      %v2634 = vpop.xlane.xlu0 %2633
      %v2635 = vsel %vm1032, %v2628, -inf
      %2636 = vmax.xlane.f32.xlu0 %v2635
      %v2637 = vpop.xlane.xlu0 %2636
      %v2638 = vsub.f32 %v2626, %v2631
      %v2639 = vsub.f32 %v2627, %v2634
      %v2640 = vsub.f32 %v2628, %v2637
      %v2641 = vmul.f32 %v2638, 1.442695
      %v2642 = vpow.pop %v2641
      %v2643 = vmul.f32 %v2639, 1.442695
      %v2644 = vpow.pop %v2643
      %v2645 = vmul.f32 %v2640, 1.442695
      %v2646 = vpow.pop %v2645
      %v2647 = vsel %vm874, %v2642, 0.0
      %2648 = vadd.xlane.f32.xlu0 %v2647
      %v2649 = vpop.xlane.xlu0 %2648
      %v2650 = vsel %vm874, %v2644, 0.0
      %2651 = vadd.xlane.f32.xlu0 %v2650
      %v2652 = vpop.xlane.xlu0 %2651
      %v2653 = vsel %vm1032, %v2646, 0.0
      %2654 = vadd.xlane.f32.xlu0 %v2653
      %v2655 = vpop.xlane.xlu0 %2654
      %v2656 = vrcp.pop %v2649
      %v2657 = vrcp.pop %v2652
      %v2658 = vrcp.pop %v2655
      %v2659 = vmul.f32 %v2642, %v2656
      %v2660 = vmul.f32 %v2644, %v2657
      %v2661 = vmul.f32 %v2646, %v2658
      %v2662 = vadd.f32 %v2483, %v2659
      %v2663 = vadd.f32 %v2484, %v2660
      %v2664 = vadd.f32 %v2485, %v2661
      %v2665 = vpack.c.bf16 %v2660, %v2659
      %v2666 = vpack.c.bf16 %v2661, %v2661
      %2670 = vrot.lane.b32.xlu0 %v2381, 104
      %v2671 = vpop.permute.xlu0 %2670
      %2672 = vrot.lane.b32.xlu0 %v2382, 104
      %v2673 = vpop.permute.xlu0 %2672
      %2674 = vrot.lane.b32.xlu0 %v2383, 104
      %v2675 = vpop.permute.xlu0 %2674
      %v2680 = vsel %vm874, %v2665, 0
      %v2683 = vsel %vm874, %v2666, 0
      %2685 = vmatprep.subr.bf16.mxu0 0
      %2686 = vmatpush1.bf16.msra.mxu0 %v2671
      %2687 = vmatprep.subr.bf16.mxu0 0
      %2688 = vmatpush1.bf16.msra.mxu0 %v2673
      %2689 = vmatprep.subr.bf16.mxu0 0
      %2690 = vmatpush1.bf16.msra.mxu0 %v2675
      %2691 = vmatprep.subr.bf16.mxu0 0
      %2692 = vmatpush1.bf16.msra.mxu0 0
      %2693 = vmatprep.subr.bf16.mxu0 0
      %2694 = vmatpush1.bf16.msra.mxu0 0
      %2695 = vmatprep.subr.bf16.mxu0 0
      %2696 = vmatpush1.bf16.msra.mxu0 0
      %2697 = vmatprep.subr.bf16.mxu0 0
      %2698 = vmatpush1.bf16.msra.mxu0 0
      %2699 = vmatprep.subr.bf16.mxu0 0
      %2700 = vmatpush1.bf16.msra.mxu0 0
      %2701 = vmatprep.subr.bf16.mxu0 0
      %2702 = vmatpush1.bf16.msra.mxu0 0
      %2703 = vmatprep.subr.bf16.mxu0 0
      %2704 = vmatpush1.bf16.msra.mxu0 0
      %2705 = vmatprep.subr.bf16.mxu0 0
      %2706 = vmatpush1.bf16.msra.mxu0 0
      %2707 = vmatprep.subr.bf16.mxu0 0
      %2708 = vmatpush1.bf16.msra.mxu0 0
      %2709 = vmatprep.subr.bf16.mxu0 0
      %2710 = vmatpush1.bf16.msra.mxu0 0
      %2711 = vmatprep.subr.bf16.mxu0 0
      %2712 = vmatpush1.bf16.msra.mxu0 0
      %2713 = vmatprep.subr.bf16.mxu0 0
      %2714 = vmatpush1.bf16.msra.mxu0 0
      %2715 = vmatprep.subr.bf16.mxu0 0
      %2716 = vmatpush1.bf16.msra.mxu0 0
      %2717 = vmatprep.mubr.bf16.mxu0 0
      %2718 = vmatmul.mubr.bf16.gmra.mrb[0].mxu0 %v2680
      %v2719 = vpop.f32.mrb[0].mxu0
      %v2720 = vadd.f32 0.0, %v2719
      %v2721 = vpop.f32.mrb[0].mxu0
      %v2722 = vpop.f32.mrb[0].mxu0
      %v2723 = vadd.f32 0.0, %v2722
      %v2724 = vpop.f32.mrb[0].mxu0
      %2725 = vmatprep.mubr.bf16.mxu0 0
      %2726 = vmatmul.mubr.bf16.gmra.mrb[0].mxu0 %v2683
      %v2727 = vpop.f32.mrb[0].mxu0
      %v2728 = vadd.f32 0.0, %v2727
      %v2729 = vpop.f32.mrb[0].mxu0
      %v2730 = vpop.f32.mrb[0].mxu0
      %v2731 = vpop.f32.mrb[0].mxu0
      %2732 = vdwg.mxu0
      %v2733 = vpack.c.bf16 %v2723, %v2720
      %v2734 = vpack.c.bf16 %v2728, %v2728
      %s2735 = scalar_lea.vmem %s10, 36
      %v2736 = vld [vmem:[%s2735] sm:$0xf]
      %v2737 = vld [vmem:[%s2735 + $0x4] sm:$0xf]
      %v2738 = vld [vmem:[%s2735 + $0x8] sm:$0xf]
      %v2742 = vunpack.c.l.b16 %v2736
      %v2743 = vunpack.c.l.b16 %v2737
      %v2744 = vunpack.c.l.b16 %v2738
      %v2745 = vpack.c.b16 %v2743, %v2742
      %v2746 = vpack.c.b16 %v2744, %v2744
      %v2749 = vsel %vm1320, %v2733, 0
      %v2752 = vsel %vm1320, %v2734, 0
      %v2755 = vsel %vm1684, %v2746, 0
      %2757 = vmatprep.subr.bf16.mxu0 0
      %2758 = vmatpush1.bf16.msra.mxu0 %v2745
      %2759 = vmatprep.subr.bf16.mxu0 0
      %2760 = vmatpush1.bf16.msra.mxu0 %v2755
      %2761 = vmatprep.subr.bf16.mxu0 0
      %2762 = vmatpush1.bf16.msra.mxu0 0
      %2763 = vmatprep.subr.bf16.mxu0 0
      %2764 = vmatpush1.bf16.msra.mxu0 0
      %2765 = vmatprep.subr.bf16.mxu0 0
      %2766 = vmatpush1.bf16.msra.mxu0 0
      %2767 = vmatprep.subr.bf16.mxu0 0
      %2768 = vmatpush1.bf16.msra.mxu0 0
      %2769 = vmatprep.subr.bf16.mxu0 0
      %2770 = vmatpush1.bf16.msra.mxu0 0
      %2771 = vmatprep.subr.bf16.mxu0 0
      %2772 = vmatpush1.bf16.msra.mxu0 0
      %2773 = vmatprep.subr.bf16.mxu0 0
      %2774 = vmatpush1.bf16.msra.mxu0 0
      %2775 = vmatprep.subr.bf16.mxu0 0
      %2776 = vmatpush1.bf16.msra.mxu0 0
      %2777 = vmatprep.subr.bf16.mxu0 0
      %2778 = vmatpush1.bf16.msra.mxu0 0
      %2779 = vmatprep.subr.bf16.mxu0 0
      %2780 = vmatpush1.bf16.msra.mxu0 0
      %2781 = vmatprep.subr.bf16.mxu0 0
      %2782 = vmatpush1.bf16.msra.mxu0 0
      %2783 = vmatprep.subr.bf16.mxu0 0
      %2784 = vmatpush1.bf16.msra.mxu0 0
      %2785 = vmatprep.subr.bf16.mxu0 0
      %2786 = vmatpush1.bf16.msra.mxu0 0
      %2787 = vmatprep.subr.bf16.mxu0 0
      %2788 = vmatpush1.bf16.msra.mxu0 0
      %2789 = vmatprep.mubr.bf16.mxu0 0
      %2790 = vmatmul.mubr.bf16.gmra.mrb[0].mxu0 %v2749
      %v2791 = vpop.f32.mrb[0].mxu0
      %v2792 = vadd.f32 0.0, %v2791
      %v2793 = vpop.f32.mrb[0].mxu0
      %v2794 = vpop.f32.mrb[0].mxu0
      %v2795 = vadd.f32 0.0, %v2794
      %v2796 = vpop.f32.mrb[0].mxu0
      %2797 = vmatprep.mubr.bf16.mxu0 0
      %2798 = vmatmul.mubr.bf16.gmra.mrb[0].mxu0 %v2752
      %v2799 = vpop.f32.mrb[0].mxu0
      %v2800 = vadd.f32 0.0, %v2799
      %v2801 = vpop.f32.mrb[0].mxu0
      %v2802 = vpop.f32.mrb[0].mxu0
      %v2803 = vpop.f32.mrb[0].mxu0
      %2804 = vdwg.mxu0
      %v2808 = vunpack.c.l.b16 %v2545
      %v2809 = vunpack.c.l.b16 %v2546
      %v2810 = vunpack.c.l.b16 %v2547
      %v2811 = vpack.c.b16 %v2809, %v2808
      %v2812 = vpack.c.b16 %v2810, %v2810
      %v2815 = vsel %vm1320, %v2542, 0
      %v2818 = vsel %vm1320, %v2543, 0
      %v2821 = vsel %vm1684, %v2812, 0
      %2823 = vmatprep.subr.bf16.mxu0 0
      %2824 = vmatpush1.bf16.msra.mxu0 %v2811
      %2825 = vmatprep.subr.bf16.mxu0 0
      %2826 = vmatpush1.bf16.msra.mxu0 %v2821
      %2827 = vmatprep.subr.bf16.mxu0 0
      %2828 = vmatpush1.bf16.msra.mxu0 0
      %2829 = vmatprep.subr.bf16.mxu0 0
      %2830 = vmatpush1.bf16.msra.mxu0 0
      %2831 = vmatprep.subr.bf16.mxu0 0
      %2832 = vmatpush1.bf16.msra.mxu0 0
      %2833 = vmatprep.subr.bf16.mxu0 0
      %2834 = vmatpush1.bf16.msra.mxu0 0
      %2835 = vmatprep.subr.bf16.mxu0 0
      %2836 = vmatpush1.bf16.msra.mxu0 0
      %2837 = vmatprep.subr.bf16.mxu0 0
      %2838 = vmatpush1.bf16.msra.mxu0 0
      %2839 = vmatprep.subr.bf16.mxu0 0
      %2840 = vmatpush1.bf16.msra.mxu0 0
      %2841 = vmatprep.subr.bf16.mxu0 0
      %2842 = vmatpush1.bf16.msra.mxu0 0
      %2843 = vmatprep.subr.bf16.mxu0 0
      %2844 = vmatpush1.bf16.msra.mxu0 0
      %2845 = vmatprep.subr.bf16.mxu0 0
      %2846 = vmatpush1.bf16.msra.mxu0 0
      %2847 = vmatprep.subr.bf16.mxu0 0
      %2848 = vmatpush1.bf16.msra.mxu0 0
      %2849 = vmatprep.subr.bf16.mxu0 0
      %2850 = vmatpush1.bf16.msra.mxu0 0
      %2851 = vmatprep.subr.bf16.mxu0 0
      %2852 = vmatpush1.bf16.msra.mxu0 0
      %2853 = vmatprep.subr.bf16.mxu0 0
      %2854 = vmatpush1.bf16.msra.mxu0 0
      %2855 = vmatprep.mubr.bf16.mxu0 0
      %2856 = vmatmul.mubr.bf16.gmra.mrb[0].mxu0 %v2815
      %v2857 = vpop.f32.mrb[0].mxu0
      %v2858 = vadd.f32 %v2792, %v2857
      %v2859 = vpop.f32.mrb[0].mxu0
      %v2860 = vpop.f32.mrb[0].mxu0
      %v2861 = vadd.f32 %v2795, %v2860
      %v2862 = vpop.f32.mrb[0].mxu0
      %2863 = vmatprep.mubr.bf16.mxu0 0
      %2864 = vmatmul.mubr.bf16.gmra.mrb[0].mxu0 %v2818
      %v2865 = vpop.f32.mrb[0].mxu0
      %v2866 = vadd.f32 %v2800, %v2865
      %v2867 = vpop.f32.mrb[0].mxu0
      %v2868 = vpop.f32.mrb[0].mxu0
      %v2869 = vpop.f32.mrb[0].mxu0
      %2870 = vdwg.mxu0
      %s2871 = scalar_lea.vmem %s11, 1
      %v2872 = vld [vmem:[%s2871] sm:$0x1]
      %v2874 = vlaneseq
      %v2875 = vshrl.u32 %v2874, 7
      %v2876 = vsub.s32 0, %v2875
      %v2877 = vrot.slane %v2872, %v2876
      %v2879 = vadd.f32 %v2858, %v2877
      %v2880 = vadd.f32 %v2861, %v2877
      %v2881 = vadd.f32 %v2866, %v2877
      %v2882 = vadd.f32 %v2120, %v2879
      %v2883 = vadd.f32 %v2121, %v2880
      %v2884 = vadd.f32 %v2122, %v2881
      %s2885 = scalar_lea.vmem %s12, 1
      %v2886 = vld [vmem:[%s2885] sm:$0x1]
      %s2887 = scalar_lea.vmem %s13, 1
      %v2888 = vld [vmem:[%s2887] sm:$0x1]
      %v2889 = vsel %vm874, %v2882, 0.0
      %2890 = vadd.xlane.f32.xlu0 %v2889
      %v2891 = vpop.xlane.xlu0 %2890
      %v2892 = vsel %vm874, %v2883, 0.0
      %2893 = vadd.xlane.f32.xlu0 %v2892
      %v2894 = vpop.xlane.xlu0 %2893
      %v2895 = vsel %vm1032, %v2884, 0.0
      %2896 = vadd.xlane.f32.xlu0 %v2895
      %v2897 = vpop.xlane.xlu0 %2896
      %v2898 = vmul.f32 %v2891, %v1826
      %v2899 = vmul.f32 %v2894, %v1826
      %v2900 = vmul.f32 %v2897, %v1826
      %v2901 = vsub.f32 %v2882, %v2898
      %v2902 = vsub.f32 %v2883, %v2899
      %v2903 = vsub.f32 %v2884, %v2900
      %v2904 = vmul.f32 %v2901, %v2901
      %v2905 = vmul.f32 %v2902, %v2902
      %v2906 = vmul.f32 %v2903, %v2903
      %v2907 = vsel %vm874, %v2904, 0.0
      %2908 = vadd.xlane.f32.xlu0 %v2907
      %v2909 = vpop.xlane.xlu0 %2908
      %v2910 = vsel %vm874, %v2905, 0.0
      %2911 = vadd.xlane.f32.xlu0 %v2910
      %v2912 = vpop.xlane.xlu0 %2911
      %v2913 = vsel %vm1032, %v2906, 0.0
      %2914 = vadd.xlane.f32.xlu0 %v2913
      %v2915 = vpop.xlane.xlu0 %2914
      %v2916 = vmul.f32 %v2909, %v1826
      %v2917 = vmul.f32 %v2912, %v1826
      %v2918 = vmul.f32 %v2915, %v1826
      %v2919 = vadd.f32 %v2916, 1e-05
      %v2920 = vadd.f32 %v2917, 1e-05
      %v2921 = vadd.f32 %v2918, 1e-05
      %v2922 = vrsqrt.pop %v2919
      %v2923 = vrsqrt.pop %v2920
      %v2924 = vrsqrt.pop %v2921
      %v2925 = vmul.f32 %v2901, %v2922
      %v2926 = vmul.f32 %v2902, %v2923
      %v2927 = vmul.f32 %v2903, %v2924
      %v2929 = vlaneseq
      %v2930 = vshrl.u32 %v2929, 7
      %v2931 = vsub.s32 0, %v2930
      %v2932 = vrot.slane %v2886, %v2931
      %v2934 = vmul.f32 %v2925, %v2932
      %v2935 = vmul.f32 %v2926, %v2932
      %v2936 = vmul.f32 %v2927, %v2932
      %v2938 = vlaneseq
      %v2939 = vshrl.u32 %v2938, 7
      %v2940 = vsub.s32 0, %v2939
      %v2941 = vrot.slane %v2888, %v2940
      %v2943 = vadd.f32 %v2934, %v2941
      %v2944 = vadd.f32 %v2935, %v2941
      %v2945 = vadd.f32 %v2936, %v2941
      %v2946 = vpack.c.bf16 %v2944, %v2943
      %v2947 = vpack.c.bf16 %v2945, %v2945
      %s2948 = scalar_lea.vmem %s14, 24
      %v2949 = vld [vmem:[%s2948] sm:$0xf]
      %v2950 = vld [vmem:[%s2948 + $0x4] sm:$0xf]
      %v2951 = vld [vmem:[%s2948 + $0x8] sm:$0xf]
      %v2952 = vld [vmem:[%s2948 + $0xc] sm:$0xf]
      %v2953 = vld [vmem:[%s2948 + $0x10] sm:$0xf]
      %v2954 = vld [vmem:[%s2948 + $0x14] sm:$0xf]
      %s2955 = scalar_lea.vmem %s15, 1
      %v2956 = vld [vmem:[%s2955] sm:$0x1]
      %v2958 = vlaneseq
      %v2959 = vshrl.u32 %v2958, 7
      %v2960 = vsub.s32 0, %v2959
      %v2961 = vrot.slane %v2956, %v2960
      %v2969 = vunpack.c.l.b16 %v2949
      %v2970 = vunpack.c.l.b16 %v2950
      %v2971 = vunpack.c.l.b16 %v2951
      %v2972 = vunpack.c.l.b16 %v2952
      %v2973 = vunpack.c.l.b16 %v2953
      %v2974 = vunpack.c.l.b16 %v2954
      %v2975 = vpack.c.b16 %v2970, %v2969
      %v2976 = vpack.c.b16 %v2972, %v2971
      %v2977 = vpack.c.b16 %v2974, %v2973
      %v2982 = vsel %vm874, %v2946, 0
      %v2985 = vsel %vm874, %v2947, 0
      %2987 = vmatprep.subr.bf16.mxu0 0
      %2988 = vmatpush1.bf16.msra.mxu0 %v2975
      %2989 = vmatprep.subr.bf16.mxu0 0
      %2990 = vmatpush1.bf16.msra.mxu0 %v2976
      %2991 = vmatprep.subr.bf16.mxu0 0
      %2992 = vmatpush1.bf16.msra.mxu0 %v2977
      %2993 = vmatprep.subr.bf16.mxu0 0
      %2994 = vmatpush1.bf16.msra.mxu0 0
      %2995 = vmatprep.subr.bf16.mxu0 0
      %2996 = vmatpush1.bf16.msra.mxu0 0
      %2997 = vmatprep.subr.bf16.mxu0 0
      %2998 = vmatpush1.bf16.msra.mxu0 0
      %2999 = vmatprep.subr.bf16.mxu0 0
      %3000 = vmatpush1.bf16.msra.mxu0 0
      %3001 = vmatprep.subr.bf16.mxu0 0
      %3002 = vmatpush1.bf16.msra.mxu0 0
      %3003 = vmatprep.subr.bf16.mxu0 0
      %3004 = vmatpush1.bf16.msra.mxu0 0
      %3005 = vmatprep.subr.bf16.mxu0 0
      %3006 = vmatpush1.bf16.msra.mxu0 0
      %3007 = vmatprep.subr.bf16.mxu0 0
      %3008 = vmatpush1.bf16.msra.mxu0 0
      %3009 = vmatprep.subr.bf16.mxu0 0
      %3010 = vmatpush1.bf16.msra.mxu0 0
      %3011 = vmatprep.subr.bf16.mxu0 0
      %3012 = vmatpush1.bf16.msra.mxu0 0
      %3013 = vmatprep.subr.bf16.mxu0 0
      %3014 = vmatpush1.bf16.msra.mxu0 0
      %3015 = vmatprep.subr.bf16.mxu0 0
      %3016 = vmatpush1.bf16.msra.mxu0 0
      %3017 = vmatprep.subr.bf16.mxu0 0
      %3018 = vmatpush1.bf16.msra.mxu0 0
      %3019 = vmatprep.mubr.bf16.mxu0 0
      %3020 = vmatmul.mubr.bf16.gmra.mrb[0].mxu0 %v2982
      %v3021 = vpop.f32.mrb[0].mxu0
      %v3022 = vadd.f32 %v2961, %v3021
      %v3023 = vpop.f32.mrb[0].mxu0
      %v3024 = vpop.f32.mrb[0].mxu0
      %v3025 = vadd.f32 %v2961, %v3024
      %v3026 = vpop.f32.mrb[0].mxu0
      %3027 = vmatprep.mubr.bf16.mxu0 0
      %3028 = vmatmul.mubr.bf16.gmra.mrb[0].mxu0 %v2985
      %v3029 = vpop.f32.mrb[0].mxu0
      %v3030 = vadd.f32 %v2961, %v3029
      %v3031 = vpop.f32.mrb[0].mxu0
      %v3032 = vpop.f32.mrb[0].mxu0
      %v3033 = vpop.f32.mrb[0].mxu0
      %3034 = vdwg.mxu0
      %v3035 = vmax.f32 %v3022, 0.0
      %v3036 = vmax.f32 %v3025, 0.0
      %v3037 = vmax.f32 %v3030, 0.0
      %v3038 = vpack.c.bf16 %v3036, %v3035
      %v3039 = vpack.c.bf16 %v3037, %v3037
      %s3040 = scalar_lea.vmem %s16, 32
      %v3041 = vld [vmem:[%s3040] sm:$0xf]
      %v3042 = vld [vmem:[%s3040 + $0x4] sm:$0xf]
      %v3043 = vld [vmem:[%s3040 + $0x8] sm:$0xf]
      %v3044 = vld [vmem:[%s3040 + $0xc] sm:$0xf]
      %v3045 = vld [vmem:[%s3040 + $0x10] sm:$0xf]
      %v3046 = vld [vmem:[%s3040 + $0x14] sm:$0xf]
      %v3047 = vld [vmem:[%s3040 + $0x18] sm:$0xf]
      %v3048 = vld [vmem:[%s3040 + $0x1c] sm:$0xf]
      %s3049 = scalar_lea.vmem %s17, 1
      %v3050 = vld [vmem:[%s3049] sm:$0x1]
      %v3052 = vlaneseq
      %v3053 = vshrl.u32 %v3052, 7
      %v3054 = vsub.s32 0, %v3053
      %v3055 = vrot.slane %v3050, %v3054
      %v3065 = vunpack.c.l.b16 %v3041
      %v3066 = vunpack.c.l.b16 %v3042
      %v3067 = vunpack.c.l.b16 %v3043
      %v3068 = vunpack.c.l.b16 %v3044
      %v3069 = vunpack.c.l.b16 %v3045
      %v3070 = vunpack.c.l.b16 %v3046
      %v3071 = vunpack.c.l.b16 %v3047
      %v3072 = vunpack.c.l.b16 %v3048
      %v3073 = vpack.c.b16 %v3066, %v3065
      %v3074 = vpack.c.b16 %v3068, %v3067
      %v3075 = vpack.c.b16 %v3070, %v3069
      %v3076 = vpack.c.b16 %v3072, %v3071
      %v3082 = vsel %vm2006, %v3038, 0
      %v3085 = vsel %vm2006, %v3039, 0
      %3087 = vmatprep.subr.bf16.mxu0 0
      %3088 = vmatpush1.bf16.msra.mxu0 %v3073
      %3089 = vmatprep.subr.bf16.mxu0 0
      %3090 = vmatpush1.bf16.msra.mxu0 %v3074
      %3091 = vmatprep.subr.bf16.mxu0 0
      %3092 = vmatpush1.bf16.msra.mxu0 %v3075
      %3093 = vmatprep.subr.bf16.mxu0 0
      %3094 = vmatpush1.bf16.msra.mxu0 %v3076
      %3095 = vmatprep.subr.bf16.mxu0 0
      %3096 = vmatpush1.bf16.msra.mxu0 0
      %3097 = vmatprep.subr.bf16.mxu0 0
      %3098 = vmatpush1.bf16.msra.mxu0 0
      %3099 = vmatprep.subr.bf16.mxu0 0
      %3100 = vmatpush1.bf16.msra.mxu0 0
      %3101 = vmatprep.subr.bf16.mxu0 0
      %3102 = vmatpush1.bf16.msra.mxu0 0
      %3103 = vmatprep.subr.bf16.mxu0 0
      %3104 = vmatpush1.bf16.msra.mxu0 0
      %3105 = vmatprep.subr.bf16.mxu0 0
      %3106 = vmatpush1.bf16.msra.mxu0 0
      %3107 = vmatprep.subr.bf16.mxu0 0
      %3108 = vmatpush1.bf16.msra.mxu0 0
      %3109 = vmatprep.subr.bf16.mxu0 0
      %3110 = vmatpush1.bf16.msra.mxu0 0
      %3111 = vmatprep.subr.bf16.mxu0 0
      %3112 = vmatpush1.bf16.msra.mxu0 0
      %3113 = vmatprep.subr.bf16.mxu0 0
      %3114 = vmatpush1.bf16.msra.mxu0 0
      %3115 = vmatprep.subr.bf16.mxu0 0
      %3116 = vmatpush1.bf16.msra.mxu0 0
      %3117 = vmatprep.subr.bf16.mxu0 0
      %3118 = vmatpush1.bf16.msra.mxu0 0
      %3119 = vmatprep.mubr.bf16.mxu0 0
      %3120 = vmatmul.mubr.bf16.gmra.mrb[0].mxu0 %v3082
      %v3121 = vpop.f32.mrb[0].mxu0
      %v3122 = vadd.f32 %v3055, %v3121
      %v3123 = vpop.f32.mrb[0].mxu0
      %v3124 = vpop.f32.mrb[0].mxu0
      %v3125 = vadd.f32 %v3055, %v3124
      %v3126 = vpop.f32.mrb[0].mxu0
      %3127 = vmatprep.mubr.bf16.mxu0 0
      %3128 = vmatmul.mubr.bf16.gmra.mrb[0].mxu0 %v3085
      %v3129 = vpop.f32.mrb[0].mxu0
      %v3130 = vadd.f32 %v3055, %v3129
      %v3131 = vpop.f32.mrb[0].mxu0
      %v3132 = vpop.f32.mrb[0].mxu0
      %v3133 = vpop.f32.mrb[0].mxu0
      %3134 = vdwg.mxu0
      %v3135 = vadd.f32 %v2943, %v3122
      %v3136 = vadd.f32 %v2944, %v3125
      %v3137 = vadd.f32 %v2945, %v3130
      %s3138 = scalar_lea.vmem %s18, 1
      %v3139 = vld [vmem:[%s3138] sm:$0x1]
      %s3140 = scalar_lea.vmem %s19, 1
      %v3141 = vld [vmem:[%s3140] sm:$0x1]
      %v3142 = vsel %vm874, %v3135, 0.0
      %3143 = vadd.xlane.f32.xlu0 %v3142
      %v3144 = vpop.xlane.xlu0 %3143
      %v3145 = vsel %vm874, %v3136, 0.0
      %3146 = vadd.xlane.f32.xlu0 %v3145
      %v3147 = vpop.xlane.xlu0 %3146
      %v3148 = vsel %vm1032, %v3137, 0.0
      %3149 = vadd.xlane.f32.xlu0 %v3148
      %v3150 = vpop.xlane.xlu0 %3149
      %v3151 = vmul.f32 %v3144, %v1826
      %v3152 = vmul.f32 %v3147, %v1826
      %v3153 = vmul.f32 %v3150, %v1826
      %v3154 = vsub.f32 %v3135, %v3151
      %v3155 = vsub.f32 %v3136, %v3152
      %v3156 = vsub.f32 %v3137, %v3153
      %v3157 = vmul.f32 %v3154, %v3154
      %v3158 = vmul.f32 %v3155, %v3155
      %v3159 = vmul.f32 %v3156, %v3156
      %v3160 = vsel %vm874, %v3157, 0.0
      %3161 = vadd.xlane.f32.xlu0 %v3160
      %v3162 = vpop.xlane.xlu0 %3161
      %v3163 = vsel %vm874, %v3158, 0.0
      %3164 = vadd.xlane.f32.xlu0 %v3163
      %v3165 = vpop.xlane.xlu0 %3164
      %v3166 = vsel %vm1032, %v3159, 0.0
      %3167 = vadd.xlane.f32.xlu0 %v3166
      %v3168 = vpop.xlane.xlu0 %3167
      %v3169 = vmul.f32 %v3162, %v1826
      %v3170 = vmul.f32 %v3165, %v1826
      %v3171 = vmul.f32 %v3168, %v1826
      %v3172 = vadd.f32 %v3169, 1e-05
      %v3173 = vadd.f32 %v3170, 1e-05
      %v3174 = vadd.f32 %v3171, 1e-05
      %v3175 = vrsqrt.pop %v3172
      %v3176 = vrsqrt.pop %v3173
      %v3177 = vrsqrt.pop %v3174
      %v3178 = vmul.f32 %v3154, %v3175
      %v3179 = vmul.f32 %v3155, %v3176
      %v3180 = vmul.f32 %v3156, %v3177
      %v3182 = vlaneseq
      %v3183 = vshrl.u32 %v3182, 7
      %v3184 = vsub.s32 0, %v3183
      %v3185 = vrot.slane %v3139, %v3184
      %v3187 = vmul.f32 %v3178, %v3185
      %v3188 = vmul.f32 %v3179, %v3185
      %v3189 = vmul.f32 %v3180, %v3185
      %v3191 = vlaneseq
      %v3192 = vshrl.u32 %v3191, 7
      %v3193 = vsub.s32 0, %v3192
      %v3194 = vrot.slane %v3141, %v3193
      %v3196 = vadd.f32 %v3187, %v3194
      %v3197 = vadd.f32 %v3188, %v3194
      %v3198 = vadd.f32 %v3189, %v3194
      %v3199 = vmul.f32 %v2662, 0.5
      %v3200 = vmul.f32 %v2663, 0.5
      %v3201 = vmul.f32 %v2664, 0.5
      %3202 = vst.msk [vmem:[%s836] sm:$0xff] %vm874, %v3199
      %3203 = vst.msk [vmem:[%s836 + $0x8] sm:$0xff] %vm874, %v3200
      %3204 = vst.msk [vmem:[%s836 + $0x10] sm:$0x1f] %vm1032, %v3201
      %v3205 = vpack.c.bf16 %v3197, %v3196
      %v3206 = vpack.c.bf16 %v3198, %v3198
      %v3207 = vld [vmem:[%s20] sm:$0xf]
      %v3208 = vld [vmem:[%s20 + $0x4] sm:$0xf]
      %v3209 = vld [vmem:[%s20 + $0x8] sm:$0xf]
      %v3210 = vld [vmem:[%s20 + $0xc] sm:$0xf]
      %v3211 = vld [vmem:[%s20 + $0x10] sm:$0xf]
      %v3212 = vld [vmem:[%s20 + $0x14] sm:$0xf]
      %v3213 = vld [vmem:[%s21] sm:$0x1]
      %v3215 = vlaneseq
      %v3216 = vshrl.u32 %v3215, 7
      %v3217 = vsub.s32 0, %v3216
      %v3218 = vrot.slane %v3213, %v3217
      %v3226 = vunpack.c.l.b16 %v3207
      %v3227 = vunpack.c.l.b16 %v3208
      %v3228 = vunpack.c.l.b16 %v3209
      %v3229 = vunpack.c.l.b16 %v3210
      %v3230 = vunpack.c.l.b16 %v3211
      %v3231 = vunpack.c.l.b16 %v3212
      %v3232 = vpack.c.b16 %v3227, %v3226
      %v3233 = vpack.c.b16 %v3229, %v3228
      %v3234 = vpack.c.b16 %v3231, %v3230
      %v3239 = vsel %vm874, %v3205, 0
      %v3242 = vsel %vm874, %v3206, 0
      %3244 = vmatprep.subr.bf16.mxu0 0
      %3245 = vmatpush1.bf16.msra.mxu0 %v3232
      %3246 = vmatprep.subr.bf16.mxu0 0
      %3247 = vmatpush1.bf16.msra.mxu0 %v3233
      %3248 = vmatprep.subr.bf16.mxu0 0
      %3249 = vmatpush1.bf16.msra.mxu0 %v3234
      %3250 = vmatprep.subr.bf16.mxu0 0
      %3251 = vmatpush1.bf16.msra.mxu0 0
      %3252 = vmatprep.subr.bf16.mxu0 0
      %3253 = vmatpush1.bf16.msra.mxu0 0
      %3254 = vmatprep.subr.bf16.mxu0 0
      %3255 = vmatpush1.bf16.msra.mxu0 0
      %3256 = vmatprep.subr.bf16.mxu0 0
      %3257 = vmatpush1.bf16.msra.mxu0 0
      %3258 = vmatprep.subr.bf16.mxu0 0
      %3259 = vmatpush1.bf16.msra.mxu0 0
      %3260 = vmatprep.subr.bf16.mxu0 0
      %3261 = vmatpush1.bf16.msra.mxu0 0
      %3262 = vmatprep.subr.bf16.mxu0 0
      %3263 = vmatpush1.bf16.msra.mxu0 0
      %3264 = vmatprep.subr.bf16.mxu0 0
      %3265 = vmatpush1.bf16.msra.mxu0 0
      %3266 = vmatprep.subr.bf16.mxu0 0
      %3267 = vmatpush1.bf16.msra.mxu0 0
      %3268 = vmatprep.subr.bf16.mxu0 0
      %3269 = vmatpush1.bf16.msra.mxu0 0
      %3270 = vmatprep.subr.bf16.mxu0 0
      %3271 = vmatpush1.bf16.msra.mxu0 0
      %3272 = vmatprep.subr.bf16.mxu0 0
      %3273 = vmatpush1.bf16.msra.mxu0 0
      %3274 = vmatprep.subr.bf16.mxu0 0
      %3275 = vmatpush1.bf16.msra.mxu0 0
      %3276 = vmatprep.mubr.bf16.mxu0 0
      %3277 = vmatmul.mubr.bf16.gmra.mrb[0].mxu0 %v3239
      %v3278 = vpop.f32.mrb[0].mxu0
      %v3279 = vadd.f32 %v3218, %v3278
      %v3280 = vpop.f32.mrb[0].mxu0
      %v3281 = vpop.f32.mrb[0].mxu0
      %v3282 = vadd.f32 %v3218, %v3281
      %v3283 = vpop.f32.mrb[0].mxu0
      %3284 = vmatprep.mubr.bf16.mxu0 0
      %3285 = vmatmul.mubr.bf16.gmra.mrb[0].mxu0 %v3242
      %v3286 = vpop.f32.mrb[0].mxu0
      %v3287 = vadd.f32 %v3218, %v3286
      %v3288 = vpop.f32.mrb[0].mxu0
      %v3289 = vpop.f32.mrb[0].mxu0
      %v3290 = vpop.f32.mrb[0].mxu0
      %3291 = vdwg.mxu0
      %v3292 = vmax.f32 %v3279, 0.0
      %v3293 = vmax.f32 %v3282, 0.0
      %v3294 = vmax.f32 %v3287, 0.0
      %v3295 = vpack.c.bf16 %v3293, %v3292
      %v3296 = vpack.c.bf16 %v3294, %v3294
      %v3297 = vld [vmem:[%s22] sm:$0xf]
      %v3298 = vld [vmem:[%s22 + $0x4] sm:$0xf]
      %v3299 = vld [vmem:[%s22 + $0x8] sm:$0xf]
      %v3300 = vld [vmem:[%s23] sm:$0x1]
      %v3302 = vlaneseq
      %v3303 = vshrl.u32 %v3302, 7
      %v3304 = vsub.s32 0, %v3303
      %v3305 = vrot.slane %v3300, %v3304
      %v3310 = vunpack.c.l.b16 %v3297
      %v3311 = vunpack.c.l.b16 %v3298
      %v3312 = vunpack.c.l.b16 %v3299
      %v3313 = vpack.c.b16 %v3311, %v3310
      %v3314 = vpack.c.b16 %v3312, %v3312
      %v3317 = vsel %vm1320, %v3295, 0
      %v3320 = vsel %vm1320, %v3296, 0
      %v3323 = vsel %vm1684, %v3314, 0
      %3325 = vmatprep.subr.bf16.mxu0 0
      %3326 = vmatpush1.bf16.msra.mxu0 %v3313
      %3327 = vmatprep.subr.bf16.mxu0 0
      %3328 = vmatpush1.bf16.msra.mxu0 %v3323
      %3329 = vmatprep.subr.bf16.mxu0 0
      %3330 = vmatpush1.bf16.msra.mxu0 0
      %3331 = vmatprep.subr.bf16.mxu0 0
      %3332 = vmatpush1.bf16.msra.mxu0 0
      %3333 = vmatprep.subr.bf16.mxu0 0
      %3334 = vmatpush1.bf16.msra.mxu0 0
      %3335 = vmatprep.subr.bf16.mxu0 0
      %3336 = vmatpush1.bf16.msra.mxu0 0
      %3337 = vmatprep.subr.bf16.mxu0 0
      %3338 = vmatpush1.bf16.msra.mxu0 0
      %3339 = vmatprep.subr.bf16.mxu0 0
      %3340 = vmatpush1.bf16.msra.mxu0 0
      %3341 = vmatprep.subr.bf16.mxu0 0
      %3342 = vmatpush1.bf16.msra.mxu0 0
      %3343 = vmatprep.subr.bf16.mxu0 0
      %3344 = vmatpush1.bf16.msra.mxu0 0
      %3345 = vmatprep.subr.bf16.mxu0 0
      %3346 = vmatpush1.bf16.msra.mxu0 0
      %3347 = vmatprep.subr.bf16.mxu0 0
      %3348 = vmatpush1.bf16.msra.mxu0 0
      %3349 = vmatprep.subr.bf16.mxu0 0
      %3350 = vmatpush1.bf16.msra.mxu0 0
      %3351 = vmatprep.subr.bf16.mxu0 0
      %3352 = vmatpush1.bf16.msra.mxu0 0
      %3353 = vmatprep.subr.bf16.mxu0 0
      %3354 = vmatpush1.bf16.msra.mxu0 0
      %3355 = vmatprep.subr.bf16.mxu0 0
      %3356 = vmatpush1.bf16.msra.mxu0 0
      %3357 = vmatprep.mubr.bf16.mxu0 0
      %3358 = vmatmul.mubr.bf16.gmra.mrb[0].mxu0 %v3317
      %v3359 = vpop.f32.mrb[0].mxu0
      %v3360 = vadd.f32 %v3305, %v3359
      %v3361 = vpop.f32.mrb[0].mxu0
      %v3362 = vpop.f32.mrb[0].mxu0
      %v3363 = vadd.f32 %v3305, %v3362
      %v3364 = vpop.f32.mrb[0].mxu0
      %3365 = vmatprep.mubr.bf16.mxu0 0
      %3366 = vmatmul.mubr.bf16.gmra.mrb[0].mxu0 %v3320
      %v3367 = vpop.f32.mrb[0].mxu0
      %v3368 = vadd.f32 %v3305, %v3367
      %v3369 = vpop.f32.mrb[0].mxu0
      %v3370 = vpop.f32.mrb[0].mxu0
      %v3371 = vpop.f32.mrb[0].mxu0
      %3372 = vdwg.mxu0
      %vm3373 = vcmask 23552
      %3374 = vst.msk [vmem:[%s831] sm:$0xff] %vm3373, %v3360
      %3375 = vst.msk [vmem:[%s831 + $0x8] sm:$0xff] %vm3373, %v3363
      %vm3376 = vcmask 20480
      %3377 = vst.msk [vmem:[%s831 + $0x10] sm:$0x1f] %vm3376, %v3368
      %p3378 = scmp.lt.s32.totalorder %s38, 1
      %s3379 = scalar_select %p3378, %s38, 1
      %s3380 = smul.addr %s3379, 3
      %s3381 = smul.addr %s3380, 8
      %s3382 = scalar_lea.vmem %s24, %s3381
      %p3383 = scmp.lt.s32.totalorder %s38, 1
      %s3384 = scalar_select %p3383, %s38, 1
      %s3385 = smul.addr %s3384, 3
      %s3386 = smul.addr %s3385, 8
      %s3387 = scalar_lea.vmem %s25, %s3386
      %p3388 = scmp.lt.s32.totalorder %s38, 1
      %s3389 = scalar_select %p3388, %s38, 1
      %s3390 = smul.addr %s3389, 3
      %s3391 = smul.addr %s3390, 8
      %s3392 = scalar_lea.vmem %s26, %s3391
      // Predicated region
      $region117: #{tapor_forward.5} parent=115 // pred_check
        %p3393 = pneg %p570
      $region118: #{tapor_forward.5} parent=115 // pred_check_branch
        %3395 = sbr.rel (%p3393) target = $region120
      $region119: #{tapor_forward.5} parent=115 // pred_region
        _
      $region120: #{tapor_forward.5} parent=115 // pred_fallthru
        _
      // Predicated region
      $region121: #{tapor_forward.5} parent=115 // pred_check
        %p3396 = pneg %p596
      $region122: #{tapor_forward.5} parent=115 // pred_check_branch
        %3398 = sbr.rel (%p3396) target = $region124
      $region123: #{tapor_forward.5} parent=115 // pred_region
        _
      $region124: #{tapor_forward.5} parent=115 // pred_fallthru
        _
      // Predicated region
      $region125: #{tapor_forward.5} parent=115 // pred_check
        %p3399 = pneg %p622
      $region126: #{tapor_forward.5} parent=115 // pred_check_branch
        %3401 = sbr.rel (%p3399) target = $region128
      $region127: #{tapor_forward.5} parent=115 // pred_region
        _
      $region128: #{tapor_forward.5} parent=115 // pred_fallthru
        _
    $region116: #{tapor_forward.5} parent=5 // pred_fallthru
      _
    %p3402 = scmp.le.s32.totalorder 2, %s33
    // Predicated region
    $region129: #{tapor_forward.5} parent=5 // pred_check
      %p3403 = pneg %p3402
    $region130: #{tapor_forward.5} parent=5 // pred_check_branch
      %3405 = sbr.rel (%p3403) target = $region132
    $region131: #{tapor_forward.5} parent=5 // pred_region
      %s3406 = ssub.s32 %s33, 2
      // Predicated region
      $region133: #{tapor_forward.5} parent=131 // pred_check
        %p3407 = pneg %p576
      $region134: #{tapor_forward.5} parent=131 // pred_check_branch
        %3409 = sbr.rel (%p3407) target = $region136
      $region135: #{tapor_forward.5} parent=131 // pred_region
        %p3410 = scmp.lt.s32.totalorder %s39, 1
        %s3411 = scalar_select %p3410, %s39, 1
        %s3412 = smul.addr %s3411, 3
        %s3413 = smul.addr %s3412, 8
        %s3414 = scalar_lea.vmem %s24, %s3413
      $region136: #{tapor_forward.5} parent=131 // pred_fallthru
        _
      // Predicated region
      $region137: #{tapor_forward.5} parent=131 // pred_check
        %p3415 = pneg %p602
      $region138: #{tapor_forward.5} parent=131 // pred_check_branch
        %3417 = sbr.rel (%p3415) target = $region140
      $region139: #{tapor_forward.5} parent=131 // pred_region
        %p3418 = scmp.lt.s32.totalorder %s39, 1
        %s3419 = scalar_select %p3418, %s39, 1
        %s3420 = smul.addr %s3419, 3
        %s3421 = smul.addr %s3420, 8
        %s3422 = scalar_lea.vmem %s25, %s3421
      $region140: #{tapor_forward.5} parent=131 // pred_fallthru
        _
      // Predicated region
      $region141: #{tapor_forward.5} parent=131 // pred_check
        %p3423 = pneg %p628
      $region142: #{tapor_forward.5} parent=131 // pred_check_branch
        %3425 = sbr.rel (%p3423) target = $region144
      $region143: #{tapor_forward.5} parent=131 // pred_region
        %p3426 = scmp.lt.s32.totalorder %s39, 1
        %s3427 = scalar_select %p3426, %s39, 1
        %s3428 = smul.addr %s3427, 3
        %s3429 = smul.addr %s3428, 8
        %s3430 = scalar_lea.vmem %s26, %s3429
      $region144: #{tapor_forward.5} parent=131 // pred_fallthru
        _
    $region132: #{tapor_forward.5} parent=5 // pred_fallthru
      _
  $region6: #{tapor_forward.5} parent=0 // loop_footer
    %s37 = sadd.s32 1, %s33
  $region7: #{tapor_forward.5} parent=0 // loop_footer_branch
    %32 = sbr.rel target = $region3
  $region8: #{tapor_forward.5} parent=0 // loop_exit
    _

</llo_original>
